<compile_context>
chip_gen: v5e
topology: v5e:2x2
jax: 0.10.0
libtpu: 0.0.40
codegen_flags: <defaults>
</compile_context>

<pallas_src>
import numpy as np
import jax
import jax.numpy as jnp
from jax.experimental import pallas as pl
from jax.experimental.pallas import tpu as pltpu

STEMB_DIM = 768
CBEMB_DIM = 384
CBOUT_DIM = 32
PRF_DIM = 51
PRF_PAD = 128          # final layer zero-padded 51 -> 128 for lane-dense stores
HIDDEN_DIM = 256
BN_EPS = 1e-5

VEC_PACK_WIDTH = 512   # widest bias vector; all small vectors packed into one array

# Order in which _forward_math consumes the packed bias / folded-BN vectors.
VEC_WIDTHS = (
    256, 32,                 # isomerism_encoder biases: Linear(384,256), Linear(256,32)
    512, 256, 256,           # backbone Linear biases: 800->512, 512->256, 256->256
) + (256,) * 12 + (          # 2x ResidualBlock: bn1(scale,shift), fc1 b, bn2(scale,shift), fc2 b
    256,                     # backbone final Linear(256,256) bias
    128, 128, 128, 64,       # head Linear biases
    PRF_PAD,                 # final Linear bias, zero-padded 51 -> 128
)


def _round_up(x, m):
    return (x + m - 1) // m * m


# ---------------------------------------------------------------------------
# math helpers (shared by the Pallas kernel and the pure-JAX reference)
# ---------------------------------------------------------------------------

# XLA f32 erf (Cephes rational approximation) -- mul/add/clamp on the VPU, one reciprocal.
_ERF_ALPHA = (-2.72614225801306e-10, 2.77068142495902e-08, -2.10102402082508e-06,
              -5.69250639462346e-05, -7.34990630326855e-04, -2.95459980854025e-03,
              -1.60960333262415e-02)
_ERF_BETA = (-1.45660718464996e-05, -2.13374055278905e-04, -1.68282697438203e-03,
             -7.37332916720468e-03, -1.42647390514189e-02)


def _recip(x, in_kernel):
    if in_kernel:
        # EUP slot (otherwise idle) instead of a VALU divide
        return pl.reciprocal(x, approx=True)
    return 1.0 / x


def _erf(x, in_kernel):
    x = jnp.clip(x, -4.0, 4.0)
    x2 = x * x
    p = x2 * _ERF_ALPHA[0] + _ERF_ALPHA[1]
    for c in _ERF_ALPHA[2:]:
        p = p * x2 + c
    q = x2 * _ERF_BETA[0] + _ERF_BETA[1]
    for c in _ERF_BETA[2:]:
        q = q * x2 + c
    return x * p * _recip(q, in_kernel)


def _gelu(x, in_kernel):
    # exact (erf-based) GELU, matching torch.nn.GELU() default
    return 0.5 * x * (1.0 + _erf(x * 0.7071067811865476, in_kernel))


def _matmul(a, b):
    # b (weight) is bf16; feed the MXU its native dtype, accumulate in f32.
    return jnp.dot(a.astype(b.dtype), b, preferred_element_type=jnp.float32)


def _unpack_vecs(packed):
    """Static slices of the packed (rows, 512) vector-parameter array.

    Works both on a VMEM Ref (inside the kernel) and on a plain jnp array (reference).
    """
    return [packed[r:r + 1, 0:w] for r, w in enumerate(VEC_WIDTHS)]


def _forward_math(stemb, cbemb, weights, vecs, *, in_kernel):
    """Full SigmaProfileGenerator forward on plain arrays (traced inside the kernel)."""
    wit = iter(weights)
    vit = iter(vecs)

    def W():
        return next(wit)

    def V():
        return next(vit)

    # --- isomerism_encoder: Linear(384,256) -> GELU -> Linear(256,32)
    h = _gelu(_matmul(cbemb, W()) + V(), in_kernel)
    conf = _matmul(h, W()) + V()

    # --- backbone
    # torch.cat([STemb, conf], dim=1) @ W1 == STemb @ W1[:768] + conf @ W1[768:]
    x = _gelu(_matmul(stemb, W()) + _matmul(conf, W()) + V(), in_kernel)   # 800 -> 512
    x = _gelu(_matmul(x, W()) + V(), in_kernel)                            # 512 -> 256
    x = _gelu(_matmul(x, W()) + V(), in_kernel)                            # 256 -> hidden

    for _ in range(2):  # two ResidualBlocks, each followed by a GELU
        s1 = V(); t1 = V()
        fw1 = W(); fb1 = V()
        s2 = V(); t2 = V()
        fw2 = W(); fb2 = V()
        out = _matmul(_gelu(x * s1 + t1, in_kernel), fw1) + fb1            # BN->GELU->fc1
        out = _matmul(_gelu(out * s2 + t2, in_kernel), fw2) + fb2          # BN->GELU->fc2
        x = _gelu(out + x, in_kernel)                                      # +identity, GELU

    x = _gelu(_matmul(x, W()) + V(), in_kernel)                            # hidden -> hidden

    # --- head (Dropout layers are identity at inference time)
    for _ in range(4):                                                     # 256->128->128->128->64
        x = _gelu(_matmul(x, W()) + V(), in_kernel)
    out = jnp.maximum(_matmul(x, W()) + V(), 0.0)                          # 64 -> 128 (51 + zero pad), ReLU

    # padded columns are exactly 0, so the row-sum equals the 51-wide sum
    area = jnp.sum(out, axis=1, keepdims=True)
    return out * _recip(area, in_kernel)


# ---------------------------------------------------------------------------
# Pallas kernel + wrapper
# ---------------------------------------------------------------------------

def sigma_profile_kernel(stemb_ref, cbemb_ref, vec_ref, *rest):
    out_ref = rest[-1]
    weights = [r[...] for r in rest[:-1]]
    vecs = _unpack_vecs(vec_ref)
    out_ref[...] = _forward_math(stemb_ref[...], cbemb_ref[...], weights, vecs,
                                 in_kernel=True)


def sigma_profile_forward(stemb, cbemb, weights, vec_packed, *, tile_b=256):
    B = stemb.shape[0]
    # big batch tile for MXU utilization; shrink for small B, pad remainder with zeros
    tb = min(tile_b, max(8, _round_up(B, 8)))
    Bp = _round_up(B, tb)
    if Bp != B:
        pad = Bp - B
        stemb = jnp.pad(stemb, ((0, pad), (0, 0)))
        cbemb = jnp.pad(cbemb, ((0, pad), (0, 0)))
    grid = (Bp // tb,)

    in_specs = (
        [pl.BlockSpec((tb, STEMB_DIM), lambda i: (i, 0)),
         pl.BlockSpec((tb, CBEMB_DIM), lambda i: (i, 0)),
         # packed biases / folded-BN vectors: whole array, grid-invariant
         pl.BlockSpec(vec_packed.shape, lambda i: (0, 0))]
        # bf16 weight matrices: whole array, grid-invariant
        # TODO(synk): pipeline_mode=pl.Buffered(1) would drop the redundant second
        # buffer for these grid-invariant blocks; left at the default for portability.
        + [pl.BlockSpec(w.shape, lambda i: (0, 0)) for w in weights]
    )
    out_spec = pl.BlockSpec((tb, PRF_PAD), lambda i: (i, 0))

    out = pl.pallas_call(
        sigma_profile_kernel,
        out_shape=jax.ShapeDtypeStruct((Bp, PRF_PAD), jnp.float32),
        grid=grid,
        in_specs=in_specs,
        out_specs=out_spec,
        compiler_params=pltpu.CompilerParams(
            dimension_semantics=("parallel",),
            vmem_limit_bytes=32 * 1024 * 1024,   # actual need ~10 MiB; headroom on v7x's 64 MiB
        ),
    )(stemb, cbemb, vec_packed, *weights)

    return out[:B, :PRF_DIM]


# ---------------------------------------------------------------------------
# deterministic parameter initialization (mirrors nn.Linear / BatchNorm1d shapes)
# ---------------------------------------------------------------------------

def init_params(key):
    keys = iter(jax.random.split(key, 64))
    weights = []      # 2-D matrices, [in, out], cast to bf16 at the end
    vec_rows = []     # 1-D f32 vectors, packed into one array at the end

    def add_vec(v):
        vec_rows.append(jnp.ravel(v).astype(jnp.float32))

    def linear(fan_in, fan_out):
        kw, kb = jax.random.split(next(keys))
        bound = 1.0 / float(np.sqrt(fan_in))
        w = jax.random.uniform(kw, (fan_in, fan_out), jnp.float32, -bound, bound)
        b = jax.random.uniform(kb, (fan_out,), jnp.float32, -bound, bound)
        return w, b

    def add_linear(fan_in, fan_out):
        w, b = linear(fan_in, fan_out)
        weights.append(w)
        add_vec(b)

    def add_bn_folded(n):
        # BatchNorm1d eval mode folded into scale/shift: y = x*scale + shift
        kg, kb, km, kv = jax.random.split(next(keys), 4)
        gamma = 1.0 + 0.1 * jax.random.normal(kg, (n,), jnp.float32)
        beta = 0.1 * jax.random.normal(kb, (n,), jnp.float32)
        mean = 0.1 * jax.random.normal(km, (n,), jnp.float32)
        var = 1.0 + 0.5 * jax.random.uniform(kv, (n,), jnp.float32)
        scale = gamma * jax.lax.rsqrt(var + BN_EPS)
        shift = beta - mean * scale
        add_vec(scale)
        add_vec(shift)

    # isomerism_encoder
    add_linear(CBEMB_DIM, 256)
    add_linear(256, CBOUT_DIM)

    # backbone (first Linear split for the concat-as-split-matmul)
    w1, b1 = linear(STEMB_DIM + CBOUT_DIM, 512)
    weights.append(w1[:STEMB_DIM])
    weights.append(w1[STEMB_DIM:])
    add_vec(b1)
    add_linear(512, 256)
    add_linear(256, HIDDEN_DIM)

    for _ in range(2):  # ResidualBlocks
        add_bn_folded(HIDDEN_DIM)
        add_linear(HIDDEN_DIM, HIDDEN_DIM)   # fc1
        add_bn_folded(HIDDEN_DIM)
        add_linear(HIDDEN_DIM, HIDDEN_DIM)   # fc2

    add_linear(HIDDEN_DIM, HIDDEN_DIM)

    # head
    for fi, fo in ((HIDDEN_DIM, 128), (128, 128), (128, 128), (128, 64)):
        add_linear(fi, fo)

    # final Linear 64->51, zero-padded to 64->128 (lane-dense output; pads stay 0 after ReLU)
    w, b = linear(64, PRF_DIM)
    w = jnp.pad(w, ((0, 0), (0, PRF_PAD - PRF_DIM)))
    b = jnp.pad(b, (0, PRF_PAD - PRF_DIM))
    weights.append(w)
    add_vec(b)

    # pack all small vectors into one (rows, 512) f32 array
    assert tuple(int(v.shape[0]) for v in vec_rows) == VEC_WIDTHS
    n_rows = _round_up(len(vec_rows), 8)
    packed = np.zeros((n_rows, VEC_PACK_WIDTH), np.float32)
    for r, v in enumerate(vec_rows):
        packed[r, :v.shape[0]] = np.asarray(v)
    vec_packed = jnp.asarray(packed)

    weights = [w.astype(jnp.bfloat16) for w in weights]
    return weights, vec_packed


if __name__ == "__main__":
    key = jax.random.PRNGKey(0)
    k_inp, k_par = jax.random.split(key)
    k_st, k_cb = jax.random.split(k_inp)

    B = 8
    stemb = jax.random.normal(k_st, (B, STEMB_DIM), jnp.float32)
    cbemb = jax.random.normal(k_cb, (B, CBEMB_DIM), jnp.float32)
    weights, vec_packed = init_params(k_par)

    prf = sigma_profile_forward(stemb, cbemb, weights, vec_packed)
    prf = jax.block_until_ready(prf)

    # pure-JAX reference: identical math / dtypes, exact divisions instead of approx rcp
    vecs = _unpack_vecs(vec_packed)
    ref = _forward_math(stemb, cbemb, weights, vecs, in_kernel=False)[:, :PRF_DIM]
    ref = jax.block_until_ready(ref)

    assert prf.shape == (B, PRF_DIM)
    assert bool(jnp.all(jnp.isfinite(prf)))
    np.testing.assert_allclose(np.asarray(prf), np.asarray(ref), rtol=5e-2, atol=5e-3)
    # rows of prf sum to ~1 by construction (approx reciprocal -> small slack)
    np.testing.assert_allclose(np.asarray(prf).sum(axis=1), np.ones(B), rtol=2e-2, atol=2e-2)

    print("KERNEL_OK")
</pallas_src>

<mosaic_0001>
module attributes {stable_mosaic.version = 11 : i64} {
  func.func @sigma_profile_kernel(%arg0: i32, %arg1: memref<8x768xf32, #tpu.memory_space<vmem>>, %arg2: memref<8x384xf32, #tpu.memory_space<vmem>>, %arg3: memref<24x512xf32, #tpu.memory_space<vmem>>, %arg4: memref<384x256xbf16, #tpu.memory_space<vmem>>, %arg5: memref<256x32xbf16, #tpu.memory_space<vmem>>, %arg6: memref<768x512xbf16, #tpu.memory_space<vmem>>, %arg7: memref<32x512xbf16, #tpu.memory_space<vmem>>, %arg8: memref<512x256xbf16, #tpu.memory_space<vmem>>, %arg9: memref<256x256xbf16, #tpu.memory_space<vmem>>, %arg10: memref<256x256xbf16, #tpu.memory_space<vmem>>, %arg11: memref<256x256xbf16, #tpu.memory_space<vmem>>, %arg12: memref<256x256xbf16, #tpu.memory_space<vmem>>, %arg13: memref<256x256xbf16, #tpu.memory_space<vmem>>, %arg14: memref<256x256xbf16, #tpu.memory_space<vmem>>, %arg15: memref<256x128xbf16, #tpu.memory_space<vmem>>, %arg16: memref<128x128xbf16, #tpu.memory_space<vmem>>, %arg17: memref<128x128xbf16, #tpu.memory_space<vmem>>, %arg18: memref<128x64xbf16, #tpu.memory_space<vmem>>, %arg19: memref<64x128xbf16, #tpu.memory_space<vmem>>, %arg20: memref<8x128xf32, #tpu.memory_space<vmem>>) attributes {dimension_semantics = [#tpu.dimension_semantics<parallel>], iteration_bounds = array<i64: 1>, scalar_prefetch = 0 : i64, scratch_operands = 0 : i64, tpu.core_type = #tpu.core_type<tc>, window_params = [{transform_indices = @transform_0, window_bounds = array<i64: 8, 768>}, {transform_indices = @transform_1, window_bounds = array<i64: 8, 384>}, {pipeline_mode = #tpu.pipeline_mode<synchronous>, transform_indices = @transform_2, window_bounds = array<i64: 24, 512>}, {pipeline_mode = #tpu.pipeline_mode<synchronous>, transform_indices = @transform_3, window_bounds = array<i64: 384, 256>}, {pipeline_mode = #tpu.pipeline_mode<synchronous>, transform_indices = @transform_4, window_bounds = array<i64: 256, 32>}, {pipeline_mode = #tpu.pipeline_mode<synchronous>, transform_indices = @transform_5, window_bounds = array<i64: 768, 512>}, {pipeline_mode = #tpu.pipeline_mode<synchronous>, transform_indices = @transform_6, window_bounds = array<i64: 32, 512>}, {pipeline_mode = #tpu.pipeline_mode<synchronous>, transform_indices = @transform_7, window_bounds = array<i64: 512, 256>}, {pipeline_mode = #tpu.pipeline_mode<synchronous>, transform_indices = @transform_8, window_bounds = array<i64: 256, 256>}, {pipeline_mode = #tpu.pipeline_mode<synchronous>, transform_indices = @transform_9, window_bounds = array<i64: 256, 256>}, {pipeline_mode = #tpu.pipeline_mode<synchronous>, transform_indices = @transform_10, window_bounds = array<i64: 256, 256>}, {pipeline_mode = #tpu.pipeline_mode<synchronous>, transform_indices = @transform_11, window_bounds = array<i64: 256, 256>}, {pipeline_mode = #tpu.pipeline_mode<synchronous>, transform_indices = @transform_12, window_bounds = array<i64: 256, 256>}, {pipeline_mode = #tpu.pipeline_mode<synchronous>, transform_indices = @transform_13, window_bounds = array<i64: 256, 256>}, {pipeline_mode = #tpu.pipeline_mode<synchronous>, transform_indices = @transform_14, window_bounds = array<i64: 256, 128>}, {pipeline_mode = #tpu.pipeline_mode<synchronous>, transform_indices = @transform_15, window_bounds = array<i64: 128, 128>}, {pipeline_mode = #tpu.pipeline_mode<synchronous>, transform_indices = @transform_16, window_bounds = array<i64: 128, 128>}, {pipeline_mode = #tpu.pipeline_mode<synchronous>, transform_indices = @transform_17, window_bounds = array<i64: 128, 64>}, {pipeline_mode = #tpu.pipeline_mode<synchronous>, transform_indices = @transform_18, window_bounds = array<i64: 64, 128>}, {transform_indices = @transform_19, window_bounds = array<i64: 8, 128>}]} {
    %c0 = arith.constant 0 : index
    %c0_0 = arith.constant 0 : index
    %0 = vector.load %arg4[%c0, %c0_0] : memref<384x256xbf16, #tpu.memory_space<vmem>>, vector<384x256xbf16>
    %c0_1 = arith.constant 0 : index
    %c0_2 = arith.constant 0 : index
    %1 = vector.load %arg5[%c0_1, %c0_2] : memref<256x32xbf16, #tpu.memory_space<vmem>>, vector<256x32xbf16>
    %c0_3 = arith.constant 0 : index
    %c0_4 = arith.constant 0 : index
    %2 = vector.load %arg6[%c0_3, %c0_4] : memref<768x512xbf16, #tpu.memory_space<vmem>>, vector<768x512xbf16>
    %c0_5 = arith.constant 0 : index
    %c0_6 = arith.constant 0 : index
    %3 = vector.load %arg7[%c0_5, %c0_6] : memref<32x512xbf16, #tpu.memory_space<vmem>>, vector<32x512xbf16>
    %c0_7 = arith.constant 0 : index
    %c0_8 = arith.constant 0 : index
    %4 = vector.load %arg8[%c0_7, %c0_8] : memref<512x256xbf16, #tpu.memory_space<vmem>>, vector<512x256xbf16>
    %c0_9 = arith.constant 0 : index
    %c0_10 = arith.constant 0 : index
    %5 = vector.load %arg9[%c0_9, %c0_10] : memref<256x256xbf16, #tpu.memory_space<vmem>>, vector<256x256xbf16>
    %c0_11 = arith.constant 0 : index
    %c0_12 = arith.constant 0 : index
    %6 = vector.load %arg10[%c0_11, %c0_12] : memref<256x256xbf16, #tpu.memory_space<vmem>>, vector<256x256xbf16>
    %c0_13 = arith.constant 0 : index
    %c0_14 = arith.constant 0 : index
    %7 = vector.load %arg11[%c0_13, %c0_14] : memref<256x256xbf16, #tpu.memory_space<vmem>>, vector<256x256xbf16>
    %c0_15 = arith.constant 0 : index
    %c0_16 = arith.constant 0 : index
    %8 = vector.load %arg12[%c0_15, %c0_16] : memref<256x256xbf16, #tpu.memory_space<vmem>>, vector<256x256xbf16>
    %c0_17 = arith.constant 0 : index
    %c0_18 = arith.constant 0 : index
    %9 = vector.load %arg13[%c0_17, %c0_18] : memref<256x256xbf16, #tpu.memory_space<vmem>>, vector<256x256xbf16>
    %c0_19 = arith.constant 0 : index
    %c0_20 = arith.constant 0 : index
    %10 = vector.load %arg14[%c0_19, %c0_20] : memref<256x256xbf16, #tpu.memory_space<vmem>>, vector<256x256xbf16>
    %c0_21 = arith.constant 0 : index
    %c0_22 = arith.constant 0 : index
    %11 = vector.load %arg15[%c0_21, %c0_22] : memref<256x128xbf16, #tpu.memory_space<vmem>>, vector<256x128xbf16>
    %c0_23 = arith.constant 0 : index
    %c0_24 = arith.constant 0 : index
    %12 = vector.load %arg16[%c0_23, %c0_24] : memref<128x128xbf16, #tpu.memory_space<vmem>>, vector<128x128xbf16>
    %c0_25 = arith.constant 0 : index
    %c0_26 = arith.constant 0 : index
    %13 = vector.load %arg17[%c0_25, %c0_26] : memref<128x128xbf16, #tpu.memory_space<vmem>>, vector<128x128xbf16>
    %c0_27 = arith.constant 0 : index
    %c0_28 = arith.constant 0 : index
    %14 = vector.load %arg18[%c0_27, %c0_28] : memref<128x64xbf16, #tpu.memory_space<vmem>>, vector<128x64xbf16>
    %c0_29 = arith.constant 0 : index
    %c0_30 = arith.constant 0 : index
    %15 = vector.load %arg19[%c0_29, %c0_30] : memref<64x128xbf16, #tpu.memory_space<vmem>>, vector<64x128xbf16>
    %c0_31 = arith.constant 0 : index
    %c0_32 = arith.constant 0 : index
    %16 = vector.load %arg3[%c0_31, %c0_32] : memref<24x512xf32, #tpu.memory_space<vmem>>, vector<1x256xf32>
    %c1 = arith.constant 1 : index
    %c0_33 = arith.constant 0 : index
    %17 = vector.load %arg3[%c1, %c0_33] : memref<24x512xf32, #tpu.memory_space<vmem>>, vector<1x32xf32>
    %c2 = arith.constant 2 : index
    %c0_34 = arith.constant 0 : index
    %18 = vector.load %arg3[%c2, %c0_34] : memref<24x512xf32, #tpu.memory_space<vmem>>, vector<1x512xf32>
    %c3 = arith.constant 3 : index
    %c0_35 = arith.constant 0 : index
    %19 = vector.load %arg3[%c3, %c0_35] : memref<24x512xf32, #tpu.memory_space<vmem>>, vector<1x256xf32>
    %c4 = arith.constant 4 : index
    %c0_36 = arith.constant 0 : index
    %20 = vector.load %arg3[%c4, %c0_36] : memref<24x512xf32, #tpu.memory_space<vmem>>, vector<1x256xf32>
    %c5 = arith.constant 5 : index
    %c0_37 = arith.constant 0 : index
    %21 = vector.load %arg3[%c5, %c0_37] : memref<24x512xf32, #tpu.memory_space<vmem>>, vector<1x256xf32>
    %c6 = arith.constant 6 : index
    %c0_38 = arith.constant 0 : index
    %22 = vector.load %arg3[%c6, %c0_38] : memref<24x512xf32, #tpu.memory_space<vmem>>, vector<1x256xf32>
    %c7 = arith.constant 7 : index
    %c0_39 = arith.constant 0 : index
    %23 = vector.load %arg3[%c7, %c0_39] : memref<24x512xf32, #tpu.memory_space<vmem>>, vector<1x256xf32>
    %c8 = arith.constant 8 : index
    %c0_40 = arith.constant 0 : index
    %24 = vector.load %arg3[%c8, %c0_40] : memref<24x512xf32, #tpu.memory_space<vmem>>, vector<1x256xf32>
    %c9 = arith.constant 9 : index
    %c0_41 = arith.constant 0 : index
    %25 = vector.load %arg3[%c9, %c0_41] : memref<24x512xf32, #tpu.memory_space<vmem>>, vector<1x256xf32>
    %c10 = arith.constant 10 : index
    %c0_42 = arith.constant 0 : index
    %26 = vector.load %arg3[%c10, %c0_42] : memref<24x512xf32, #tpu.memory_space<vmem>>, vector<1x256xf32>
    %c11 = arith.constant 11 : index
    %c0_43 = arith.constant 0 : index
    %27 = vector.load %arg3[%c11, %c0_43] : memref<24x512xf32, #tpu.memory_space<vmem>>, vector<1x256xf32>
    %c12 = arith.constant 12 : index
    %c0_44 = arith.constant 0 : index
    %28 = vector.load %arg3[%c12, %c0_44] : memref<24x512xf32, #tpu.memory_space<vmem>>, vector<1x256xf32>
    %c13 = arith.constant 13 : index
    %c0_45 = arith.constant 0 : index
    %29 = vector.load %arg3[%c13, %c0_45] : memref<24x512xf32, #tpu.memory_space<vmem>>, vector<1x256xf32>
    %c14 = arith.constant 14 : index
    %c0_46 = arith.constant 0 : index
    %30 = vector.load %arg3[%c14, %c0_46] : memref<24x512xf32, #tpu.memory_space<vmem>>, vector<1x256xf32>
    %c15 = arith.constant 15 : index
    %c0_47 = arith.constant 0 : index
    %31 = vector.load %arg3[%c15, %c0_47] : memref<24x512xf32, #tpu.memory_space<vmem>>, vector<1x256xf32>
    %c16 = arith.constant 16 : index
    %c0_48 = arith.constant 0 : index
    %32 = vector.load %arg3[%c16, %c0_48] : memref<24x512xf32, #tpu.memory_space<vmem>>, vector<1x256xf32>
    %c17 = arith.constant 17 : index
    %c0_49 = arith.constant 0 : index
    %33 = vector.load %arg3[%c17, %c0_49] : memref<24x512xf32, #tpu.memory_space<vmem>>, vector<1x256xf32>
    %c18 = arith.constant 18 : index
    %c0_50 = arith.constant 0 : index
    %34 = vector.load %arg3[%c18, %c0_50] : memref<24x512xf32, #tpu.memory_space<vmem>>, vector<1x128xf32>
    %c19 = arith.constant 19 : index
    %c0_51 = arith.constant 0 : index
    %35 = vector.load %arg3[%c19, %c0_51] : memref<24x512xf32, #tpu.memory_space<vmem>>, vector<1x128xf32>
    %c20 = arith.constant 20 : index
    %c0_52 = arith.constant 0 : index
    %36 = vector.load %arg3[%c20, %c0_52] : memref<24x512xf32, #tpu.memory_space<vmem>>, vector<1x128xf32>
    %c21 = arith.constant 21 : index
    %c0_53 = arith.constant 0 : index
    %37 = vector.load %arg3[%c21, %c0_53] : memref<24x512xf32, #tpu.memory_space<vmem>>, vector<1x64xf32>
    %c22 = arith.constant 22 : index
    %c0_54 = arith.constant 0 : index
    %38 = vector.load %arg3[%c22, %c0_54] : memref<24x512xf32, #tpu.memory_space<vmem>>, vector<1x128xf32>
    %c0_55 = arith.constant 0 : index
    %c0_56 = arith.constant 0 : index
    %39 = vector.load %arg1[%c0_55, %c0_56] : memref<8x768xf32, #tpu.memory_space<vmem>>, vector<8x768xf32>
    %c0_57 = arith.constant 0 : index
    %c0_58 = arith.constant 0 : index
    %40 = vector.load %arg2[%c0_57, %c0_58] : memref<8x384xf32, #tpu.memory_space<vmem>>, vector<8x384xf32>
    %41 = arith.truncf %40 : vector<8x384xf32> to vector<8x384xbf16>
    %cst = arith.constant dense<0.000000e+00> : vector<8x256xf32>
    %42 = tpu.matmul %41, %0, %cst {dimension_numbers = #tpu.dot_dimension_numbers<[1], [0], [0], [1], [0, 0, 1, 1], [], []>} : vector<8x384xbf16>, vector<384x256xbf16>, vector<8x256xf32> -> vector<8x256xf32>
    %43 = vector.broadcast %16 : vector<1x256xf32> to vector<8x256xf32>
    %44 = arith.addf %42, %43 : vector<8x256xf32>
    %cst_59 = arith.constant 5.000000e-01 : f32
    %45 = vector.broadcast %cst_59 : f32 to vector<8x256xf32>
    %46 = arith.mulf %45, %44 : vector<8x256xf32>
    %cst_60 = arith.constant 0.707106769 : f32
    %47 = vector.broadcast %cst_60 : f32 to vector<8x256xf32>
    %48 = arith.mulf %44, %47 : vector<8x256xf32>
    %cst_61 = arith.constant -4.000000e+00 : f32
    %cst_62 = arith.constant 4.000000e+00 : f32
    %49 = vector.broadcast %cst_61 : f32 to vector<8x256xf32>
    %50 = arith.maximumf %49, %48 : vector<8x256xf32>
    %51 = vector.broadcast %cst_62 : f32 to vector<8x256xf32>
    %52 = arith.minimumf %51, %50 : vector<8x256xf32>
    %53 = arith.mulf %52, %52 : vector<8x256xf32>
    %cst_63 = arith.constant -2.72614237E-10 : f32
    %54 = vector.broadcast %cst_63 : f32 to vector<8x256xf32>
    %55 = arith.mulf %53, %54 : vector<8x256xf32>
    %cst_64 = arith.constant 2.77068146E-8 : f32
    %56 = vector.broadcast %cst_64 : f32 to vector<8x256xf32>
    %57 = arith.addf %55, %56 : vector<8x256xf32>
    %58 = arith.mulf %57, %53 : vector<8x256xf32>
    %cst_65 = arith.constant -2.10102394E-6 : f32
    %59 = vector.broadcast %cst_65 : f32 to vector<8x256xf32>
    %60 = arith.addf %58, %59 : vector<8x256xf32>
    %61 = arith.mulf %60, %53 : vector<8x256xf32>
    %cst_66 = arith.constant -5.69250624E-5 : f32
    %62 = vector.broadcast %cst_66 : f32 to vector<8x256xf32>
    %63 = arith.addf %61, %62 : vector<8x256xf32>
    %64 = arith.mulf %63, %53 : vector<8x256xf32>
    %cst_67 = arith.constant -7.34990637E-4 : f32
    %65 = vector.broadcast %cst_67 : f32 to vector<8x256xf32>
    %66 = arith.addf %64, %65 : vector<8x256xf32>
    %67 = arith.mulf %66, %53 : vector<8x256xf32>
    %cst_68 = arith.constant -2.954600e-03 : f32
    %68 = vector.broadcast %cst_68 : f32 to vector<8x256xf32>
    %69 = arith.addf %67, %68 : vector<8x256xf32>
    %70 = arith.mulf %69, %53 : vector<8x256xf32>
    %cst_69 = arith.constant -0.0160960332 : f32
    %71 = vector.broadcast %cst_69 : f32 to vector<8x256xf32>
    %72 = arith.addf %70, %71 : vector<8x256xf32>
    %cst_70 = arith.constant -1.45660715E-5 : f32
    %73 = vector.broadcast %cst_70 : f32 to vector<8x256xf32>
    %74 = arith.mulf %53, %73 : vector<8x256xf32>
    %cst_71 = arith.constant -2.13374049E-4 : f32
    %75 = vector.broadcast %cst_71 : f32 to vector<8x256xf32>
    %76 = arith.addf %74, %75 : vector<8x256xf32>
    %77 = arith.mulf %76, %53 : vector<8x256xf32>
    %cst_72 = arith.constant -0.00168282702 : f32
    %78 = vector.broadcast %cst_72 : f32 to vector<8x256xf32>
    %79 = arith.addf %77, %78 : vector<8x256xf32>
    %80 = arith.mulf %79, %53 : vector<8x256xf32>
    %cst_73 = arith.constant -0.00737332925 : f32
    %81 = vector.broadcast %cst_73 : f32 to vector<8x256xf32>
    %82 = arith.addf %80, %81 : vector<8x256xf32>
    %83 = arith.mulf %82, %53 : vector<8x256xf32>
    %cst_74 = arith.constant -0.0142647391 : f32
    %84 = vector.broadcast %cst_74 : f32 to vector<8x256xf32>
    %85 = arith.addf %83, %84 : vector<8x256xf32>
    %86 = arith.mulf %52, %72 : vector<8x256xf32>
    %87 = tpu.reciprocal %85 {approx = true} : vector<8x256xf32> -> vector<8x256xf32>
    %88 = arith.mulf %86, %87 : vector<8x256xf32>
    %cst_75 = arith.constant 1.000000e+00 : f32
    %89 = vector.broadcast %cst_75 : f32 to vector<8x256xf32>
    %90 = arith.addf %89, %88 : vector<8x256xf32>
    %91 = arith.mulf %46, %90 : vector<8x256xf32>
    %92 = arith.truncf %91 : vector<8x256xf32> to vector<8x256xbf16>
    %cst_76 = arith.constant dense<0.000000e+00> : vector<8x32xf32>
    %93 = tpu.matmul %92, %1, %cst_76 {dimension_numbers = #tpu.dot_dimension_numbers<[1], [0], [0], [1], [0, 0, 1, 1], [], []>} : vector<8x256xbf16>, vector<256x32xbf16>, vector<8x32xf32> -> vector<8x32xf32>
    %94 = vector.broadcast %17 : vector<1x32xf32> to vector<8x32xf32>
    %95 = arith.addf %93, %94 : vector<8x32xf32>
    %96 = arith.truncf %39 : vector<8x768xf32> to vector<8x768xbf16>
    %cst_77 = arith.constant dense<0.000000e+00> : vector<8x512xf32>
    %97 = tpu.matmul %96, %2, %cst_77 {dimension_numbers = #tpu.dot_dimension_numbers<[1], [0], [0], [1], [0, 0, 1, 1], [], []>} : vector<8x768xbf16>, vector<768x512xbf16>, vector<8x512xf32> -> vector<8x512xf32>
    %98 = arith.truncf %95 : vector<8x32xf32> to vector<8x32xbf16>
    %cst_78 = arith.constant dense<0.000000e+00> : vector<8x512xf32>
    %99 = tpu.matmul %98, %3, %cst_78 {dimension_numbers = #tpu.dot_dimension_numbers<[1], [0], [0], [1], [0, 0, 1, 1], [], []>} : vector<8x32xbf16>, vector<32x512xbf16>, vector<8x512xf32> -> vector<8x512xf32>
    %100 = arith.addf %97, %99 : vector<8x512xf32>
    %101 = vector.broadcast %18 : vector<1x512xf32> to vector<8x512xf32>
    %102 = arith.addf %100, %101 : vector<8x512xf32>
    %cst_79 = arith.constant 5.000000e-01 : f32
    %103 = vector.broadcast %cst_79 : f32 to vector<8x512xf32>
    %104 = arith.mulf %103, %102 : vector<8x512xf32>
    %cst_80 = arith.constant 0.707106769 : f32
    %105 = vector.broadcast %cst_80 : f32 to vector<8x512xf32>
    %106 = arith.mulf %102, %105 : vector<8x512xf32>
    %cst_81 = arith.constant -4.000000e+00 : f32
    %cst_82 = arith.constant 4.000000e+00 : f32
    %107 = vector.broadcast %cst_81 : f32 to vector<8x512xf32>
    %108 = arith.maximumf %107, %106 : vector<8x512xf32>
    %109 = vector.broadcast %cst_82 : f32 to vector<8x512xf32>
    %110 = arith.minimumf %109, %108 : vector<8x512xf32>
    %111 = arith.mulf %110, %110 : vector<8x512xf32>
    %cst_83 = arith.constant -2.72614237E-10 : f32
    %112 = vector.broadcast %cst_83 : f32 to vector<8x512xf32>
    %113 = arith.mulf %111, %112 : vector<8x512xf32>
    %cst_84 = arith.constant 2.77068146E-8 : f32
    %114 = vector.broadcast %cst_84 : f32 to vector<8x512xf32>
    %115 = arith.addf %113, %114 : vector<8x512xf32>
    %116 = arith.mulf %115, %111 : vector<8x512xf32>
    %cst_85 = arith.constant -2.10102394E-6 : f32
    %117 = vector.broadcast %cst_85 : f32 to vector<8x512xf32>
    %118 = arith.addf %116, %117 : vector<8x512xf32>
    %119 = arith.mulf %118, %111 : vector<8x512xf32>
    %cst_86 = arith.constant -5.69250624E-5 : f32
    %120 = vector.broadcast %cst_86 : f32 to vector<8x512xf32>
    %121 = arith.addf %119, %120 : vector<8x512xf32>
    %122 = arith.mulf %121, %111 : vector<8x512xf32>
    %cst_87 = arith.constant -7.34990637E-4 : f32
    %123 = vector.broadcast %cst_87 : f32 to vector<8x512xf32>
    %124 = arith.addf %122, %123 : vector<8x512xf32>
    %125 = arith.mulf %124, %111 : vector<8x512xf32>
    %cst_88 = arith.constant -2.954600e-03 : f32
    %126 = vector.broadcast %cst_88 : f32 to vector<8x512xf32>
    %127 = arith.addf %125, %126 : vector<8x512xf32>
    %128 = arith.mulf %127, %111 : vector<8x512xf32>
    %cst_89 = arith.constant -0.0160960332 : f32
    %129 = vector.broadcast %cst_89 : f32 to vector<8x512xf32>
    %130 = arith.addf %128, %129 : vector<8x512xf32>
    %cst_90 = arith.constant -1.45660715E-5 : f32
    %131 = vector.broadcast %cst_90 : f32 to vector<8x512xf32>
    %132 = arith.mulf %111, %131 : vector<8x512xf32>
    %cst_91 = arith.constant -2.13374049E-4 : f32
    %133 = vector.broadcast %cst_91 : f32 to vector<8x512xf32>
    %134 = arith.addf %132, %133 : vector<8x512xf32>
    %135 = arith.mulf %134, %111 : vector<8x512xf32>
    %cst_92 = arith.constant -0.00168282702 : f32
    %136 = vector.broadcast %cst_92 : f32 to vector<8x512xf32>
    %137 = arith.addf %135, %136 : vector<8x512xf32>
    %138 = arith.mulf %137, %111 : vector<8x512xf32>
    %cst_93 = arith.constant -0.00737332925 : f32
    %139 = vector.broadcast %cst_93 : f32 to vector<8x512xf32>
    %140 = arith.addf %138, %139 : vector<8x512xf32>
    %141 = arith.mulf %140, %111 : vector<8x512xf32>
    %cst_94 = arith.constant -0.0142647391 : f32
    %142 = vector.broadcast %cst_94 : f32 to vector<8x512xf32>
    %143 = arith.addf %141, %142 : vector<8x512xf32>
    %144 = arith.mulf %110, %130 : vector<8x512xf32>
    %145 = tpu.reciprocal %143 {approx = true} : vector<8x512xf32> -> vector<8x512xf32>
    %146 = arith.mulf %144, %145 : vector<8x512xf32>
    %cst_95 = arith.constant 1.000000e+00 : f32
    %147 = vector.broadcast %cst_95 : f32 to vector<8x512xf32>
    %148 = arith.addf %147, %146 : vector<8x512xf32>
    %149 = arith.mulf %104, %148 : vector<8x512xf32>
    %150 = arith.truncf %149 : vector<8x512xf32> to vector<8x512xbf16>
    %cst_96 = arith.constant dense<0.000000e+00> : vector<8x256xf32>
    %151 = tpu.matmul %150, %4, %cst_96 {dimension_numbers = #tpu.dot_dimension_numbers<[1], [0], [0], [1], [0, 0, 1, 1], [], []>} : vector<8x512xbf16>, vector<512x256xbf16>, vector<8x256xf32> -> vector<8x256xf32>
    %152 = vector.broadcast %19 : vector<1x256xf32> to vector<8x256xf32>
    %153 = arith.addf %151, %152 : vector<8x256xf32>
    %cst_97 = arith.constant 5.000000e-01 : f32
    %154 = vector.broadcast %cst_97 : f32 to vector<8x256xf32>
    %155 = arith.mulf %154, %153 : vector<8x256xf32>
    %cst_98 = arith.constant 0.707106769 : f32
    %156 = vector.broadcast %cst_98 : f32 to vector<8x256xf32>
    %157 = arith.mulf %153, %156 : vector<8x256xf32>
    %cst_99 = arith.constant -4.000000e+00 : f32
    %cst_100 = arith.constant 4.000000e+00 : f32
    %158 = vector.broadcast %cst_99 : f32 to vector<8x256xf32>
    %159 = arith.maximumf %158, %157 : vector<8x256xf32>
    %160 = vector.broadcast %cst_100 : f32 to vector<8x256xf32>
    %161 = arith.minimumf %160, %159 : vector<8x256xf32>
    %162 = arith.mulf %161, %161 : vector<8x256xf32>
    %cst_101 = arith.constant -2.72614237E-10 : f32
    %163 = vector.broadcast %cst_101 : f32 to vector<8x256xf32>
    %164 = arith.mulf %162, %163 : vector<8x256xf32>
    %cst_102 = arith.constant 2.77068146E-8 : f32
    %165 = vector.broadcast %cst_102 : f32 to vector<8x256xf32>
    %166 = arith.addf %164, %165 : vector<8x256xf32>
    %167 = arith.mulf %166, %162 : vector<8x256xf32>
    %cst_103 = arith.constant -2.10102394E-6 : f32
    %168 = vector.broadcast %cst_103 : f32 to vector<8x256xf32>
    %169 = arith.addf %167, %168 : vector<8x256xf32>
    %170 = arith.mulf %169, %162 : vector<8x256xf32>
    %cst_104 = arith.constant -5.69250624E-5 : f32
    %171 = vector.broadcast %cst_104 : f32 to vector<8x256xf32>
    %172 = arith.addf %170, %171 : vector<8x256xf32>
    %173 = arith.mulf %172, %162 : vector<8x256xf32>
    %cst_105 = arith.constant -7.34990637E-4 : f32
    %174 = vector.broadcast %cst_105 : f32 to vector<8x256xf32>
    %175 = arith.addf %173, %174 : vector<8x256xf32>
    %176 = arith.mulf %175, %162 : vector<8x256xf32>
    %cst_106 = arith.constant -2.954600e-03 : f32
    %177 = vector.broadcast %cst_106 : f32 to vector<8x256xf32>
    %178 = arith.addf %176, %177 : vector<8x256xf32>
    %179 = arith.mulf %178, %162 : vector<8x256xf32>
    %cst_107 = arith.constant -0.0160960332 : f32
    %180 = vector.broadcast %cst_107 : f32 to vector<8x256xf32>
    %181 = arith.addf %179, %180 : vector<8x256xf32>
    %cst_108 = arith.constant -1.45660715E-5 : f32
    %182 = vector.broadcast %cst_108 : f32 to vector<8x256xf32>
    %183 = arith.mulf %162, %182 : vector<8x256xf32>
    %cst_109 = arith.constant -2.13374049E-4 : f32
    %184 = vector.broadcast %cst_109 : f32 to vector<8x256xf32>
    %185 = arith.addf %183, %184 : vector<8x256xf32>
    %186 = arith.mulf %185, %162 : vector<8x256xf32>
    %cst_110 = arith.constant -0.00168282702 : f32
    %187 = vector.broadcast %cst_110 : f32 to vector<8x256xf32>
    %188 = arith.addf %186, %187 : vector<8x256xf32>
    %189 = arith.mulf %188, %162 : vector<8x256xf32>
    %cst_111 = arith.constant -0.00737332925 : f32
    %190 = vector.broadcast %cst_111 : f32 to vector<8x256xf32>
    %191 = arith.addf %189, %190 : vector<8x256xf32>
    %192 = arith.mulf %191, %162 : vector<8x256xf32>
    %cst_112 = arith.constant -0.0142647391 : f32
    %193 = vector.broadcast %cst_112 : f32 to vector<8x256xf32>
    %194 = arith.addf %192, %193 : vector<8x256xf32>
    %195 = arith.mulf %161, %181 : vector<8x256xf32>
    %196 = tpu.reciprocal %194 {approx = true} : vector<8x256xf32> -> vector<8x256xf32>
    %197 = arith.mulf %195, %196 : vector<8x256xf32>
    %cst_113 = arith.constant 1.000000e+00 : f32
    %198 = vector.broadcast %cst_113 : f32 to vector<8x256xf32>
    %199 = arith.addf %198, %197 : vector<8x256xf32>
    %200 = arith.mulf %155, %199 : vector<8x256xf32>
    %201 = arith.truncf %200 : vector<8x256xf32> to vector<8x256xbf16>
    %cst_114 = arith.constant dense<0.000000e+00> : vector<8x256xf32>
    %202 = tpu.matmul %201, %5, %cst_114 {dimension_numbers = #tpu.dot_dimension_numbers<[1], [0], [0], [1], [0, 0, 1, 1], [], []>} : vector<8x256xbf16>, vector<256x256xbf16>, vector<8x256xf32> -> vector<8x256xf32>
    %203 = vector.broadcast %20 : vector<1x256xf32> to vector<8x256xf32>
    %204 = arith.addf %202, %203 : vector<8x256xf32>
    %cst_115 = arith.constant 5.000000e-01 : f32
    %205 = vector.broadcast %cst_115 : f32 to vector<8x256xf32>
    %206 = arith.mulf %205, %204 : vector<8x256xf32>
    %cst_116 = arith.constant 0.707106769 : f32
    %207 = vector.broadcast %cst_116 : f32 to vector<8x256xf32>
    %208 = arith.mulf %204, %207 : vector<8x256xf32>
    %cst_117 = arith.constant -4.000000e+00 : f32
    %cst_118 = arith.constant 4.000000e+00 : f32
    %209 = vector.broadcast %cst_117 : f32 to vector<8x256xf32>
    %210 = arith.maximumf %209, %208 : vector<8x256xf32>
    %211 = vector.broadcast %cst_118 : f32 to vector<8x256xf32>
    %212 = arith.minimumf %211, %210 : vector<8x256xf32>
    %213 = arith.mulf %212, %212 : vector<8x256xf32>
    %cst_119 = arith.constant -2.72614237E-10 : f32
    %214 = vector.broadcast %cst_119 : f32 to vector<8x256xf32>
    %215 = arith.mulf %213, %214 : vector<8x256xf32>
    %cst_120 = arith.constant 2.77068146E-8 : f32
    %216 = vector.broadcast %cst_120 : f32 to vector<8x256xf32>
    %217 = arith.addf %215, %216 : vector<8x256xf32>
    %218 = arith.mulf %217, %213 : vector<8x256xf32>
    %cst_121 = arith.constant -2.10102394E-6 : f32
    %219 = vector.broadcast %cst_121 : f32 to vector<8x256xf32>
    %220 = arith.addf %218, %219 : vector<8x256xf32>
    %221 = arith.mulf %220, %213 : vector<8x256xf32>
    %cst_122 = arith.constant -5.69250624E-5 : f32
    %222 = vector.broadcast %cst_122 : f32 to vector<8x256xf32>
    %223 = arith.addf %221, %222 : vector<8x256xf32>
    %224 = arith.mulf %223, %213 : vector<8x256xf32>
    %cst_123 = arith.constant -7.34990637E-4 : f32
    %225 = vector.broadcast %cst_123 : f32 to vector<8x256xf32>
    %226 = arith.addf %224, %225 : vector<8x256xf32>
    %227 = arith.mulf %226, %213 : vector<8x256xf32>
    %cst_124 = arith.constant -2.954600e-03 : f32
    %228 = vector.broadcast %cst_124 : f32 to vector<8x256xf32>
    %229 = arith.addf %227, %228 : vector<8x256xf32>
    %230 = arith.mulf %229, %213 : vector<8x256xf32>
    %cst_125 = arith.constant -0.0160960332 : f32
    %231 = vector.broadcast %cst_125 : f32 to vector<8x256xf32>
    %232 = arith.addf %230, %231 : vector<8x256xf32>
    %cst_126 = arith.constant -1.45660715E-5 : f32
    %233 = vector.broadcast %cst_126 : f32 to vector<8x256xf32>
    %234 = arith.mulf %213, %233 : vector<8x256xf32>
    %cst_127 = arith.constant -2.13374049E-4 : f32
    %235 = vector.broadcast %cst_127 : f32 to vector<8x256xf32>
    %236 = arith.addf %234, %235 : vector<8x256xf32>
    %237 = arith.mulf %236, %213 : vector<8x256xf32>
    %cst_128 = arith.constant -0.00168282702 : f32
    %238 = vector.broadcast %cst_128 : f32 to vector<8x256xf32>
    %239 = arith.addf %237, %238 : vector<8x256xf32>
    %240 = arith.mulf %239, %213 : vector<8x256xf32>
    %cst_129 = arith.constant -0.00737332925 : f32
    %241 = vector.broadcast %cst_129 : f32 to vector<8x256xf32>
    %242 = arith.addf %240, %241 : vector<8x256xf32>
    %243 = arith.mulf %242, %213 : vector<8x256xf32>
    %cst_130 = arith.constant -0.0142647391 : f32
    %244 = vector.broadcast %cst_130 : f32 to vector<8x256xf32>
    %245 = arith.addf %243, %244 : vector<8x256xf32>
    %246 = arith.mulf %212, %232 : vector<8x256xf32>
    %247 = tpu.reciprocal %245 {approx = true} : vector<8x256xf32> -> vector<8x256xf32>
    %248 = arith.mulf %246, %247 : vector<8x256xf32>
    %cst_131 = arith.constant 1.000000e+00 : f32
    %249 = vector.broadcast %cst_131 : f32 to vector<8x256xf32>
    %250 = arith.addf %249, %248 : vector<8x256xf32>
    %251 = arith.mulf %206, %250 : vector<8x256xf32>
    %252 = vector.broadcast %21 : vector<1x256xf32> to vector<8x256xf32>
    %253 = arith.mulf %251, %252 : vector<8x256xf32>
    %254 = vector.broadcast %22 : vector<1x256xf32> to vector<8x256xf32>
    %255 = arith.addf %253, %254 : vector<8x256xf32>
    %cst_132 = arith.constant 5.000000e-01 : f32
    %256 = vector.broadcast %cst_132 : f32 to vector<8x256xf32>
    %257 = arith.mulf %256, %255 : vector<8x256xf32>
    %cst_133 = arith.constant 0.707106769 : f32
    %258 = vector.broadcast %cst_133 : f32 to vector<8x256xf32>
    %259 = arith.mulf %255, %258 : vector<8x256xf32>
    %cst_134 = arith.constant -4.000000e+00 : f32
    %cst_135 = arith.constant 4.000000e+00 : f32
    %260 = vector.broadcast %cst_134 : f32 to vector<8x256xf32>
    %261 = arith.maximumf %260, %259 : vector<8x256xf32>
    %262 = vector.broadcast %cst_135 : f32 to vector<8x256xf32>
    %263 = arith.minimumf %262, %261 : vector<8x256xf32>
    %264 = arith.mulf %263, %263 : vector<8x256xf32>
    %cst_136 = arith.constant -2.72614237E-10 : f32
    %265 = vector.broadcast %cst_136 : f32 to vector<8x256xf32>
    %266 = arith.mulf %264, %265 : vector<8x256xf32>
    %cst_137 = arith.constant 2.77068146E-8 : f32
    %267 = vector.broadcast %cst_137 : f32 to vector<8x256xf32>
    %268 = arith.addf %266, %267 : vector<8x256xf32>
    %269 = arith.mulf %268, %264 : vector<8x256xf32>
    %cst_138 = arith.constant -2.10102394E-6 : f32
    %270 = vector.broadcast %cst_138 : f32 to vector<8x256xf32>
    %271 = arith.addf %269, %270 : vector<8x256xf32>
    %272 = arith.mulf %271, %264 : vector<8x256xf32>
    %cst_139 = arith.constant -5.69250624E-5 : f32
    %273 = vector.broadcast %cst_139 : f32 to vector<8x256xf32>
    %274 = arith.addf %272, %273 : vector<8x256xf32>
    %275 = arith.mulf %274, %264 : vector<8x256xf32>
    %cst_140 = arith.constant -7.34990637E-4 : f32
    %276 = vector.broadcast %cst_140 : f32 to vector<8x256xf32>
    %277 = arith.addf %275, %276 : vector<8x256xf32>
    %278 = arith.mulf %277, %264 : vector<8x256xf32>
    %cst_141 = arith.constant -2.954600e-03 : f32
    %279 = vector.broadcast %cst_141 : f32 to vector<8x256xf32>
    %280 = arith.addf %278, %279 : vector<8x256xf32>
    %281 = arith.mulf %280, %264 : vector<8x256xf32>
    %cst_142 = arith.constant -0.0160960332 : f32
    %282 = vector.broadcast %cst_142 : f32 to vector<8x256xf32>
    %283 = arith.addf %281, %282 : vector<8x256xf32>
    %cst_143 = arith.constant -1.45660715E-5 : f32
    %284 = vector.broadcast %cst_143 : f32 to vector<8x256xf32>
    %285 = arith.mulf %264, %284 : vector<8x256xf32>
    %cst_144 = arith.constant -2.13374049E-4 : f32
    %286 = vector.broadcast %cst_144 : f32 to vector<8x256xf32>
    %287 = arith.addf %285, %286 : vector<8x256xf32>
    %288 = arith.mulf %287, %264 : vector<8x256xf32>
    %cst_145 = arith.constant -0.00168282702 : f32
    %289 = vector.broadcast %cst_145 : f32 to vector<8x256xf32>
    %290 = arith.addf %288, %289 : vector<8x256xf32>
    %291 = arith.mulf %290, %264 : vector<8x256xf32>
    %cst_146 = arith.constant -0.00737332925 : f32
    %292 = vector.broadcast %cst_146 : f32 to vector<8x256xf32>
    %293 = arith.addf %291, %292 : vector<8x256xf32>
    %294 = arith.mulf %293, %264 : vector<8x256xf32>
    %cst_147 = arith.constant -0.0142647391 : f32
    %295 = vector.broadcast %cst_147 : f32 to vector<8x256xf32>
    %296 = arith.addf %294, %295 : vector<8x256xf32>
    %297 = arith.mulf %263, %283 : vector<8x256xf32>
    %298 = tpu.reciprocal %296 {approx = true} : vector<8x256xf32> -> vector<8x256xf32>
    %299 = arith.mulf %297, %298 : vector<8x256xf32>
    %cst_148 = arith.constant 1.000000e+00 : f32
    %300 = vector.broadcast %cst_148 : f32 to vector<8x256xf32>
    %301 = arith.addf %300, %299 : vector<8x256xf32>
    %302 = arith.mulf %257, %301 : vector<8x256xf32>
    %303 = arith.truncf %302 : vector<8x256xf32> to vector<8x256xbf16>
    %cst_149 = arith.constant dense<0.000000e+00> : vector<8x256xf32>
    %304 = tpu.matmul %303, %6, %cst_149 {dimension_numbers = #tpu.dot_dimension_numbers<[1], [0], [0], [1], [0, 0, 1, 1], [], []>} : vector<8x256xbf16>, vector<256x256xbf16>, vector<8x256xf32> -> vector<8x256xf32>
    %305 = vector.broadcast %23 : vector<1x256xf32> to vector<8x256xf32>
    %306 = arith.addf %304, %305 : vector<8x256xf32>
    %307 = vector.broadcast %24 : vector<1x256xf32> to vector<8x256xf32>
    %308 = arith.mulf %306, %307 : vector<8x256xf32>
    %309 = vector.broadcast %25 : vector<1x256xf32> to vector<8x256xf32>
    %310 = arith.addf %308, %309 : vector<8x256xf32>
    %cst_150 = arith.constant 5.000000e-01 : f32
    %311 = vector.broadcast %cst_150 : f32 to vector<8x256xf32>
    %312 = arith.mulf %311, %310 : vector<8x256xf32>
    %cst_151 = arith.constant 0.707106769 : f32
    %313 = vector.broadcast %cst_151 : f32 to vector<8x256xf32>
    %314 = arith.mulf %310, %313 : vector<8x256xf32>
    %cst_152 = arith.constant -4.000000e+00 : f32
    %cst_153 = arith.constant 4.000000e+00 : f32
    %315 = vector.broadcast %cst_152 : f32 to vector<8x256xf32>
    %316 = arith.maximumf %315, %314 : vector<8x256xf32>
    %317 = vector.broadcast %cst_153 : f32 to vector<8x256xf32>
    %318 = arith.minimumf %317, %316 : vector<8x256xf32>
    %319 = arith.mulf %318, %318 : vector<8x256xf32>
    %cst_154 = arith.constant -2.72614237E-10 : f32
    %320 = vector.broadcast %cst_154 : f32 to vector<8x256xf32>
    %321 = arith.mulf %319, %320 : vector<8x256xf32>
    %cst_155 = arith.constant 2.77068146E-8 : f32
    %322 = vector.broadcast %cst_155 : f32 to vector<8x256xf32>
    %323 = arith.addf %321, %322 : vector<8x256xf32>
    %324 = arith.mulf %323, %319 : vector<8x256xf32>
    %cst_156 = arith.constant -2.10102394E-6 : f32
    %325 = vector.broadcast %cst_156 : f32 to vector<8x256xf32>
    %326 = arith.addf %324, %325 : vector<8x256xf32>
    %327 = arith.mulf %326, %319 : vector<8x256xf32>
    %cst_157 = arith.constant -5.69250624E-5 : f32
    %328 = vector.broadcast %cst_157 : f32 to vector<8x256xf32>
    %329 = arith.addf %327, %328 : vector<8x256xf32>
    %330 = arith.mulf %329, %319 : vector<8x256xf32>
    %cst_158 = arith.constant -7.34990637E-4 : f32
    %331 = vector.broadcast %cst_158 : f32 to vector<8x256xf32>
    %332 = arith.addf %330, %331 : vector<8x256xf32>
    %333 = arith.mulf %332, %319 : vector<8x256xf32>
    %cst_159 = arith.constant -2.954600e-03 : f32
    %334 = vector.broadcast %cst_159 : f32 to vector<8x256xf32>
    %335 = arith.addf %333, %334 : vector<8x256xf32>
    %336 = arith.mulf %335, %319 : vector<8x256xf32>
    %cst_160 = arith.constant -0.0160960332 : f32
    %337 = vector.broadcast %cst_160 : f32 to vector<8x256xf32>
    %338 = arith.addf %336, %337 : vector<8x256xf32>
    %cst_161 = arith.constant -1.45660715E-5 : f32
    %339 = vector.broadcast %cst_161 : f32 to vector<8x256xf32>
    %340 = arith.mulf %319, %339 : vector<8x256xf32>
    %cst_162 = arith.constant -2.13374049E-4 : f32
    %341 = vector.broadcast %cst_162 : f32 to vector<8x256xf32>
    %342 = arith.addf %340, %341 : vector<8x256xf32>
    %343 = arith.mulf %342, %319 : vector<8x256xf32>
    %cst_163 = arith.constant -0.00168282702 : f32
    %344 = vector.broadcast %cst_163 : f32 to vector<8x256xf32>
    %345 = arith.addf %343, %344 : vector<8x256xf32>
    %346 = arith.mulf %345, %319 : vector<8x256xf32>
    %cst_164 = arith.constant -0.00737332925 : f32
    %347 = vector.broadcast %cst_164 : f32 to vector<8x256xf32>
    %348 = arith.addf %346, %347 : vector<8x256xf32>
    %349 = arith.mulf %348, %319 : vector<8x256xf32>
    %cst_165 = arith.constant -0.0142647391 : f32
    %350 = vector.broadcast %cst_165 : f32 to vector<8x256xf32>
    %351 = arith.addf %349, %350 : vector<8x256xf32>
    %352 = arith.mulf %318, %338 : vector<8x256xf32>
    %353 = tpu.reciprocal %351 {approx = true} : vector<8x256xf32> -> vector<8x256xf32>
    %354 = arith.mulf %352, %353 : vector<8x256xf32>
    %cst_166 = arith.constant 1.000000e+00 : f32
    %355 = vector.broadcast %cst_166 : f32 to vector<8x256xf32>
    %356 = arith.addf %355, %354 : vector<8x256xf32>
    %357 = arith.mulf %312, %356 : vector<8x256xf32>
    %358 = arith.truncf %357 : vector<8x256xf32> to vector<8x256xbf16>
    %cst_167 = arith.constant dense<0.000000e+00> : vector<8x256xf32>
    %359 = tpu.matmul %358, %7, %cst_167 {dimension_numbers = #tpu.dot_dimension_numbers<[1], [0], [0], [1], [0, 0, 1, 1], [], []>} : vector<8x256xbf16>, vector<256x256xbf16>, vector<8x256xf32> -> vector<8x256xf32>
    %360 = vector.broadcast %26 : vector<1x256xf32> to vector<8x256xf32>
    %361 = arith.addf %359, %360 : vector<8x256xf32>
    %362 = arith.addf %361, %251 : vector<8x256xf32>
    %cst_168 = arith.constant 5.000000e-01 : f32
    %363 = vector.broadcast %cst_168 : f32 to vector<8x256xf32>
    %364 = arith.mulf %363, %362 : vector<8x256xf32>
    %cst_169 = arith.constant 0.707106769 : f32
    %365 = vector.broadcast %cst_169 : f32 to vector<8x256xf32>
    %366 = arith.mulf %362, %365 : vector<8x256xf32>
    %cst_170 = arith.constant -4.000000e+00 : f32
    %cst_171 = arith.constant 4.000000e+00 : f32
    %367 = vector.broadcast %cst_170 : f32 to vector<8x256xf32>
    %368 = arith.maximumf %367, %366 : vector<8x256xf32>
    %369 = vector.broadcast %cst_171 : f32 to vector<8x256xf32>
    %370 = arith.minimumf %369, %368 : vector<8x256xf32>
    %371 = arith.mulf %370, %370 : vector<8x256xf32>
    %cst_172 = arith.constant -2.72614237E-10 : f32
    %372 = vector.broadcast %cst_172 : f32 to vector<8x256xf32>
    %373 = arith.mulf %371, %372 : vector<8x256xf32>
    %cst_173 = arith.constant 2.77068146E-8 : f32
    %374 = vector.broadcast %cst_173 : f32 to vector<8x256xf32>
    %375 = arith.addf %373, %374 : vector<8x256xf32>
    %376 = arith.mulf %375, %371 : vector<8x256xf32>
    %cst_174 = arith.constant -2.10102394E-6 : f32
    %377 = vector.broadcast %cst_174 : f32 to vector<8x256xf32>
    %378 = arith.addf %376, %377 : vector<8x256xf32>
    %379 = arith.mulf %378, %371 : vector<8x256xf32>
    %cst_175 = arith.constant -5.69250624E-5 : f32
    %380 = vector.broadcast %cst_175 : f32 to vector<8x256xf32>
    %381 = arith.addf %379, %380 : vector<8x256xf32>
    %382 = arith.mulf %381, %371 : vector<8x256xf32>
    %cst_176 = arith.constant -7.34990637E-4 : f32
    %383 = vector.broadcast %cst_176 : f32 to vector<8x256xf32>
    %384 = arith.addf %382, %383 : vector<8x256xf32>
    %385 = arith.mulf %384, %371 : vector<8x256xf32>
    %cst_177 = arith.constant -2.954600e-03 : f32
    %386 = vector.broadcast %cst_177 : f32 to vector<8x256xf32>
    %387 = arith.addf %385, %386 : vector<8x256xf32>
    %388 = arith.mulf %387, %371 : vector<8x256xf32>
    %cst_178 = arith.constant -0.0160960332 : f32
    %389 = vector.broadcast %cst_178 : f32 to vector<8x256xf32>
    %390 = arith.addf %388, %389 : vector<8x256xf32>
    %cst_179 = arith.constant -1.45660715E-5 : f32
    %391 = vector.broadcast %cst_179 : f32 to vector<8x256xf32>
    %392 = arith.mulf %371, %391 : vector<8x256xf32>
    %cst_180 = arith.constant -2.13374049E-4 : f32
    %393 = vector.broadcast %cst_180 : f32 to vector<8x256xf32>
    %394 = arith.addf %392, %393 : vector<8x256xf32>
    %395 = arith.mulf %394, %371 : vector<8x256xf32>
    %cst_181 = arith.constant -0.00168282702 : f32
    %396 = vector.broadcast %cst_181 : f32 to vector<8x256xf32>
    %397 = arith.addf %395, %396 : vector<8x256xf32>
    %398 = arith.mulf %397, %371 : vector<8x256xf32>
    %cst_182 = arith.constant -0.00737332925 : f32
    %399 = vector.broadcast %cst_182 : f32 to vector<8x256xf32>
    %400 = arith.addf %398, %399 : vector<8x256xf32>
    %401 = arith.mulf %400, %371 : vector<8x256xf32>
    %cst_183 = arith.constant -0.0142647391 : f32
    %402 = vector.broadcast %cst_183 : f32 to vector<8x256xf32>
    %403 = arith.addf %401, %402 : vector<8x256xf32>
    %404 = arith.mulf %370, %390 : vector<8x256xf32>
    %405 = tpu.reciprocal %403 {approx = true} : vector<8x256xf32> -> vector<8x256xf32>
    %406 = arith.mulf %404, %405 : vector<8x256xf32>
    %cst_184 = arith.constant 1.000000e+00 : f32
    %407 = vector.broadcast %cst_184 : f32 to vector<8x256xf32>
    %408 = arith.addf %407, %406 : vector<8x256xf32>
    %409 = arith.mulf %364, %408 : vector<8x256xf32>
    %410 = vector.broadcast %27 : vector<1x256xf32> to vector<8x256xf32>
    %411 = arith.mulf %409, %410 : vector<8x256xf32>
    %412 = vector.broadcast %28 : vector<1x256xf32> to vector<8x256xf32>
    %413 = arith.addf %411, %412 : vector<8x256xf32>
    %cst_185 = arith.constant 5.000000e-01 : f32
    %414 = vector.broadcast %cst_185 : f32 to vector<8x256xf32>
    %415 = arith.mulf %414, %413 : vector<8x256xf32>
    %cst_186 = arith.constant 0.707106769 : f32
    %416 = vector.broadcast %cst_186 : f32 to vector<8x256xf32>
    %417 = arith.mulf %413, %416 : vector<8x256xf32>
    %cst_187 = arith.constant -4.000000e+00 : f32
    %cst_188 = arith.constant 4.000000e+00 : f32
    %418 = vector.broadcast %cst_187 : f32 to vector<8x256xf32>
    %419 = arith.maximumf %418, %417 : vector<8x256xf32>
    %420 = vector.broadcast %cst_188 : f32 to vector<8x256xf32>
    %421 = arith.minimumf %420, %419 : vector<8x256xf32>
    %422 = arith.mulf %421, %421 : vector<8x256xf32>
    %cst_189 = arith.constant -2.72614237E-10 : f32
    %423 = vector.broadcast %cst_189 : f32 to vector<8x256xf32>
    %424 = arith.mulf %422, %423 : vector<8x256xf32>
    %cst_190 = arith.constant 2.77068146E-8 : f32
    %425 = vector.broadcast %cst_190 : f32 to vector<8x256xf32>
    %426 = arith.addf %424, %425 : vector<8x256xf32>
    %427 = arith.mulf %426, %422 : vector<8x256xf32>
    %cst_191 = arith.constant -2.10102394E-6 : f32
    %428 = vector.broadcast %cst_191 : f32 to vector<8x256xf32>
    %429 = arith.addf %427, %428 : vector<8x256xf32>
    %430 = arith.mulf %429, %422 : vector<8x256xf32>
    %cst_192 = arith.constant -5.69250624E-5 : f32
    %431 = vector.broadcast %cst_192 : f32 to vector<8x256xf32>
    %432 = arith.addf %430, %431 : vector<8x256xf32>
    %433 = arith.mulf %432, %422 : vector<8x256xf32>
    %cst_193 = arith.constant -7.34990637E-4 : f32
    %434 = vector.broadcast %cst_193 : f32 to vector<8x256xf32>
    %435 = arith.addf %433, %434 : vector<8x256xf32>
    %436 = arith.mulf %435, %422 : vector<8x256xf32>
    %cst_194 = arith.constant -2.954600e-03 : f32
    %437 = vector.broadcast %cst_194 : f32 to vector<8x256xf32>
    %438 = arith.addf %436, %437 : vector<8x256xf32>
    %439 = arith.mulf %438, %422 : vector<8x256xf32>
    %cst_195 = arith.constant -0.0160960332 : f32
    %440 = vector.broadcast %cst_195 : f32 to vector<8x256xf32>
    %441 = arith.addf %439, %440 : vector<8x256xf32>
    %cst_196 = arith.constant -1.45660715E-5 : f32
    %442 = vector.broadcast %cst_196 : f32 to vector<8x256xf32>
    %443 = arith.mulf %422, %442 : vector<8x256xf32>
    %cst_197 = arith.constant -2.13374049E-4 : f32
    %444 = vector.broadcast %cst_197 : f32 to vector<8x256xf32>
    %445 = arith.addf %443, %444 : vector<8x256xf32>
    %446 = arith.mulf %445, %422 : vector<8x256xf32>
    %cst_198 = arith.constant -0.00168282702 : f32
    %447 = vector.broadcast %cst_198 : f32 to vector<8x256xf32>
    %448 = arith.addf %446, %447 : vector<8x256xf32>
    %449 = arith.mulf %448, %422 : vector<8x256xf32>
    %cst_199 = arith.constant -0.00737332925 : f32
    %450 = vector.broadcast %cst_199 : f32 to vector<8x256xf32>
    %451 = arith.addf %449, %450 : vector<8x256xf32>
    %452 = arith.mulf %451, %422 : vector<8x256xf32>
    %cst_200 = arith.constant -0.0142647391 : f32
    %453 = vector.broadcast %cst_200 : f32 to vector<8x256xf32>
    %454 = arith.addf %452, %453 : vector<8x256xf32>
    %455 = arith.mulf %421, %441 : vector<8x256xf32>
    %456 = tpu.reciprocal %454 {approx = true} : vector<8x256xf32> -> vector<8x256xf32>
    %457 = arith.mulf %455, %456 : vector<8x256xf32>
    %cst_201 = arith.constant 1.000000e+00 : f32
    %458 = vector.broadcast %cst_201 : f32 to vector<8x256xf32>
    %459 = arith.addf %458, %457 : vector<8x256xf32>
    %460 = arith.mulf %415, %459 : vector<8x256xf32>
    %461 = arith.truncf %460 : vector<8x256xf32> to vector<8x256xbf16>
    %cst_202 = arith.constant dense<0.000000e+00> : vector<8x256xf32>
    %462 = tpu.matmul %461, %8, %cst_202 {dimension_numbers = #tpu.dot_dimension_numbers<[1], [0], [0], [1], [0, 0, 1, 1], [], []>} : vector<8x256xbf16>, vector<256x256xbf16>, vector<8x256xf32> -> vector<8x256xf32>
    %463 = vector.broadcast %29 : vector<1x256xf32> to vector<8x256xf32>
    %464 = arith.addf %462, %463 : vector<8x256xf32>
    %465 = vector.broadcast %30 : vector<1x256xf32> to vector<8x256xf32>
    %466 = arith.mulf %464, %465 : vector<8x256xf32>
    %467 = vector.broadcast %31 : vector<1x256xf32> to vector<8x256xf32>
    %468 = arith.addf %466, %467 : vector<8x256xf32>
    %cst_203 = arith.constant 5.000000e-01 : f32
    %469 = vector.broadcast %cst_203 : f32 to vector<8x256xf32>
    %470 = arith.mulf %469, %468 : vector<8x256xf32>
    %cst_204 = arith.constant 0.707106769 : f32
    %471 = vector.broadcast %cst_204 : f32 to vector<8x256xf32>
    %472 = arith.mulf %468, %471 : vector<8x256xf32>
    %cst_205 = arith.constant -4.000000e+00 : f32
    %cst_206 = arith.constant 4.000000e+00 : f32
    %473 = vector.broadcast %cst_205 : f32 to vector<8x256xf32>
    %474 = arith.maximumf %473, %472 : vector<8x256xf32>
    %475 = vector.broadcast %cst_206 : f32 to vector<8x256xf32>
    %476 = arith.minimumf %475, %474 : vector<8x256xf32>
    %477 = arith.mulf %476, %476 : vector<8x256xf32>
    %cst_207 = arith.constant -2.72614237E-10 : f32
    %478 = vector.broadcast %cst_207 : f32 to vector<8x256xf32>
    %479 = arith.mulf %477, %478 : vector<8x256xf32>
    %cst_208 = arith.constant 2.77068146E-8 : f32
    %480 = vector.broadcast %cst_208 : f32 to vector<8x256xf32>
    %481 = arith.addf %479, %480 : vector<8x256xf32>
    %482 = arith.mulf %481, %477 : vector<8x256xf32>
    %cst_209 = arith.constant -2.10102394E-6 : f32
    %483 = vector.broadcast %cst_209 : f32 to vector<8x256xf32>
    %484 = arith.addf %482, %483 : vector<8x256xf32>
    %485 = arith.mulf %484, %477 : vector<8x256xf32>
    %cst_210 = arith.constant -5.69250624E-5 : f32
    %486 = vector.broadcast %cst_210 : f32 to vector<8x256xf32>
    %487 = arith.addf %485, %486 : vector<8x256xf32>
    %488 = arith.mulf %487, %477 : vector<8x256xf32>
    %cst_211 = arith.constant -7.34990637E-4 : f32
    %489 = vector.broadcast %cst_211 : f32 to vector<8x256xf32>
    %490 = arith.addf %488, %489 : vector<8x256xf32>
    %491 = arith.mulf %490, %477 : vector<8x256xf32>
    %cst_212 = arith.constant -2.954600e-03 : f32
    %492 = vector.broadcast %cst_212 : f32 to vector<8x256xf32>
    %493 = arith.addf %491, %492 : vector<8x256xf32>
    %494 = arith.mulf %493, %477 : vector<8x256xf32>
    %cst_213 = arith.constant -0.0160960332 : f32
    %495 = vector.broadcast %cst_213 : f32 to vector<8x256xf32>
    %496 = arith.addf %494, %495 : vector<8x256xf32>
    %cst_214 = arith.constant -1.45660715E-5 : f32
    %497 = vector.broadcast %cst_214 : f32 to vector<8x256xf32>
    %498 = arith.mulf %477, %497 : vector<8x256xf32>
    %cst_215 = arith.constant -2.13374049E-4 : f32
    %499 = vector.broadcast %cst_215 : f32 to vector<8x256xf32>
    %500 = arith.addf %498, %499 : vector<8x256xf32>
    %501 = arith.mulf %500, %477 : vector<8x256xf32>
    %cst_216 = arith.constant -0.00168282702 : f32
    %502 = vector.broadcast %cst_216 : f32 to vector<8x256xf32>
    %503 = arith.addf %501, %502 : vector<8x256xf32>
    %504 = arith.mulf %503, %477 : vector<8x256xf32>
    %cst_217 = arith.constant -0.00737332925 : f32
    %505 = vector.broadcast %cst_217 : f32 to vector<8x256xf32>
    %506 = arith.addf %504, %505 : vector<8x256xf32>
    %507 = arith.mulf %506, %477 : vector<8x256xf32>
    %cst_218 = arith.constant -0.0142647391 : f32
    %508 = vector.broadcast %cst_218 : f32 to vector<8x256xf32>
    %509 = arith.addf %507, %508 : vector<8x256xf32>
    %510 = arith.mulf %476, %496 : vector<8x256xf32>
    %511 = tpu.reciprocal %509 {approx = true} : vector<8x256xf32> -> vector<8x256xf32>
    %512 = arith.mulf %510, %511 : vector<8x256xf32>
    %cst_219 = arith.constant 1.000000e+00 : f32
    %513 = vector.broadcast %cst_219 : f32 to vector<8x256xf32>
    %514 = arith.addf %513, %512 : vector<8x256xf32>
    %515 = arith.mulf %470, %514 : vector<8x256xf32>
    %516 = arith.truncf %515 : vector<8x256xf32> to vector<8x256xbf16>
    %cst_220 = arith.constant dense<0.000000e+00> : vector<8x256xf32>
    %517 = tpu.matmul %516, %9, %cst_220 {dimension_numbers = #tpu.dot_dimension_numbers<[1], [0], [0], [1], [0, 0, 1, 1], [], []>} : vector<8x256xbf16>, vector<256x256xbf16>, vector<8x256xf32> -> vector<8x256xf32>
    %518 = vector.broadcast %32 : vector<1x256xf32> to vector<8x256xf32>
    %519 = arith.addf %517, %518 : vector<8x256xf32>
    %520 = arith.addf %519, %409 : vector<8x256xf32>
    %cst_221 = arith.constant 5.000000e-01 : f32
    %521 = vector.broadcast %cst_221 : f32 to vector<8x256xf32>
    %522 = arith.mulf %521, %520 : vector<8x256xf32>
    %cst_222 = arith.constant 0.707106769 : f32
    %523 = vector.broadcast %cst_222 : f32 to vector<8x256xf32>
    %524 = arith.mulf %520, %523 : vector<8x256xf32>
    %cst_223 = arith.constant -4.000000e+00 : f32
    %cst_224 = arith.constant 4.000000e+00 : f32
    %525 = vector.broadcast %cst_223 : f32 to vector<8x256xf32>
    %526 = arith.maximumf %525, %524 : vector<8x256xf32>
    %527 = vector.broadcast %cst_224 : f32 to vector<8x256xf32>
    %528 = arith.minimumf %527, %526 : vector<8x256xf32>
    %529 = arith.mulf %528, %528 : vector<8x256xf32>
    %cst_225 = arith.constant -2.72614237E-10 : f32
    %530 = vector.broadcast %cst_225 : f32 to vector<8x256xf32>
    %531 = arith.mulf %529, %530 : vector<8x256xf32>
    %cst_226 = arith.constant 2.77068146E-8 : f32
    %532 = vector.broadcast %cst_226 : f32 to vector<8x256xf32>
    %533 = arith.addf %531, %532 : vector<8x256xf32>
    %534 = arith.mulf %533, %529 : vector<8x256xf32>
    %cst_227 = arith.constant -2.10102394E-6 : f32
    %535 = vector.broadcast %cst_227 : f32 to vector<8x256xf32>
    %536 = arith.addf %534, %535 : vector<8x256xf32>
    %537 = arith.mulf %536, %529 : vector<8x256xf32>
    %cst_228 = arith.constant -5.69250624E-5 : f32
    %538 = vector.broadcast %cst_228 : f32 to vector<8x256xf32>
    %539 = arith.addf %537, %538 : vector<8x256xf32>
    %540 = arith.mulf %539, %529 : vector<8x256xf32>
    %cst_229 = arith.constant -7.34990637E-4 : f32
    %541 = vector.broadcast %cst_229 : f32 to vector<8x256xf32>
    %542 = arith.addf %540, %541 : vector<8x256xf32>
    %543 = arith.mulf %542, %529 : vector<8x256xf32>
    %cst_230 = arith.constant -2.954600e-03 : f32
    %544 = vector.broadcast %cst_230 : f32 to vector<8x256xf32>
    %545 = arith.addf %543, %544 : vector<8x256xf32>
    %546 = arith.mulf %545, %529 : vector<8x256xf32>
    %cst_231 = arith.constant -0.0160960332 : f32
    %547 = vector.broadcast %cst_231 : f32 to vector<8x256xf32>
    %548 = arith.addf %546, %547 : vector<8x256xf32>
    %cst_232 = arith.constant -1.45660715E-5 : f32
    %549 = vector.broadcast %cst_232 : f32 to vector<8x256xf32>
    %550 = arith.mulf %529, %549 : vector<8x256xf32>
    %cst_233 = arith.constant -2.13374049E-4 : f32
    %551 = vector.broadcast %cst_233 : f32 to vector<8x256xf32>
    %552 = arith.addf %550, %551 : vector<8x256xf32>
    %553 = arith.mulf %552, %529 : vector<8x256xf32>
    %cst_234 = arith.constant -0.00168282702 : f32
    %554 = vector.broadcast %cst_234 : f32 to vector<8x256xf32>
    %555 = arith.addf %553, %554 : vector<8x256xf32>
    %556 = arith.mulf %555, %529 : vector<8x256xf32>
    %cst_235 = arith.constant -0.00737332925 : f32
    %557 = vector.broadcast %cst_235 : f32 to vector<8x256xf32>
    %558 = arith.addf %556, %557 : vector<8x256xf32>
    %559 = arith.mulf %558, %529 : vector<8x256xf32>
    %cst_236 = arith.constant -0.0142647391 : f32
    %560 = vector.broadcast %cst_236 : f32 to vector<8x256xf32>
    %561 = arith.addf %559, %560 : vector<8x256xf32>
    %562 = arith.mulf %528, %548 : vector<8x256xf32>
    %563 = tpu.reciprocal %561 {approx = true} : vector<8x256xf32> -> vector<8x256xf32>
    %564 = arith.mulf %562, %563 : vector<8x256xf32>
    %cst_237 = arith.constant 1.000000e+00 : f32
    %565 = vector.broadcast %cst_237 : f32 to vector<8x256xf32>
    %566 = arith.addf %565, %564 : vector<8x256xf32>
    %567 = arith.mulf %522, %566 : vector<8x256xf32>
    %568 = arith.truncf %567 : vector<8x256xf32> to vector<8x256xbf16>
    %cst_238 = arith.constant dense<0.000000e+00> : vector<8x256xf32>
    %569 = tpu.matmul %568, %10, %cst_238 {dimension_numbers = #tpu.dot_dimension_numbers<[1], [0], [0], [1], [0, 0, 1, 1], [], []>} : vector<8x256xbf16>, vector<256x256xbf16>, vector<8x256xf32> -> vector<8x256xf32>
    %570 = vector.broadcast %33 : vector<1x256xf32> to vector<8x256xf32>
    %571 = arith.addf %569, %570 : vector<8x256xf32>
    %cst_239 = arith.constant 5.000000e-01 : f32
    %572 = vector.broadcast %cst_239 : f32 to vector<8x256xf32>
    %573 = arith.mulf %572, %571 : vector<8x256xf32>
    %cst_240 = arith.constant 0.707106769 : f32
    %574 = vector.broadcast %cst_240 : f32 to vector<8x256xf32>
    %575 = arith.mulf %571, %574 : vector<8x256xf32>
    %cst_241 = arith.constant -4.000000e+00 : f32
    %cst_242 = arith.constant 4.000000e+00 : f32
    %576 = vector.broadcast %cst_241 : f32 to vector<8x256xf32>
    %577 = arith.maximumf %576, %575 : vector<8x256xf32>
    %578 = vector.broadcast %cst_242 : f32 to vector<8x256xf32>
    %579 = arith.minimumf %578, %577 : vector<8x256xf32>
    %580 = arith.mulf %579, %579 : vector<8x256xf32>
    %cst_243 = arith.constant -2.72614237E-10 : f32
    %581 = vector.broadcast %cst_243 : f32 to vector<8x256xf32>
    %582 = arith.mulf %580, %581 : vector<8x256xf32>
    %cst_244 = arith.constant 2.77068146E-8 : f32
    %583 = vector.broadcast %cst_244 : f32 to vector<8x256xf32>
    %584 = arith.addf %582, %583 : vector<8x256xf32>
    %585 = arith.mulf %584, %580 : vector<8x256xf32>
    %cst_245 = arith.constant -2.10102394E-6 : f32
    %586 = vector.broadcast %cst_245 : f32 to vector<8x256xf32>
    %587 = arith.addf %585, %586 : vector<8x256xf32>
    %588 = arith.mulf %587, %580 : vector<8x256xf32>
    %cst_246 = arith.constant -5.69250624E-5 : f32
    %589 = vector.broadcast %cst_246 : f32 to vector<8x256xf32>
    %590 = arith.addf %588, %589 : vector<8x256xf32>
    %591 = arith.mulf %590, %580 : vector<8x256xf32>
    %cst_247 = arith.constant -7.34990637E-4 : f32
    %592 = vector.broadcast %cst_247 : f32 to vector<8x256xf32>
    %593 = arith.addf %591, %592 : vector<8x256xf32>
    %594 = arith.mulf %593, %580 : vector<8x256xf32>
    %cst_248 = arith.constant -2.954600e-03 : f32
    %595 = vector.broadcast %cst_248 : f32 to vector<8x256xf32>
    %596 = arith.addf %594, %595 : vector<8x256xf32>
    %597 = arith.mulf %596, %580 : vector<8x256xf32>
    %cst_249 = arith.constant -0.0160960332 : f32
    %598 = vector.broadcast %cst_249 : f32 to vector<8x256xf32>
    %599 = arith.addf %597, %598 : vector<8x256xf32>
    %cst_250 = arith.constant -1.45660715E-5 : f32
    %600 = vector.broadcast %cst_250 : f32 to vector<8x256xf32>
    %601 = arith.mulf %580, %600 : vector<8x256xf32>
    %cst_251 = arith.constant -2.13374049E-4 : f32
    %602 = vector.broadcast %cst_251 : f32 to vector<8x256xf32>
    %603 = arith.addf %601, %602 : vector<8x256xf32>
    %604 = arith.mulf %603, %580 : vector<8x256xf32>
    %cst_252 = arith.constant -0.00168282702 : f32
    %605 = vector.broadcast %cst_252 : f32 to vector<8x256xf32>
    %606 = arith.addf %604, %605 : vector<8x256xf32>
    %607 = arith.mulf %606, %580 : vector<8x256xf32>
    %cst_253 = arith.constant -0.00737332925 : f32
    %608 = vector.broadcast %cst_253 : f32 to vector<8x256xf32>
    %609 = arith.addf %607, %608 : vector<8x256xf32>
    %610 = arith.mulf %609, %580 : vector<8x256xf32>
    %cst_254 = arith.constant -0.0142647391 : f32
    %611 = vector.broadcast %cst_254 : f32 to vector<8x256xf32>
    %612 = arith.addf %610, %611 : vector<8x256xf32>
    %613 = arith.mulf %579, %599 : vector<8x256xf32>
    %614 = tpu.reciprocal %612 {approx = true} : vector<8x256xf32> -> vector<8x256xf32>
    %615 = arith.mulf %613, %614 : vector<8x256xf32>
    %cst_255 = arith.constant 1.000000e+00 : f32
    %616 = vector.broadcast %cst_255 : f32 to vector<8x256xf32>
    %617 = arith.addf %616, %615 : vector<8x256xf32>
    %618 = arith.mulf %573, %617 : vector<8x256xf32>
    %619 = arith.truncf %618 : vector<8x256xf32> to vector<8x256xbf16>
    %cst_256 = arith.constant dense<0.000000e+00> : vector<8x128xf32>
    %620 = tpu.matmul %619, %11, %cst_256 {dimension_numbers = #tpu.dot_dimension_numbers<[1], [0], [0], [1], [0, 0, 1, 1], [], []>} : vector<8x256xbf16>, vector<256x128xbf16>, vector<8x128xf32> -> vector<8x128xf32>
    %621 = vector.broadcast %34 : vector<1x128xf32> to vector<8x128xf32>
    %622 = arith.addf %620, %621 : vector<8x128xf32>
    %cst_257 = arith.constant 5.000000e-01 : f32
    %623 = vector.broadcast %cst_257 : f32 to vector<8x128xf32>
    %624 = arith.mulf %623, %622 : vector<8x128xf32>
    %cst_258 = arith.constant 0.707106769 : f32
    %625 = vector.broadcast %cst_258 : f32 to vector<8x128xf32>
    %626 = arith.mulf %622, %625 : vector<8x128xf32>
    %cst_259 = arith.constant -4.000000e+00 : f32
    %cst_260 = arith.constant 4.000000e+00 : f32
    %627 = vector.broadcast %cst_259 : f32 to vector<8x128xf32>
    %628 = arith.maximumf %627, %626 : vector<8x128xf32>
    %629 = vector.broadcast %cst_260 : f32 to vector<8x128xf32>
    %630 = arith.minimumf %629, %628 : vector<8x128xf32>
    %631 = arith.mulf %630, %630 : vector<8x128xf32>
    %cst_261 = arith.constant -2.72614237E-10 : f32
    %632 = vector.broadcast %cst_261 : f32 to vector<8x128xf32>
    %633 = arith.mulf %631, %632 : vector<8x128xf32>
    %cst_262 = arith.constant 2.77068146E-8 : f32
    %634 = vector.broadcast %cst_262 : f32 to vector<8x128xf32>
    %635 = arith.addf %633, %634 : vector<8x128xf32>
    %636 = arith.mulf %635, %631 : vector<8x128xf32>
    %cst_263 = arith.constant -2.10102394E-6 : f32
    %637 = vector.broadcast %cst_263 : f32 to vector<8x128xf32>
    %638 = arith.addf %636, %637 : vector<8x128xf32>
    %639 = arith.mulf %638, %631 : vector<8x128xf32>
    %cst_264 = arith.constant -5.69250624E-5 : f32
    %640 = vector.broadcast %cst_264 : f32 to vector<8x128xf32>
    %641 = arith.addf %639, %640 : vector<8x128xf32>
    %642 = arith.mulf %641, %631 : vector<8x128xf32>
    %cst_265 = arith.constant -7.34990637E-4 : f32
    %643 = vector.broadcast %cst_265 : f32 to vector<8x128xf32>
    %644 = arith.addf %642, %643 : vector<8x128xf32>
    %645 = arith.mulf %644, %631 : vector<8x128xf32>
    %cst_266 = arith.constant -2.954600e-03 : f32
    %646 = vector.broadcast %cst_266 : f32 to vector<8x128xf32>
    %647 = arith.addf %645, %646 : vector<8x128xf32>
    %648 = arith.mulf %647, %631 : vector<8x128xf32>
    %cst_267 = arith.constant -0.0160960332 : f32
    %649 = vector.broadcast %cst_267 : f32 to vector<8x128xf32>
    %650 = arith.addf %648, %649 : vector<8x128xf32>
    %cst_268 = arith.constant -1.45660715E-5 : f32
    %651 = vector.broadcast %cst_268 : f32 to vector<8x128xf32>
    %652 = arith.mulf %631, %651 : vector<8x128xf32>
    %cst_269 = arith.constant -2.13374049E-4 : f32
    %653 = vector.broadcast %cst_269 : f32 to vector<8x128xf32>
    %654 = arith.addf %652, %653 : vector<8x128xf32>
    %655 = arith.mulf %654, %631 : vector<8x128xf32>
    %cst_270 = arith.constant -0.00168282702 : f32
    %656 = vector.broadcast %cst_270 : f32 to vector<8x128xf32>
    %657 = arith.addf %655, %656 : vector<8x128xf32>
    %658 = arith.mulf %657, %631 : vector<8x128xf32>
    %cst_271 = arith.constant -0.00737332925 : f32
    %659 = vector.broadcast %cst_271 : f32 to vector<8x128xf32>
    %660 = arith.addf %658, %659 : vector<8x128xf32>
    %661 = arith.mulf %660, %631 : vector<8x128xf32>
    %cst_272 = arith.constant -0.0142647391 : f32
    %662 = vector.broadcast %cst_272 : f32 to vector<8x128xf32>
    %663 = arith.addf %661, %662 : vector<8x128xf32>
    %664 = arith.mulf %630, %650 : vector<8x128xf32>
    %665 = tpu.reciprocal %663 {approx = true} : vector<8x128xf32> -> vector<8x128xf32>
    %666 = arith.mulf %664, %665 : vector<8x128xf32>
    %cst_273 = arith.constant 1.000000e+00 : f32
    %667 = vector.broadcast %cst_273 : f32 to vector<8x128xf32>
    %668 = arith.addf %667, %666 : vector<8x128xf32>
    %669 = arith.mulf %624, %668 : vector<8x128xf32>
    %670 = arith.truncf %669 : vector<8x128xf32> to vector<8x128xbf16>
    %cst_274 = arith.constant dense<0.000000e+00> : vector<8x128xf32>
    %671 = tpu.matmul %670, %12, %cst_274 {dimension_numbers = #tpu.dot_dimension_numbers<[1], [0], [0], [1], [0, 0, 1, 1], [], []>} : vector<8x128xbf16>, vector<128x128xbf16>, vector<8x128xf32> -> vector<8x128xf32>
    %672 = vector.broadcast %35 : vector<1x128xf32> to vector<8x128xf32>
    %673 = arith.addf %671, %672 : vector<8x128xf32>
    %cst_275 = arith.constant 5.000000e-01 : f32
    %674 = vector.broadcast %cst_275 : f32 to vector<8x128xf32>
    %675 = arith.mulf %674, %673 : vector<8x128xf32>
    %cst_276 = arith.constant 0.707106769 : f32
    %676 = vector.broadcast %cst_276 : f32 to vector<8x128xf32>
    %677 = arith.mulf %673, %676 : vector<8x128xf32>
    %cst_277 = arith.constant -4.000000e+00 : f32
    %cst_278 = arith.constant 4.000000e+00 : f32
    %678 = vector.broadcast %cst_277 : f32 to vector<8x128xf32>
    %679 = arith.maximumf %678, %677 : vector<8x128xf32>
    %680 = vector.broadcast %cst_278 : f32 to vector<8x128xf32>
    %681 = arith.minimumf %680, %679 : vector<8x128xf32>
    %682 = arith.mulf %681, %681 : vector<8x128xf32>
    %cst_279 = arith.constant -2.72614237E-10 : f32
    %683 = vector.broadcast %cst_279 : f32 to vector<8x128xf32>
    %684 = arith.mulf %682, %683 : vector<8x128xf32>
    %cst_280 = arith.constant 2.77068146E-8 : f32
    %685 = vector.broadcast %cst_280 : f32 to vector<8x128xf32>
    %686 = arith.addf %684, %685 : vector<8x128xf32>
    %687 = arith.mulf %686, %682 : vector<8x128xf32>
    %cst_281 = arith.constant -2.10102394E-6 : f32
    %688 = vector.broadcast %cst_281 : f32 to vector<8x128xf32>
    %689 = arith.addf %687, %688 : vector<8x128xf32>
    %690 = arith.mulf %689, %682 : vector<8x128xf32>
    %cst_282 = arith.constant -5.69250624E-5 : f32
    %691 = vector.broadcast %cst_282 : f32 to vector<8x128xf32>
    %692 = arith.addf %690, %691 : vector<8x128xf32>
    %693 = arith.mulf %692, %682 : vector<8x128xf32>
    %cst_283 = arith.constant -7.34990637E-4 : f32
    %694 = vector.broadcast %cst_283 : f32 to vector<8x128xf32>
    %695 = arith.addf %693, %694 : vector<8x128xf32>
    %696 = arith.mulf %695, %682 : vector<8x128xf32>
    %cst_284 = arith.constant -2.954600e-03 : f32
    %697 = vector.broadcast %cst_284 : f32 to vector<8x128xf32>
    %698 = arith.addf %696, %697 : vector<8x128xf32>
    %699 = arith.mulf %698, %682 : vector<8x128xf32>
    %cst_285 = arith.constant -0.0160960332 : f32
    %700 = vector.broadcast %cst_285 : f32 to vector<8x128xf32>
    %701 = arith.addf %699, %700 : vector<8x128xf32>
    %cst_286 = arith.constant -1.45660715E-5 : f32
    %702 = vector.broadcast %cst_286 : f32 to vector<8x128xf32>
    %703 = arith.mulf %682, %702 : vector<8x128xf32>
    %cst_287 = arith.constant -2.13374049E-4 : f32
    %704 = vector.broadcast %cst_287 : f32 to vector<8x128xf32>
    %705 = arith.addf %703, %704 : vector<8x128xf32>
    %706 = arith.mulf %705, %682 : vector<8x128xf32>
    %cst_288 = arith.constant -0.00168282702 : f32
    %707 = vector.broadcast %cst_288 : f32 to vector<8x128xf32>
    %708 = arith.addf %706, %707 : vector<8x128xf32>
    %709 = arith.mulf %708, %682 : vector<8x128xf32>
    %cst_289 = arith.constant -0.00737332925 : f32
    %710 = vector.broadcast %cst_289 : f32 to vector<8x128xf32>
    %711 = arith.addf %709, %710 : vector<8x128xf32>
    %712 = arith.mulf %711, %682 : vector<8x128xf32>
    %cst_290 = arith.constant -0.0142647391 : f32
    %713 = vector.broadcast %cst_290 : f32 to vector<8x128xf32>
    %714 = arith.addf %712, %713 : vector<8x128xf32>
    %715 = arith.mulf %681, %701 : vector<8x128xf32>
    %716 = tpu.reciprocal %714 {approx = true} : vector<8x128xf32> -> vector<8x128xf32>
    %717 = arith.mulf %715, %716 : vector<8x128xf32>
    %cst_291 = arith.constant 1.000000e+00 : f32
    %718 = vector.broadcast %cst_291 : f32 to vector<8x128xf32>
    %719 = arith.addf %718, %717 : vector<8x128xf32>
    %720 = arith.mulf %675, %719 : vector<8x128xf32>
    %721 = arith.truncf %720 : vector<8x128xf32> to vector<8x128xbf16>
    %cst_292 = arith.constant dense<0.000000e+00> : vector<8x128xf32>
    %722 = tpu.matmul %721, %13, %cst_292 {dimension_numbers = #tpu.dot_dimension_numbers<[1], [0], [0], [1], [0, 0, 1, 1], [], []>} : vector<8x128xbf16>, vector<128x128xbf16>, vector<8x128xf32> -> vector<8x128xf32>
    %723 = vector.broadcast %36 : vector<1x128xf32> to vector<8x128xf32>
    %724 = arith.addf %722, %723 : vector<8x128xf32>
    %cst_293 = arith.constant 5.000000e-01 : f32
    %725 = vector.broadcast %cst_293 : f32 to vector<8x128xf32>
    %726 = arith.mulf %725, %724 : vector<8x128xf32>
    %cst_294 = arith.constant 0.707106769 : f32
    %727 = vector.broadcast %cst_294 : f32 to vector<8x128xf32>
    %728 = arith.mulf %724, %727 : vector<8x128xf32>
    %cst_295 = arith.constant -4.000000e+00 : f32
    %cst_296 = arith.constant 4.000000e+00 : f32
    %729 = vector.broadcast %cst_295 : f32 to vector<8x128xf32>
    %730 = arith.maximumf %729, %728 : vector<8x128xf32>
    %731 = vector.broadcast %cst_296 : f32 to vector<8x128xf32>
    %732 = arith.minimumf %731, %730 : vector<8x128xf32>
    %733 = arith.mulf %732, %732 : vector<8x128xf32>
    %cst_297 = arith.constant -2.72614237E-10 : f32
    %734 = vector.broadcast %cst_297 : f32 to vector<8x128xf32>
    %735 = arith.mulf %733, %734 : vector<8x128xf32>
    %cst_298 = arith.constant 2.77068146E-8 : f32
    %736 = vector.broadcast %cst_298 : f32 to vector<8x128xf32>
    %737 = arith.addf %735, %736 : vector<8x128xf32>
    %738 = arith.mulf %737, %733 : vector<8x128xf32>
    %cst_299 = arith.constant -2.10102394E-6 : f32
    %739 = vector.broadcast %cst_299 : f32 to vector<8x128xf32>
    %740 = arith.addf %738, %739 : vector<8x128xf32>
    %741 = arith.mulf %740, %733 : vector<8x128xf32>
    %cst_300 = arith.constant -5.69250624E-5 : f32
    %742 = vector.broadcast %cst_300 : f32 to vector<8x128xf32>
    %743 = arith.addf %741, %742 : vector<8x128xf32>
    %744 = arith.mulf %743, %733 : vector<8x128xf32>
    %cst_301 = arith.constant -7.34990637E-4 : f32
    %745 = vector.broadcast %cst_301 : f32 to vector<8x128xf32>
    %746 = arith.addf %744, %745 : vector<8x128xf32>
    %747 = arith.mulf %746, %733 : vector<8x128xf32>
    %cst_302 = arith.constant -2.954600e-03 : f32
    %748 = vector.broadcast %cst_302 : f32 to vector<8x128xf32>
    %749 = arith.addf %747, %748 : vector<8x128xf32>
    %750 = arith.mulf %749, %733 : vector<8x128xf32>
    %cst_303 = arith.constant -0.0160960332 : f32
    %751 = vector.broadcast %cst_303 : f32 to vector<8x128xf32>
    %752 = arith.addf %750, %751 : vector<8x128xf32>
    %cst_304 = arith.constant -1.45660715E-5 : f32
    %753 = vector.broadcast %cst_304 : f32 to vector<8x128xf32>
    %754 = arith.mulf %733, %753 : vector<8x128xf32>
    %cst_305 = arith.constant -2.13374049E-4 : f32
    %755 = vector.broadcast %cst_305 : f32 to vector<8x128xf32>
    %756 = arith.addf %754, %755 : vector<8x128xf32>
    %757 = arith.mulf %756, %733 : vector<8x128xf32>
    %cst_306 = arith.constant -0.00168282702 : f32
    %758 = vector.broadcast %cst_306 : f32 to vector<8x128xf32>
    %759 = arith.addf %757, %758 : vector<8x128xf32>
    %760 = arith.mulf %759, %733 : vector<8x128xf32>
    %cst_307 = arith.constant -0.00737332925 : f32
    %761 = vector.broadcast %cst_307 : f32 to vector<8x128xf32>
    %762 = arith.addf %760, %761 : vector<8x128xf32>
    %763 = arith.mulf %762, %733 : vector<8x128xf32>
    %cst_308 = arith.constant -0.0142647391 : f32
    %764 = vector.broadcast %cst_308 : f32 to vector<8x128xf32>
    %765 = arith.addf %763, %764 : vector<8x128xf32>
    %766 = arith.mulf %732, %752 : vector<8x128xf32>
    %767 = tpu.reciprocal %765 {approx = true} : vector<8x128xf32> -> vector<8x128xf32>
    %768 = arith.mulf %766, %767 : vector<8x128xf32>
    %cst_309 = arith.constant 1.000000e+00 : f32
    %769 = vector.broadcast %cst_309 : f32 to vector<8x128xf32>
    %770 = arith.addf %769, %768 : vector<8x128xf32>
    %771 = arith.mulf %726, %770 : vector<8x128xf32>
    %772 = arith.truncf %771 : vector<8x128xf32> to vector<8x128xbf16>
    %cst_310 = arith.constant dense<0.000000e+00> : vector<8x64xf32>
    %773 = tpu.matmul %772, %14, %cst_310 {dimension_numbers = #tpu.dot_dimension_numbers<[1], [0], [0], [1], [0, 0, 1, 1], [], []>} : vector<8x128xbf16>, vector<128x64xbf16>, vector<8x64xf32> -> vector<8x64xf32>
    %774 = vector.broadcast %37 : vector<1x64xf32> to vector<8x64xf32>
    %775 = arith.addf %773, %774 : vector<8x64xf32>
    %cst_311 = arith.constant 5.000000e-01 : f32
    %776 = vector.broadcast %cst_311 : f32 to vector<8x64xf32>
    %777 = arith.mulf %776, %775 : vector<8x64xf32>
    %cst_312 = arith.constant 0.707106769 : f32
    %778 = vector.broadcast %cst_312 : f32 to vector<8x64xf32>
    %779 = arith.mulf %775, %778 : vector<8x64xf32>
    %cst_313 = arith.constant -4.000000e+00 : f32
    %cst_314 = arith.constant 4.000000e+00 : f32
    %780 = vector.broadcast %cst_313 : f32 to vector<8x64xf32>
    %781 = arith.maximumf %780, %779 : vector<8x64xf32>
    %782 = vector.broadcast %cst_314 : f32 to vector<8x64xf32>
    %783 = arith.minimumf %782, %781 : vector<8x64xf32>
    %784 = arith.mulf %783, %783 : vector<8x64xf32>
    %cst_315 = arith.constant -2.72614237E-10 : f32
    %785 = vector.broadcast %cst_315 : f32 to vector<8x64xf32>
    %786 = arith.mulf %784, %785 : vector<8x64xf32>
    %cst_316 = arith.constant 2.77068146E-8 : f32
    %787 = vector.broadcast %cst_316 : f32 to vector<8x64xf32>
    %788 = arith.addf %786, %787 : vector<8x64xf32>
    %789 = arith.mulf %788, %784 : vector<8x64xf32>
    %cst_317 = arith.constant -2.10102394E-6 : f32
    %790 = vector.broadcast %cst_317 : f32 to vector<8x64xf32>
    %791 = arith.addf %789, %790 : vector<8x64xf32>
    %792 = arith.mulf %791, %784 : vector<8x64xf32>
    %cst_318 = arith.constant -5.69250624E-5 : f32
    %793 = vector.broadcast %cst_318 : f32 to vector<8x64xf32>
    %794 = arith.addf %792, %793 : vector<8x64xf32>
    %795 = arith.mulf %794, %784 : vector<8x64xf32>
    %cst_319 = arith.constant -7.34990637E-4 : f32
    %796 = vector.broadcast %cst_319 : f32 to vector<8x64xf32>
    %797 = arith.addf %795, %796 : vector<8x64xf32>
    %798 = arith.mulf %797, %784 : vector<8x64xf32>
    %cst_320 = arith.constant -2.954600e-03 : f32
    %799 = vector.broadcast %cst_320 : f32 to vector<8x64xf32>
    %800 = arith.addf %798, %799 : vector<8x64xf32>
    %801 = arith.mulf %800, %784 : vector<8x64xf32>
    %cst_321 = arith.constant -0.0160960332 : f32
    %802 = vector.broadcast %cst_321 : f32 to vector<8x64xf32>
    %803 = arith.addf %801, %802 : vector<8x64xf32>
    %cst_322 = arith.constant -1.45660715E-5 : f32
    %804 = vector.broadcast %cst_322 : f32 to vector<8x64xf32>
    %805 = arith.mulf %784, %804 : vector<8x64xf32>
    %cst_323 = arith.constant -2.13374049E-4 : f32
    %806 = vector.broadcast %cst_323 : f32 to vector<8x64xf32>
    %807 = arith.addf %805, %806 : vector<8x64xf32>
    %808 = arith.mulf %807, %784 : vector<8x64xf32>
    %cst_324 = arith.constant -0.00168282702 : f32
    %809 = vector.broadcast %cst_324 : f32 to vector<8x64xf32>
    %810 = arith.addf %808, %809 : vector<8x64xf32>
    %811 = arith.mulf %810, %784 : vector<8x64xf32>
    %cst_325 = arith.constant -0.00737332925 : f32
    %812 = vector.broadcast %cst_325 : f32 to vector<8x64xf32>
    %813 = arith.addf %811, %812 : vector<8x64xf32>
    %814 = arith.mulf %813, %784 : vector<8x64xf32>
    %cst_326 = arith.constant -0.0142647391 : f32
    %815 = vector.broadcast %cst_326 : f32 to vector<8x64xf32>
    %816 = arith.addf %814, %815 : vector<8x64xf32>
    %817 = arith.mulf %783, %803 : vector<8x64xf32>
    %818 = tpu.reciprocal %816 {approx = true} : vector<8x64xf32> -> vector<8x64xf32>
    %819 = arith.mulf %817, %818 : vector<8x64xf32>
    %cst_327 = arith.constant 1.000000e+00 : f32
    %820 = vector.broadcast %cst_327 : f32 to vector<8x64xf32>
    %821 = arith.addf %820, %819 : vector<8x64xf32>
    %822 = arith.mulf %777, %821 : vector<8x64xf32>
    %823 = arith.truncf %822 : vector<8x64xf32> to vector<8x64xbf16>
    %cst_328 = arith.constant dense<0.000000e+00> : vector<8x128xf32>
    %824 = tpu.matmul %823, %15, %cst_328 {dimension_numbers = #tpu.dot_dimension_numbers<[1], [0], [0], [1], [0, 0, 1, 1], [], []>} : vector<8x64xbf16>, vector<64x128xbf16>, vector<8x128xf32> -> vector<8x128xf32>
    %825 = vector.broadcast %38 : vector<1x128xf32> to vector<8x128xf32>
    %826 = arith.addf %824, %825 : vector<8x128xf32>
    %cst_329 = arith.constant 0.000000e+00 : f32
    %827 = vector.broadcast %cst_329 : f32 to vector<8x128xf32>
    %828 = arith.maximumf %826, %827 : vector<8x128xf32>
    %cst_330 = arith.constant dense<0.000000e+00> : vector<8xf32>
    %829 = vector.multi_reduction <add>, %828, %cst_330 [1] : vector<8x128xf32> to vector<8xf32>
    %830 = vector.shape_cast %829 : vector<8xf32> to vector<8x1xf32>
    %831 = tpu.reciprocal %830 {approx = true} : vector<8x1xf32> -> vector<8x1xf32>
    %832 = vector.broadcast %831 : vector<8x1xf32> to vector<8x128xf32>
    %833 = arith.mulf %828, %832 : vector<8x128xf32>
    %c0_331 = arith.constant 0 : index
    %c0_332 = arith.constant 0 : index
    %834 = vector.load %arg20[%c0_331, %c0_332] : memref<8x128xf32, #tpu.memory_space<vmem>>, vector<8x128xf32>
    tpu.vector_store %arg20[%c0_331, %c0_332], %833 {strides = array<i32>} : memref<8x128xf32, #tpu.memory_space<vmem>>, vector<8x128xf32>,
    return
  }
  func.func @transform_0(%arg0: i32) -> (i32, i32) {
    %c0_i32 = arith.constant 0 : i32
    %c0_i32_0 = arith.constant 0 : i32
    return %arg0, %c0_i32 : i32, i32
  }
  func.func @transform_1(%arg0: i32) -> (i32, i32) {
    %c0_i32 = arith.constant 0 : i32
    %c0_i32_0 = arith.constant 0 : i32
    return %arg0, %c0_i32 : i32, i32
  }
  func.func @transform_2(%arg0: i32) -> (i32, i32) {
    %c0_i32 = arith.constant 0 : i32
    %c0_i32_0 = arith.constant 0 : i32
    %c0_i32_1 = arith.constant 0 : i32
    return %c0_i32, %c0_i32_0 : i32, i32
  }
  func.func @transform_3(%arg0: i32) -> (i32, i32) {
    %c0_i32 = arith.constant 0 : i32
    %c0_i32_0 = arith.constant 0 : i32
    %c0_i32_1 = arith.constant 0 : i32
    return %c0_i32, %c0_i32_0 : i32, i32
  }
  func.func @transform_4(%arg0: i32) -> (i32, i32) {
    %c0_i32 = arith.constant 0 : i32
    %c0_i32_0 = arith.constant 0 : i32
    %c0_i32_1 = arith.constant 0 : i32
    return %c0_i32, %c0_i32_0 : i32, i32
  }
  func.func @transform_5(%arg0: i32) -> (i32, i32) {
    %c0_i32 = arith.constant 0 : i32
    %c0_i32_0 = arith.constant 0 : i32
    %c0_i32_1 = arith.constant 0 : i32
    return %c0_i32, %c0_i32_0 : i32, i32
  }
  func.func @transform_6(%arg0: i32) -> (i32, i32) {
    %c0_i32 = arith.constant 0 : i32
    %c0_i32_0 = arith.constant 0 : i32
    %c0_i32_1 = arith.constant 0 : i32
    return %c0_i32, %c0_i32_0 : i32, i32
  }
  func.func @transform_7(%arg0: i32) -> (i32, i32) {
    %c0_i32 = arith.constant 0 : i32
    %c0_i32_0 = arith.constant 0 : i32
    %c0_i32_1 = arith.constant 0 : i32
    return %c0_i32, %c0_i32_0 : i32, i32
  }
  func.func @transform_8(%arg0: i32) -> (i32, i32) {
    %c0_i32 = arith.constant 0 : i32
    %c0_i32_0 = arith.constant 0 : i32
    %c0_i32_1 = arith.constant 0 : i32
    return %c0_i32, %c0_i32_0 : i32, i32
  }
  func.func @transform_9(%arg0: i32) -> (i32, i32) {
    %c0_i32 = arith.constant 0 : i32
    %c0_i32_0 = arith.constant 0 : i32
    %c0_i32_1 = arith.constant 0 : i32
    return %c0_i32, %c0_i32_0 : i32, i32
  }
  func.func @transform_10(%arg0: i32) -> (i32, i32) {
    %c0_i32 = arith.constant 0 : i32
    %c0_i32_0 = arith.constant 0 : i32
    %c0_i32_1 = arith.constant 0 : i32
    return %c0_i32, %c0_i32_0 : i32, i32
  }
  func.func @transform_11(%arg0: i32) -> (i32, i32) {
    %c0_i32 = arith.constant 0 : i32
    %c0_i32_0 = arith.constant 0 : i32
    %c0_i32_1 = arith.constant 0 : i32
    return %c0_i32, %c0_i32_0 : i32, i32
  }
  func.func @transform_12(%arg0: i32) -> (i32, i32) {
    %c0_i32 = arith.constant 0 : i32
    %c0_i32_0 = arith.constant 0 : i32
    %c0_i32_1 = arith.constant 0 : i32
    return %c0_i32, %c0_i32_0 : i32, i32
  }
  func.func @transform_13(%arg0: i32) -> (i32, i32) {
    %c0_i32 = arith.constant 0 : i32
    %c0_i32_0 = arith.constant 0 : i32
    %c0_i32_1 = arith.constant 0 : i32
    return %c0_i32, %c0_i32_0 : i32, i32
  }
  func.func @transform_14(%arg0: i32) -> (i32, i32) {
    %c0_i32 = arith.constant 0 : i32
    %c0_i32_0 = arith.constant 0 : i32
    %c0_i32_1 = arith.constant 0 : i32
    return %c0_i32, %c0_i32_0 : i32, i32
  }
  func.func @transform_15(%arg0: i32) -> (i32, i32) {
    %c0_i32 = arith.constant 0 : i32
    %c0_i32_0 = arith.constant 0 : i32
    %c0_i32_1 = arith.constant 0 : i32
    return %c0_i32, %c0_i32_0 : i32, i32
  }
  func.func @transform_16(%arg0: i32) -> (i32, i32) {
    %c0_i32 = arith.constant 0 : i32
    %c0_i32_0 = arith.constant 0 : i32
    %c0_i32_1 = arith.constant 0 : i32
    return %c0_i32, %c0_i32_0 : i32, i32
  }
  func.func @transform_17(%arg0: i32) -> (i32, i32) {
    %c0_i32 = arith.constant 0 : i32
    %c0_i32_0 = arith.constant 0 : i32
    %c0_i32_1 = arith.constant 0 : i32
    return %c0_i32, %c0_i32_0 : i32, i32
  }
  func.func @transform_18(%arg0: i32) -> (i32, i32) {
    %c0_i32 = arith.constant 0 : i32
    %c0_i32_0 = arith.constant 0 : i32
    %c0_i32_1 = arith.constant 0 : i32
    return %c0_i32, %c0_i32_0 : i32, i32
  }
  func.func @transform_19(%arg0: i32) -> (i32, i32) {
    %c0_i32 = arith.constant 0 : i32
    %c0_i32_0 = arith.constant 0 : i32
    return %arg0, %c0_i32 : i32, i32
  }
}

</mosaic_0001>

<llo_original>
// kernel: tpu_custom_call.1
$region0: #{tpu_custom_call.1}
  #allocation0 [shape = 'u32[]', space=smem, size = 0x4, offset = 0x4, fixed_abs, tag = 'smem constant byte address 0x4 - core index']
  #allocation1 [shape = 'u32[72,128]{1,0:T(1,128)}', space=vmem, size = 0x9000, scoped, tag = 'internal scratch']
  %s0 = inlined_call_operand.hbm [shape: f32[8,768], index: 0, kind: input, shape index: {}]
  %s1 = inlined_call_operand.hbm [shape: f32[8,384], index: 1, kind: input, shape index: {}]
  %s2 = inlined_call_operand.vmem [shape: f32[24,512], index: 2, kind: input, shape index: {}]
  %s3 = inlined_call_operand.hbm [shape: bf16[384,256], index: 3, kind: input, shape index: {}]
  %s4 = inlined_call_operand.vmem [shape: bf16[256,32], index: 4, kind: input, shape index: {}]
  %s5 = inlined_call_operand.hbm [shape: bf16[768,512], index: 5, kind: input, shape index: {}]
  %s6 = inlined_call_operand.hbm [shape: bf16[32,512], index: 6, kind: input, shape index: {}]
  %s7 = inlined_call_operand.hbm [shape: bf16[512,256], index: 7, kind: input, shape index: {}]
  %s8 = inlined_call_operand.hbm [shape: bf16[256,256], index: 8, kind: input, shape index: {}]
  %s9 = inlined_call_operand.hbm [shape: bf16[256,256], index: 9, kind: input, shape index: {}]
  %s10 = inlined_call_operand.hbm [shape: bf16[256,256], index: 10, kind: input, shape index: {}]
  %s11 = inlined_call_operand.hbm [shape: bf16[256,256], index: 11, kind: input, shape index: {}]
  %s12 = inlined_call_operand.hbm [shape: bf16[256,256], index: 12, kind: input, shape index: {}]
  %s13 = inlined_call_operand.hbm [shape: bf16[256,256], index: 13, kind: input, shape index: {}]
  %s14 = inlined_call_operand.vmem [shape: bf16[256,128], index: 14, kind: input, shape index: {}]
  %s15 = inlined_call_operand.hbm [shape: bf16[128,128], index: 15, kind: input, shape index: {}]
  %s16 = inlined_call_operand.hbm [shape: bf16[128,128], index: 16, kind: input, shape index: {}]
  %s17 = inlined_call_operand.vmem [shape: bf16[128,64], index: 17, kind: input, shape index: {}]
  %s18 = inlined_call_operand.hbm [shape: bf16[64,128], index: 18, kind: input, shape index: {}]
  %s19 = inlined_call_operand.hbm [shape: f32[8,128], index: 19, kind: output, shape index: {}]
  %s20 = sld [smem:[#allocation0]]
  $region146: #{tpu_custom_call.1} parent=0
    _
  %s22 = ssub.s32 1, %s20
  %s23 = scalar_select 0, %s22, %s20
  $region1: #{tpu_custom_call.1} parent=0
    #allocation2 [shape = 'u8[24576]{0}', space=vmem, size = 0x6000, scoped, tag = 'input window, operand 0, single buffered']
    #allocation3 [shape = 's32[1]{0}', space=sflag, size = 0x4, scoped, tag = 'scoped memory for tpu_custom_call.1']
    #allocation4 [shape = 's32[1]{0}', space=sflag, size = 0x4, scoped, tag = 'scoped memory for tpu_custom_call.1']
    #allocation5 [shape = 'u8[12288]{0}', space=vmem, size = 0x3000, scoped, tag = 'input window, operand 1, single buffered']
    #allocation6 [shape = 's32[1]{0}', space=sflag, size = 0x4, scoped, tag = 'scoped memory for tpu_custom_call.1']
    #allocation7 [shape = 'u8[196608]{0}', space=vmem, size = 0x30000, scoped, tag = 'input window, operand 3, single buffered']
    #allocation8 [shape = 'u8[786432]{0}', space=vmem, size = 0xc0000, scoped, tag = 'input window, operand 5, single buffered']
    #allocation9 [shape = 's32[1]{0}', space=sflag, size = 0x4, scoped, tag = 'scoped memory for tpu_custom_call.1']
    #allocation10 [shape = 'u8[32768]{0}', space=vmem, size = 0x8000, scoped, tag = 'input window, operand 6, single buffered']
    #allocation11 [shape = 'u8[262144]{0}', space=vmem, size = 0x40000, scoped, tag = 'input window, operand 7, single buffered']
    #allocation12 [shape = 's32[1]{0}', space=sflag, size = 0x4, scoped, tag = 'scoped memory for tpu_custom_call.1']
    #allocation13 [shape = 'u8[131072]{0}', space=vmem, size = 0x20000, scoped, tag = 'input window, operand 8, single buffered']
    #allocation14 [shape = 'u8[131072]{0}', space=vmem, size = 0x20000, scoped, tag = 'input window, operand 9, single buffered']
    #allocation15 [shape = 's32[1]{0}', space=sflag, size = 0x4, scoped, tag = 'scoped memory for tpu_custom_call.1']
    #allocation16 [shape = 'u8[131072]{0}', space=vmem, size = 0x20000, scoped, tag = 'input window, operand 10, single buffered']
    #allocation17 [shape = 'u8[131072]{0}', space=vmem, size = 0x20000, scoped, tag = 'input window, operand 11, single buffered']
    #allocation18 [shape = 's32[1]{0}', space=sflag, size = 0x4, scoped, tag = 'scoped memory for tpu_custom_call.1']
    #allocation19 [shape = 'u8[131072]{0}', space=vmem, size = 0x20000, scoped, tag = 'input window, operand 12, single buffered']
    #allocation20 [shape = 'u8[131072]{0}', space=vmem, size = 0x20000, scoped, tag = 'input window, operand 13, single buffered']
    #allocation21 [shape = 's32[1]{0}', space=sflag, size = 0x4, scoped, tag = 'scoped memory for tpu_custom_call.1']
    #allocation22 [shape = 'u8[32768]{0}', space=vmem, size = 0x8000, scoped, tag = 'input window, operand 15, single buffered']
    #allocation23 [shape = 'u8[32768]{0}', space=vmem, size = 0x8000, scoped, tag = 'input window, operand 16, single buffered']
    #allocation24 [shape = 's32[1]{0}', space=sflag, size = 0x4, scoped, tag = 'scoped memory for tpu_custom_call.1']
    #allocation25 [shape = 'u8[16384]{0}', space=vmem, size = 0x4000, scoped, tag = 'input window, operand 18, single buffered']
    #allocation26 [shape = 'u8[4096]{0}', space=vmem, size = 0x1000, scoped, tag = 'output window, operand 0, single buffered']
    %24 = vsyncpa [#allocation3], 0
    %25 = vsyncpa [#allocation6], 0
    %26 = vsyncpa [#allocation9], 0
    %27 = vsyncpa [#allocation12], 0
    %28 = vsyncpa [#allocation15], 0
    %29 = vsyncpa [#allocation18], 0
    %30 = vsyncpa [#allocation21], 0
    %31 = vsyncpa [#allocation24], 0
    %32 = vsyncpa [#allocation4], 0
    // Predicated region
    $region2: #{tpu_custom_call.1} parent=1 // pred_check
      _
    $region3: #{tpu_custom_call.1} parent=1 // pred_check_branch
      %34 = sbr.rel (0) target = $region5
    $region4: #{tpu_custom_call.1} parent=1 // pred_region
      %36 = vsyncadd [#allocation3], 0
      %s38 = sshll.u32 %s0, 4
      %s39 = int_to_ptr.hbm [resolvable:$true] %s38
      %s40 = sshll.u32 [#allocation2], 4
      %s41 = int_to_ptr.vmem [resolvable:$true] %s40
      %43 = dma.hbm_to_vmem [thread:$0]  %s39, 768, %s41, [#allocation3]
    $region5: #{tpu_custom_call.1} parent=1 // pred_fallthru
      _
    // Predicated region
    $region6: #{tpu_custom_call.1} parent=1 // pred_check
      _
    $region7: #{tpu_custom_call.1} parent=1 // pred_check_branch
      %45 = sbr.rel (0) target = $region9
    $region8: #{tpu_custom_call.1} parent=1 // pred_region
      %47 = vsyncadd [#allocation6], 0
      %s49 = sshll.u32 %s1, 4
      %s50 = int_to_ptr.hbm [resolvable:$true] %s49
      %s51 = sshll.u32 [#allocation5], 4
      %s52 = int_to_ptr.vmem [resolvable:$true] %s51
      %54 = dma.hbm_to_vmem [thread:$0]  %s50, 384, %s52, [#allocation6]
    $region9: #{tpu_custom_call.1} parent=1 // pred_fallthru
      _
    // Predicated region
    $region10: #{tpu_custom_call.1} parent=1 // pred_check
      _
    $region11: #{tpu_custom_call.1} parent=1 // pred_check_branch
      %56 = sbr.rel (0) target = $region13
    $region12: #{tpu_custom_call.1} parent=1 // pred_region
      _
    $region13: #{tpu_custom_call.1} parent=1 // pred_fallthru
      _
    // Predicated region
    $region14: #{tpu_custom_call.1} parent=1 // pred_check
      _
    $region15: #{tpu_custom_call.1} parent=1 // pred_check_branch
      %58 = sbr.rel (0) target = $region17
    $region16: #{tpu_custom_call.1} parent=1 // pred_region
      %60 = vsyncadd [#allocation6], 0
      %s61 = sshll.u32 %s3, 4
      %s62 = int_to_ptr.hbm [resolvable:$true] %s61
      %s63 = sshll.u32 [#allocation7], 4
      %s64 = int_to_ptr.vmem [resolvable:$true] %s63
      %69 = dma.hbm_to_vmem [thread:$0]  %s62, 6144, %s64, [#allocation6], 128, 128, 8
    $region17: #{tpu_custom_call.1} parent=1 // pred_fallthru
      _
    // Predicated region
    $region18: #{tpu_custom_call.1} parent=1 // pred_check
      _
    $region19: #{tpu_custom_call.1} parent=1 // pred_check_branch
      %71 = sbr.rel (0) target = $region21
    $region20: #{tpu_custom_call.1} parent=1 // pred_region
      _
    $region21: #{tpu_custom_call.1} parent=1 // pred_fallthru
      _
    // Predicated region
    $region22: #{tpu_custom_call.1} parent=1 // pred_check
      _
    $region23: #{tpu_custom_call.1} parent=1 // pred_check_branch
      %73 = sbr.rel (0) target = $region25
    $region24: #{tpu_custom_call.1} parent=1 // pred_region
      %75 = vsyncadd [#allocation9], 0
      %s76 = sshll.u32 %s5, 4
      %s77 = int_to_ptr.hbm [resolvable:$true] %s76
      %s78 = sshll.u32 [#allocation8], 4
      %s79 = int_to_ptr.vmem [resolvable:$true] %s78
      %84 = dma.hbm_to_vmem [thread:$0]  %s77, 24576, %s79, [#allocation9], 256, 256, 16
    $region25: #{tpu_custom_call.1} parent=1 // pred_fallthru
      _
    // Predicated region
    $region26: #{tpu_custom_call.1} parent=1 // pred_check
      _
    $region27: #{tpu_custom_call.1} parent=1 // pred_check_branch
      %86 = sbr.rel (0) target = $region29
    $region28: #{tpu_custom_call.1} parent=1 // pred_region
      %88 = vsyncadd [#allocation9], 0
      %s89 = sshll.u32 %s6, 4
      %s90 = int_to_ptr.hbm [resolvable:$true] %s89
      %s91 = sshll.u32 [#allocation10], 4
      %s92 = int_to_ptr.vmem [resolvable:$true] %s91
      %97 = dma.hbm_to_vmem [thread:$0]  %s90, 1024, %s92, [#allocation9], 256, 256, 16
    $region29: #{tpu_custom_call.1} parent=1 // pred_fallthru
      _
    // Predicated region
    $region30: #{tpu_custom_call.1} parent=1 // pred_check
      _
    $region31: #{tpu_custom_call.1} parent=1 // pred_check_branch
      %99 = sbr.rel (0) target = $region33
    $region32: #{tpu_custom_call.1} parent=1 // pred_region
      %101 = vsyncadd [#allocation12], 0
      %s102 = sshll.u32 %s7, 4
      %s103 = int_to_ptr.hbm [resolvable:$true] %s102
      %s104 = sshll.u32 [#allocation11], 4
      %s105 = int_to_ptr.vmem [resolvable:$true] %s104
      %110 = dma.hbm_to_vmem [thread:$0]  %s103, 8192, %s105, [#allocation12], 128, 128, 8
    $region33: #{tpu_custom_call.1} parent=1 // pred_fallthru
      _
    // Predicated region
    $region34: #{tpu_custom_call.1} parent=1 // pred_check
      _
    $region35: #{tpu_custom_call.1} parent=1 // pred_check_branch
      %112 = sbr.rel (0) target = $region37
    $region36: #{tpu_custom_call.1} parent=1 // pred_region
      %114 = vsyncadd [#allocation12], 0
      %s115 = sshll.u32 %s8, 4
      %s116 = int_to_ptr.hbm [resolvable:$true] %s115
      %s117 = sshll.u32 [#allocation13], 4
      %s118 = int_to_ptr.vmem [resolvable:$true] %s117
      %123 = dma.hbm_to_vmem [thread:$0]  %s116, 4096, %s118, [#allocation12], 128, 128, 8
    $region37: #{tpu_custom_call.1} parent=1 // pred_fallthru
      _
    // Predicated region
    $region38: #{tpu_custom_call.1} parent=1 // pred_check
      _
    $region39: #{tpu_custom_call.1} parent=1 // pred_check_branch
      %125 = sbr.rel (0) target = $region41
    $region40: #{tpu_custom_call.1} parent=1 // pred_region
      %127 = vsyncadd [#allocation15], 0
      %s128 = sshll.u32 %s9, 4
      %s129 = int_to_ptr.hbm [resolvable:$true] %s128
      %s130 = sshll.u32 [#allocation14], 4
      %s131 = int_to_ptr.vmem [resolvable:$true] %s130
      %136 = dma.hbm_to_vmem [thread:$0]  %s129, 4096, %s131, [#allocation15], 128, 128, 8
    $region41: #{tpu_custom_call.1} parent=1 // pred_fallthru
      _
    // Predicated region
    $region42: #{tpu_custom_call.1} parent=1 // pred_check
      _
    $region43: #{tpu_custom_call.1} parent=1 // pred_check_branch
      %138 = sbr.rel (0) target = $region45
    $region44: #{tpu_custom_call.1} parent=1 // pred_region
      %140 = vsyncadd [#allocation15], 0
      %s141 = sshll.u32 %s10, 4
      %s142 = int_to_ptr.hbm [resolvable:$true] %s141
      %s143 = sshll.u32 [#allocation16], 4
      %s144 = int_to_ptr.vmem [resolvable:$true] %s143
      %149 = dma.hbm_to_vmem [thread:$0]  %s142, 4096, %s144, [#allocation15], 128, 128, 8
    $region45: #{tpu_custom_call.1} parent=1 // pred_fallthru
      _
    // Predicated region
    $region46: #{tpu_custom_call.1} parent=1 // pred_check
      _
    $region47: #{tpu_custom_call.1} parent=1 // pred_check_branch
      %151 = sbr.rel (0) target = $region49
    $region48: #{tpu_custom_call.1} parent=1 // pred_region
      %153 = vsyncadd [#allocation18], 0
      %s154 = sshll.u32 %s11, 4
      %s155 = int_to_ptr.hbm [resolvable:$true] %s154
      %s156 = sshll.u32 [#allocation17], 4
      %s157 = int_to_ptr.vmem [resolvable:$true] %s156
      %162 = dma.hbm_to_vmem [thread:$0]  %s155, 4096, %s157, [#allocation18], 128, 128, 8
    $region49: #{tpu_custom_call.1} parent=1 // pred_fallthru
      _
    // Predicated region
    $region50: #{tpu_custom_call.1} parent=1 // pred_check
      _
    $region51: #{tpu_custom_call.1} parent=1 // pred_check_branch
      %164 = sbr.rel (0) target = $region53
    $region52: #{tpu_custom_call.1} parent=1 // pred_region
      %166 = vsyncadd [#allocation18], 0
      %s167 = sshll.u32 %s12, 4
      %s168 = int_to_ptr.hbm [resolvable:$true] %s167
      %s169 = sshll.u32 [#allocation19], 4
      %s170 = int_to_ptr.vmem [resolvable:$true] %s169
      %175 = dma.hbm_to_vmem [thread:$0]  %s168, 4096, %s170, [#allocation18], 128, 128, 8
    $region53: #{tpu_custom_call.1} parent=1 // pred_fallthru
      _
    // Predicated region
    $region54: #{tpu_custom_call.1} parent=1 // pred_check
      _
    $region55: #{tpu_custom_call.1} parent=1 // pred_check_branch
      %177 = sbr.rel (0) target = $region57
    $region56: #{tpu_custom_call.1} parent=1 // pred_region
      %179 = vsyncadd [#allocation21], 0
      %s180 = sshll.u32 %s13, 4
      %s181 = int_to_ptr.hbm [resolvable:$true] %s180
      %s182 = sshll.u32 [#allocation20], 4
      %s183 = int_to_ptr.vmem [resolvable:$true] %s182
      %188 = dma.hbm_to_vmem [thread:$0]  %s181, 4096, %s183, [#allocation21], 128, 128, 8
    $region57: #{tpu_custom_call.1} parent=1 // pred_fallthru
      _
    // Predicated region
    $region58: #{tpu_custom_call.1} parent=1 // pred_check
      _
    $region59: #{tpu_custom_call.1} parent=1 // pred_check_branch
      %190 = sbr.rel (0) target = $region61
    $region60: #{tpu_custom_call.1} parent=1 // pred_region
      _
    $region61: #{tpu_custom_call.1} parent=1 // pred_fallthru
      _
    // Predicated region
    $region62: #{tpu_custom_call.1} parent=1 // pred_check
      _
    $region63: #{tpu_custom_call.1} parent=1 // pred_check_branch
      %192 = sbr.rel (0) target = $region65
    $region64: #{tpu_custom_call.1} parent=1 // pred_region
      %194 = vsyncadd [#allocation21], 0
      %s195 = sshll.u32 %s15, 4
      %s196 = int_to_ptr.hbm [resolvable:$true] %s195
      %s197 = sshll.u32 [#allocation22], 4
      %s198 = int_to_ptr.vmem [resolvable:$true] %s197
      %203 = dma.hbm_to_vmem [thread:$0]  %s196, 1024, %s198, [#allocation21], 64, 64, 4
    $region65: #{tpu_custom_call.1} parent=1 // pred_fallthru
      _
    // Predicated region
    $region66: #{tpu_custom_call.1} parent=1 // pred_check
      _
    $region67: #{tpu_custom_call.1} parent=1 // pred_check_branch
      %205 = sbr.rel (0) target = $region69
    $region68: #{tpu_custom_call.1} parent=1 // pred_region
      %207 = vsyncadd [#allocation24], 0
      %s208 = sshll.u32 %s16, 4
      %s209 = int_to_ptr.hbm [resolvable:$true] %s208
      %s210 = sshll.u32 [#allocation23], 4
      %s211 = int_to_ptr.vmem [resolvable:$true] %s210
      %216 = dma.hbm_to_vmem [thread:$0]  %s209, 1024, %s211, [#allocation24], 64, 64, 4
    $region69: #{tpu_custom_call.1} parent=1 // pred_fallthru
      _
    // Predicated region
    $region70: #{tpu_custom_call.1} parent=1 // pred_check
      _
    $region71: #{tpu_custom_call.1} parent=1 // pred_check_branch
      %218 = sbr.rel (0) target = $region73
    $region72: #{tpu_custom_call.1} parent=1 // pred_region
      _
    $region73: #{tpu_custom_call.1} parent=1 // pred_fallthru
      _
    // Predicated region
    $region74: #{tpu_custom_call.1} parent=1 // pred_check
      _
    $region75: #{tpu_custom_call.1} parent=1 // pred_check_branch
      %220 = sbr.rel (0) target = $region77
    $region76: #{tpu_custom_call.1} parent=1 // pred_region
      %222 = vsyncadd [#allocation24], 0
      %s223 = sshll.u32 %s18, 4
      %s224 = int_to_ptr.hbm [resolvable:$true] %s223
      %s225 = sshll.u32 [#allocation25], 4
      %s226 = int_to_ptr.vmem [resolvable:$true] %s225
      %231 = dma.hbm_to_vmem [thread:$0]  %s224, 512, %s226, [#allocation24], 64, 64, 4
    $region77: #{tpu_custom_call.1} parent=1 // pred_fallthru
      _
    // Predicated region
    $region78: #{tpu_custom_call.1} parent=1 // pred_check
      _
    $region79: #{tpu_custom_call.1} parent=1 // pred_check_branch
      %233 = sbr.rel (0) target = $region81
    $region80: #{tpu_custom_call.1} parent=1 // pred_region
      %235 = dma.done [#allocation3], 768
    $region81: #{tpu_custom_call.1} parent=1 // pred_fallthru
      _
    // Predicated region
    $region82: #{tpu_custom_call.1} parent=1 // pred_check
      _
    $region83: #{tpu_custom_call.1} parent=1 // pred_check_branch
      %237 = sbr.rel (0) target = $region85
    $region84: #{tpu_custom_call.1} parent=1 // pred_region
      %239 = dma.done [#allocation6], 384
    $region85: #{tpu_custom_call.1} parent=1 // pred_fallthru
      _
    // Predicated region
    $region86: #{tpu_custom_call.1} parent=1 // pred_check
      _
    $region87: #{tpu_custom_call.1} parent=1 // pred_check_branch
      %241 = sbr.rel (0) target = $region89
    $region88: #{tpu_custom_call.1} parent=1 // pred_region
      %243 = dma.done [#allocation6], 6144
    $region89: #{tpu_custom_call.1} parent=1 // pred_fallthru
      _
    // Predicated region
    $region90: #{tpu_custom_call.1} parent=1 // pred_check
      _
    $region91: #{tpu_custom_call.1} parent=1 // pred_check_branch
      %245 = sbr.rel (0) target = $region93
    $region92: #{tpu_custom_call.1} parent=1 // pred_region
      %247 = dma.done [#allocation9], 24576
    $region93: #{tpu_custom_call.1} parent=1 // pred_fallthru
      _
    // Predicated region
    $region94: #{tpu_custom_call.1} parent=1 // pred_check
      _
    $region95: #{tpu_custom_call.1} parent=1 // pred_check_branch
      %249 = sbr.rel (0) target = $region97
    $region96: #{tpu_custom_call.1} parent=1 // pred_region
      %251 = dma.done [#allocation9], 1024
    $region97: #{tpu_custom_call.1} parent=1 // pred_fallthru
      _
    // Predicated region
    $region98: #{tpu_custom_call.1} parent=1 // pred_check
      _
    $region99: #{tpu_custom_call.1} parent=1 // pred_check_branch
      %253 = sbr.rel (0) target = $region101
    $region100: #{tpu_custom_call.1} parent=1 // pred_region
      %255 = dma.done [#allocation12], 8192
    $region101: #{tpu_custom_call.1} parent=1 // pred_fallthru
      _
    // Predicated region
    $region102: #{tpu_custom_call.1} parent=1 // pred_check
      _
    $region103: #{tpu_custom_call.1} parent=1 // pred_check_branch
      %257 = sbr.rel (0) target = $region105
    $region104: #{tpu_custom_call.1} parent=1 // pred_region
      %259 = dma.done [#allocation12], 4096
    $region105: #{tpu_custom_call.1} parent=1 // pred_fallthru
      _
    // Predicated region
    $region106: #{tpu_custom_call.1} parent=1 // pred_check
      _
    $region107: #{tpu_custom_call.1} parent=1 // pred_check_branch
      %261 = sbr.rel (0) target = $region109
    $region108: #{tpu_custom_call.1} parent=1 // pred_region
      %263 = dma.done [#allocation15], 4096
    $region109: #{tpu_custom_call.1} parent=1 // pred_fallthru
      _
    // Predicated region
    $region110: #{tpu_custom_call.1} parent=1 // pred_check
      _
    $region111: #{tpu_custom_call.1} parent=1 // pred_check_branch
      %265 = sbr.rel (0) target = $region113
    $region112: #{tpu_custom_call.1} parent=1 // pred_region
      %267 = dma.done [#allocation15], 4096
    $region113: #{tpu_custom_call.1} parent=1 // pred_fallthru
      _
    // Predicated region
    $region114: #{tpu_custom_call.1} parent=1 // pred_check
      _
    $region115: #{tpu_custom_call.1} parent=1 // pred_check_branch
      %269 = sbr.rel (0) target = $region117
    $region116: #{tpu_custom_call.1} parent=1 // pred_region
      %271 = dma.done [#allocation18], 4096
    $region117: #{tpu_custom_call.1} parent=1 // pred_fallthru
      _
    // Predicated region
    $region118: #{tpu_custom_call.1} parent=1 // pred_check
      _
    $region119: #{tpu_custom_call.1} parent=1 // pred_check_branch
      %273 = sbr.rel (0) target = $region121
    $region120: #{tpu_custom_call.1} parent=1 // pred_region
      %275 = dma.done [#allocation18], 4096
    $region121: #{tpu_custom_call.1} parent=1 // pred_fallthru
      _
    // Predicated region
    $region122: #{tpu_custom_call.1} parent=1 // pred_check
      _
    $region123: #{tpu_custom_call.1} parent=1 // pred_check_branch
      %277 = sbr.rel (0) target = $region125
    $region124: #{tpu_custom_call.1} parent=1 // pred_region
      %279 = dma.done [#allocation21], 4096
    $region125: #{tpu_custom_call.1} parent=1 // pred_fallthru
      _
    // Predicated region
    $region126: #{tpu_custom_call.1} parent=1 // pred_check
      _
    $region127: #{tpu_custom_call.1} parent=1 // pred_check_branch
      %281 = sbr.rel (0) target = $region129
    $region128: #{tpu_custom_call.1} parent=1 // pred_region
      %283 = dma.done [#allocation21], 1024
    $region129: #{tpu_custom_call.1} parent=1 // pred_fallthru
      _
    // Predicated region
    $region130: #{tpu_custom_call.1} parent=1 // pred_check
      _
    $region131: #{tpu_custom_call.1} parent=1 // pred_check_branch
      %285 = sbr.rel (0) target = $region133
    $region132: #{tpu_custom_call.1} parent=1 // pred_region
      %287 = dma.done [#allocation24], 1024
    $region133: #{tpu_custom_call.1} parent=1 // pred_fallthru
      _
    // Predicated region
    $region134: #{tpu_custom_call.1} parent=1 // pred_check
      _
    $region135: #{tpu_custom_call.1} parent=1 // pred_check_branch
      %289 = sbr.rel (0) target = $region137
    $region136: #{tpu_custom_call.1} parent=1 // pred_region
      %291 = dma.done [#allocation24], 512
    $region137: #{tpu_custom_call.1} parent=1 // pred_fallthru
      _
    %v293 = vld [vmem:[#allocation7] sm:$0xff]
    %v294 = vld [vmem:[#allocation7 + $0x8] sm:$0xff]
    %v295 = vld [vmem:[#allocation7 + $0x10] sm:$0xff]
    %v296 = vld [vmem:[#allocation7 + $0x18] sm:$0xff]
    %v297 = vld [vmem:[#allocation7 + $0x20] sm:$0xff]
    %v298 = vld [vmem:[#allocation7 + $0x28] sm:$0xff]
    %v299 = vld [vmem:[#allocation7 + $0x30] sm:$0xff]
    %v300 = vld [vmem:[#allocation7 + $0x38] sm:$0xff]
    %v301 = vld [vmem:[#allocation7 + $0x40] sm:$0xff]
    %v302 = vld [vmem:[#allocation7 + $0x48] sm:$0xff]
    %v303 = vld [vmem:[#allocation7 + $0x50] sm:$0xff]
    %v304 = vld [vmem:[#allocation7 + $0x58] sm:$0xff]
    %v305 = vld [vmem:[#allocation7 + $0x60] sm:$0xff]
    %v306 = vld [vmem:[#allocation7 + $0x68] sm:$0xff]
    %v307 = vld [vmem:[#allocation7 + $0x70] sm:$0xff]
    %v308 = vld [vmem:[#allocation7 + $0x78] sm:$0xff]
    %v309 = vld [vmem:[#allocation7 + $0x80] sm:$0xff]
    %v310 = vld [vmem:[#allocation7 + $0x88] sm:$0xff]
    %v311 = vld [vmem:[#allocation7 + $0x90] sm:$0xff]
    %v312 = vld [vmem:[#allocation7 + $0x98] sm:$0xff]
    %v313 = vld [vmem:[#allocation7 + $0xa0] sm:$0xff]
    %v314 = vld [vmem:[#allocation7 + $0xa8] sm:$0xff]
    %v315 = vld [vmem:[#allocation7 + $0xb0] sm:$0xff]
    %v316 = vld [vmem:[#allocation7 + $0xb8] sm:$0xff]
    %v317 = vld [vmem:[#allocation7 + $0xc0] sm:$0xff]
    %v318 = vld [vmem:[#allocation7 + $0xc8] sm:$0xff]
    %v319 = vld [vmem:[#allocation7 + $0xd0] sm:$0xff]
    %v320 = vld [vmem:[#allocation7 + $0xd8] sm:$0xff]
    %v321 = vld [vmem:[#allocation7 + $0xe0] sm:$0xff]
    %v322 = vld [vmem:[#allocation7 + $0xe8] sm:$0xff]
    %v323 = vld [vmem:[#allocation7 + $0xf0] sm:$0xff]
    %v324 = vld [vmem:[#allocation7 + $0xf8] sm:$0xff]
    %v325 = vld [vmem:[#allocation7 + $0x100] sm:$0xff]
    %v326 = vld [vmem:[#allocation7 + $0x108] sm:$0xff]
    %v327 = vld [vmem:[#allocation7 + $0x110] sm:$0xff]
    %v328 = vld [vmem:[#allocation7 + $0x118] sm:$0xff]
    %v329 = vld [vmem:[#allocation7 + $0x120] sm:$0xff]
    %v330 = vld [vmem:[#allocation7 + $0x128] sm:$0xff]
    %v331 = vld [vmem:[#allocation7 + $0x130] sm:$0xff]
    %v332 = vld [vmem:[#allocation7 + $0x138] sm:$0xff]
    %v333 = vld [vmem:[#allocation7 + $0x140] sm:$0xff]
    %v334 = vld [vmem:[#allocation7 + $0x148] sm:$0xff]
    %v335 = vld [vmem:[#allocation7 + $0x150] sm:$0xff]
    %v336 = vld [vmem:[#allocation7 + $0x158] sm:$0xff]
    %v337 = vld [vmem:[#allocation7 + $0x160] sm:$0xff]
    %v338 = vld [vmem:[#allocation7 + $0x168] sm:$0xff]
    %v339 = vld [vmem:[#allocation7 + $0x170] sm:$0xff]
    %v340 = vld [vmem:[#allocation7 + $0x178] sm:$0xff]
    %v341 = vld [vmem:[%s4] sm:$0xf]
    %v342 = vld [vmem:[%s4 + $0x4] sm:$0xf]
    %v343 = vld [vmem:[%s4 + $0x8] sm:$0xf]
    %v344 = vld [vmem:[%s4 + $0xc] sm:$0xf]
    %v345 = vld [vmem:[%s4 + $0x10] sm:$0xf]
    %v346 = vld [vmem:[%s4 + $0x14] sm:$0xf]
    %v347 = vld [vmem:[%s4 + $0x18] sm:$0xf]
    %v348 = vld [vmem:[%s4 + $0x1c] sm:$0xf]
    %v349 = vld [vmem:[%s4 + $0x20] sm:$0xf]
    %v350 = vld [vmem:[%s4 + $0x24] sm:$0xf]
    %v351 = vld [vmem:[%s4 + $0x28] sm:$0xf]
    %v352 = vld [vmem:[%s4 + $0x2c] sm:$0xf]
    %v353 = vld [vmem:[%s4 + $0x30] sm:$0xf]
    %v354 = vld [vmem:[%s4 + $0x34] sm:$0xf]
    %v355 = vld [vmem:[%s4 + $0x38] sm:$0xf]
    %v356 = vld [vmem:[%s4 + $0x3c] sm:$0xf]
    %v357 = vld [vmem:[%s4 + $0x40] sm:$0xf]
    %v358 = vld [vmem:[%s4 + $0x44] sm:$0xf]
    %v359 = vld [vmem:[%s4 + $0x48] sm:$0xf]
    %v360 = vld [vmem:[%s4 + $0x4c] sm:$0xf]
    %v361 = vld [vmem:[%s4 + $0x50] sm:$0xf]
    %v362 = vld [vmem:[%s4 + $0x54] sm:$0xf]
    %v363 = vld [vmem:[%s4 + $0x58] sm:$0xf]
    %v364 = vld [vmem:[%s4 + $0x5c] sm:$0xf]
    %v365 = vld [vmem:[%s4 + $0x60] sm:$0xf]
    %v366 = vld [vmem:[%s4 + $0x64] sm:$0xf]
    %v367 = vld [vmem:[%s4 + $0x68] sm:$0xf]
    %v368 = vld [vmem:[%s4 + $0x6c] sm:$0xf]
    %v369 = vld [vmem:[%s4 + $0x70] sm:$0xf]
    %v370 = vld [vmem:[%s4 + $0x74] sm:$0xf]
    %v371 = vld [vmem:[%s4 + $0x78] sm:$0xf]
    %v372 = vld [vmem:[%s4 + $0x7c] sm:$0xf]
    %v373 = vld [vmem:[#allocation8] sm:$0xff]
    %v374 = vld [vmem:[#allocation8 + $0x8] sm:$0xff]
    %v375 = vld [vmem:[#allocation8 + $0x10] sm:$0xff]
    %v376 = vld [vmem:[#allocation8 + $0x18] sm:$0xff]
    %v377 = vld [vmem:[#allocation8 + $0x20] sm:$0xff]
    %v378 = vld [vmem:[#allocation8 + $0x28] sm:$0xff]
    %v379 = vld [vmem:[#allocation8 + $0x30] sm:$0xff]
    %v380 = vld [vmem:[#allocation8 + $0x38] sm:$0xff]
    %v381 = vld [vmem:[#allocation8 + $0x40] sm:$0xff]
    %v382 = vld [vmem:[#allocation8 + $0x48] sm:$0xff]
    %v383 = vld [vmem:[#allocation8 + $0x50] sm:$0xff]
    %v384 = vld [vmem:[#allocation8 + $0x58] sm:$0xff]
    %v385 = vld [vmem:[#allocation8 + $0x60] sm:$0xff]
    %v386 = vld [vmem:[#allocation8 + $0x68] sm:$0xff]
    %v387 = vld [vmem:[#allocation8 + $0x70] sm:$0xff]
    %v388 = vld [vmem:[#allocation8 + $0x78] sm:$0xff]
    %v389 = vld [vmem:[#allocation8 + $0x80] sm:$0xff]
    %v390 = vld [vmem:[#allocation8 + $0x88] sm:$0xff]
    %v391 = vld [vmem:[#allocation8 + $0x90] sm:$0xff]
    %v392 = vld [vmem:[#allocation8 + $0x98] sm:$0xff]
    %v393 = vld [vmem:[#allocation8 + $0xa0] sm:$0xff]
    %v394 = vld [vmem:[#allocation8 + $0xa8] sm:$0xff]
    %v395 = vld [vmem:[#allocation8 + $0xb0] sm:$0xff]
    %v396 = vld [vmem:[#allocation8 + $0xb8] sm:$0xff]
    %v397 = vld [vmem:[#allocation8 + $0xc0] sm:$0xff]
    %v398 = vld [vmem:[#allocation8 + $0xc8] sm:$0xff]
    %v399 = vld [vmem:[#allocation8 + $0xd0] sm:$0xff]
    %v400 = vld [vmem:[#allocation8 + $0xd8] sm:$0xff]
    %v401 = vld [vmem:[#allocation8 + $0xe0] sm:$0xff]
    %v402 = vld [vmem:[#allocation8 + $0xe8] sm:$0xff]
    %v403 = vld [vmem:[#allocation8 + $0xf0] sm:$0xff]
    %v404 = vld [vmem:[#allocation8 + $0xf8] sm:$0xff]
    %v405 = vld [vmem:[#allocation8 + $0x100] sm:$0xff]
    %v406 = vld [vmem:[#allocation8 + $0x108] sm:$0xff]
    %v407 = vld [vmem:[#allocation8 + $0x110] sm:$0xff]
    %v408 = vld [vmem:[#allocation8 + $0x118] sm:$0xff]
    %v409 = vld [vmem:[#allocation8 + $0x120] sm:$0xff]
    %v410 = vld [vmem:[#allocation8 + $0x128] sm:$0xff]
    %v411 = vld [vmem:[#allocation8 + $0x130] sm:$0xff]
    %v412 = vld [vmem:[#allocation8 + $0x138] sm:$0xff]
    %v413 = vld [vmem:[#allocation8 + $0x140] sm:$0xff]
    %v414 = vld [vmem:[#allocation8 + $0x148] sm:$0xff]
    %v415 = vld [vmem:[#allocation8 + $0x150] sm:$0xff]
    %v416 = vld [vmem:[#allocation8 + $0x158] sm:$0xff]
    %v417 = vld [vmem:[#allocation8 + $0x160] sm:$0xff]
    %v418 = vld [vmem:[#allocation8 + $0x168] sm:$0xff]
    %v419 = vld [vmem:[#allocation8 + $0x170] sm:$0xff]
    %v420 = vld [vmem:[#allocation8 + $0x178] sm:$0xff]
    %v421 = vld [vmem:[#allocation8 + $0x180] sm:$0xff]
    %v422 = vld [vmem:[#allocation8 + $0x188] sm:$0xff]
    %v423 = vld [vmem:[#allocation8 + $0x190] sm:$0xff]
    %v424 = vld [vmem:[#allocation8 + $0x198] sm:$0xff]
    %v425 = vld [vmem:[#allocation8 + $0x1a0] sm:$0xff]
    %v426 = vld [vmem:[#allocation8 + $0x1a8] sm:$0xff]
    %v427 = vld [vmem:[#allocation8 + $0x1b0] sm:$0xff]
    %v428 = vld [vmem:[#allocation8 + $0x1b8] sm:$0xff]
    %v429 = vld [vmem:[#allocation8 + $0x1c0] sm:$0xff]
    %v430 = vld [vmem:[#allocation8 + $0x1c8] sm:$0xff]
    %v431 = vld [vmem:[#allocation8 + $0x1d0] sm:$0xff]
    %v432 = vld [vmem:[#allocation8 + $0x1d8] sm:$0xff]
    %v433 = vld [vmem:[#allocation8 + $0x1e0] sm:$0xff]
    %v434 = vld [vmem:[#allocation8 + $0x1e8] sm:$0xff]
    %v435 = vld [vmem:[#allocation8 + $0x1f0] sm:$0xff]
    %v436 = vld [vmem:[#allocation8 + $0x1f8] sm:$0xff]
    %v437 = vld [vmem:[#allocation8 + $0x200] sm:$0xff]
    %v438 = vld [vmem:[#allocation8 + $0x208] sm:$0xff]
    %v439 = vld [vmem:[#allocation8 + $0x210] sm:$0xff]
    %v440 = vld [vmem:[#allocation8 + $0x218] sm:$0xff]
    %v441 = vld [vmem:[#allocation8 + $0x220] sm:$0xff]
    %v442 = vld [vmem:[#allocation8 + $0x228] sm:$0xff]
    %v443 = vld [vmem:[#allocation8 + $0x230] sm:$0xff]
    %v444 = vld [vmem:[#allocation8 + $0x238] sm:$0xff]
    %v445 = vld [vmem:[#allocation8 + $0x240] sm:$0xff]
    %v446 = vld [vmem:[#allocation8 + $0x248] sm:$0xff]
    %v447 = vld [vmem:[#allocation8 + $0x250] sm:$0xff]
    %v448 = vld [vmem:[#allocation8 + $0x258] sm:$0xff]
    %v449 = vld [vmem:[#allocation8 + $0x260] sm:$0xff]
    %v450 = vld [vmem:[#allocation8 + $0x268] sm:$0xff]
    %v451 = vld [vmem:[#allocation8 + $0x270] sm:$0xff]
    %v452 = vld [vmem:[#allocation8 + $0x278] sm:$0xff]
    %v453 = vld [vmem:[#allocation8 + $0x280] sm:$0xff]
    %v454 = vld [vmem:[#allocation8 + $0x288] sm:$0xff]
    %v455 = vld [vmem:[#allocation8 + $0x290] sm:$0xff]
    %v456 = vld [vmem:[#allocation8 + $0x298] sm:$0xff]
    %v457 = vld [vmem:[#allocation8 + $0x2a0] sm:$0xff]
    %v458 = vld [vmem:[#allocation8 + $0x2a8] sm:$0xff]
    %v459 = vld [vmem:[#allocation8 + $0x2b0] sm:$0xff]
    %v460 = vld [vmem:[#allocation8 + $0x2b8] sm:$0xff]
    %v461 = vld [vmem:[#allocation8 + $0x2c0] sm:$0xff]
    %v462 = vld [vmem:[#allocation8 + $0x2c8] sm:$0xff]
    %v463 = vld [vmem:[#allocation8 + $0x2d0] sm:$0xff]
    %v464 = vld [vmem:[#allocation8 + $0x2d8] sm:$0xff]
    %v465 = vld [vmem:[#allocation8 + $0x2e0] sm:$0xff]
    %v466 = vld [vmem:[#allocation8 + $0x2e8] sm:$0xff]
    %v467 = vld [vmem:[#allocation8 + $0x2f0] sm:$0xff]
    %v468 = vld [vmem:[#allocation8 + $0x2f8] sm:$0xff]
    %v469 = vld [vmem:[#allocation8 + $0x300] sm:$0xff]
    %v470 = vld [vmem:[#allocation8 + $0x308] sm:$0xff]
    %v471 = vld [vmem:[#allocation8 + $0x310] sm:$0xff]
    %v472 = vld [vmem:[#allocation8 + $0x318] sm:$0xff]
    %v473 = vld [vmem:[#allocation8 + $0x320] sm:$0xff]
    %v474 = vld [vmem:[#allocation8 + $0x328] sm:$0xff]
    %v475 = vld [vmem:[#allocation8 + $0x330] sm:$0xff]
    %v476 = vld [vmem:[#allocation8 + $0x338] sm:$0xff]
    %v477 = vld [vmem:[#allocation8 + $0x340] sm:$0xff]
    %v478 = vld [vmem:[#allocation8 + $0x348] sm:$0xff]
    %v479 = vld [vmem:[#allocation8 + $0x350] sm:$0xff]
    %v480 = vld [vmem:[#allocation8 + $0x358] sm:$0xff]
    %v481 = vld [vmem:[#allocation8 + $0x360] sm:$0xff]
    %v482 = vld [vmem:[#allocation8 + $0x368] sm:$0xff]
    %v483 = vld [vmem:[#allocation8 + $0x370] sm:$0xff]
    %v484 = vld [vmem:[#allocation8 + $0x378] sm:$0xff]
    %v485 = vld [vmem:[#allocation8 + $0x380] sm:$0xff]
    %v486 = vld [vmem:[#allocation8 + $0x388] sm:$0xff]
    %v487 = vld [vmem:[#allocation8 + $0x390] sm:$0xff]
    %v488 = vld [vmem:[#allocation8 + $0x398] sm:$0xff]
    %v489 = vld [vmem:[#allocation8 + $0x3a0] sm:$0xff]
    %v490 = vld [vmem:[#allocation8 + $0x3a8] sm:$0xff]
    %v491 = vld [vmem:[#allocation8 + $0x3b0] sm:$0xff]
    %v492 = vld [vmem:[#allocation8 + $0x3b8] sm:$0xff]
    %v493 = vld [vmem:[#allocation8 + $0x3c0] sm:$0xff]
    %v494 = vld [vmem:[#allocation8 + $0x3c8] sm:$0xff]
    %v495 = vld [vmem:[#allocation8 + $0x3d0] sm:$0xff]
    %v496 = vld [vmem:[#allocation8 + $0x3d8] sm:$0xff]
    %v497 = vld [vmem:[#allocation8 + $0x3e0] sm:$0xff]
    %v498 = vld [vmem:[#allocation8 + $0x3e8] sm:$0xff]
    %v499 = vld [vmem:[#allocation8 + $0x3f0] sm:$0xff]
    %v500 = vld [vmem:[#allocation8 + $0x3f8] sm:$0xff]
    %v501 = vld [vmem:[#allocation8 + $0x400] sm:$0xff]
    %v502 = vld [vmem:[#allocation8 + $0x408] sm:$0xff]
    %v503 = vld [vmem:[#allocation8 + $0x410] sm:$0xff]
    %v504 = vld [vmem:[#allocation8 + $0x418] sm:$0xff]
    %v505 = vld [vmem:[#allocation8 + $0x420] sm:$0xff]
    %v506 = vld [vmem:[#allocation8 + $0x428] sm:$0xff]
    %v507 = vld [vmem:[#allocation8 + $0x430] sm:$0xff]
    %v508 = vld [vmem:[#allocation8 + $0x438] sm:$0xff]
    %v509 = vld [vmem:[#allocation8 + $0x440] sm:$0xff]
    %v510 = vld [vmem:[#allocation8 + $0x448] sm:$0xff]
    %v511 = vld [vmem:[#allocation8 + $0x450] sm:$0xff]
    %v512 = vld [vmem:[#allocation8 + $0x458] sm:$0xff]
    %v513 = vld [vmem:[#allocation8 + $0x460] sm:$0xff]
    %v514 = vld [vmem:[#allocation8 + $0x468] sm:$0xff]
    %v515 = vld [vmem:[#allocation8 + $0x470] sm:$0xff]
    %v516 = vld [vmem:[#allocation8 + $0x478] sm:$0xff]
    %v517 = vld [vmem:[#allocation8 + $0x480] sm:$0xff]
    %v518 = vld [vmem:[#allocation8 + $0x488] sm:$0xff]
    %v519 = vld [vmem:[#allocation8 + $0x490] sm:$0xff]
    %v520 = vld [vmem:[#allocation8 + $0x498] sm:$0xff]
    %v521 = vld [vmem:[#allocation8 + $0x4a0] sm:$0xff]
    %v522 = vld [vmem:[#allocation8 + $0x4a8] sm:$0xff]
    %v523 = vld [vmem:[#allocation8 + $0x4b0] sm:$0xff]
    %v524 = vld [vmem:[#allocation8 + $0x4b8] sm:$0xff]
    %v525 = vld [vmem:[#allocation8 + $0x4c0] sm:$0xff]
    %v526 = vld [vmem:[#allocation8 + $0x4c8] sm:$0xff]
    %v527 = vld [vmem:[#allocation8 + $0x4d0] sm:$0xff]
    %v528 = vld [vmem:[#allocation8 + $0x4d8] sm:$0xff]
    %v529 = vld [vmem:[#allocation8 + $0x4e0] sm:$0xff]
    %v530 = vld [vmem:[#allocation8 + $0x4e8] sm:$0xff]
    %v531 = vld [vmem:[#allocation8 + $0x4f0] sm:$0xff]
    %v532 = vld [vmem:[#allocation8 + $0x4f8] sm:$0xff]
    %v533 = vld [vmem:[#allocation8 + $0x500] sm:$0xff]
    %v534 = vld [vmem:[#allocation8 + $0x508] sm:$0xff]
    %v535 = vld [vmem:[#allocation8 + $0x510] sm:$0xff]
    %v536 = vld [vmem:[#allocation8 + $0x518] sm:$0xff]
    %v537 = vld [vmem:[#allocation8 + $0x520] sm:$0xff]
    %v538 = vld [vmem:[#allocation8 + $0x528] sm:$0xff]
    %v539 = vld [vmem:[#allocation8 + $0x530] sm:$0xff]
    %v540 = vld [vmem:[#allocation8 + $0x538] sm:$0xff]
    %v541 = vld [vmem:[#allocation8 + $0x540] sm:$0xff]
    %v542 = vld [vmem:[#allocation8 + $0x548] sm:$0xff]
    %v543 = vld [vmem:[#allocation8 + $0x550] sm:$0xff]
    %v544 = vld [vmem:[#allocation8 + $0x558] sm:$0xff]
    %v545 = vld [vmem:[#allocation8 + $0x560] sm:$0xff]
    %v546 = vld [vmem:[#allocation8 + $0x568] sm:$0xff]
    %v547 = vld [vmem:[#allocation8 + $0x570] sm:$0xff]
    %v548 = vld [vmem:[#allocation8 + $0x578] sm:$0xff]
    %v549 = vld [vmem:[#allocation8 + $0x580] sm:$0xff]
    %v550 = vld [vmem:[#allocation8 + $0x588] sm:$0xff]
    %v551 = vld [vmem:[#allocation8 + $0x590] sm:$0xff]
    %v552 = vld [vmem:[#allocation8 + $0x598] sm:$0xff]
    %v553 = vld [vmem:[#allocation8 + $0x5a0] sm:$0xff]
    %v554 = vld [vmem:[#allocation8 + $0x5a8] sm:$0xff]
    %v555 = vld [vmem:[#allocation8 + $0x5b0] sm:$0xff]
    %v556 = vld [vmem:[#allocation8 + $0x5b8] sm:$0xff]
    %v557 = vld [vmem:[#allocation8 + $0x5c0] sm:$0xff]
    %v558 = vld [vmem:[#allocation8 + $0x5c8] sm:$0xff]
    %v559 = vld [vmem:[#allocation8 + $0x5d0] sm:$0xff]
    %v560 = vld [vmem:[#allocation8 + $0x5d8] sm:$0xff]
    %v561 = vld [vmem:[#allocation8 + $0x5e0] sm:$0xff]
    %v562 = vld [vmem:[#allocation8 + $0x5e8] sm:$0xff]
    %v563 = vld [vmem:[#allocation8 + $0x5f0] sm:$0xff]
    %v564 = vld [vmem:[#allocation8 + $0x5f8] sm:$0xff]
    %v565 = vld [vmem:[#allocation10] sm:$0xff]
    %v566 = vld [vmem:[#allocation10 + $0x8] sm:$0xff]
    %v567 = vld [vmem:[#allocation10 + $0x10] sm:$0xff]
    %v568 = vld [vmem:[#allocation10 + $0x18] sm:$0xff]
    %v569 = vld [vmem:[#allocation10 + $0x20] sm:$0xff]
    %v570 = vld [vmem:[#allocation10 + $0x28] sm:$0xff]
    %v571 = vld [vmem:[#allocation10 + $0x30] sm:$0xff]
    %v572 = vld [vmem:[#allocation10 + $0x38] sm:$0xff]
    %v573 = vld [vmem:[#allocation11] sm:$0xff]
    %v574 = vld [vmem:[#allocation11 + $0x8] sm:$0xff]
    %v575 = vld [vmem:[#allocation11 + $0x10] sm:$0xff]
    %v576 = vld [vmem:[#allocation11 + $0x18] sm:$0xff]
    %v577 = vld [vmem:[#allocation11 + $0x20] sm:$0xff]
    %v578 = vld [vmem:[#allocation11 + $0x28] sm:$0xff]
    %v579 = vld [vmem:[#allocation11 + $0x30] sm:$0xff]
    %v580 = vld [vmem:[#allocation11 + $0x38] sm:$0xff]
    %v581 = vld [vmem:[#allocation11 + $0x40] sm:$0xff]
    %v582 = vld [vmem:[#allocation11 + $0x48] sm:$0xff]
    %v583 = vld [vmem:[#allocation11 + $0x50] sm:$0xff]
    %v584 = vld [vmem:[#allocation11 + $0x58] sm:$0xff]
    %v585 = vld [vmem:[#allocation11 + $0x60] sm:$0xff]
    %v586 = vld [vmem:[#allocation11 + $0x68] sm:$0xff]
    %v587 = vld [vmem:[#allocation11 + $0x70] sm:$0xff]
    %v588 = vld [vmem:[#allocation11 + $0x78] sm:$0xff]
    %v589 = vld [vmem:[#allocation11 + $0x80] sm:$0xff]
    %v590 = vld [vmem:[#allocation11 + $0x88] sm:$0xff]
    %v591 = vld [vmem:[#allocation11 + $0x90] sm:$0xff]
    %v592 = vld [vmem:[#allocation11 + $0x98] sm:$0xff]
    %v593 = vld [vmem:[#allocation11 + $0xa0] sm:$0xff]
    %v594 = vld [vmem:[#allocation11 + $0xa8] sm:$0xff]
    %v595 = vld [vmem:[#allocation11 + $0xb0] sm:$0xff]
    %v596 = vld [vmem:[#allocation11 + $0xb8] sm:$0xff]
    %v597 = vld [vmem:[#allocation11 + $0xc0] sm:$0xff]
    %v598 = vld [vmem:[#allocation11 + $0xc8] sm:$0xff]
    %v599 = vld [vmem:[#allocation11 + $0xd0] sm:$0xff]
    %v600 = vld [vmem:[#allocation11 + $0xd8] sm:$0xff]
    %v601 = vld [vmem:[#allocation11 + $0xe0] sm:$0xff]
    %v602 = vld [vmem:[#allocation11 + $0xe8] sm:$0xff]
    %v603 = vld [vmem:[#allocation11 + $0xf0] sm:$0xff]
    %v604 = vld [vmem:[#allocation11 + $0xf8] sm:$0xff]
    %v605 = vld [vmem:[#allocation11 + $0x100] sm:$0xff]
    %v606 = vld [vmem:[#allocation11 + $0x108] sm:$0xff]
    %v607 = vld [vmem:[#allocation11 + $0x110] sm:$0xff]
    %v608 = vld [vmem:[#allocation11 + $0x118] sm:$0xff]
    %v609 = vld [vmem:[#allocation11 + $0x120] sm:$0xff]
    %v610 = vld [vmem:[#allocation11 + $0x128] sm:$0xff]
    %v611 = vld [vmem:[#allocation11 + $0x130] sm:$0xff]
    %v612 = vld [vmem:[#allocation11 + $0x138] sm:$0xff]
    %v613 = vld [vmem:[#allocation11 + $0x140] sm:$0xff]
    %v614 = vld [vmem:[#allocation11 + $0x148] sm:$0xff]
    %v615 = vld [vmem:[#allocation11 + $0x150] sm:$0xff]
    %v616 = vld [vmem:[#allocation11 + $0x158] sm:$0xff]
    %v617 = vld [vmem:[#allocation11 + $0x160] sm:$0xff]
    %v618 = vld [vmem:[#allocation11 + $0x168] sm:$0xff]
    %v619 = vld [vmem:[#allocation11 + $0x170] sm:$0xff]
    %v620 = vld [vmem:[#allocation11 + $0x178] sm:$0xff]
    %v621 = vld [vmem:[#allocation11 + $0x180] sm:$0xff]
    %v622 = vld [vmem:[#allocation11 + $0x188] sm:$0xff]
    %v623 = vld [vmem:[#allocation11 + $0x190] sm:$0xff]
    %v624 = vld [vmem:[#allocation11 + $0x198] sm:$0xff]
    %v625 = vld [vmem:[#allocation11 + $0x1a0] sm:$0xff]
    %v626 = vld [vmem:[#allocation11 + $0x1a8] sm:$0xff]
    %v627 = vld [vmem:[#allocation11 + $0x1b0] sm:$0xff]
    %v628 = vld [vmem:[#allocation11 + $0x1b8] sm:$0xff]
    %v629 = vld [vmem:[#allocation11 + $0x1c0] sm:$0xff]
    %v630 = vld [vmem:[#allocation11 + $0x1c8] sm:$0xff]
    %v631 = vld [vmem:[#allocation11 + $0x1d0] sm:$0xff]
    %v632 = vld [vmem:[#allocation11 + $0x1d8] sm:$0xff]
    %v633 = vld [vmem:[#allocation11 + $0x1e0] sm:$0xff]
    %v634 = vld [vmem:[#allocation11 + $0x1e8] sm:$0xff]
    %v635 = vld [vmem:[#allocation11 + $0x1f0] sm:$0xff]
    %v636 = vld [vmem:[#allocation11 + $0x1f8] sm:$0xff]
    %v637 = vld [vmem:[#allocation13] sm:$0xff]
    %v638 = vld [vmem:[#allocation13 + $0x8] sm:$0xff]
    %v639 = vld [vmem:[#allocation13 + $0x10] sm:$0xff]
    %v640 = vld [vmem:[#allocation13 + $0x18] sm:$0xff]
    %v641 = vld [vmem:[#allocation13 + $0x20] sm:$0xff]
    %v642 = vld [vmem:[#allocation13 + $0x28] sm:$0xff]
    %v643 = vld [vmem:[#allocation13 + $0x30] sm:$0xff]
    %v644 = vld [vmem:[#allocation13 + $0x38] sm:$0xff]
    %v645 = vld [vmem:[#allocation13 + $0x40] sm:$0xff]
    %v646 = vld [vmem:[#allocation13 + $0x48] sm:$0xff]
    %v647 = vld [vmem:[#allocation13 + $0x50] sm:$0xff]
    %v648 = vld [vmem:[#allocation13 + $0x58] sm:$0xff]
    %v649 = vld [vmem:[#allocation13 + $0x60] sm:$0xff]
    %v650 = vld [vmem:[#allocation13 + $0x68] sm:$0xff]
    %v651 = vld [vmem:[#allocation13 + $0x70] sm:$0xff]
    %v652 = vld [vmem:[#allocation13 + $0x78] sm:$0xff]
    %v653 = vld [vmem:[#allocation13 + $0x80] sm:$0xff]
    %v654 = vld [vmem:[#allocation13 + $0x88] sm:$0xff]
    %v655 = vld [vmem:[#allocation13 + $0x90] sm:$0xff]
    %v656 = vld [vmem:[#allocation13 + $0x98] sm:$0xff]
    %v657 = vld [vmem:[#allocation13 + $0xa0] sm:$0xff]
    %v658 = vld [vmem:[#allocation13 + $0xa8] sm:$0xff]
    %v659 = vld [vmem:[#allocation13 + $0xb0] sm:$0xff]
    %v660 = vld [vmem:[#allocation13 + $0xb8] sm:$0xff]
    %v661 = vld [vmem:[#allocation13 + $0xc0] sm:$0xff]
    %v662 = vld [vmem:[#allocation13 + $0xc8] sm:$0xff]
    %v663 = vld [vmem:[#allocation13 + $0xd0] sm:$0xff]
    %v664 = vld [vmem:[#allocation13 + $0xd8] sm:$0xff]
    %v665 = vld [vmem:[#allocation13 + $0xe0] sm:$0xff]
    %v666 = vld [vmem:[#allocation13 + $0xe8] sm:$0xff]
    %v667 = vld [vmem:[#allocation13 + $0xf0] sm:$0xff]
    %v668 = vld [vmem:[#allocation13 + $0xf8] sm:$0xff]
    %v669 = vld [vmem:[#allocation14] sm:$0xff]
    %v670 = vld [vmem:[#allocation14 + $0x8] sm:$0xff]
    %v671 = vld [vmem:[#allocation14 + $0x10] sm:$0xff]
    %v672 = vld [vmem:[#allocation14 + $0x18] sm:$0xff]
    %v673 = vld [vmem:[#allocation14 + $0x20] sm:$0xff]
    %v674 = vld [vmem:[#allocation14 + $0x28] sm:$0xff]
    %v675 = vld [vmem:[#allocation14 + $0x30] sm:$0xff]
    %v676 = vld [vmem:[#allocation14 + $0x38] sm:$0xff]
    %v677 = vld [vmem:[#allocation14 + $0x40] sm:$0xff]
    %v678 = vld [vmem:[#allocation14 + $0x48] sm:$0xff]
    %v679 = vld [vmem:[#allocation14 + $0x50] sm:$0xff]
    %v680 = vld [vmem:[#allocation14 + $0x58] sm:$0xff]
    %v681 = vld [vmem:[#allocation14 + $0x60] sm:$0xff]
    %v682 = vld [vmem:[#allocation14 + $0x68] sm:$0xff]
    %v683 = vld [vmem:[#allocation14 + $0x70] sm:$0xff]
    %v684 = vld [vmem:[#allocation14 + $0x78] sm:$0xff]
    %v685 = vld [vmem:[#allocation14 + $0x80] sm:$0xff]
    %v686 = vld [vmem:[#allocation14 + $0x88] sm:$0xff]
    %v687 = vld [vmem:[#allocation14 + $0x90] sm:$0xff]
    %v688 = vld [vmem:[#allocation14 + $0x98] sm:$0xff]
    %v689 = vld [vmem:[#allocation14 + $0xa0] sm:$0xff]
    %v690 = vld [vmem:[#allocation14 + $0xa8] sm:$0xff]
    %v691 = vld [vmem:[#allocation14 + $0xb0] sm:$0xff]
    %v692 = vld [vmem:[#allocation14 + $0xb8] sm:$0xff]
    %v693 = vld [vmem:[#allocation14 + $0xc0] sm:$0xff]
    %v694 = vld [vmem:[#allocation14 + $0xc8] sm:$0xff]
    %v695 = vld [vmem:[#allocation14 + $0xd0] sm:$0xff]
    %v696 = vld [vmem:[#allocation14 + $0xd8] sm:$0xff]
    %v697 = vld [vmem:[#allocation14 + $0xe0] sm:$0xff]
    %v698 = vld [vmem:[#allocation14 + $0xe8] sm:$0xff]
    %v699 = vld [vmem:[#allocation14 + $0xf0] sm:$0xff]
    %v700 = vld [vmem:[#allocation14 + $0xf8] sm:$0xff]
    %v701 = vld [vmem:[#allocation16] sm:$0xff]
    %v702 = vld [vmem:[#allocation16 + $0x8] sm:$0xff]
    %v703 = vld [vmem:[#allocation16 + $0x10] sm:$0xff]
    %v704 = vld [vmem:[#allocation16 + $0x18] sm:$0xff]
    %v705 = vld [vmem:[#allocation16 + $0x20] sm:$0xff]
    %v706 = vld [vmem:[#allocation16 + $0x28] sm:$0xff]
    %v707 = vld [vmem:[#allocation16 + $0x30] sm:$0xff]
    %v708 = vld [vmem:[#allocation16 + $0x38] sm:$0xff]
    %v709 = vld [vmem:[#allocation16 + $0x40] sm:$0xff]
    %v710 = vld [vmem:[#allocation16 + $0x48] sm:$0xff]
    %v711 = vld [vmem:[#allocation16 + $0x50] sm:$0xff]
    %v712 = vld [vmem:[#allocation16 + $0x58] sm:$0xff]
    %v713 = vld [vmem:[#allocation16 + $0x60] sm:$0xff]
    %v714 = vld [vmem:[#allocation16 + $0x68] sm:$0xff]
    %v715 = vld [vmem:[#allocation16 + $0x70] sm:$0xff]
    %v716 = vld [vmem:[#allocation16 + $0x78] sm:$0xff]
    %v717 = vld [vmem:[#allocation16 + $0x80] sm:$0xff]
    %v718 = vld [vmem:[#allocation16 + $0x88] sm:$0xff]
    %v719 = vld [vmem:[#allocation16 + $0x90] sm:$0xff]
    %v720 = vld [vmem:[#allocation16 + $0x98] sm:$0xff]
    %v721 = vld [vmem:[#allocation16 + $0xa0] sm:$0xff]
    %v722 = vld [vmem:[#allocation16 + $0xa8] sm:$0xff]
    %v723 = vld [vmem:[#allocation16 + $0xb0] sm:$0xff]
    %v724 = vld [vmem:[#allocation16 + $0xb8] sm:$0xff]
    %v725 = vld [vmem:[#allocation16 + $0xc0] sm:$0xff]
    %v726 = vld [vmem:[#allocation16 + $0xc8] sm:$0xff]
    %v727 = vld [vmem:[#allocation16 + $0xd0] sm:$0xff]
    %v728 = vld [vmem:[#allocation16 + $0xd8] sm:$0xff]
    %v729 = vld [vmem:[#allocation16 + $0xe0] sm:$0xff]
    %v730 = vld [vmem:[#allocation16 + $0xe8] sm:$0xff]
    %v731 = vld [vmem:[#allocation16 + $0xf0] sm:$0xff]
    %v732 = vld [vmem:[#allocation16 + $0xf8] sm:$0xff]
    %v733 = vld [vmem:[#allocation17] sm:$0xff]
    %v734 = vld [vmem:[#allocation17 + $0x8] sm:$0xff]
    %v735 = vld [vmem:[#allocation17 + $0x10] sm:$0xff]
    %v736 = vld [vmem:[#allocation17 + $0x18] sm:$0xff]
    %v737 = vld [vmem:[#allocation17 + $0x20] sm:$0xff]
    %v738 = vld [vmem:[#allocation17 + $0x28] sm:$0xff]
    %v739 = vld [vmem:[#allocation17 + $0x30] sm:$0xff]
    %v740 = vld [vmem:[#allocation17 + $0x38] sm:$0xff]
    %v741 = vld [vmem:[#allocation17 + $0x40] sm:$0xff]
    %v742 = vld [vmem:[#allocation17 + $0x48] sm:$0xff]
    %v743 = vld [vmem:[#allocation17 + $0x50] sm:$0xff]
    %v744 = vld [vmem:[#allocation17 + $0x58] sm:$0xff]
    %v745 = vld [vmem:[#allocation17 + $0x60] sm:$0xff]
    %v746 = vld [vmem:[#allocation17 + $0x68] sm:$0xff]
    %v747 = vld [vmem:[#allocation17 + $0x70] sm:$0xff]
    %v748 = vld [vmem:[#allocation17 + $0x78] sm:$0xff]
    %v749 = vld [vmem:[#allocation17 + $0x80] sm:$0xff]
    %v750 = vld [vmem:[#allocation17 + $0x88] sm:$0xff]
    %v751 = vld [vmem:[#allocation17 + $0x90] sm:$0xff]
    %v752 = vld [vmem:[#allocation17 + $0x98] sm:$0xff]
    %v753 = vld [vmem:[#allocation17 + $0xa0] sm:$0xff]
    %v754 = vld [vmem:[#allocation17 + $0xa8] sm:$0xff]
    %v755 = vld [vmem:[#allocation17 + $0xb0] sm:$0xff]
    %v756 = vld [vmem:[#allocation17 + $0xb8] sm:$0xff]
    %v757 = vld [vmem:[#allocation17 + $0xc0] sm:$0xff]
    %v758 = vld [vmem:[#allocation17 + $0xc8] sm:$0xff]
    %v759 = vld [vmem:[#allocation17 + $0xd0] sm:$0xff]
    %v760 = vld [vmem:[#allocation17 + $0xd8] sm:$0xff]
    %v761 = vld [vmem:[#allocation17 + $0xe0] sm:$0xff]
    %v762 = vld [vmem:[#allocation17 + $0xe8] sm:$0xff]
    %v763 = vld [vmem:[#allocation17 + $0xf0] sm:$0xff]
    %v764 = vld [vmem:[#allocation17 + $0xf8] sm:$0xff]
    %v765 = vld [vmem:[#allocation19] sm:$0xff]
    %v766 = vld [vmem:[#allocation19 + $0x8] sm:$0xff]
    %v767 = vld [vmem:[#allocation19 + $0x10] sm:$0xff]
    %v768 = vld [vmem:[#allocation19 + $0x18] sm:$0xff]
    %v769 = vld [vmem:[#allocation19 + $0x20] sm:$0xff]
    %v770 = vld [vmem:[#allocation19 + $0x28] sm:$0xff]
    %v771 = vld [vmem:[#allocation19 + $0x30] sm:$0xff]
    %v772 = vld [vmem:[#allocation19 + $0x38] sm:$0xff]
    %v773 = vld [vmem:[#allocation19 + $0x40] sm:$0xff]
    %v774 = vld [vmem:[#allocation19 + $0x48] sm:$0xff]
    %v775 = vld [vmem:[#allocation19 + $0x50] sm:$0xff]
    %v776 = vld [vmem:[#allocation19 + $0x58] sm:$0xff]
    %v777 = vld [vmem:[#allocation19 + $0x60] sm:$0xff]
    %v778 = vld [vmem:[#allocation19 + $0x68] sm:$0xff]
    %v779 = vld [vmem:[#allocation19 + $0x70] sm:$0xff]
    %v780 = vld [vmem:[#allocation19 + $0x78] sm:$0xff]
    %v781 = vld [vmem:[#allocation19 + $0x80] sm:$0xff]
    %v782 = vld [vmem:[#allocation19 + $0x88] sm:$0xff]
    %v783 = vld [vmem:[#allocation19 + $0x90] sm:$0xff]
    %v784 = vld [vmem:[#allocation19 + $0x98] sm:$0xff]
    %v785 = vld [vmem:[#allocation19 + $0xa0] sm:$0xff]
    %v786 = vld [vmem:[#allocation19 + $0xa8] sm:$0xff]
    %v787 = vld [vmem:[#allocation19 + $0xb0] sm:$0xff]
    %v788 = vld [vmem:[#allocation19 + $0xb8] sm:$0xff]
    %v789 = vld [vmem:[#allocation19 + $0xc0] sm:$0xff]
    %v790 = vld [vmem:[#allocation19 + $0xc8] sm:$0xff]
    %v791 = vld [vmem:[#allocation19 + $0xd0] sm:$0xff]
    %v792 = vld [vmem:[#allocation19 + $0xd8] sm:$0xff]
    %v793 = vld [vmem:[#allocation19 + $0xe0] sm:$0xff]
    %v794 = vld [vmem:[#allocation19 + $0xe8] sm:$0xff]
    %v795 = vld [vmem:[#allocation19 + $0xf0] sm:$0xff]
    %v796 = vld [vmem:[#allocation19 + $0xf8] sm:$0xff]
    %v797 = vld [vmem:[#allocation20] sm:$0xff]
    %v798 = vld [vmem:[#allocation20 + $0x8] sm:$0xff]
    %v799 = vld [vmem:[#allocation20 + $0x10] sm:$0xff]
    %v800 = vld [vmem:[#allocation20 + $0x18] sm:$0xff]
    %v801 = vld [vmem:[#allocation20 + $0x20] sm:$0xff]
    %v802 = vld [vmem:[#allocation20 + $0x28] sm:$0xff]
    %v803 = vld [vmem:[#allocation20 + $0x30] sm:$0xff]
    %v804 = vld [vmem:[#allocation20 + $0x38] sm:$0xff]
    %v805 = vld [vmem:[#allocation20 + $0x40] sm:$0xff]
    %v806 = vld [vmem:[#allocation20 + $0x48] sm:$0xff]
    %v807 = vld [vmem:[#allocation20 + $0x50] sm:$0xff]
    %v808 = vld [vmem:[#allocation20 + $0x58] sm:$0xff]
    %v809 = vld [vmem:[#allocation20 + $0x60] sm:$0xff]
    %v810 = vld [vmem:[#allocation20 + $0x68] sm:$0xff]
    %v811 = vld [vmem:[#allocation20 + $0x70] sm:$0xff]
    %v812 = vld [vmem:[#allocation20 + $0x78] sm:$0xff]
    %v813 = vld [vmem:[#allocation20 + $0x80] sm:$0xff]
    %v814 = vld [vmem:[#allocation20 + $0x88] sm:$0xff]
    %v815 = vld [vmem:[#allocation20 + $0x90] sm:$0xff]
    %v816 = vld [vmem:[#allocation20 + $0x98] sm:$0xff]
    %v817 = vld [vmem:[#allocation20 + $0xa0] sm:$0xff]
    %v818 = vld [vmem:[#allocation20 + $0xa8] sm:$0xff]
    %v819 = vld [vmem:[#allocation20 + $0xb0] sm:$0xff]
    %v820 = vld [vmem:[#allocation20 + $0xb8] sm:$0xff]
    %v821 = vld [vmem:[#allocation20 + $0xc0] sm:$0xff]
    %v822 = vld [vmem:[#allocation20 + $0xc8] sm:$0xff]
    %v823 = vld [vmem:[#allocation20 + $0xd0] sm:$0xff]
    %v824 = vld [vmem:[#allocation20 + $0xd8] sm:$0xff]
    %v825 = vld [vmem:[#allocation20 + $0xe0] sm:$0xff]
    %v826 = vld [vmem:[#allocation20 + $0xe8] sm:$0xff]
    %v827 = vld [vmem:[#allocation20 + $0xf0] sm:$0xff]
    %v828 = vld [vmem:[#allocation20 + $0xf8] sm:$0xff]
    %v829 = vld [vmem:[%s14] sm:$0xf]
    %v830 = vld [vmem:[%s14 + $0x4] sm:$0xf]
    %v831 = vld [vmem:[%s14 + $0x8] sm:$0xf]
    %v832 = vld [vmem:[%s14 + $0xc] sm:$0xf]
    %v833 = vld [vmem:[%s14 + $0x10] sm:$0xf]
    %v834 = vld [vmem:[%s14 + $0x14] sm:$0xf]
    %v835 = vld [vmem:[%s14 + $0x18] sm:$0xf]
    %v836 = vld [vmem:[%s14 + $0x1c] sm:$0xf]
    %v837 = vld [vmem:[%s14 + $0x20] sm:$0xf]
    %v838 = vld [vmem:[%s14 + $0x24] sm:$0xf]
    %v839 = vld [vmem:[%s14 + $0x28] sm:$0xf]
    %v840 = vld [vmem:[%s14 + $0x2c] sm:$0xf]
    %v841 = vld [vmem:[%s14 + $0x30] sm:$0xf]
    %v842 = vld [vmem:[%s14 + $0x34] sm:$0xf]
    %v843 = vld [vmem:[%s14 + $0x38] sm:$0xf]
    %v844 = vld [vmem:[%s14 + $0x3c] sm:$0xf]
    %v845 = vld [vmem:[%s14 + $0x40] sm:$0xf]
    %v846 = vld [vmem:[%s14 + $0x44] sm:$0xf]
    %v847 = vld [vmem:[%s14 + $0x48] sm:$0xf]
    %v848 = vld [vmem:[%s14 + $0x4c] sm:$0xf]
    %v849 = vld [vmem:[%s14 + $0x50] sm:$0xf]
    %v850 = vld [vmem:[%s14 + $0x54] sm:$0xf]
    %v851 = vld [vmem:[%s14 + $0x58] sm:$0xf]
    %v852 = vld [vmem:[%s14 + $0x5c] sm:$0xf]
    %v853 = vld [vmem:[%s14 + $0x60] sm:$0xf]
    %v854 = vld [vmem:[%s14 + $0x64] sm:$0xf]
    %v855 = vld [vmem:[%s14 + $0x68] sm:$0xf]
    %v856 = vld [vmem:[%s14 + $0x6c] sm:$0xf]
    %v857 = vld [vmem:[%s14 + $0x70] sm:$0xf]
    %v858 = vld [vmem:[%s14 + $0x74] sm:$0xf]
    %v859 = vld [vmem:[%s14 + $0x78] sm:$0xf]
    %v860 = vld [vmem:[%s14 + $0x7c] sm:$0xf]
    %v861 = vld [vmem:[#allocation22] sm:$0xf]
    %v862 = vld [vmem:[#allocation22 + $0x4] sm:$0xf]
    %v863 = vld [vmem:[#allocation22 + $0x8] sm:$0xf]
    %v864 = vld [vmem:[#allocation22 + $0xc] sm:$0xf]
    %v865 = vld [vmem:[#allocation22 + $0x10] sm:$0xf]
    %v866 = vld [vmem:[#allocation22 + $0x14] sm:$0xf]
    %v867 = vld [vmem:[#allocation22 + $0x18] sm:$0xf]
    %v868 = vld [vmem:[#allocation22 + $0x1c] sm:$0xf]
    %v869 = vld [vmem:[#allocation22 + $0x20] sm:$0xf]
    %v870 = vld [vmem:[#allocation22 + $0x24] sm:$0xf]
    %v871 = vld [vmem:[#allocation22 + $0x28] sm:$0xf]
    %v872 = vld [vmem:[#allocation22 + $0x2c] sm:$0xf]
    %v873 = vld [vmem:[#allocation22 + $0x30] sm:$0xf]
    %v874 = vld [vmem:[#allocation22 + $0x34] sm:$0xf]
    %v875 = vld [vmem:[#allocation22 + $0x38] sm:$0xf]
    %v876 = vld [vmem:[#allocation22 + $0x3c] sm:$0xf]
    %v877 = vld [vmem:[#allocation23] sm:$0xf]
    %v878 = vld [vmem:[#allocation23 + $0x4] sm:$0xf]
    %v879 = vld [vmem:[#allocation23 + $0x8] sm:$0xf]
    %v880 = vld [vmem:[#allocation23 + $0xc] sm:$0xf]
    %v881 = vld [vmem:[#allocation23 + $0x10] sm:$0xf]
    %v882 = vld [vmem:[#allocation23 + $0x14] sm:$0xf]
    %v883 = vld [vmem:[#allocation23 + $0x18] sm:$0xf]
    %v884 = vld [vmem:[#allocation23 + $0x1c] sm:$0xf]
    %v885 = vld [vmem:[#allocation23 + $0x20] sm:$0xf]
    %v886 = vld [vmem:[#allocation23 + $0x24] sm:$0xf]
    %v887 = vld [vmem:[#allocation23 + $0x28] sm:$0xf]
    %v888 = vld [vmem:[#allocation23 + $0x2c] sm:$0xf]
    %v889 = vld [vmem:[#allocation23 + $0x30] sm:$0xf]
    %v890 = vld [vmem:[#allocation23 + $0x34] sm:$0xf]
    %v891 = vld [vmem:[#allocation23 + $0x38] sm:$0xf]
    %v892 = vld [vmem:[#allocation23 + $0x3c] sm:$0xf]
    %v893 = vld [vmem:[%s17] sm:$0xf]
    %v894 = vld [vmem:[%s17 + $0x4] sm:$0xf]
    %v895 = vld [vmem:[%s17 + $0x8] sm:$0xf]
    %v896 = vld [vmem:[%s17 + $0xc] sm:$0xf]
    %v897 = vld [vmem:[%s17 + $0x10] sm:$0xf]
    %v898 = vld [vmem:[%s17 + $0x14] sm:$0xf]
    %v899 = vld [vmem:[%s17 + $0x18] sm:$0xf]
    %v900 = vld [vmem:[%s17 + $0x1c] sm:$0xf]
    %v901 = vld [vmem:[%s17 + $0x20] sm:$0xf]
    %v902 = vld [vmem:[%s17 + $0x24] sm:$0xf]
    %v903 = vld [vmem:[%s17 + $0x28] sm:$0xf]
    %v904 = vld [vmem:[%s17 + $0x2c] sm:$0xf]
    %v905 = vld [vmem:[%s17 + $0x30] sm:$0xf]
    %v906 = vld [vmem:[%s17 + $0x34] sm:$0xf]
    %v907 = vld [vmem:[%s17 + $0x38] sm:$0xf]
    %v908 = vld [vmem:[%s17 + $0x3c] sm:$0xf]
    %v909 = vld [vmem:[#allocation25] sm:$0xf]
    %v910 = vld [vmem:[#allocation25 + $0x4] sm:$0xf]
    %v911 = vld [vmem:[#allocation25 + $0x8] sm:$0xf]
    %v912 = vld [vmem:[#allocation25 + $0xc] sm:$0xf]
    %v913 = vld [vmem:[#allocation25 + $0x10] sm:$0xf]
    %v914 = vld [vmem:[#allocation25 + $0x14] sm:$0xf]
    %v915 = vld [vmem:[#allocation25 + $0x18] sm:$0xf]
    %v916 = vld [vmem:[#allocation25 + $0x1c] sm:$0xf]
    %v917 = vld [vmem:[%s2] ss:$8 sm:$0x3]
    %v918 = vld [vmem:[%s2 + $0x1] ss:$0 sm:$0xff]
    %s919 = scalar_lea.vmem %s2, 2
    %v920 = vld [vmem:[%s919] ss:$8 sm:$0xf]
    %s921 = scalar_lea.vmem %s2, 3
    %v922 = vld [vmem:[%s921] ss:$8 sm:$0x3]
    %s923 = scalar_lea.vmem %s2, 4
    %v924 = vld [vmem:[%s923] ss:$8 sm:$0x3]
    %s925 = scalar_lea.vmem %s2, 5
    %v926 = vld [vmem:[%s925] ss:$8 sm:$0x3]
    %s927 = scalar_lea.vmem %s2, 6
    %v928 = vld [vmem:[%s927] ss:$8 sm:$0x3]
    %s929 = scalar_lea.vmem %s2, 7
    %v930 = vld [vmem:[%s929] ss:$8 sm:$0x3]
    %s931 = scalar_lea.vmem %s2, 32
    %v932 = vld [vmem:[%s931] ss:$8 sm:$0x3]
    %s933 = scalar_lea.vmem %s2, 33
    %v934 = vld [vmem:[%s933] ss:$8 sm:$0x3]
    %s935 = scalar_lea.vmem %s2, 34
    %v936 = vld [vmem:[%s935] ss:$8 sm:$0x3]
    %s937 = scalar_lea.vmem %s2, 35
    %v938 = vld [vmem:[%s937] ss:$8 sm:$0x3]
    %s939 = scalar_lea.vmem %s2, 36
    %v940 = vld [vmem:[%s939] ss:$8 sm:$0x3]
    %s941 = scalar_lea.vmem %s2, 37
    %v942 = vld [vmem:[%s941] ss:$8 sm:$0x3]
    %s943 = scalar_lea.vmem %s2, 38
    %v944 = vld [vmem:[%s943] ss:$8 sm:$0x3]
    %s945 = scalar_lea.vmem %s2, 39
    %v946 = vld [vmem:[%s945] ss:$8 sm:$0x3]
    %s947 = scalar_lea.vmem %s2, 64
    %v948 = vld [vmem:[%s947] ss:$8 sm:$0x3]
    %s949 = scalar_lea.vmem %s2, 65
    %v950 = vld [vmem:[%s949] ss:$8 sm:$0x3]
    %v951 = vld [vmem:[%s2 + $0x42] ss:$0 sm:$0xff]
    %v952 = vld [vmem:[%s2 + $0x43] ss:$0 sm:$0xff]
    %v953 = vld [vmem:[%s2 + $0x44] ss:$0 sm:$0xff]
    %v954 = vld [vmem:[%s2 + $0x45] ss:$0 sm:$0xff]
    %v955 = vld [vmem:[%s2 + $0x46] ss:$0 sm:$0xff]
    %v956 = vld [vmem:[#allocation2] sm:$0xff]
    %v957 = vld [vmem:[#allocation2 + $0x8] sm:$0xff]
    %v958 = vld [vmem:[#allocation2 + $0x10] sm:$0xff]
    %v959 = vld [vmem:[#allocation2 + $0x18] sm:$0xff]
    %v960 = vld [vmem:[#allocation2 + $0x20] sm:$0xff]
    %v961 = vld [vmem:[#allocation2 + $0x28] sm:$0xff]
    %v962 = vld [vmem:[#allocation5] sm:$0xff]
    %v963 = vld [vmem:[#allocation5 + $0x8] sm:$0xff]
    %v964 = vld [vmem:[#allocation5 + $0x10] sm:$0xff]
    %v965 = vpack.c.bf16 %v962, %v962
    %v966 = vpack.c.bf16 %v963, %v963
    %v967 = vpack.c.bf16 %v964, %v964
    %v969 = vperm.slane %v917, 0
    %v970 = vperm.slane %v917, 1
    %v1021 = vunpack.c.l.b16 %v293
    %v1022 = vunpack.c.h.b16 %v293
    %v1023 = vunpack.c.l.b16 %v294
    %v1024 = vunpack.c.h.b16 %v294
    %v1025 = vunpack.c.l.b16 %v295
    %v1026 = vunpack.c.h.b16 %v295
    %v1027 = vunpack.c.l.b16 %v296
    %v1028 = vunpack.c.h.b16 %v296
    %v1029 = vunpack.c.l.b16 %v297
    %v1030 = vunpack.c.h.b16 %v297
    %v1031 = vunpack.c.l.b16 %v298
    %v1032 = vunpack.c.h.b16 %v298
    %v1033 = vunpack.c.l.b16 %v299
    %v1034 = vunpack.c.h.b16 %v299
    %v1035 = vunpack.c.l.b16 %v300
    %v1036 = vunpack.c.h.b16 %v300
    %v1037 = vunpack.c.l.b16 %v301
    %v1038 = vunpack.c.h.b16 %v301
    %v1039 = vunpack.c.l.b16 %v302
    %v1040 = vunpack.c.h.b16 %v302
    %v1041 = vunpack.c.l.b16 %v303
    %v1042 = vunpack.c.h.b16 %v303
    %v1043 = vunpack.c.l.b16 %v304
    %v1044 = vunpack.c.h.b16 %v304
    %v1045 = vunpack.c.l.b16 %v305
    %v1046 = vunpack.c.h.b16 %v305
    %v1047 = vunpack.c.l.b16 %v306
    %v1048 = vunpack.c.h.b16 %v306
    %v1049 = vunpack.c.l.b16 %v307
    %v1050 = vunpack.c.h.b16 %v307
    %v1051 = vunpack.c.l.b16 %v308
    %v1052 = vunpack.c.h.b16 %v308
    %v1053 = vunpack.c.l.b16 %v309
    %v1054 = vunpack.c.h.b16 %v309
    %v1055 = vunpack.c.l.b16 %v310
    %v1056 = vunpack.c.h.b16 %v310
    %v1057 = vunpack.c.l.b16 %v311
    %v1058 = vunpack.c.h.b16 %v311
    %v1059 = vunpack.c.l.b16 %v312
    %v1060 = vunpack.c.h.b16 %v312
    %v1061 = vunpack.c.l.b16 %v313
    %v1062 = vunpack.c.h.b16 %v313
    %v1063 = vunpack.c.l.b16 %v314
    %v1064 = vunpack.c.h.b16 %v314
    %v1065 = vunpack.c.l.b16 %v315
    %v1066 = vunpack.c.h.b16 %v315
    %v1067 = vunpack.c.l.b16 %v316
    %v1068 = vunpack.c.h.b16 %v316
    %v1069 = vunpack.c.l.b16 %v317
    %v1070 = vunpack.c.h.b16 %v317
    %v1071 = vunpack.c.l.b16 %v318
    %v1072 = vunpack.c.h.b16 %v318
    %v1073 = vunpack.c.l.b16 %v319
    %v1074 = vunpack.c.h.b16 %v319
    %v1075 = vunpack.c.l.b16 %v320
    %v1076 = vunpack.c.h.b16 %v320
    %v1077 = vunpack.c.l.b16 %v321
    %v1078 = vunpack.c.h.b16 %v321
    %v1079 = vunpack.c.l.b16 %v322
    %v1080 = vunpack.c.h.b16 %v322
    %v1081 = vunpack.c.l.b16 %v323
    %v1082 = vunpack.c.h.b16 %v323
    %v1083 = vunpack.c.l.b16 %v324
    %v1084 = vunpack.c.h.b16 %v324
    %v1085 = vunpack.c.l.b16 %v325
    %v1086 = vunpack.c.h.b16 %v325
    %v1087 = vunpack.c.l.b16 %v326
    %v1088 = vunpack.c.h.b16 %v326
    %v1089 = vunpack.c.l.b16 %v327
    %v1090 = vunpack.c.h.b16 %v327
    %v1091 = vunpack.c.l.b16 %v328
    %v1092 = vunpack.c.h.b16 %v328
    %v1093 = vunpack.c.l.b16 %v329
    %v1094 = vunpack.c.h.b16 %v329
    %v1095 = vunpack.c.l.b16 %v330
    %v1096 = vunpack.c.h.b16 %v330
    %v1097 = vunpack.c.l.b16 %v331
    %v1098 = vunpack.c.h.b16 %v331
    %v1099 = vunpack.c.l.b16 %v332
    %v1100 = vunpack.c.h.b16 %v332
    %v1101 = vunpack.c.l.b16 %v333
    %v1102 = vunpack.c.h.b16 %v333
    %v1103 = vunpack.c.l.b16 %v334
    %v1104 = vunpack.c.h.b16 %v334
    %v1105 = vunpack.c.l.b16 %v335
    %v1106 = vunpack.c.h.b16 %v335
    %v1107 = vunpack.c.l.b16 %v336
    %v1108 = vunpack.c.h.b16 %v336
    %v1109 = vunpack.c.l.b16 %v337
    %v1110 = vunpack.c.h.b16 %v337
    %v1111 = vunpack.c.l.b16 %v338
    %v1112 = vunpack.c.h.b16 %v338
    %v1113 = vunpack.c.l.b16 %v339
    %v1114 = vunpack.c.h.b16 %v339
    %v1115 = vunpack.c.l.b16 %v340
    %v1116 = vunpack.c.h.b16 %v340
    %v1117 = vpack.c.b16 %v1023, %v1021
    %v1118 = vpack.c.b16 %v1024, %v1022
    %v1119 = vpack.c.b16 %v1027, %v1025
    %v1120 = vpack.c.b16 %v1028, %v1026
    %v1121 = vpack.c.b16 %v1031, %v1029
    %v1122 = vpack.c.b16 %v1032, %v1030
    %v1123 = vpack.c.b16 %v1035, %v1033
    %v1124 = vpack.c.b16 %v1036, %v1034
    %v1125 = vpack.c.b16 %v1039, %v1037
    %v1126 = vpack.c.b16 %v1040, %v1038
    %v1127 = vpack.c.b16 %v1043, %v1041
    %v1128 = vpack.c.b16 %v1044, %v1042
    %v1129 = vpack.c.b16 %v1047, %v1045
    %v1130 = vpack.c.b16 %v1048, %v1046
    %v1131 = vpack.c.b16 %v1051, %v1049
    %v1132 = vpack.c.b16 %v1052, %v1050
    %v1133 = vpack.c.b16 %v1055, %v1053
    %v1134 = vpack.c.b16 %v1056, %v1054
    %v1135 = vpack.c.b16 %v1059, %v1057
    %v1136 = vpack.c.b16 %v1060, %v1058
    %v1137 = vpack.c.b16 %v1063, %v1061
    %v1138 = vpack.c.b16 %v1064, %v1062
    %v1139 = vpack.c.b16 %v1067, %v1065
    %v1140 = vpack.c.b16 %v1068, %v1066
    %v1141 = vpack.c.b16 %v1071, %v1069
    %v1142 = vpack.c.b16 %v1072, %v1070
    %v1143 = vpack.c.b16 %v1075, %v1073
    %v1144 = vpack.c.b16 %v1076, %v1074
    %v1145 = vpack.c.b16 %v1079, %v1077
    %v1146 = vpack.c.b16 %v1080, %v1078
    %v1147 = vpack.c.b16 %v1083, %v1081
    %v1148 = vpack.c.b16 %v1084, %v1082
    %v1149 = vpack.c.b16 %v1087, %v1085
    %v1150 = vpack.c.b16 %v1088, %v1086
    %v1151 = vpack.c.b16 %v1091, %v1089
    %v1152 = vpack.c.b16 %v1092, %v1090
    %v1153 = vpack.c.b16 %v1095, %v1093
    %v1154 = vpack.c.b16 %v1096, %v1094
    %v1155 = vpack.c.b16 %v1099, %v1097
    %v1156 = vpack.c.b16 %v1100, %v1098
    %v1157 = vpack.c.b16 %v1103, %v1101
    %v1158 = vpack.c.b16 %v1104, %v1102
    %v1159 = vpack.c.b16 %v1107, %v1105
    %v1160 = vpack.c.b16 %v1108, %v1106
    %v1161 = vpack.c.b16 %v1111, %v1109
    %v1162 = vpack.c.b16 %v1112, %v1110
    %v1163 = vpack.c.b16 %v1115, %v1113
    %v1164 = vpack.c.b16 %v1116, %v1114
    %1213 = vmatpush.bf16.msra.mxu0 %v1131
    %1214 = vmatpush.bf16.msra.mxu0 %v1129
    %1215 = vmatpush.bf16.msra.mxu0 %v1127
    %1216 = vmatpush.bf16.msra.mxu0 %v1125
    %1217 = vmatpush.bf16.msra.mxu0 %v1123
    %1218 = vmatpush.bf16.msra.mxu0 %v1121
    %1219 = vmatpush.bf16.msra.mxu0 %v1119
    %1220 = vmatpush.bf16.msra.mxu0 %v1117
    %1221 = vmatmul.bf16.gmra.mxu0 %v965
    %v1222 = vpop.f32.mrf.mxu0
    %v1223 = vadd.f32 %v969, %v1222
    %v1224 = vpop.f32.mrf.mxu0
    %1225 = vdwg.mxu0
    %1226 = vmatpush.bf16.msra.mxu0 %v1147
    %1227 = vmatpush.bf16.msra.mxu0 %v1145
    %1228 = vmatpush.bf16.msra.mxu0 %v1143
    %1229 = vmatpush.bf16.msra.mxu0 %v1141
    %1230 = vmatpush.bf16.msra.mxu0 %v1139
    %1231 = vmatpush.bf16.msra.mxu0 %v1137
    %1232 = vmatpush.bf16.msra.mxu0 %v1135
    %1233 = vmatpush.bf16.msra.mxu0 %v1133
    %1234 = vmatmul.bf16.gmra.mxu0 %v966
    %v1235 = vpop.f32.mrf.mxu0
    %v1236 = vadd.f32 %v1223, %v1235
    %v1237 = vpop.f32.mrf.mxu0
    %1238 = vdwg.mxu0
    %1239 = vmatpush.bf16.msra.mxu0 %v1163
    %1240 = vmatpush.bf16.msra.mxu0 %v1161
    %1241 = vmatpush.bf16.msra.mxu0 %v1159
    %1242 = vmatpush.bf16.msra.mxu0 %v1157
    %1243 = vmatpush.bf16.msra.mxu0 %v1155
    %1244 = vmatpush.bf16.msra.mxu0 %v1153
    %1245 = vmatpush.bf16.msra.mxu0 %v1151
    %1246 = vmatpush.bf16.msra.mxu0 %v1149
    %1247 = vmatmul.bf16.gmra.mxu0 %v967
    %v1248 = vpop.f32.mrf.mxu0
    %v1249 = vadd.f32 %v1236, %v1248
    %v1250 = vpop.f32.mrf.mxu0
    %1251 = vdwg.mxu0
    %1252 = vmatpush.bf16.msra.mxu0 %v1132
    %1253 = vmatpush.bf16.msra.mxu0 %v1130
    %1254 = vmatpush.bf16.msra.mxu0 %v1128
    %1255 = vmatpush.bf16.msra.mxu0 %v1126
    %1256 = vmatpush.bf16.msra.mxu0 %v1124
    %1257 = vmatpush.bf16.msra.mxu0 %v1122
    %1258 = vmatpush.bf16.msra.mxu0 %v1120
    %1259 = vmatpush.bf16.msra.mxu0 %v1118
    %1260 = vmatmul.bf16.gmra.mxu0 %v965
    %v1261 = vpop.f32.mrf.mxu0
    %v1262 = vadd.f32 %v970, %v1261
    %v1263 = vpop.f32.mrf.mxu0
    %1264 = vdwg.mxu0
    %1265 = vmatpush.bf16.msra.mxu0 %v1148
    %1266 = vmatpush.bf16.msra.mxu0 %v1146
    %1267 = vmatpush.bf16.msra.mxu0 %v1144
    %1268 = vmatpush.bf16.msra.mxu0 %v1142
    %1269 = vmatpush.bf16.msra.mxu0 %v1140
    %1270 = vmatpush.bf16.msra.mxu0 %v1138
    %1271 = vmatpush.bf16.msra.mxu0 %v1136
    %1272 = vmatpush.bf16.msra.mxu0 %v1134
    %1273 = vmatmul.bf16.gmra.mxu0 %v966
    %v1274 = vpop.f32.mrf.mxu0
    %v1275 = vadd.f32 %v1262, %v1274
    %v1276 = vpop.f32.mrf.mxu0
    %1277 = vdwg.mxu0
    %1278 = vmatpush.bf16.msra.mxu0 %v1164
    %1279 = vmatpush.bf16.msra.mxu0 %v1162
    %1280 = vmatpush.bf16.msra.mxu0 %v1160
    %1281 = vmatpush.bf16.msra.mxu0 %v1158
    %1282 = vmatpush.bf16.msra.mxu0 %v1156
    %1283 = vmatpush.bf16.msra.mxu0 %v1154
    %1284 = vmatpush.bf16.msra.mxu0 %v1152
    %1285 = vmatpush.bf16.msra.mxu0 %v1150
    %1286 = vmatmul.bf16.gmra.mxu0 %v967
    %v1287 = vpop.f32.mrf.mxu0
    %v1288 = vadd.f32 %v1275, %v1287
    %v1289 = vpop.f32.mrf.mxu0
    %1290 = vdwg.mxu0
    %v1291 = vmul.f32 %v1249, 0.5
    %v1292 = vmul.f32 %v1288, 0.5
    %v1293 = vmul.f32 %v1249, 0.70710677
    %v1294 = vmul.f32 %v1288, 0.70710677
    %v1295 = vmax.f32 %v1293, -4.0
    %v1296 = vmax.f32 %v1294, -4.0
    %v1297 = vmin.f32 %v1295, 4.0
    %v1298 = vmin.f32 %v1296, 4.0
    %v1299 = vmul.f32 %v1297, %v1297
    %v1300 = vmul.f32 %v1298, %v1298
    %v1301 = vmul.f32 %v1299, -2.7261424e-10
    %v1302 = vmul.f32 %v1300, -2.7261424e-10
    %v1303 = vadd.f32 %v1301, 2.7706815e-08
    %v1304 = vadd.f32 %v1302, 2.7706815e-08
    %v1305 = vmul.f32 %v1303, %v1299
    %v1306 = vmul.f32 %v1304, %v1300
    %v1307 = vadd.f32 %v1305, -2.101024e-06
    %v1308 = vadd.f32 %v1306, -2.101024e-06
    %v1309 = vmul.f32 %v1307, %v1299
    %v1310 = vmul.f32 %v1308, %v1300
    %v1311 = vadd.f32 %v1309, -5.6925062e-05
    %v1312 = vadd.f32 %v1310, -5.6925062e-05
    %v1313 = vmul.f32 %v1311, %v1299
    %v1314 = vmul.f32 %v1312, %v1300
    %v1315 = vadd.f32 %v1313, -0.00073499064
    %v1316 = vadd.f32 %v1314, -0.00073499064
    %v1317 = vmul.f32 %v1315, %v1299
    %v1318 = vmul.f32 %v1316, %v1300
    %v1319 = vadd.f32 %v1317, -0.0029546
    %v1320 = vadd.f32 %v1318, -0.0029546
    %v1321 = vmul.f32 %v1319, %v1299
    %v1322 = vmul.f32 %v1320, %v1300
    %v1323 = vadd.f32 %v1321, -0.016096033
    %v1324 = vadd.f32 %v1322, -0.016096033
    %v1325 = vmul.f32 %v1299, -1.45660715e-05
    %v1326 = vmul.f32 %v1300, -1.45660715e-05
    %v1327 = vadd.f32 %v1325, -0.00021337405
    %v1328 = vadd.f32 %v1326, -0.00021337405
    %v1329 = vmul.f32 %v1327, %v1299
    %v1330 = vmul.f32 %v1328, %v1300
    %v1331 = vadd.f32 %v1329, -0.001682827
    %v1332 = vadd.f32 %v1330, -0.001682827
    %v1333 = vmul.f32 %v1331, %v1299
    %v1334 = vmul.f32 %v1332, %v1300
    %v1335 = vadd.f32 %v1333, -0.0073733293
    %v1336 = vadd.f32 %v1334, -0.0073733293
    %v1337 = vmul.f32 %v1335, %v1299
    %v1338 = vmul.f32 %v1336, %v1300
    %v1339 = vadd.f32 %v1337, -0.014264739
    %v1340 = vadd.f32 %v1338, -0.014264739
    %v1341 = vmul.f32 %v1297, %v1323
    %v1342 = vmul.f32 %v1298, %v1324
    %v1343 = vrcp.pop %v1339
    %v1344 = vrcp.pop %v1340
    %v1345 = vmul.f32 %v1341, %v1343
    %v1346 = vmul.f32 %v1342, %v1344
    %v1347 = vadd.f32 %v1345, 1.0
    %v1348 = vadd.f32 %v1346, 1.0
    %v1349 = vmul.f32 %v1291, %v1347
    %v1350 = vmul.f32 %v1292, %v1348
    %v1351 = vpack.c.bf16 %v1349, %v1349
    %v1352 = vpack.c.bf16 %v1350, %v1350
    %v1385 = vunpack.c.l.b16 %v341
    %v1386 = vunpack.c.l.b16 %v342
    %v1387 = vunpack.c.l.b16 %v343
    %v1388 = vunpack.c.l.b16 %v344
    %v1389 = vunpack.c.l.b16 %v345
    %v1390 = vunpack.c.l.b16 %v346
    %v1391 = vunpack.c.l.b16 %v347
    %v1392 = vunpack.c.l.b16 %v348
    %v1393 = vunpack.c.l.b16 %v349
    %v1394 = vunpack.c.l.b16 %v350
    %v1395 = vunpack.c.l.b16 %v351
    %v1396 = vunpack.c.l.b16 %v352
    %v1397 = vunpack.c.l.b16 %v353
    %v1398 = vunpack.c.l.b16 %v354
    %v1399 = vunpack.c.l.b16 %v355
    %v1400 = vunpack.c.l.b16 %v356
    %v1401 = vunpack.c.l.b16 %v357
    %v1402 = vunpack.c.l.b16 %v358
    %v1403 = vunpack.c.l.b16 %v359
    %v1404 = vunpack.c.l.b16 %v360
    %v1405 = vunpack.c.l.b16 %v361
    %v1406 = vunpack.c.l.b16 %v362
    %v1407 = vunpack.c.l.b16 %v363
    %v1408 = vunpack.c.l.b16 %v364
    %v1409 = vunpack.c.l.b16 %v365
    %v1410 = vunpack.c.l.b16 %v366
    %v1411 = vunpack.c.l.b16 %v367
    %v1412 = vunpack.c.l.b16 %v368
    %v1413 = vunpack.c.l.b16 %v369
    %v1414 = vunpack.c.l.b16 %v370
    %v1415 = vunpack.c.l.b16 %v371
    %v1416 = vunpack.c.l.b16 %v372
    %v1417 = vpack.c.b16 %v1386, %v1385
    %v1418 = vpack.c.b16 %v1388, %v1387
    %v1419 = vpack.c.b16 %v1390, %v1389
    %v1420 = vpack.c.b16 %v1392, %v1391
    %v1421 = vpack.c.b16 %v1394, %v1393
    %v1422 = vpack.c.b16 %v1396, %v1395
    %v1423 = vpack.c.b16 %v1398, %v1397
    %v1424 = vpack.c.b16 %v1400, %v1399
    %v1425 = vpack.c.b16 %v1402, %v1401
    %v1426 = vpack.c.b16 %v1404, %v1403
    %v1427 = vpack.c.b16 %v1406, %v1405
    %v1428 = vpack.c.b16 %v1408, %v1407
    %v1429 = vpack.c.b16 %v1410, %v1409
    %v1430 = vpack.c.b16 %v1412, %v1411
    %v1431 = vpack.c.b16 %v1414, %v1413
    %v1432 = vpack.c.b16 %v1416, %v1415
    %1449 = vmatpush.bf16.msra.mxu0 %v1424
    %1450 = vmatpush.bf16.msra.mxu0 %v1423
    %1451 = vmatpush.bf16.msra.mxu0 %v1422
    %1452 = vmatpush.bf16.msra.mxu0 %v1421
    %1453 = vmatpush.bf16.msra.mxu0 %v1420
    %1454 = vmatpush.bf16.msra.mxu0 %v1419
    %1455 = vmatpush.bf16.msra.mxu0 %v1418
    %1456 = vmatpush.bf16.msra.mxu0 %v1417
    %1457 = vmatmul.bf16.gmra.mxu0 %v1351
    %v1458 = vpop.f32.mrf.mxu0
    %v1459 = vadd.f32 %v918, %v1458
    %v1460 = vpop.f32.mrf.mxu0
    %1461 = vdwg.mxu0
    %1462 = vmatpush.bf16.msra.mxu0 %v1432
    %1463 = vmatpush.bf16.msra.mxu0 %v1431
    %1464 = vmatpush.bf16.msra.mxu0 %v1430
    %1465 = vmatpush.bf16.msra.mxu0 %v1429
    %1466 = vmatpush.bf16.msra.mxu0 %v1428
    %1467 = vmatpush.bf16.msra.mxu0 %v1427
    %1468 = vmatpush.bf16.msra.mxu0 %v1426
    %1469 = vmatpush.bf16.msra.mxu0 %v1425
    %1470 = vmatmul.bf16.gmra.mxu0 %v1352
    %v1471 = vpop.f32.mrf.mxu0
    %v1472 = vadd.f32 %v1459, %v1471
    %v1473 = vpop.f32.mrf.mxu0
    %1474 = vdwg.mxu0
    %v1475 = vpack.c.bf16 %v956, %v956
    %v1476 = vpack.c.bf16 %v957, %v957
    %v1477 = vpack.c.bf16 %v958, %v958
    %v1478 = vpack.c.bf16 %v959, %v959
    %v1479 = vpack.c.bf16 %v960, %v960
    %v1480 = vpack.c.bf16 %v961, %v961
    %v1481 = vpack.c.bf16 %v1472, %v1472
    %v1490 = vunpack.c.l.b16 %v565
    %v1491 = vunpack.c.h.b16 %v565
    %v1492 = vunpack.c.l.b16 %v566
    %v1493 = vunpack.c.h.b16 %v566
    %v1494 = vunpack.c.l.b16 %v567
    %v1495 = vunpack.c.h.b16 %v567
    %v1496 = vunpack.c.l.b16 %v568
    %v1497 = vunpack.c.h.b16 %v568
    %v1498 = vunpack.c.l.b16 %v569
    %v1499 = vunpack.c.h.b16 %v569
    %v1500 = vunpack.c.l.b16 %v570
    %v1501 = vunpack.c.h.b16 %v570
    %v1502 = vunpack.c.l.b16 %v571
    %v1503 = vunpack.c.h.b16 %v571
    %v1504 = vunpack.c.l.b16 %v572
    %v1505 = vunpack.c.h.b16 %v572
    %v1506 = vpack.c.b16 %v1494, %v1490
    %v1507 = vpack.c.b16 %v1495, %v1491
    %v1508 = vpack.c.b16 %v1496, %v1492
    %v1509 = vpack.c.b16 %v1497, %v1493
    %v1510 = vpack.c.b16 %v1502, %v1498
    %v1511 = vpack.c.b16 %v1503, %v1499
    %v1512 = vpack.c.b16 %v1504, %v1500
    %v1513 = vpack.c.b16 %v1505, %v1501
    %vm1522 = vcmask 261120
    %v1524 = vsel %vm1522, %v1481, 0
    %1526 = vmatpush.bf16.msra.mxu0 0
    %1527 = vmatpush.bf16.msra.mxu0 0
    %1528 = vmatpush.bf16.msra.mxu0 0
    %1529 = vmatpush.bf16.msra.mxu0 0
    %1530 = vmatpush.bf16.msra.mxu0 0
    %1531 = vmatpush.bf16.msra.mxu0 0
    %1532 = vmatpush.bf16.msra.mxu0 %v1510
    %1533 = vmatpush.bf16.msra.mxu0 %v1506
    %1534 = vmatmul.bf16.gmra.mxu0 %v1524
    %v1535 = vpop.f32.mrf.mxu0
    %v1536 = vadd.f32 0.0, %v1535
    %v1537 = vpop.f32.mrf.mxu0
    %1538 = vdwg.mxu0
    %1539 = vmatpush.bf16.msra.mxu0 0
    %1540 = vmatpush.bf16.msra.mxu0 0
    %1541 = vmatpush.bf16.msra.mxu0 0
    %1542 = vmatpush.bf16.msra.mxu0 0
    %1543 = vmatpush.bf16.msra.mxu0 0
    %1544 = vmatpush.bf16.msra.mxu0 0
    %1545 = vmatpush.bf16.msra.mxu0 %v1511
    %1546 = vmatpush.bf16.msra.mxu0 %v1507
    %1547 = vmatmul.bf16.gmra.mxu0 %v1524
    %v1548 = vpop.f32.mrf.mxu0
    %v1549 = vadd.f32 0.0, %v1548
    %v1550 = vpop.f32.mrf.mxu0
    %1551 = vdwg.mxu0
    %1552 = vmatpush.bf16.msra.mxu0 0
    %1553 = vmatpush.bf16.msra.mxu0 0
    %1554 = vmatpush.bf16.msra.mxu0 0
    %1555 = vmatpush.bf16.msra.mxu0 0
    %1556 = vmatpush.bf16.msra.mxu0 0
    %1557 = vmatpush.bf16.msra.mxu0 0
    %1558 = vmatpush.bf16.msra.mxu0 %v1512
    %1559 = vmatpush.bf16.msra.mxu0 %v1508
    %1560 = vmatmul.bf16.gmra.mxu0 %v1524
    %v1561 = vpop.f32.mrf.mxu0
    %v1562 = vadd.f32 0.0, %v1561
    %v1563 = vpop.f32.mrf.mxu0
    %1564 = vdwg.mxu0
    %1565 = vmatpush.bf16.msra.mxu0 0
    %1566 = vmatpush.bf16.msra.mxu0 0
    %1567 = vmatpush.bf16.msra.mxu0 0
    %1568 = vmatpush.bf16.msra.mxu0 0
    %1569 = vmatpush.bf16.msra.mxu0 0
    %1570 = vmatpush.bf16.msra.mxu0 0
    %1571 = vmatpush.bf16.msra.mxu0 %v1513
    %1572 = vmatpush.bf16.msra.mxu0 %v1509
    %1573 = vmatmul.bf16.gmra.mxu0 %v1524
    %v1574 = vpop.f32.mrf.mxu0
    %v1575 = vadd.f32 0.0, %v1574
    %v1576 = vpop.f32.mrf.mxu0
    %1577 = vdwg.mxu0
    %v1770 = vunpack.c.l.b16 %v373
    %v1771 = vunpack.c.h.b16 %v373
    %v1772 = vunpack.c.l.b16 %v374
    %v1773 = vunpack.c.h.b16 %v374
    %v1774 = vunpack.c.l.b16 %v375
    %v1775 = vunpack.c.h.b16 %v375
    %v1776 = vunpack.c.l.b16 %v376
    %v1777 = vunpack.c.h.b16 %v376
    %v1778 = vunpack.c.l.b16 %v377
    %v1779 = vunpack.c.h.b16 %v377
    %v1780 = vunpack.c.l.b16 %v378
    %v1781 = vunpack.c.h.b16 %v378
    %v1782 = vunpack.c.l.b16 %v379
    %v1783 = vunpack.c.h.b16 %v379
    %v1784 = vunpack.c.l.b16 %v380
    %v1785 = vunpack.c.h.b16 %v380
    %v1786 = vunpack.c.l.b16 %v381
    %v1787 = vunpack.c.h.b16 %v381
    %v1788 = vunpack.c.l.b16 %v382
    %v1789 = vunpack.c.h.b16 %v382
    %v1790 = vunpack.c.l.b16 %v383
    %v1791 = vunpack.c.h.b16 %v383
    %v1792 = vunpack.c.l.b16 %v384
    %v1793 = vunpack.c.h.b16 %v384
    %v1794 = vunpack.c.l.b16 %v385
    %v1795 = vunpack.c.h.b16 %v385
    %v1796 = vunpack.c.l.b16 %v386
    %v1797 = vunpack.c.h.b16 %v386
    %v1798 = vunpack.c.l.b16 %v387
    %v1799 = vunpack.c.h.b16 %v387
    %v1800 = vunpack.c.l.b16 %v388
    %v1801 = vunpack.c.h.b16 %v388
    %v1802 = vunpack.c.l.b16 %v389
    %v1803 = vunpack.c.h.b16 %v389
    %v1804 = vunpack.c.l.b16 %v390
    %v1805 = vunpack.c.h.b16 %v390
    %v1806 = vunpack.c.l.b16 %v391
    %v1807 = vunpack.c.h.b16 %v391
    %v1808 = vunpack.c.l.b16 %v392
    %v1809 = vunpack.c.h.b16 %v392
    %v1810 = vunpack.c.l.b16 %v393
    %v1811 = vunpack.c.h.b16 %v393
    %v1812 = vunpack.c.l.b16 %v394
    %v1813 = vunpack.c.h.b16 %v394
    %v1814 = vunpack.c.l.b16 %v395
    %v1815 = vunpack.c.h.b16 %v395
    %v1816 = vunpack.c.l.b16 %v396
    %v1817 = vunpack.c.h.b16 %v396
    %v1818 = vunpack.c.l.b16 %v397
    %v1819 = vunpack.c.h.b16 %v397
    %v1820 = vunpack.c.l.b16 %v398
    %v1821 = vunpack.c.h.b16 %v398
    %v1822 = vunpack.c.l.b16 %v399
    %v1823 = vunpack.c.h.b16 %v399
    %v1824 = vunpack.c.l.b16 %v400
    %v1825 = vunpack.c.h.b16 %v400
    %v1826 = vunpack.c.l.b16 %v401
    %v1827 = vunpack.c.h.b16 %v401
    %v1828 = vunpack.c.l.b16 %v402
    %v1829 = vunpack.c.h.b16 %v402
    %v1830 = vunpack.c.l.b16 %v403
    %v1831 = vunpack.c.h.b16 %v403
    %v1832 = vunpack.c.l.b16 %v404
    %v1833 = vunpack.c.h.b16 %v404
    %v1834 = vunpack.c.l.b16 %v405
    %v1835 = vunpack.c.h.b16 %v405
    %v1836 = vunpack.c.l.b16 %v406
    %v1837 = vunpack.c.h.b16 %v406
    %v1838 = vunpack.c.l.b16 %v407
    %v1839 = vunpack.c.h.b16 %v407
    %v1840 = vunpack.c.l.b16 %v408
    %v1841 = vunpack.c.h.b16 %v408
    %v1842 = vunpack.c.l.b16 %v409
    %v1843 = vunpack.c.h.b16 %v409
    %v1844 = vunpack.c.l.b16 %v410
    %v1845 = vunpack.c.h.b16 %v410
    %v1846 = vunpack.c.l.b16 %v411
    %v1847 = vunpack.c.h.b16 %v411
    %v1848 = vunpack.c.l.b16 %v412
    %v1849 = vunpack.c.h.b16 %v412
    %v1850 = vunpack.c.l.b16 %v413
    %v1851 = vunpack.c.h.b16 %v413
    %v1852 = vunpack.c.l.b16 %v414
    %v1853 = vunpack.c.h.b16 %v414
    %v1854 = vunpack.c.l.b16 %v415
    %v1855 = vunpack.c.h.b16 %v415
    %v1856 = vunpack.c.l.b16 %v416
    %v1857 = vunpack.c.h.b16 %v416
    %v1858 = vunpack.c.l.b16 %v417
    %v1859 = vunpack.c.h.b16 %v417
    %v1860 = vunpack.c.l.b16 %v418
    %v1861 = vunpack.c.h.b16 %v418
    %v1862 = vunpack.c.l.b16 %v419
    %v1863 = vunpack.c.h.b16 %v419
    %v1864 = vunpack.c.l.b16 %v420
    %v1865 = vunpack.c.h.b16 %v420
    %v1866 = vunpack.c.l.b16 %v421
    %v1867 = vunpack.c.h.b16 %v421
    %v1868 = vunpack.c.l.b16 %v422
    %v1869 = vunpack.c.h.b16 %v422
    %v1870 = vunpack.c.l.b16 %v423
    %v1871 = vunpack.c.h.b16 %v423
    %v1872 = vunpack.c.l.b16 %v424
    %v1873 = vunpack.c.h.b16 %v424
    %v1874 = vunpack.c.l.b16 %v425
    %v1875 = vunpack.c.h.b16 %v425
    %v1876 = vunpack.c.l.b16 %v426
    %v1877 = vunpack.c.h.b16 %v426
    %v1878 = vunpack.c.l.b16 %v427
    %v1879 = vunpack.c.h.b16 %v427
    %v1880 = vunpack.c.l.b16 %v428
    %v1881 = vunpack.c.h.b16 %v428
    %v1882 = vunpack.c.l.b16 %v429
    %v1883 = vunpack.c.h.b16 %v429
    %v1884 = vunpack.c.l.b16 %v430
    %v1885 = vunpack.c.h.b16 %v430
    %v1886 = vunpack.c.l.b16 %v431
    %v1887 = vunpack.c.h.b16 %v431
    %v1888 = vunpack.c.l.b16 %v432
    %v1889 = vunpack.c.h.b16 %v432
    %v1890 = vunpack.c.l.b16 %v433
    %v1891 = vunpack.c.h.b16 %v433
    %v1892 = vunpack.c.l.b16 %v434
    %v1893 = vunpack.c.h.b16 %v434
    %v1894 = vunpack.c.l.b16 %v435
    %v1895 = vunpack.c.h.b16 %v435
    %v1896 = vunpack.c.l.b16 %v436
    %v1897 = vunpack.c.h.b16 %v436
    %v1898 = vunpack.c.l.b16 %v437
    %v1899 = vunpack.c.h.b16 %v437
    %v1900 = vunpack.c.l.b16 %v438
    %v1901 = vunpack.c.h.b16 %v438
    %v1902 = vunpack.c.l.b16 %v439
    %v1903 = vunpack.c.h.b16 %v439
    %v1904 = vunpack.c.l.b16 %v440
    %v1905 = vunpack.c.h.b16 %v440
    %v1906 = vunpack.c.l.b16 %v441
    %v1907 = vunpack.c.h.b16 %v441
    %v1908 = vunpack.c.l.b16 %v442
    %v1909 = vunpack.c.h.b16 %v442
    %v1910 = vunpack.c.l.b16 %v443
    %v1911 = vunpack.c.h.b16 %v443
    %v1912 = vunpack.c.l.b16 %v444
    %v1913 = vunpack.c.h.b16 %v444
    %v1914 = vunpack.c.l.b16 %v445
    %v1915 = vunpack.c.h.b16 %v445
    %v1916 = vunpack.c.l.b16 %v446
    %v1917 = vunpack.c.h.b16 %v446
    %v1918 = vunpack.c.l.b16 %v447
    %v1919 = vunpack.c.h.b16 %v447
    %v1920 = vunpack.c.l.b16 %v448
    %v1921 = vunpack.c.h.b16 %v448
    %v1922 = vunpack.c.l.b16 %v449
    %v1923 = vunpack.c.h.b16 %v449
    %v1924 = vunpack.c.l.b16 %v450
    %v1925 = vunpack.c.h.b16 %v450
    %v1926 = vunpack.c.l.b16 %v451
    %v1927 = vunpack.c.h.b16 %v451
    %v1928 = vunpack.c.l.b16 %v452
    %v1929 = vunpack.c.h.b16 %v452
    %v1930 = vunpack.c.l.b16 %v453
    %v1931 = vunpack.c.h.b16 %v453
    %v1932 = vunpack.c.l.b16 %v454
    %v1933 = vunpack.c.h.b16 %v454
    %v1934 = vunpack.c.l.b16 %v455
    %v1935 = vunpack.c.h.b16 %v455
    %v1936 = vunpack.c.l.b16 %v456
    %v1937 = vunpack.c.h.b16 %v456
    %v1938 = vunpack.c.l.b16 %v457
    %v1939 = vunpack.c.h.b16 %v457
    %v1940 = vunpack.c.l.b16 %v458
    %v1941 = vunpack.c.h.b16 %v458
    %v1942 = vunpack.c.l.b16 %v459
    %v1943 = vunpack.c.h.b16 %v459
    %v1944 = vunpack.c.l.b16 %v460
    %v1945 = vunpack.c.h.b16 %v460
    %v1946 = vunpack.c.l.b16 %v461
    %v1947 = vunpack.c.h.b16 %v461
    %v1948 = vunpack.c.l.b16 %v462
    %v1949 = vunpack.c.h.b16 %v462
    %v1950 = vunpack.c.l.b16 %v463
    %v1951 = vunpack.c.h.b16 %v463
    %v1952 = vunpack.c.l.b16 %v464
    %v1953 = vunpack.c.h.b16 %v464
    %v1954 = vunpack.c.l.b16 %v465
    %v1955 = vunpack.c.h.b16 %v465
    %v1956 = vunpack.c.l.b16 %v466
    %v1957 = vunpack.c.h.b16 %v466
    %v1958 = vunpack.c.l.b16 %v467
    %v1959 = vunpack.c.h.b16 %v467
    %v1960 = vunpack.c.l.b16 %v468
    %v1961 = vunpack.c.h.b16 %v468
    %v1962 = vunpack.c.l.b16 %v469
    %v1963 = vunpack.c.h.b16 %v469
    %v1964 = vunpack.c.l.b16 %v470
    %v1965 = vunpack.c.h.b16 %v470
    %v1966 = vunpack.c.l.b16 %v471
    %v1967 = vunpack.c.h.b16 %v471
    %v1968 = vunpack.c.l.b16 %v472
    %v1969 = vunpack.c.h.b16 %v472
    %v1970 = vunpack.c.l.b16 %v473
    %v1971 = vunpack.c.h.b16 %v473
    %v1972 = vunpack.c.l.b16 %v474
    %v1973 = vunpack.c.h.b16 %v474
    %v1974 = vunpack.c.l.b16 %v475
    %v1975 = vunpack.c.h.b16 %v475
    %v1976 = vunpack.c.l.b16 %v476
    %v1977 = vunpack.c.h.b16 %v476
    %v1978 = vunpack.c.l.b16 %v477
    %v1979 = vunpack.c.h.b16 %v477
    %v1980 = vunpack.c.l.b16 %v478
    %v1981 = vunpack.c.h.b16 %v478
    %v1982 = vunpack.c.l.b16 %v479
    %v1983 = vunpack.c.h.b16 %v479
    %v1984 = vunpack.c.l.b16 %v480
    %v1985 = vunpack.c.h.b16 %v480
    %v1986 = vunpack.c.l.b16 %v481
    %v1987 = vunpack.c.h.b16 %v481
    %v1988 = vunpack.c.l.b16 %v482
    %v1989 = vunpack.c.h.b16 %v482
    %v1990 = vunpack.c.l.b16 %v483
    %v1991 = vunpack.c.h.b16 %v483
    %v1992 = vunpack.c.l.b16 %v484
    %v1993 = vunpack.c.h.b16 %v484
    %v1994 = vunpack.c.l.b16 %v485
    %v1995 = vunpack.c.h.b16 %v485
    %v1996 = vunpack.c.l.b16 %v486
    %v1997 = vunpack.c.h.b16 %v486
    %v1998 = vunpack.c.l.b16 %v487
    %v1999 = vunpack.c.h.b16 %v487
    %v2000 = vunpack.c.l.b16 %v488
    %v2001 = vunpack.c.h.b16 %v488
    %v2002 = vunpack.c.l.b16 %v489
    %v2003 = vunpack.c.h.b16 %v489
    %v2004 = vunpack.c.l.b16 %v490
    %v2005 = vunpack.c.h.b16 %v490
    %v2006 = vunpack.c.l.b16 %v491
    %v2007 = vunpack.c.h.b16 %v491
    %v2008 = vunpack.c.l.b16 %v492
    %v2009 = vunpack.c.h.b16 %v492
    %v2010 = vunpack.c.l.b16 %v493
    %v2011 = vunpack.c.h.b16 %v493
    %v2012 = vunpack.c.l.b16 %v494
    %v2013 = vunpack.c.h.b16 %v494
    %v2014 = vunpack.c.l.b16 %v495
    %v2015 = vunpack.c.h.b16 %v495
    %v2016 = vunpack.c.l.b16 %v496
    %v2017 = vunpack.c.h.b16 %v496
    %v2018 = vunpack.c.l.b16 %v497
    %v2019 = vunpack.c.h.b16 %v497
    %v2020 = vunpack.c.l.b16 %v498
    %v2021 = vunpack.c.h.b16 %v498
    %v2022 = vunpack.c.l.b16 %v499
    %v2023 = vunpack.c.h.b16 %v499
    %v2024 = vunpack.c.l.b16 %v500
    %v2025 = vunpack.c.h.b16 %v500
    %v2026 = vunpack.c.l.b16 %v501
    %v2027 = vunpack.c.h.b16 %v501
    %v2028 = vunpack.c.l.b16 %v502
    %v2029 = vunpack.c.h.b16 %v502
    %v2030 = vunpack.c.l.b16 %v503
    %v2031 = vunpack.c.h.b16 %v503
    %v2032 = vunpack.c.l.b16 %v504
    %v2033 = vunpack.c.h.b16 %v504
    %v2034 = vunpack.c.l.b16 %v505
    %v2035 = vunpack.c.h.b16 %v505
    %v2036 = vunpack.c.l.b16 %v506
    %v2037 = vunpack.c.h.b16 %v506
    %v2038 = vunpack.c.l.b16 %v507
    %v2039 = vunpack.c.h.b16 %v507
    %v2040 = vunpack.c.l.b16 %v508
    %v2041 = vunpack.c.h.b16 %v508
    %v2042 = vunpack.c.l.b16 %v509
    %v2043 = vunpack.c.h.b16 %v509
    %v2044 = vunpack.c.l.b16 %v510
    %v2045 = vunpack.c.h.b16 %v510
    %v2046 = vunpack.c.l.b16 %v511
    %v2047 = vunpack.c.h.b16 %v511
    %v2048 = vunpack.c.l.b16 %v512
    %v2049 = vunpack.c.h.b16 %v512
    %v2050 = vunpack.c.l.b16 %v513
    %v2051 = vunpack.c.h.b16 %v513
    %v2052 = vunpack.c.l.b16 %v514
    %v2053 = vunpack.c.h.b16 %v514
    %v2054 = vunpack.c.l.b16 %v515
    %v2055 = vunpack.c.h.b16 %v515
    %v2056 = vunpack.c.l.b16 %v516
    %v2057 = vunpack.c.h.b16 %v516
    %v2058 = vunpack.c.l.b16 %v517
    %v2059 = vunpack.c.h.b16 %v517
    %v2060 = vunpack.c.l.b16 %v518
    %v2061 = vunpack.c.h.b16 %v518
    %v2062 = vunpack.c.l.b16 %v519
    %v2063 = vunpack.c.h.b16 %v519
    %v2064 = vunpack.c.l.b16 %v520
    %v2065 = vunpack.c.h.b16 %v520
    %v2066 = vunpack.c.l.b16 %v521
    %v2067 = vunpack.c.h.b16 %v521
    %v2068 = vunpack.c.l.b16 %v522
    %v2069 = vunpack.c.h.b16 %v522
    %v2070 = vunpack.c.l.b16 %v523
    %v2071 = vunpack.c.h.b16 %v523
    %v2072 = vunpack.c.l.b16 %v524
    %v2073 = vunpack.c.h.b16 %v524
    %v2074 = vunpack.c.l.b16 %v525
    %v2075 = vunpack.c.h.b16 %v525
    %v2076 = vunpack.c.l.b16 %v526
    %v2077 = vunpack.c.h.b16 %v526
    %v2078 = vunpack.c.l.b16 %v527
    %v2079 = vunpack.c.h.b16 %v527
    %v2080 = vunpack.c.l.b16 %v528
    %v2081 = vunpack.c.h.b16 %v528
    %v2082 = vunpack.c.l.b16 %v529
    %v2083 = vunpack.c.h.b16 %v529
    %v2084 = vunpack.c.l.b16 %v530
    %v2085 = vunpack.c.h.b16 %v530
    %v2086 = vunpack.c.l.b16 %v531
    %v2087 = vunpack.c.h.b16 %v531
    %v2088 = vunpack.c.l.b16 %v532
    %v2089 = vunpack.c.h.b16 %v532
    %v2090 = vunpack.c.l.b16 %v533
    %v2091 = vunpack.c.h.b16 %v533
    %v2092 = vunpack.c.l.b16 %v534
    %v2093 = vunpack.c.h.b16 %v534
    %v2094 = vunpack.c.l.b16 %v535
    %v2095 = vunpack.c.h.b16 %v535
    %v2096 = vunpack.c.l.b16 %v536
    %v2097 = vunpack.c.h.b16 %v536
    %v2098 = vunpack.c.l.b16 %v537
    %v2099 = vunpack.c.h.b16 %v537
    %v2100 = vunpack.c.l.b16 %v538
    %v2101 = vunpack.c.h.b16 %v538
    %v2102 = vunpack.c.l.b16 %v539
    %v2103 = vunpack.c.h.b16 %v539
    %v2104 = vunpack.c.l.b16 %v540
    %v2105 = vunpack.c.h.b16 %v540
    %v2106 = vunpack.c.l.b16 %v541
    %v2107 = vunpack.c.h.b16 %v541
    %v2108 = vunpack.c.l.b16 %v542
    %v2109 = vunpack.c.h.b16 %v542
    %v2110 = vunpack.c.l.b16 %v543
    %v2111 = vunpack.c.h.b16 %v543
    %v2112 = vunpack.c.l.b16 %v544
    %v2113 = vunpack.c.h.b16 %v544
    %v2114 = vunpack.c.l.b16 %v545
    %v2115 = vunpack.c.h.b16 %v545
    %v2116 = vunpack.c.l.b16 %v546
    %v2117 = vunpack.c.h.b16 %v546
    %v2118 = vunpack.c.l.b16 %v547
    %v2119 = vunpack.c.h.b16 %v547
    %v2120 = vunpack.c.l.b16 %v548
    %v2121 = vunpack.c.h.b16 %v548
    %v2122 = vunpack.c.l.b16 %v549
    %v2123 = vunpack.c.h.b16 %v549
    %v2124 = vunpack.c.l.b16 %v550
    %v2125 = vunpack.c.h.b16 %v550
    %v2126 = vunpack.c.l.b16 %v551
    %v2127 = vunpack.c.h.b16 %v551
    %v2128 = vunpack.c.l.b16 %v552
    %v2129 = vunpack.c.h.b16 %v552
    %v2130 = vunpack.c.l.b16 %v553
    %v2131 = vunpack.c.h.b16 %v553
    %v2132 = vunpack.c.l.b16 %v554
    %v2133 = vunpack.c.h.b16 %v554
    %v2134 = vunpack.c.l.b16 %v555
    %v2135 = vunpack.c.h.b16 %v555
    %v2136 = vunpack.c.l.b16 %v556
    %v2137 = vunpack.c.h.b16 %v556
    %v2138 = vunpack.c.l.b16 %v557
    %v2139 = vunpack.c.h.b16 %v557
    %v2140 = vunpack.c.l.b16 %v558
    %v2141 = vunpack.c.h.b16 %v558
    %v2142 = vunpack.c.l.b16 %v559
    %v2143 = vunpack.c.h.b16 %v559
    %v2144 = vunpack.c.l.b16 %v560
    %v2145 = vunpack.c.h.b16 %v560
    %v2146 = vunpack.c.l.b16 %v561
    %v2147 = vunpack.c.h.b16 %v561
    %v2148 = vunpack.c.l.b16 %v562
    %v2149 = vunpack.c.h.b16 %v562
    %v2150 = vunpack.c.l.b16 %v563
    %v2151 = vunpack.c.h.b16 %v563
    %v2152 = vunpack.c.l.b16 %v564
    %v2153 = vunpack.c.h.b16 %v564
    %v2154 = vpack.c.b16 %v1774, %v1770
    %v2155 = vpack.c.b16 %v1775, %v1771
    %v2156 = vpack.c.b16 %v1776, %v1772
    %v2157 = vpack.c.b16 %v1777, %v1773
    %v2158 = vpack.c.b16 %v1782, %v1778
    %v2159 = vpack.c.b16 %v1783, %v1779
    %v2160 = vpack.c.b16 %v1784, %v1780
    %v2161 = vpack.c.b16 %v1785, %v1781
    %v2162 = vpack.c.b16 %v1790, %v1786
    %v2163 = vpack.c.b16 %v1791, %v1787
    %v2164 = vpack.c.b16 %v1792, %v1788
    %v2165 = vpack.c.b16 %v1793, %v1789
    %v2166 = vpack.c.b16 %v1798, %v1794
    %v2167 = vpack.c.b16 %v1799, %v1795
    %v2168 = vpack.c.b16 %v1800, %v1796
    %v2169 = vpack.c.b16 %v1801, %v1797
    %v2170 = vpack.c.b16 %v1806, %v1802
    %v2171 = vpack.c.b16 %v1807, %v1803
    %v2172 = vpack.c.b16 %v1808, %v1804
    %v2173 = vpack.c.b16 %v1809, %v1805
    %v2174 = vpack.c.b16 %v1814, %v1810
    %v2175 = vpack.c.b16 %v1815, %v1811
    %v2176 = vpack.c.b16 %v1816, %v1812
    %v2177 = vpack.c.b16 %v1817, %v1813
    %v2178 = vpack.c.b16 %v1822, %v1818
    %v2179 = vpack.c.b16 %v1823, %v1819
    %v2180 = vpack.c.b16 %v1824, %v1820
    %v2181 = vpack.c.b16 %v1825, %v1821
    %v2182 = vpack.c.b16 %v1830, %v1826
    %v2183 = vpack.c.b16 %v1831, %v1827
    %v2184 = vpack.c.b16 %v1832, %v1828
    %v2185 = vpack.c.b16 %v1833, %v1829
    %v2186 = vpack.c.b16 %v1838, %v1834
    %v2187 = vpack.c.b16 %v1839, %v1835
    %v2188 = vpack.c.b16 %v1840, %v1836
    %v2189 = vpack.c.b16 %v1841, %v1837
    %v2190 = vpack.c.b16 %v1846, %v1842
    %v2191 = vpack.c.b16 %v1847, %v1843
    %v2192 = vpack.c.b16 %v1848, %v1844
    %v2193 = vpack.c.b16 %v1849, %v1845
    %v2194 = vpack.c.b16 %v1854, %v1850
    %v2195 = vpack.c.b16 %v1855, %v1851
    %v2196 = vpack.c.b16 %v1856, %v1852
    %v2197 = vpack.c.b16 %v1857, %v1853
    %v2198 = vpack.c.b16 %v1862, %v1858
    %v2199 = vpack.c.b16 %v1863, %v1859
    %v2200 = vpack.c.b16 %v1864, %v1860
    %v2201 = vpack.c.b16 %v1865, %v1861
    %v2202 = vpack.c.b16 %v1870, %v1866
    %v2203 = vpack.c.b16 %v1871, %v1867
    %v2204 = vpack.c.b16 %v1872, %v1868
    %v2205 = vpack.c.b16 %v1873, %v1869
    %v2206 = vpack.c.b16 %v1878, %v1874
    %v2207 = vpack.c.b16 %v1879, %v1875
    %v2208 = vpack.c.b16 %v1880, %v1876
    %v2209 = vpack.c.b16 %v1881, %v1877
    %v2210 = vpack.c.b16 %v1886, %v1882
    %v2211 = vpack.c.b16 %v1887, %v1883
    %v2212 = vpack.c.b16 %v1888, %v1884
    %v2213 = vpack.c.b16 %v1889, %v1885
    %v2214 = vpack.c.b16 %v1894, %v1890
    %v2215 = vpack.c.b16 %v1895, %v1891
    %v2216 = vpack.c.b16 %v1896, %v1892
    %v2217 = vpack.c.b16 %v1897, %v1893
    %v2218 = vpack.c.b16 %v1902, %v1898
    %v2219 = vpack.c.b16 %v1903, %v1899
    %v2220 = vpack.c.b16 %v1904, %v1900
    %v2221 = vpack.c.b16 %v1905, %v1901
    %v2222 = vpack.c.b16 %v1910, %v1906
    %v2223 = vpack.c.b16 %v1911, %v1907
    %v2224 = vpack.c.b16 %v1912, %v1908
    %v2225 = vpack.c.b16 %v1913, %v1909
    %v2226 = vpack.c.b16 %v1918, %v1914
    %v2227 = vpack.c.b16 %v1919, %v1915
    %v2228 = vpack.c.b16 %v1920, %v1916
    %v2229 = vpack.c.b16 %v1921, %v1917
    %v2230 = vpack.c.b16 %v1926, %v1922
    %v2231 = vpack.c.b16 %v1927, %v1923
    %v2232 = vpack.c.b16 %v1928, %v1924
    %v2233 = vpack.c.b16 %v1929, %v1925
    %v2234 = vpack.c.b16 %v1934, %v1930
    %v2235 = vpack.c.b16 %v1935, %v1931
    %v2236 = vpack.c.b16 %v1936, %v1932
    %v2237 = vpack.c.b16 %v1937, %v1933
    %v2238 = vpack.c.b16 %v1942, %v1938
    %v2239 = vpack.c.b16 %v1943, %v1939
    %v2240 = vpack.c.b16 %v1944, %v1940
    %v2241 = vpack.c.b16 %v1945, %v1941
    %v2242 = vpack.c.b16 %v1950, %v1946
    %v2243 = vpack.c.b16 %v1951, %v1947
    %v2244 = vpack.c.b16 %v1952, %v1948
    %v2245 = vpack.c.b16 %v1953, %v1949
    %v2246 = vpack.c.b16 %v1958, %v1954
    %v2247 = vpack.c.b16 %v1959, %v1955
    %v2248 = vpack.c.b16 %v1960, %v1956
    %v2249 = vpack.c.b16 %v1961, %v1957
    %v2250 = vpack.c.b16 %v1966, %v1962
    %v2251 = vpack.c.b16 %v1967, %v1963
    %v2252 = vpack.c.b16 %v1968, %v1964
    %v2253 = vpack.c.b16 %v1969, %v1965
    %v2254 = vpack.c.b16 %v1974, %v1970
    %v2255 = vpack.c.b16 %v1975, %v1971
    %v2256 = vpack.c.b16 %v1976, %v1972
    %v2257 = vpack.c.b16 %v1977, %v1973
    %v2258 = vpack.c.b16 %v1982, %v1978
    %v2259 = vpack.c.b16 %v1983, %v1979
    %v2260 = vpack.c.b16 %v1984, %v1980
    %v2261 = vpack.c.b16 %v1985, %v1981
    %v2262 = vpack.c.b16 %v1990, %v1986
    %v2263 = vpack.c.b16 %v1991, %v1987
    %v2264 = vpack.c.b16 %v1992, %v1988
    %v2265 = vpack.c.b16 %v1993, %v1989
    %v2266 = vpack.c.b16 %v1998, %v1994
    %v2267 = vpack.c.b16 %v1999, %v1995
    %v2268 = vpack.c.b16 %v2000, %v1996
    %v2269 = vpack.c.b16 %v2001, %v1997
    %v2270 = vpack.c.b16 %v2006, %v2002
    %v2271 = vpack.c.b16 %v2007, %v2003
    %v2272 = vpack.c.b16 %v2008, %v2004
    %v2273 = vpack.c.b16 %v2009, %v2005
    %v2274 = vpack.c.b16 %v2014, %v2010
    %v2275 = vpack.c.b16 %v2015, %v2011
    %v2276 = vpack.c.b16 %v2016, %v2012
    %v2277 = vpack.c.b16 %v2017, %v2013
    %v2278 = vpack.c.b16 %v2022, %v2018
    %v2279 = vpack.c.b16 %v2023, %v2019
    %v2280 = vpack.c.b16 %v2024, %v2020
    %v2281 = vpack.c.b16 %v2025, %v2021
    %v2282 = vpack.c.b16 %v2030, %v2026
    %v2283 = vpack.c.b16 %v2031, %v2027
    %v2284 = vpack.c.b16 %v2032, %v2028
    %v2285 = vpack.c.b16 %v2033, %v2029
    %v2286 = vpack.c.b16 %v2038, %v2034
    %v2287 = vpack.c.b16 %v2039, %v2035
    %v2288 = vpack.c.b16 %v2040, %v2036
    %v2289 = vpack.c.b16 %v2041, %v2037
    %v2290 = vpack.c.b16 %v2046, %v2042
    %v2291 = vpack.c.b16 %v2047, %v2043
    %v2292 = vpack.c.b16 %v2048, %v2044
    %v2293 = vpack.c.b16 %v2049, %v2045
    %v2294 = vpack.c.b16 %v2054, %v2050
    %v2295 = vpack.c.b16 %v2055, %v2051
    %v2296 = vpack.c.b16 %v2056, %v2052
    %v2297 = vpack.c.b16 %v2057, %v2053
    %v2298 = vpack.c.b16 %v2062, %v2058
    %v2299 = vpack.c.b16 %v2063, %v2059
    %v2300 = vpack.c.b16 %v2064, %v2060
    %v2301 = vpack.c.b16 %v2065, %v2061
    %v2302 = vpack.c.b16 %v2070, %v2066
    %v2303 = vpack.c.b16 %v2071, %v2067
    %v2304 = vpack.c.b16 %v2072, %v2068
    %v2305 = vpack.c.b16 %v2073, %v2069
    %v2306 = vpack.c.b16 %v2078, %v2074
    %v2307 = vpack.c.b16 %v2079, %v2075
    %v2308 = vpack.c.b16 %v2080, %v2076
    %v2309 = vpack.c.b16 %v2081, %v2077
    %v2310 = vpack.c.b16 %v2086, %v2082
    %v2311 = vpack.c.b16 %v2087, %v2083
    %v2312 = vpack.c.b16 %v2088, %v2084
    %v2313 = vpack.c.b16 %v2089, %v2085
    %v2314 = vpack.c.b16 %v2094, %v2090
    %v2315 = vpack.c.b16 %v2095, %v2091
    %v2316 = vpack.c.b16 %v2096, %v2092
    %v2317 = vpack.c.b16 %v2097, %v2093
    %v2318 = vpack.c.b16 %v2102, %v2098
    %v2319 = vpack.c.b16 %v2103, %v2099
    %v2320 = vpack.c.b16 %v2104, %v2100
    %v2321 = vpack.c.b16 %v2105, %v2101
    %v2322 = vpack.c.b16 %v2110, %v2106
    %v2323 = vpack.c.b16 %v2111, %v2107
    %v2324 = vpack.c.b16 %v2112, %v2108
    %v2325 = vpack.c.b16 %v2113, %v2109
    %v2326 = vpack.c.b16 %v2118, %v2114
    %v2327 = vpack.c.b16 %v2119, %v2115
    %v2328 = vpack.c.b16 %v2120, %v2116
    %v2329 = vpack.c.b16 %v2121, %v2117
    %v2330 = vpack.c.b16 %v2126, %v2122
    %v2331 = vpack.c.b16 %v2127, %v2123
    %v2332 = vpack.c.b16 %v2128, %v2124
    %v2333 = vpack.c.b16 %v2129, %v2125
    %v2334 = vpack.c.b16 %v2134, %v2130
    %v2335 = vpack.c.b16 %v2135, %v2131
    %v2336 = vpack.c.b16 %v2136, %v2132
    %v2337 = vpack.c.b16 %v2137, %v2133
    %v2338 = vpack.c.b16 %v2142, %v2138
    %v2339 = vpack.c.b16 %v2143, %v2139
    %v2340 = vpack.c.b16 %v2144, %v2140
    %v2341 = vpack.c.b16 %v2145, %v2141
    %v2342 = vpack.c.b16 %v2150, %v2146
    %v2343 = vpack.c.b16 %v2151, %v2147
    %v2344 = vpack.c.b16 %v2152, %v2148
    %v2345 = vpack.c.b16 %v2153, %v2149
    %2538 = vmatpush.bf16.msra.mxu0 %v2182
    %2539 = vmatpush.bf16.msra.mxu0 %v2178
    %2540 = vmatpush.bf16.msra.mxu0 %v2174
    %2541 = vmatpush.bf16.msra.mxu0 %v2170
    %2542 = vmatpush.bf16.msra.mxu0 %v2166
    %2543 = vmatpush.bf16.msra.mxu0 %v2162
    %2544 = vmatpush.bf16.msra.mxu0 %v2158
    %2545 = vmatpush.bf16.msra.mxu0 %v2154
    %2546 = vmatmul.bf16.gmra.mxu0 %v1475
    %v2547 = vpop.f32.mrf.mxu0
    %v2548 = vadd.f32 %v1536, %v2547
    %v2549 = vpop.f32.mrf.mxu0
    %2550 = vdwg.mxu0
    %2551 = vmatpush.bf16.msra.mxu0 %v2214
    %2552 = vmatpush.bf16.msra.mxu0 %v2210
    %2553 = vmatpush.bf16.msra.mxu0 %v2206
    %2554 = vmatpush.bf16.msra.mxu0 %v2202
    %2555 = vmatpush.bf16.msra.mxu0 %v2198
    %2556 = vmatpush.bf16.msra.mxu0 %v2194
    %2557 = vmatpush.bf16.msra.mxu0 %v2190
    %2558 = vmatpush.bf16.msra.mxu0 %v2186
    %2559 = vmatmul.bf16.gmra.mxu0 %v1476
    %v2560 = vpop.f32.mrf.mxu0
    %v2561 = vadd.f32 %v2548, %v2560
    %v2562 = vpop.f32.mrf.mxu0
    %2563 = vdwg.mxu0
    %2564 = vmatpush.bf16.msra.mxu0 %v2246
    %2565 = vmatpush.bf16.msra.mxu0 %v2242
    %2566 = vmatpush.bf16.msra.mxu0 %v2238
    %2567 = vmatpush.bf16.msra.mxu0 %v2234
    %2568 = vmatpush.bf16.msra.mxu0 %v2230
    %2569 = vmatpush.bf16.msra.mxu0 %v2226
    %2570 = vmatpush.bf16.msra.mxu0 %v2222
    %2571 = vmatpush.bf16.msra.mxu0 %v2218
    %2572 = vmatmul.bf16.gmra.mxu0 %v1477
    %v2573 = vpop.f32.mrf.mxu0
    %v2574 = vadd.f32 %v2561, %v2573
    %v2575 = vpop.f32.mrf.mxu0
    %2576 = vdwg.mxu0
    %2577 = vmatpush.bf16.msra.mxu0 %v2278
    %2578 = vmatpush.bf16.msra.mxu0 %v2274
    %2579 = vmatpush.bf16.msra.mxu0 %v2270
    %2580 = vmatpush.bf16.msra.mxu0 %v2266
    %2581 = vmatpush.bf16.msra.mxu0 %v2262
    %2582 = vmatpush.bf16.msra.mxu0 %v2258
    %2583 = vmatpush.bf16.msra.mxu0 %v2254
    %2584 = vmatpush.bf16.msra.mxu0 %v2250
    %2585 = vmatmul.bf16.gmra.mxu0 %v1478
    %v2586 = vpop.f32.mrf.mxu0
    %v2587 = vadd.f32 %v2574, %v2586
    %v2588 = vpop.f32.mrf.mxu0
    %2589 = vdwg.mxu0
    %2590 = vmatpush.bf16.msra.mxu0 %v2310
    %2591 = vmatpush.bf16.msra.mxu0 %v2306
    %2592 = vmatpush.bf16.msra.mxu0 %v2302
    %2593 = vmatpush.bf16.msra.mxu0 %v2298
    %2594 = vmatpush.bf16.msra.mxu0 %v2294
    %2595 = vmatpush.bf16.msra.mxu0 %v2290
    %2596 = vmatpush.bf16.msra.mxu0 %v2286
    %2597 = vmatpush.bf16.msra.mxu0 %v2282
    %2598 = vmatmul.bf16.gmra.mxu0 %v1479
    %v2599 = vpop.f32.mrf.mxu0
    %v2600 = vadd.f32 %v2587, %v2599
    %v2601 = vpop.f32.mrf.mxu0
    %2602 = vdwg.mxu0
    %2603 = vmatpush.bf16.msra.mxu0 %v2342
    %2604 = vmatpush.bf16.msra.mxu0 %v2338
    %2605 = vmatpush.bf16.msra.mxu0 %v2334
    %2606 = vmatpush.bf16.msra.mxu0 %v2330
    %2607 = vmatpush.bf16.msra.mxu0 %v2326
    %2608 = vmatpush.bf16.msra.mxu0 %v2322
    %2609 = vmatpush.bf16.msra.mxu0 %v2318
    %2610 = vmatpush.bf16.msra.mxu0 %v2314
    %2611 = vmatmul.bf16.gmra.mxu0 %v1480
    %v2612 = vpop.f32.mrf.mxu0
    %v2613 = vadd.f32 %v2600, %v2612
    %v2614 = vpop.f32.mrf.mxu0
    %2615 = vdwg.mxu0
    %2616 = vmatpush.bf16.msra.mxu0 %v2183
    %2617 = vmatpush.bf16.msra.mxu0 %v2179
    %2618 = vmatpush.bf16.msra.mxu0 %v2175
    %2619 = vmatpush.bf16.msra.mxu0 %v2171
    %2620 = vmatpush.bf16.msra.mxu0 %v2167
    %2621 = vmatpush.bf16.msra.mxu0 %v2163
    %2622 = vmatpush.bf16.msra.mxu0 %v2159
    %2623 = vmatpush.bf16.msra.mxu0 %v2155
    %2624 = vmatmul.bf16.gmra.mxu0 %v1475
    %v2625 = vpop.f32.mrf.mxu0
    %v2626 = vadd.f32 %v1549, %v2625
    %v2627 = vpop.f32.mrf.mxu0
    %2628 = vdwg.mxu0
    %2629 = vmatpush.bf16.msra.mxu0 %v2215
    %2630 = vmatpush.bf16.msra.mxu0 %v2211
    %2631 = vmatpush.bf16.msra.mxu0 %v2207
    %2632 = vmatpush.bf16.msra.mxu0 %v2203
    %2633 = vmatpush.bf16.msra.mxu0 %v2199
    %2634 = vmatpush.bf16.msra.mxu0 %v2195
    %2635 = vmatpush.bf16.msra.mxu0 %v2191
    %2636 = vmatpush.bf16.msra.mxu0 %v2187
    %2637 = vmatmul.bf16.gmra.mxu0 %v1476
    %v2638 = vpop.f32.mrf.mxu0
    %v2639 = vadd.f32 %v2626, %v2638
    %v2640 = vpop.f32.mrf.mxu0
    %2641 = vdwg.mxu0
    %2642 = vmatpush.bf16.msra.mxu0 %v2247
    %2643 = vmatpush.bf16.msra.mxu0 %v2243
    %2644 = vmatpush.bf16.msra.mxu0 %v2239
    %2645 = vmatpush.bf16.msra.mxu0 %v2235
    %2646 = vmatpush.bf16.msra.mxu0 %v2231
    %2647 = vmatpush.bf16.msra.mxu0 %v2227
    %2648 = vmatpush.bf16.msra.mxu0 %v2223
    %2649 = vmatpush.bf16.msra.mxu0 %v2219
    %2650 = vmatmul.bf16.gmra.mxu0 %v1477
    %v2651 = vpop.f32.mrf.mxu0
    %v2652 = vadd.f32 %v2639, %v2651
    %v2653 = vpop.f32.mrf.mxu0
    %2654 = vdwg.mxu0
    %2655 = vmatpush.bf16.msra.mxu0 %v2279
    %2656 = vmatpush.bf16.msra.mxu0 %v2275
    %2657 = vmatpush.bf16.msra.mxu0 %v2271
    %2658 = vmatpush.bf16.msra.mxu0 %v2267
    %2659 = vmatpush.bf16.msra.mxu0 %v2263
    %2660 = vmatpush.bf16.msra.mxu0 %v2259
    %2661 = vmatpush.bf16.msra.mxu0 %v2255
    %2662 = vmatpush.bf16.msra.mxu0 %v2251
    %2663 = vmatmul.bf16.gmra.mxu0 %v1478
    %v2664 = vpop.f32.mrf.mxu0
    %v2665 = vadd.f32 %v2652, %v2664
    %v2666 = vpop.f32.mrf.mxu0
    %2667 = vdwg.mxu0
    %2668 = vmatpush.bf16.msra.mxu0 %v2311
    %2669 = vmatpush.bf16.msra.mxu0 %v2307
    %2670 = vmatpush.bf16.msra.mxu0 %v2303
    %2671 = vmatpush.bf16.msra.mxu0 %v2299
    %2672 = vmatpush.bf16.msra.mxu0 %v2295
    %2673 = vmatpush.bf16.msra.mxu0 %v2291
    %2674 = vmatpush.bf16.msra.mxu0 %v2287
    %2675 = vmatpush.bf16.msra.mxu0 %v2283
    %2676 = vmatmul.bf16.gmra.mxu0 %v1479
    %v2677 = vpop.f32.mrf.mxu0
    %v2678 = vadd.f32 %v2665, %v2677
    %v2679 = vpop.f32.mrf.mxu0
    %2680 = vdwg.mxu0
    %2681 = vmatpush.bf16.msra.mxu0 %v2343
    %2682 = vmatpush.bf16.msra.mxu0 %v2339
    %2683 = vmatpush.bf16.msra.mxu0 %v2335
    %2684 = vmatpush.bf16.msra.mxu0 %v2331
    %2685 = vmatpush.bf16.msra.mxu0 %v2327
    %2686 = vmatpush.bf16.msra.mxu0 %v2323
    %2687 = vmatpush.bf16.msra.mxu0 %v2319
    %2688 = vmatpush.bf16.msra.mxu0 %v2315
    %2689 = vmatmul.bf16.gmra.mxu0 %v1480
    %v2690 = vpop.f32.mrf.mxu0
    %v2691 = vadd.f32 %v2678, %v2690
    %v2692 = vpop.f32.mrf.mxu0
    %2693 = vdwg.mxu0
    %2694 = vmatpush.bf16.msra.mxu0 %v2184
    %2695 = vmatpush.bf16.msra.mxu0 %v2180
    %2696 = vmatpush.bf16.msra.mxu0 %v2176
    %2697 = vmatpush.bf16.msra.mxu0 %v2172
    %2698 = vmatpush.bf16.msra.mxu0 %v2168
    %2699 = vmatpush.bf16.msra.mxu0 %v2164
    %2700 = vmatpush.bf16.msra.mxu0 %v2160
    %2701 = vmatpush.bf16.msra.mxu0 %v2156
    %2702 = vmatmul.bf16.gmra.mxu0 %v1475
    %v2703 = vpop.f32.mrf.mxu0
    %v2704 = vadd.f32 %v1562, %v2703
    %v2705 = vpop.f32.mrf.mxu0
    %2706 = vdwg.mxu0
    %2707 = vmatpush.bf16.msra.mxu0 %v2216
    %2708 = vmatpush.bf16.msra.mxu0 %v2212
    %2709 = vmatpush.bf16.msra.mxu0 %v2208
    %2710 = vmatpush.bf16.msra.mxu0 %v2204
    %2711 = vmatpush.bf16.msra.mxu0 %v2200
    %2712 = vmatpush.bf16.msra.mxu0 %v2196
    %2713 = vmatpush.bf16.msra.mxu0 %v2192
    %2714 = vmatpush.bf16.msra.mxu0 %v2188
    %2715 = vmatmul.bf16.gmra.mxu0 %v1476
    %v2716 = vpop.f32.mrf.mxu0
    %v2717 = vadd.f32 %v2704, %v2716
    %v2718 = vpop.f32.mrf.mxu0
    %2719 = vdwg.mxu0
    %2720 = vmatpush.bf16.msra.mxu0 %v2248
    %2721 = vmatpush.bf16.msra.mxu0 %v2244
    %2722 = vmatpush.bf16.msra.mxu0 %v2240
    %2723 = vmatpush.bf16.msra.mxu0 %v2236
    %2724 = vmatpush.bf16.msra.mxu0 %v2232
    %2725 = vmatpush.bf16.msra.mxu0 %v2228
    %2726 = vmatpush.bf16.msra.mxu0 %v2224
    %2727 = vmatpush.bf16.msra.mxu0 %v2220
    %2728 = vmatmul.bf16.gmra.mxu0 %v1477
    %v2729 = vpop.f32.mrf.mxu0
    %v2730 = vadd.f32 %v2717, %v2729
    %v2731 = vpop.f32.mrf.mxu0
    %2732 = vdwg.mxu0
    %2733 = vmatpush.bf16.msra.mxu0 %v2280
    %2734 = vmatpush.bf16.msra.mxu0 %v2276
    %2735 = vmatpush.bf16.msra.mxu0 %v2272
    %2736 = vmatpush.bf16.msra.mxu0 %v2268
    %2737 = vmatpush.bf16.msra.mxu0 %v2264
    %2738 = vmatpush.bf16.msra.mxu0 %v2260
    %2739 = vmatpush.bf16.msra.mxu0 %v2256
    %2740 = vmatpush.bf16.msra.mxu0 %v2252
    %2741 = vmatmul.bf16.gmra.mxu0 %v1478
    %v2742 = vpop.f32.mrf.mxu0
    %v2743 = vadd.f32 %v2730, %v2742
    %v2744 = vpop.f32.mrf.mxu0
    %2745 = vdwg.mxu0
    %2746 = vmatpush.bf16.msra.mxu0 %v2312
    %2747 = vmatpush.bf16.msra.mxu0 %v2308
    %2748 = vmatpush.bf16.msra.mxu0 %v2304
    %2749 = vmatpush.bf16.msra.mxu0 %v2300
    %2750 = vmatpush.bf16.msra.mxu0 %v2296
    %2751 = vmatpush.bf16.msra.mxu0 %v2292
    %2752 = vmatpush.bf16.msra.mxu0 %v2288
    %2753 = vmatpush.bf16.msra.mxu0 %v2284
    %2754 = vmatmul.bf16.gmra.mxu0 %v1479
    %v2755 = vpop.f32.mrf.mxu0
    %v2756 = vadd.f32 %v2743, %v2755
    %v2757 = vpop.f32.mrf.mxu0
    %2758 = vdwg.mxu0
    %2759 = vmatpush.bf16.msra.mxu0 %v2344
    %2760 = vmatpush.bf16.msra.mxu0 %v2340
    %2761 = vmatpush.bf16.msra.mxu0 %v2336
    %2762 = vmatpush.bf16.msra.mxu0 %v2332
    %2763 = vmatpush.bf16.msra.mxu0 %v2328
    %2764 = vmatpush.bf16.msra.mxu0 %v2324
    %2765 = vmatpush.bf16.msra.mxu0 %v2320
    %2766 = vmatpush.bf16.msra.mxu0 %v2316
    %2767 = vmatmul.bf16.gmra.mxu0 %v1480
    %v2768 = vpop.f32.mrf.mxu0
    %v2769 = vadd.f32 %v2756, %v2768
    %v2770 = vpop.f32.mrf.mxu0
    %2771 = vdwg.mxu0
    %2772 = vmatpush.bf16.msra.mxu0 %v2185
    %2773 = vmatpush.bf16.msra.mxu0 %v2181
    %2774 = vmatpush.bf16.msra.mxu0 %v2177
    %2775 = vmatpush.bf16.msra.mxu0 %v2173
    %2776 = vmatpush.bf16.msra.mxu0 %v2169
    %2777 = vmatpush.bf16.msra.mxu0 %v2165
    %2778 = vmatpush.bf16.msra.mxu0 %v2161
    %2779 = vmatpush.bf16.msra.mxu0 %v2157
    %2780 = vmatmul.bf16.gmra.mxu0 %v1475
    %v2781 = vpop.f32.mrf.mxu0
    %v2782 = vadd.f32 %v1575, %v2781
    %v2783 = vpop.f32.mrf.mxu0
    %2784 = vdwg.mxu0
    %2785 = vmatpush.bf16.msra.mxu0 %v2217
    %2786 = vmatpush.bf16.msra.mxu0 %v2213
    %2787 = vmatpush.bf16.msra.mxu0 %v2209
    %2788 = vmatpush.bf16.msra.mxu0 %v2205
    %2789 = vmatpush.bf16.msra.mxu0 %v2201
    %2790 = vmatpush.bf16.msra.mxu0 %v2197
    %2791 = vmatpush.bf16.msra.mxu0 %v2193
    %2792 = vmatpush.bf16.msra.mxu0 %v2189
    %2793 = vmatmul.bf16.gmra.mxu0 %v1476
    %v2794 = vpop.f32.mrf.mxu0
    %v2795 = vadd.f32 %v2782, %v2794
    %v2796 = vpop.f32.mrf.mxu0
    %2797 = vdwg.mxu0
    %2798 = vmatpush.bf16.msra.mxu0 %v2249
    %2799 = vmatpush.bf16.msra.mxu0 %v2245
    %2800 = vmatpush.bf16.msra.mxu0 %v2241
    %2801 = vmatpush.bf16.msra.mxu0 %v2237
    %2802 = vmatpush.bf16.msra.mxu0 %v2233
    %2803 = vmatpush.bf16.msra.mxu0 %v2229
    %2804 = vmatpush.bf16.msra.mxu0 %v2225
    %2805 = vmatpush.bf16.msra.mxu0 %v2221
    %2806 = vmatmul.bf16.gmra.mxu0 %v1477
    %v2807 = vpop.f32.mrf.mxu0
    %v2808 = vadd.f32 %v2795, %v2807
    %v2809 = vpop.f32.mrf.mxu0
    %2810 = vdwg.mxu0
    %2811 = vmatpush.bf16.msra.mxu0 %v2281
    %2812 = vmatpush.bf16.msra.mxu0 %v2277
    %2813 = vmatpush.bf16.msra.mxu0 %v2273
    %2814 = vmatpush.bf16.msra.mxu0 %v2269
    %2815 = vmatpush.bf16.msra.mxu0 %v2265
    %2816 = vmatpush.bf16.msra.mxu0 %v2261
    %2817 = vmatpush.bf16.msra.mxu0 %v2257
    %2818 = vmatpush.bf16.msra.mxu0 %v2253
    %2819 = vmatmul.bf16.gmra.mxu0 %v1478
    %v2820 = vpop.f32.mrf.mxu0
    %v2821 = vadd.f32 %v2808, %v2820
    %v2822 = vpop.f32.mrf.mxu0
    %2823 = vdwg.mxu0
    %2824 = vmatpush.bf16.msra.mxu0 %v2313
    %2825 = vmatpush.bf16.msra.mxu0 %v2309
    %2826 = vmatpush.bf16.msra.mxu0 %v2305
    %2827 = vmatpush.bf16.msra.mxu0 %v2301
    %2828 = vmatpush.bf16.msra.mxu0 %v2297
    %2829 = vmatpush.bf16.msra.mxu0 %v2293
    %2830 = vmatpush.bf16.msra.mxu0 %v2289
    %2831 = vmatpush.bf16.msra.mxu0 %v2285
    %2832 = vmatmul.bf16.gmra.mxu0 %v1479
    %v2833 = vpop.f32.mrf.mxu0
    %v2834 = vadd.f32 %v2821, %v2833
    %v2835 = vpop.f32.mrf.mxu0
    %2836 = vdwg.mxu0
    %2837 = vmatpush.bf16.msra.mxu0 %v2345
    %2838 = vmatpush.bf16.msra.mxu0 %v2341
    %2839 = vmatpush.bf16.msra.mxu0 %v2337
    %2840 = vmatpush.bf16.msra.mxu0 %v2333
    %2841 = vmatpush.bf16.msra.mxu0 %v2329
    %2842 = vmatpush.bf16.msra.mxu0 %v2325
    %2843 = vmatpush.bf16.msra.mxu0 %v2321
    %2844 = vmatpush.bf16.msra.mxu0 %v2317
    %2845 = vmatmul.bf16.gmra.mxu0 %v1480
    %v2846 = vpop.f32.mrf.mxu0
    %v2847 = vadd.f32 %v2834, %v2846
    %v2848 = vpop.f32.mrf.mxu0
    %2849 = vdwg.mxu0
    %v2851 = vperm.slane %v920, 0
    %v2852 = vperm.slane %v920, 1
    %v2853 = vperm.slane %v920, 2
    %v2854 = vperm.slane %v920, 3
    %v2859 = vadd.f32 %v2613, %v2851
    %v2860 = vadd.f32 %v2691, %v2852
    %v2861 = vadd.f32 %v2769, %v2853
    %v2862 = vadd.f32 %v2847, %v2854
    %v2863 = vmul.f32 %v2859, 0.5
    %v2864 = vmul.f32 %v2860, 0.5
    %v2865 = vmul.f32 %v2861, 0.5
    %v2866 = vmul.f32 %v2862, 0.5
    %v2867 = vmul.f32 %v2859, 0.70710677
    %v2868 = vmul.f32 %v2860, 0.70710677
    %v2869 = vmul.f32 %v2861, 0.70710677
    %v2870 = vmul.f32 %v2862, 0.70710677
    %v2871 = vmax.f32 %v2867, -4.0
    %v2872 = vmax.f32 %v2868, -4.0
    %v2873 = vmax.f32 %v2869, -4.0
    %v2874 = vmax.f32 %v2870, -4.0
    %v2875 = vmin.f32 %v2871, 4.0
    %v2876 = vmin.f32 %v2872, 4.0
    %v2877 = vmin.f32 %v2873, 4.0
    %v2878 = vmin.f32 %v2874, 4.0
    %v2879 = vmul.f32 %v2875, %v2875
    %v2880 = vmul.f32 %v2876, %v2876
    %v2881 = vmul.f32 %v2877, %v2877
    %v2882 = vmul.f32 %v2878, %v2878
    %v2883 = vmul.f32 %v2879, -2.7261424e-10
    %v2884 = vmul.f32 %v2880, -2.7261424e-10
    %v2885 = vmul.f32 %v2881, -2.7261424e-10
    %v2886 = vmul.f32 %v2882, -2.7261424e-10
    %v2887 = vadd.f32 %v2883, 2.7706815e-08
    %v2888 = vadd.f32 %v2884, 2.7706815e-08
    %v2889 = vadd.f32 %v2885, 2.7706815e-08
    %v2890 = vadd.f32 %v2886, 2.7706815e-08
    %v2891 = vmul.f32 %v2887, %v2879
    %v2892 = vmul.f32 %v2888, %v2880
    %v2893 = vmul.f32 %v2889, %v2881
    %v2894 = vmul.f32 %v2890, %v2882
    %v2895 = vadd.f32 %v2891, -2.101024e-06
    %v2896 = vadd.f32 %v2892, -2.101024e-06
    %v2897 = vadd.f32 %v2893, -2.101024e-06
    %v2898 = vadd.f32 %v2894, -2.101024e-06
    %v2899 = vmul.f32 %v2895, %v2879
    %v2900 = vmul.f32 %v2896, %v2880
    %v2901 = vmul.f32 %v2897, %v2881
    %v2902 = vmul.f32 %v2898, %v2882
    %v2903 = vadd.f32 %v2899, -5.6925062e-05
    %v2904 = vadd.f32 %v2900, -5.6925062e-05
    %v2905 = vadd.f32 %v2901, -5.6925062e-05
    %v2906 = vadd.f32 %v2902, -5.6925062e-05
    %v2907 = vmul.f32 %v2903, %v2879
    %v2908 = vmul.f32 %v2904, %v2880
    %v2909 = vmul.f32 %v2905, %v2881
    %v2910 = vmul.f32 %v2906, %v2882
    %v2911 = vadd.f32 %v2907, -0.00073499064
    %v2912 = vadd.f32 %v2908, -0.00073499064
    %v2913 = vadd.f32 %v2909, -0.00073499064
    %v2914 = vadd.f32 %v2910, -0.00073499064
    %v2915 = vmul.f32 %v2911, %v2879
    %v2916 = vmul.f32 %v2912, %v2880
    %v2917 = vmul.f32 %v2913, %v2881
    %v2918 = vmul.f32 %v2914, %v2882
    %v2919 = vadd.f32 %v2915, -0.0029546
    %v2920 = vadd.f32 %v2916, -0.0029546
    %v2921 = vadd.f32 %v2917, -0.0029546
    %v2922 = vadd.f32 %v2918, -0.0029546
    %v2923 = vmul.f32 %v2919, %v2879
    %v2924 = vmul.f32 %v2920, %v2880
    %v2925 = vmul.f32 %v2921, %v2881
    %v2926 = vmul.f32 %v2922, %v2882
    %v2927 = vadd.f32 %v2923, -0.016096033
    %v2928 = vadd.f32 %v2924, -0.016096033
    %v2929 = vadd.f32 %v2925, -0.016096033
    %v2930 = vadd.f32 %v2926, -0.016096033
    %v2931 = vmul.f32 %v2879, -1.45660715e-05
    %v2932 = vmul.f32 %v2880, -1.45660715e-05
    %v2933 = vmul.f32 %v2881, -1.45660715e-05
    %v2934 = vmul.f32 %v2882, -1.45660715e-05
    %v2935 = vadd.f32 %v2931, -0.00021337405
    %v2936 = vadd.f32 %v2932, -0.00021337405
    %v2937 = vadd.f32 %v2933, -0.00021337405
    %v2938 = vadd.f32 %v2934, -0.00021337405
    %v2939 = vmul.f32 %v2935, %v2879
    %v2940 = vmul.f32 %v2936, %v2880
    %v2941 = vmul.f32 %v2937, %v2881
    %v2942 = vmul.f32 %v2938, %v2882
    %v2943 = vadd.f32 %v2939, -0.001682827
    %v2944 = vadd.f32 %v2940, -0.001682827
    %v2945 = vadd.f32 %v2941, -0.001682827
    %v2946 = vadd.f32 %v2942, -0.001682827
    %v2947 = vmul.f32 %v2943, %v2879
    %v2948 = vmul.f32 %v2944, %v2880
    %v2949 = vmul.f32 %v2945, %v2881
    %v2950 = vmul.f32 %v2946, %v2882
    %v2951 = vadd.f32 %v2947, -0.0073733293
    %v2952 = vadd.f32 %v2948, -0.0073733293
    %v2953 = vadd.f32 %v2949, -0.0073733293
    %v2954 = vadd.f32 %v2950, -0.0073733293
    %v2955 = vmul.f32 %v2951, %v2879
    %v2956 = vmul.f32 %v2952, %v2880
    %v2957 = vmul.f32 %v2953, %v2881
    %v2958 = vmul.f32 %v2954, %v2882
    %v2959 = vadd.f32 %v2955, -0.014264739
    %v2960 = vadd.f32 %v2956, -0.014264739
    %v2961 = vadd.f32 %v2957, -0.014264739
    %v2962 = vadd.f32 %v2958, -0.014264739
    %v2963 = vmul.f32 %v2875, %v2927
    %v2964 = vmul.f32 %v2876, %v2928
    %v2965 = vmul.f32 %v2877, %v2929
    %v2966 = vmul.f32 %v2878, %v2930
    %v2967 = vrcp.pop %v2959
    %v2968 = vrcp.pop %v2960
    %v2969 = vrcp.pop %v2961
    %v2970 = vrcp.pop %v2962
    %v2971 = vmul.f32 %v2963, %v2967
    %v2972 = vmul.f32 %v2964, %v2968
    %v2973 = vmul.f32 %v2965, %v2969
    %v2974 = vmul.f32 %v2966, %v2970
    %v2975 = vadd.f32 %v2971, 1.0
    %v2976 = vadd.f32 %v2972, 1.0
    %v2977 = vadd.f32 %v2973, 1.0
    %v2978 = vadd.f32 %v2974, 1.0
    %v2979 = vmul.f32 %v2863, %v2975
    %v2980 = vmul.f32 %v2864, %v2976
    %v2981 = vmul.f32 %v2865, %v2977
    %v2982 = vmul.f32 %v2866, %v2978
    %v2983 = vpack.c.bf16 %v2979, %v2979
    %v2984 = vpack.c.bf16 %v2980, %v2980
    %v2985 = vpack.c.bf16 %v2981, %v2981
    %v2986 = vpack.c.bf16 %v2982, %v2982
    %v2988 = vperm.slane %v922, 0
    %v2989 = vperm.slane %v922, 1
    %v3056 = vunpack.c.l.b16 %v573
    %v3057 = vunpack.c.h.b16 %v573
    %v3058 = vunpack.c.l.b16 %v574
    %v3059 = vunpack.c.h.b16 %v574
    %v3060 = vunpack.c.l.b16 %v575
    %v3061 = vunpack.c.h.b16 %v575
    %v3062 = vunpack.c.l.b16 %v576
    %v3063 = vunpack.c.h.b16 %v576
    %v3064 = vunpack.c.l.b16 %v577
    %v3065 = vunpack.c.h.b16 %v577
    %v3066 = vunpack.c.l.b16 %v578
    %v3067 = vunpack.c.h.b16 %v578
    %v3068 = vunpack.c.l.b16 %v579
    %v3069 = vunpack.c.h.b16 %v579
    %v3070 = vunpack.c.l.b16 %v580
    %v3071 = vunpack.c.h.b16 %v580
    %v3072 = vunpack.c.l.b16 %v581
    %v3073 = vunpack.c.h.b16 %v581
    %v3074 = vunpack.c.l.b16 %v582
    %v3075 = vunpack.c.h.b16 %v582
    %v3076 = vunpack.c.l.b16 %v583
    %v3077 = vunpack.c.h.b16 %v583
    %v3078 = vunpack.c.l.b16 %v584
    %v3079 = vunpack.c.h.b16 %v584
    %v3080 = vunpack.c.l.b16 %v585
    %v3081 = vunpack.c.h.b16 %v585
    %v3082 = vunpack.c.l.b16 %v586
    %v3083 = vunpack.c.h.b16 %v586
    %v3084 = vunpack.c.l.b16 %v587
    %v3085 = vunpack.c.h.b16 %v587
    %v3086 = vunpack.c.l.b16 %v588
    %v3087 = vunpack.c.h.b16 %v588
    %v3088 = vunpack.c.l.b16 %v589
    %v3089 = vunpack.c.h.b16 %v589
    %v3090 = vunpack.c.l.b16 %v590
    %v3091 = vunpack.c.h.b16 %v590
    %v3092 = vunpack.c.l.b16 %v591
    %v3093 = vunpack.c.h.b16 %v591
    %v3094 = vunpack.c.l.b16 %v592
    %v3095 = vunpack.c.h.b16 %v592
    %v3096 = vunpack.c.l.b16 %v593
    %v3097 = vunpack.c.h.b16 %v593
    %v3098 = vunpack.c.l.b16 %v594
    %v3099 = vunpack.c.h.b16 %v594
    %v3100 = vunpack.c.l.b16 %v595
    %v3101 = vunpack.c.h.b16 %v595
    %v3102 = vunpack.c.l.b16 %v596
    %v3103 = vunpack.c.h.b16 %v596
    %v3104 = vunpack.c.l.b16 %v597
    %v3105 = vunpack.c.h.b16 %v597
    %v3106 = vunpack.c.l.b16 %v598
    %v3107 = vunpack.c.h.b16 %v598
    %v3108 = vunpack.c.l.b16 %v599
    %v3109 = vunpack.c.h.b16 %v599
    %v3110 = vunpack.c.l.b16 %v600
    %v3111 = vunpack.c.h.b16 %v600
    %v3112 = vunpack.c.l.b16 %v601
    %v3113 = vunpack.c.h.b16 %v601
    %v3114 = vunpack.c.l.b16 %v602
    %v3115 = vunpack.c.h.b16 %v602
    %v3116 = vunpack.c.l.b16 %v603
    %v3117 = vunpack.c.h.b16 %v603
    %v3118 = vunpack.c.l.b16 %v604
    %v3119 = vunpack.c.h.b16 %v604
    %v3120 = vunpack.c.l.b16 %v605
    %v3121 = vunpack.c.h.b16 %v605
    %v3122 = vunpack.c.l.b16 %v606
    %v3123 = vunpack.c.h.b16 %v606
    %v3124 = vunpack.c.l.b16 %v607
    %v3125 = vunpack.c.h.b16 %v607
    %v3126 = vunpack.c.l.b16 %v608
    %v3127 = vunpack.c.h.b16 %v608
    %v3128 = vunpack.c.l.b16 %v609
    %v3129 = vunpack.c.h.b16 %v609
    %v3130 = vunpack.c.l.b16 %v610
    %v3131 = vunpack.c.h.b16 %v610
    %v3132 = vunpack.c.l.b16 %v611
    %v3133 = vunpack.c.h.b16 %v611
    %v3134 = vunpack.c.l.b16 %v612
    %v3135 = vunpack.c.h.b16 %v612
    %v3136 = vunpack.c.l.b16 %v613
    %v3137 = vunpack.c.h.b16 %v613
    %v3138 = vunpack.c.l.b16 %v614
    %v3139 = vunpack.c.h.b16 %v614
    %v3140 = vunpack.c.l.b16 %v615
    %v3141 = vunpack.c.h.b16 %v615
    %v3142 = vunpack.c.l.b16 %v616
    %v3143 = vunpack.c.h.b16 %v616
    %v3144 = vunpack.c.l.b16 %v617
    %v3145 = vunpack.c.h.b16 %v617
    %v3146 = vunpack.c.l.b16 %v618
    %v3147 = vunpack.c.h.b16 %v618
    %v3148 = vunpack.c.l.b16 %v619
    %v3149 = vunpack.c.h.b16 %v619
    %v3150 = vunpack.c.l.b16 %v620
    %v3151 = vunpack.c.h.b16 %v620
    %v3152 = vunpack.c.l.b16 %v621
    %v3153 = vunpack.c.h.b16 %v621
    %v3154 = vunpack.c.l.b16 %v622
    %v3155 = vunpack.c.h.b16 %v622
    %v3156 = vunpack.c.l.b16 %v623
    %v3157 = vunpack.c.h.b16 %v623
    %v3158 = vunpack.c.l.b16 %v624
    %v3159 = vunpack.c.h.b16 %v624
    %v3160 = vunpack.c.l.b16 %v625
    %v3161 = vunpack.c.h.b16 %v625
    %v3162 = vunpack.c.l.b16 %v626
    %v3163 = vunpack.c.h.b16 %v626
    %v3164 = vunpack.c.l.b16 %v627
    %v3165 = vunpack.c.h.b16 %v627
    %v3166 = vunpack.c.l.b16 %v628
    %v3167 = vunpack.c.h.b16 %v628
    %v3168 = vunpack.c.l.b16 %v629
    %v3169 = vunpack.c.h.b16 %v629
    %v3170 = vunpack.c.l.b16 %v630
    %v3171 = vunpack.c.h.b16 %v630
    %v3172 = vunpack.c.l.b16 %v631
    %v3173 = vunpack.c.h.b16 %v631
    %v3174 = vunpack.c.l.b16 %v632
    %v3175 = vunpack.c.h.b16 %v632
    %v3176 = vunpack.c.l.b16 %v633
    %v3177 = vunpack.c.h.b16 %v633
    %v3178 = vunpack.c.l.b16 %v634
    %v3179 = vunpack.c.h.b16 %v634
    %v3180 = vunpack.c.l.b16 %v635
    %v3181 = vunpack.c.h.b16 %v635
    %v3182 = vunpack.c.l.b16 %v636
    %v3183 = vunpack.c.h.b16 %v636
    %v3184 = vpack.c.b16 %v3058, %v3056
    %v3185 = vpack.c.b16 %v3059, %v3057
    %v3186 = vpack.c.b16 %v3062, %v3060
    %v3187 = vpack.c.b16 %v3063, %v3061
    %v3188 = vpack.c.b16 %v3066, %v3064
    %v3189 = vpack.c.b16 %v3067, %v3065
    %v3190 = vpack.c.b16 %v3070, %v3068
    %v3191 = vpack.c.b16 %v3071, %v3069
    %v3192 = vpack.c.b16 %v3074, %v3072
    %v3193 = vpack.c.b16 %v3075, %v3073
    %v3194 = vpack.c.b16 %v3078, %v3076
    %v3195 = vpack.c.b16 %v3079, %v3077
    %v3196 = vpack.c.b16 %v3082, %v3080
    %v3197 = vpack.c.b16 %v3083, %v3081
    %v3198 = vpack.c.b16 %v3086, %v3084
    %v3199 = vpack.c.b16 %v3087, %v3085
    %v3200 = vpack.c.b16 %v3090, %v3088
    %v3201 = vpack.c.b16 %v3091, %v3089
    %v3202 = vpack.c.b16 %v3094, %v3092
    %v3203 = vpack.c.b16 %v3095, %v3093
    %v3204 = vpack.c.b16 %v3098, %v3096
    %v3205 = vpack.c.b16 %v3099, %v3097
    %v3206 = vpack.c.b16 %v3102, %v3100
    %v3207 = vpack.c.b16 %v3103, %v3101
    %v3208 = vpack.c.b16 %v3106, %v3104
    %v3209 = vpack.c.b16 %v3107, %v3105
    %v3210 = vpack.c.b16 %v3110, %v3108
    %v3211 = vpack.c.b16 %v3111, %v3109
    %v3212 = vpack.c.b16 %v3114, %v3112
    %v3213 = vpack.c.b16 %v3115, %v3113
    %v3214 = vpack.c.b16 %v3118, %v3116
    %v3215 = vpack.c.b16 %v3119, %v3117
    %v3216 = vpack.c.b16 %v3122, %v3120
    %v3217 = vpack.c.b16 %v3123, %v3121
    %v3218 = vpack.c.b16 %v3126, %v3124
    %v3219 = vpack.c.b16 %v3127, %v3125
    %v3220 = vpack.c.b16 %v3130, %v3128
    %v3221 = vpack.c.b16 %v3131, %v3129
    %v3222 = vpack.c.b16 %v3134, %v3132
    %v3223 = vpack.c.b16 %v3135, %v3133
    %v3224 = vpack.c.b16 %v3138, %v3136
    %v3225 = vpack.c.b16 %v3139, %v3137
    %v3226 = vpack.c.b16 %v3142, %v3140
    %v3227 = vpack.c.b16 %v3143, %v3141
    %v3228 = vpack.c.b16 %v3146, %v3144
    %v3229 = vpack.c.b16 %v3147, %v3145
    %v3230 = vpack.c.b16 %v3150, %v3148
    %v3231 = vpack.c.b16 %v3151, %v3149
    %v3232 = vpack.c.b16 %v3154, %v3152
    %v3233 = vpack.c.b16 %v3155, %v3153
    %v3234 = vpack.c.b16 %v3158, %v3156
    %v3235 = vpack.c.b16 %v3159, %v3157
    %v3236 = vpack.c.b16 %v3162, %v3160
    %v3237 = vpack.c.b16 %v3163, %v3161
    %v3238 = vpack.c.b16 %v3166, %v3164
    %v3239 = vpack.c.b16 %v3167, %v3165
    %v3240 = vpack.c.b16 %v3170, %v3168
    %v3241 = vpack.c.b16 %v3171, %v3169
    %v3242 = vpack.c.b16 %v3174, %v3172
    %v3243 = vpack.c.b16 %v3175, %v3173
    %v3244 = vpack.c.b16 %v3178, %v3176
    %v3245 = vpack.c.b16 %v3179, %v3177
    %v3246 = vpack.c.b16 %v3182, %v3180
    %v3247 = vpack.c.b16 %v3183, %v3181
    %3312 = vmatpush.bf16.msra.mxu0 %v3198
    %3313 = vmatpush.bf16.msra.mxu0 %v3196
    %3314 = vmatpush.bf16.msra.mxu0 %v3194
    %3315 = vmatpush.bf16.msra.mxu0 %v3192
    %3316 = vmatpush.bf16.msra.mxu0 %v3190
    %3317 = vmatpush.bf16.msra.mxu0 %v3188
    %3318 = vmatpush.bf16.msra.mxu0 %v3186
    %3319 = vmatpush.bf16.msra.mxu0 %v3184
    %3320 = vmatmul.bf16.gmra.mxu0 %v2983
    %v3321 = vpop.f32.mrf.mxu0
    %v3322 = vadd.f32 %v2988, %v3321
    %v3323 = vpop.f32.mrf.mxu0
    %3324 = vdwg.mxu0
    %3325 = vmatpush.bf16.msra.mxu0 %v3214
    %3326 = vmatpush.bf16.msra.mxu0 %v3212
    %3327 = vmatpush.bf16.msra.mxu0 %v3210
    %3328 = vmatpush.bf16.msra.mxu0 %v3208
    %3329 = vmatpush.bf16.msra.mxu0 %v3206
    %3330 = vmatpush.bf16.msra.mxu0 %v3204
    %3331 = vmatpush.bf16.msra.mxu0 %v3202
    %3332 = vmatpush.bf16.msra.mxu0 %v3200
    %3333 = vmatmul.bf16.gmra.mxu0 %v2984
    %v3334 = vpop.f32.mrf.mxu0
    %v3335 = vadd.f32 %v3322, %v3334
    %v3336 = vpop.f32.mrf.mxu0
    %3337 = vdwg.mxu0
    %3338 = vmatpush.bf16.msra.mxu0 %v3230
    %3339 = vmatpush.bf16.msra.mxu0 %v3228
    %3340 = vmatpush.bf16.msra.mxu0 %v3226
    %3341 = vmatpush.bf16.msra.mxu0 %v3224
    %3342 = vmatpush.bf16.msra.mxu0 %v3222
    %3343 = vmatpush.bf16.msra.mxu0 %v3220
    %3344 = vmatpush.bf16.msra.mxu0 %v3218
    %3345 = vmatpush.bf16.msra.mxu0 %v3216
    %3346 = vmatmul.bf16.gmra.mxu0 %v2985
    %v3347 = vpop.f32.mrf.mxu0
    %v3348 = vadd.f32 %v3335, %v3347
    %v3349 = vpop.f32.mrf.mxu0
    %3350 = vdwg.mxu0
    %3351 = vmatpush.bf16.msra.mxu0 %v3246
    %3352 = vmatpush.bf16.msra.mxu0 %v3244
    %3353 = vmatpush.bf16.msra.mxu0 %v3242
    %3354 = vmatpush.bf16.msra.mxu0 %v3240
    %3355 = vmatpush.bf16.msra.mxu0 %v3238
    %3356 = vmatpush.bf16.msra.mxu0 %v3236
    %3357 = vmatpush.bf16.msra.mxu0 %v3234
    %3358 = vmatpush.bf16.msra.mxu0 %v3232
    %3359 = vmatmul.bf16.gmra.mxu0 %v2986
    %v3360 = vpop.f32.mrf.mxu0
    %v3361 = vadd.f32 %v3348, %v3360
    %v3362 = vpop.f32.mrf.mxu0
    %3363 = vdwg.mxu0
    %3364 = vmatpush.bf16.msra.mxu0 %v3199
    %3365 = vmatpush.bf16.msra.mxu0 %v3197
    %3366 = vmatpush.bf16.msra.mxu0 %v3195
    %3367 = vmatpush.bf16.msra.mxu0 %v3193
    %3368 = vmatpush.bf16.msra.mxu0 %v3191
    %3369 = vmatpush.bf16.msra.mxu0 %v3189
    %3370 = vmatpush.bf16.msra.mxu0 %v3187
    %3371 = vmatpush.bf16.msra.mxu0 %v3185
    %3372 = vmatmul.bf16.gmra.mxu0 %v2983
    %v3373 = vpop.f32.mrf.mxu0
    %v3374 = vadd.f32 %v2989, %v3373
    %v3375 = vpop.f32.mrf.mxu0
    %3376 = vdwg.mxu0
    %3377 = vmatpush.bf16.msra.mxu0 %v3215
    %3378 = vmatpush.bf16.msra.mxu0 %v3213
    %3379 = vmatpush.bf16.msra.mxu0 %v3211
    %3380 = vmatpush.bf16.msra.mxu0 %v3209
    %3381 = vmatpush.bf16.msra.mxu0 %v3207
    %3382 = vmatpush.bf16.msra.mxu0 %v3205
    %3383 = vmatpush.bf16.msra.mxu0 %v3203
    %3384 = vmatpush.bf16.msra.mxu0 %v3201
    %3385 = vmatmul.bf16.gmra.mxu0 %v2984
    %v3386 = vpop.f32.mrf.mxu0
    %v3387 = vadd.f32 %v3374, %v3386
    %v3388 = vpop.f32.mrf.mxu0
    %3389 = vdwg.mxu0
    %3390 = vmatpush.bf16.msra.mxu0 %v3231
    %3391 = vmatpush.bf16.msra.mxu0 %v3229
    %3392 = vmatpush.bf16.msra.mxu0 %v3227
    %3393 = vmatpush.bf16.msra.mxu0 %v3225
    %3394 = vmatpush.bf16.msra.mxu0 %v3223
    %3395 = vmatpush.bf16.msra.mxu0 %v3221
    %3396 = vmatpush.bf16.msra.mxu0 %v3219
    %3397 = vmatpush.bf16.msra.mxu0 %v3217
    %3398 = vmatmul.bf16.gmra.mxu0 %v2985
    %v3399 = vpop.f32.mrf.mxu0
    %v3400 = vadd.f32 %v3387, %v3399
    %v3401 = vpop.f32.mrf.mxu0
    %3402 = vdwg.mxu0
    %3403 = vmatpush.bf16.msra.mxu0 %v3247
    %3404 = vmatpush.bf16.msra.mxu0 %v3245
    %3405 = vmatpush.bf16.msra.mxu0 %v3243
    %3406 = vmatpush.bf16.msra.mxu0 %v3241
    %3407 = vmatpush.bf16.msra.mxu0 %v3239
    %3408 = vmatpush.bf16.msra.mxu0 %v3237
    %3409 = vmatpush.bf16.msra.mxu0 %v3235
    %3410 = vmatpush.bf16.msra.mxu0 %v3233
    %3411 = vmatmul.bf16.gmra.mxu0 %v2986
    %v3412 = vpop.f32.mrf.mxu0
    %v3413 = vadd.f32 %v3400, %v3412
    %v3414 = vpop.f32.mrf.mxu0
    %3415 = vdwg.mxu0
    %v3416 = vmul.f32 %v3361, 0.5
    %v3417 = vmul.f32 %v3413, 0.5
    %v3418 = vmul.f32 %v3361, 0.70710677
    %v3419 = vmul.f32 %v3413, 0.70710677
    %v3420 = vmax.f32 %v3418, -4.0
    %v3421 = vmax.f32 %v3419, -4.0
    %v3422 = vmin.f32 %v3420, 4.0
    %v3423 = vmin.f32 %v3421, 4.0
    %v3424 = vmul.f32 %v3422, %v3422
    %v3425 = vmul.f32 %v3423, %v3423
    %v3426 = vmul.f32 %v3424, -2.7261424e-10
    %v3427 = vmul.f32 %v3425, -2.7261424e-10
    %v3428 = vadd.f32 %v3426, 2.7706815e-08
    %v3429 = vadd.f32 %v3427, 2.7706815e-08
    %v3430 = vmul.f32 %v3428, %v3424
    %v3431 = vmul.f32 %v3429, %v3425
    %v3432 = vadd.f32 %v3430, -2.101024e-06
    %v3433 = vadd.f32 %v3431, -2.101024e-06
    %v3434 = vmul.f32 %v3432, %v3424
    %v3435 = vmul.f32 %v3433, %v3425
    %v3436 = vadd.f32 %v3434, -5.6925062e-05
    %v3437 = vadd.f32 %v3435, -5.6925062e-05
    %v3438 = vmul.f32 %v3436, %v3424
    %v3439 = vmul.f32 %v3437, %v3425
    %v3440 = vadd.f32 %v3438, -0.00073499064
    %v3441 = vadd.f32 %v3439, -0.00073499064
    %v3442 = vmul.f32 %v3440, %v3424
    %v3443 = vmul.f32 %v3441, %v3425
    %v3444 = vadd.f32 %v3442, -0.0029546
    %v3445 = vadd.f32 %v3443, -0.0029546
    %v3446 = vmul.f32 %v3444, %v3424
    %v3447 = vmul.f32 %v3445, %v3425
    %v3448 = vadd.f32 %v3446, -0.016096033
    %v3449 = vadd.f32 %v3447, -0.016096033
    %v3450 = vmul.f32 %v3424, -1.45660715e-05
    %v3451 = vmul.f32 %v3425, -1.45660715e-05
    %v3452 = vadd.f32 %v3450, -0.00021337405
    %v3453 = vadd.f32 %v3451, -0.00021337405
    %v3454 = vmul.f32 %v3452, %v3424
    %v3455 = vmul.f32 %v3453, %v3425
    %v3456 = vadd.f32 %v3454, -0.001682827
    %v3457 = vadd.f32 %v3455, -0.001682827
    %v3458 = vmul.f32 %v3456, %v3424
    %v3459 = vmul.f32 %v3457, %v3425
    %v3460 = vadd.f32 %v3458, -0.0073733293
    %v3461 = vadd.f32 %v3459, -0.0073733293
    %v3462 = vmul.f32 %v3460, %v3424
    %v3463 = vmul.f32 %v3461, %v3425
    %v3464 = vadd.f32 %v3462, -0.014264739
    %v3465 = vadd.f32 %v3463, -0.014264739
    %v3466 = vmul.f32 %v3422, %v3448
    %v3467 = vmul.f32 %v3423, %v3449
    %v3468 = vrcp.pop %v3464
    %v3469 = vrcp.pop %v3465
    %v3470 = vmul.f32 %v3466, %v3468
    %v3471 = vmul.f32 %v3467, %v3469
    %v3472 = vadd.f32 %v3470, 1.0
    %v3473 = vadd.f32 %v3471, 1.0
    %v3474 = vmul.f32 %v3416, %v3472
    %v3475 = vmul.f32 %v3417, %v3473
    %v3476 = vpack.c.bf16 %v3474, %v3474
    %v3477 = vpack.c.bf16 %v3475, %v3475
    %v3479 = vperm.slane %v924, 0
    %v3480 = vperm.slane %v924, 1
    %v3515 = vunpack.c.l.b16 %v637
    %v3516 = vunpack.c.h.b16 %v637
    %v3517 = vunpack.c.l.b16 %v638
    %v3518 = vunpack.c.h.b16 %v638
    %v3519 = vunpack.c.l.b16 %v639
    %v3520 = vunpack.c.h.b16 %v639
    %v3521 = vunpack.c.l.b16 %v640
    %v3522 = vunpack.c.h.b16 %v640
    %v3523 = vunpack.c.l.b16 %v641
    %v3524 = vunpack.c.h.b16 %v641
    %v3525 = vunpack.c.l.b16 %v642
    %v3526 = vunpack.c.h.b16 %v642
    %v3527 = vunpack.c.l.b16 %v643
    %v3528 = vunpack.c.h.b16 %v643
    %v3529 = vunpack.c.l.b16 %v644
    %v3530 = vunpack.c.h.b16 %v644
    %v3531 = vunpack.c.l.b16 %v645
    %v3532 = vunpack.c.h.b16 %v645
    %v3533 = vunpack.c.l.b16 %v646
    %v3534 = vunpack.c.h.b16 %v646
    %v3535 = vunpack.c.l.b16 %v647
    %v3536 = vunpack.c.h.b16 %v647
    %v3537 = vunpack.c.l.b16 %v648
    %v3538 = vunpack.c.h.b16 %v648
    %v3539 = vunpack.c.l.b16 %v649
    %v3540 = vunpack.c.h.b16 %v649
    %v3541 = vunpack.c.l.b16 %v650
    %v3542 = vunpack.c.h.b16 %v650
    %v3543 = vunpack.c.l.b16 %v651
    %v3544 = vunpack.c.h.b16 %v651
    %v3545 = vunpack.c.l.b16 %v652
    %v3546 = vunpack.c.h.b16 %v652
    %v3547 = vunpack.c.l.b16 %v653
    %v3548 = vunpack.c.h.b16 %v653
    %v3549 = vunpack.c.l.b16 %v654
    %v3550 = vunpack.c.h.b16 %v654
    %v3551 = vunpack.c.l.b16 %v655
    %v3552 = vunpack.c.h.b16 %v655
    %v3553 = vunpack.c.l.b16 %v656
    %v3554 = vunpack.c.h.b16 %v656
    %v3555 = vunpack.c.l.b16 %v657
    %v3556 = vunpack.c.h.b16 %v657
    %v3557 = vunpack.c.l.b16 %v658
    %v3558 = vunpack.c.h.b16 %v658
    %v3559 = vunpack.c.l.b16 %v659
    %v3560 = vunpack.c.h.b16 %v659
    %v3561 = vunpack.c.l.b16 %v660
    %v3562 = vunpack.c.h.b16 %v660
    %v3563 = vunpack.c.l.b16 %v661
    %v3564 = vunpack.c.h.b16 %v661
    %v3565 = vunpack.c.l.b16 %v662
    %v3566 = vunpack.c.h.b16 %v662
    %v3567 = vunpack.c.l.b16 %v663
    %v3568 = vunpack.c.h.b16 %v663
    %v3569 = vunpack.c.l.b16 %v664
    %v3570 = vunpack.c.h.b16 %v664
    %v3571 = vunpack.c.l.b16 %v665
    %v3572 = vunpack.c.h.b16 %v665
    %v3573 = vunpack.c.l.b16 %v666
    %v3574 = vunpack.c.h.b16 %v666
    %v3575 = vunpack.c.l.b16 %v667
    %v3576 = vunpack.c.h.b16 %v667
    %v3577 = vunpack.c.l.b16 %v668
    %v3578 = vunpack.c.h.b16 %v668
    %v3579 = vpack.c.b16 %v3517, %v3515
    %v3580 = vpack.c.b16 %v3518, %v3516
    %v3581 = vpack.c.b16 %v3521, %v3519
    %v3582 = vpack.c.b16 %v3522, %v3520
    %v3583 = vpack.c.b16 %v3525, %v3523
    %v3584 = vpack.c.b16 %v3526, %v3524
    %v3585 = vpack.c.b16 %v3529, %v3527
    %v3586 = vpack.c.b16 %v3530, %v3528
    %v3587 = vpack.c.b16 %v3533, %v3531
    %v3588 = vpack.c.b16 %v3534, %v3532
    %v3589 = vpack.c.b16 %v3537, %v3535
    %v3590 = vpack.c.b16 %v3538, %v3536
    %v3591 = vpack.c.b16 %v3541, %v3539
    %v3592 = vpack.c.b16 %v3542, %v3540
    %v3593 = vpack.c.b16 %v3545, %v3543
    %v3594 = vpack.c.b16 %v3546, %v3544
    %v3595 = vpack.c.b16 %v3549, %v3547
    %v3596 = vpack.c.b16 %v3550, %v3548
    %v3597 = vpack.c.b16 %v3553, %v3551
    %v3598 = vpack.c.b16 %v3554, %v3552
    %v3599 = vpack.c.b16 %v3557, %v3555
    %v3600 = vpack.c.b16 %v3558, %v3556
    %v3601 = vpack.c.b16 %v3561, %v3559
    %v3602 = vpack.c.b16 %v3562, %v3560
    %v3603 = vpack.c.b16 %v3565, %v3563
    %v3604 = vpack.c.b16 %v3566, %v3564
    %v3605 = vpack.c.b16 %v3569, %v3567
    %v3606 = vpack.c.b16 %v3570, %v3568
    %v3607 = vpack.c.b16 %v3573, %v3571
    %v3608 = vpack.c.b16 %v3574, %v3572
    %v3609 = vpack.c.b16 %v3577, %v3575
    %v3610 = vpack.c.b16 %v3578, %v3576
    %3643 = vmatpush.bf16.msra.mxu0 %v3593
    %3644 = vmatpush.bf16.msra.mxu0 %v3591
    %3645 = vmatpush.bf16.msra.mxu0 %v3589
    %3646 = vmatpush.bf16.msra.mxu0 %v3587
    %3647 = vmatpush.bf16.msra.mxu0 %v3585
    %3648 = vmatpush.bf16.msra.mxu0 %v3583
    %3649 = vmatpush.bf16.msra.mxu0 %v3581
    %3650 = vmatpush.bf16.msra.mxu0 %v3579
    %3651 = vmatmul.bf16.gmra.mxu0 %v3476
    %v3652 = vpop.f32.mrf.mxu0
    %v3653 = vadd.f32 %v3479, %v3652
    %v3654 = vpop.f32.mrf.mxu0
    %3655 = vdwg.mxu0
    %3656 = vmatpush.bf16.msra.mxu0 %v3609
    %3657 = vmatpush.bf16.msra.mxu0 %v3607
    %3658 = vmatpush.bf16.msra.mxu0 %v3605
    %3659 = vmatpush.bf16.msra.mxu0 %v3603
    %3660 = vmatpush.bf16.msra.mxu0 %v3601
    %3661 = vmatpush.bf16.msra.mxu0 %v3599
    %3662 = vmatpush.bf16.msra.mxu0 %v3597
    %3663 = vmatpush.bf16.msra.mxu0 %v3595
    %3664 = vmatmul.bf16.gmra.mxu0 %v3477
    %v3665 = vpop.f32.mrf.mxu0
    %v3666 = vadd.f32 %v3653, %v3665
    %v3667 = vpop.f32.mrf.mxu0
    %3668 = vdwg.mxu0
    %3669 = vmatpush.bf16.msra.mxu0 %v3594
    %3670 = vmatpush.bf16.msra.mxu0 %v3592
    %3671 = vmatpush.bf16.msra.mxu0 %v3590
    %3672 = vmatpush.bf16.msra.mxu0 %v3588
    %3673 = vmatpush.bf16.msra.mxu0 %v3586
    %3674 = vmatpush.bf16.msra.mxu0 %v3584
    %3675 = vmatpush.bf16.msra.mxu0 %v3582
    %3676 = vmatpush.bf16.msra.mxu0 %v3580
    %3677 = vmatmul.bf16.gmra.mxu0 %v3476
    %v3678 = vpop.f32.mrf.mxu0
    %v3679 = vadd.f32 %v3480, %v3678
    %v3680 = vpop.f32.mrf.mxu0
    %3681 = vdwg.mxu0
    %3682 = vmatpush.bf16.msra.mxu0 %v3610
    %3683 = vmatpush.bf16.msra.mxu0 %v3608
    %3684 = vmatpush.bf16.msra.mxu0 %v3606
    %3685 = vmatpush.bf16.msra.mxu0 %v3604
    %3686 = vmatpush.bf16.msra.mxu0 %v3602
    %3687 = vmatpush.bf16.msra.mxu0 %v3600
    %3688 = vmatpush.bf16.msra.mxu0 %v3598
    %3689 = vmatpush.bf16.msra.mxu0 %v3596
    %3690 = vmatmul.bf16.gmra.mxu0 %v3477
    %v3691 = vpop.f32.mrf.mxu0
    %v3692 = vadd.f32 %v3679, %v3691
    %v3693 = vpop.f32.mrf.mxu0
    %3694 = vdwg.mxu0
    %v3695 = vmul.f32 %v3666, 0.5
    %v3696 = vmul.f32 %v3692, 0.5
    %v3697 = vmul.f32 %v3666, 0.70710677
    %v3698 = vmul.f32 %v3692, 0.70710677
    %v3699 = vmax.f32 %v3697, -4.0
    %v3700 = vmax.f32 %v3698, -4.0
    %v3701 = vmin.f32 %v3699, 4.0
    %v3702 = vmin.f32 %v3700, 4.0
    %v3703 = vmul.f32 %v3701, %v3701
    %v3704 = vmul.f32 %v3702, %v3702
    %v3705 = vmul.f32 %v3703, -2.7261424e-10
    %v3706 = vmul.f32 %v3704, -2.7261424e-10
    %v3707 = vadd.f32 %v3705, 2.7706815e-08
    %v3708 = vadd.f32 %v3706, 2.7706815e-08
    %v3709 = vmul.f32 %v3707, %v3703
    %v3710 = vmul.f32 %v3708, %v3704
    %v3711 = vadd.f32 %v3709, -2.101024e-06
    %v3712 = vadd.f32 %v3710, -2.101024e-06
    %v3713 = vmul.f32 %v3711, %v3703
    %v3714 = vmul.f32 %v3712, %v3704
    %v3715 = vadd.f32 %v3713, -5.6925062e-05
    %v3716 = vadd.f32 %v3714, -5.6925062e-05
    %v3717 = vmul.f32 %v3715, %v3703
    %v3718 = vmul.f32 %v3716, %v3704
    %v3719 = vadd.f32 %v3717, -0.00073499064
    %v3720 = vadd.f32 %v3718, -0.00073499064
    %v3721 = vmul.f32 %v3719, %v3703
    %v3722 = vmul.f32 %v3720, %v3704
    %v3723 = vadd.f32 %v3721, -0.0029546
    %v3724 = vadd.f32 %v3722, -0.0029546
    %v3725 = vmul.f32 %v3723, %v3703
    %v3726 = vmul.f32 %v3724, %v3704
    %v3727 = vadd.f32 %v3725, -0.016096033
    %v3728 = vadd.f32 %v3726, -0.016096033
    %v3729 = vmul.f32 %v3703, -1.45660715e-05
    %v3730 = vmul.f32 %v3704, -1.45660715e-05
    %v3731 = vadd.f32 %v3729, -0.00021337405
    %v3732 = vadd.f32 %v3730, -0.00021337405
    %v3733 = vmul.f32 %v3731, %v3703
    %v3734 = vmul.f32 %v3732, %v3704
    %v3735 = vadd.f32 %v3733, -0.001682827
    %v3736 = vadd.f32 %v3734, -0.001682827
    %v3737 = vmul.f32 %v3735, %v3703
    %v3738 = vmul.f32 %v3736, %v3704
    %v3739 = vadd.f32 %v3737, -0.0073733293
    %v3740 = vadd.f32 %v3738, -0.0073733293
    %v3741 = vmul.f32 %v3739, %v3703
    %v3742 = vmul.f32 %v3740, %v3704
    %v3743 = vadd.f32 %v3741, -0.014264739
    %v3744 = vadd.f32 %v3742, -0.014264739
    %v3745 = vmul.f32 %v3701, %v3727
    %v3746 = vmul.f32 %v3702, %v3728
    %v3747 = vrcp.pop %v3743
    %v3748 = vrcp.pop %v3744
    %v3749 = vmul.f32 %v3745, %v3747
    %v3750 = vmul.f32 %v3746, %v3748
    %v3751 = vadd.f32 %v3749, 1.0
    %v3752 = vadd.f32 %v3750, 1.0
    %v3753 = vmul.f32 %v3695, %v3751
    %v3754 = vmul.f32 %v3696, %v3752
    %v3756 = vperm.slane %v926, 0
    %v3757 = vperm.slane %v926, 1
    %v3760 = vmul.f32 %v3753, %v3756
    %v3761 = vmul.f32 %v3754, %v3757
    %v3763 = vperm.slane %v928, 0
    %v3764 = vperm.slane %v928, 1
    %v3767 = vadd.f32 %v3760, %v3763
    %v3768 = vadd.f32 %v3761, %v3764
    %v3769 = vmul.f32 %v3767, 0.5
    %v3770 = vmul.f32 %v3768, 0.5
    %v3771 = vmul.f32 %v3767, 0.70710677
    %v3772 = vmul.f32 %v3768, 0.70710677
    %v3773 = vmax.f32 %v3771, -4.0
    %v3774 = vmax.f32 %v3772, -4.0
    %v3775 = vmin.f32 %v3773, 4.0
    %v3776 = vmin.f32 %v3774, 4.0
    %v3777 = vmul.f32 %v3775, %v3775
    %v3778 = vmul.f32 %v3776, %v3776
    %v3779 = vmul.f32 %v3777, -2.7261424e-10
    %v3780 = vmul.f32 %v3778, -2.7261424e-10
    %v3781 = vadd.f32 %v3779, 2.7706815e-08
    %v3782 = vadd.f32 %v3780, 2.7706815e-08
    %v3783 = vmul.f32 %v3781, %v3777
    %v3784 = vmul.f32 %v3782, %v3778
    %v3785 = vadd.f32 %v3783, -2.101024e-06
    %v3786 = vadd.f32 %v3784, -2.101024e-06
    %v3787 = vmul.f32 %v3785, %v3777
    %v3788 = vmul.f32 %v3786, %v3778
    %v3789 = vadd.f32 %v3787, -5.6925062e-05
    %v3790 = vadd.f32 %v3788, -5.6925062e-05
    %v3791 = vmul.f32 %v3789, %v3777
    %v3792 = vmul.f32 %v3790, %v3778
    %v3793 = vadd.f32 %v3791, -0.00073499064
    %v3794 = vadd.f32 %v3792, -0.00073499064
    %v3795 = vmul.f32 %v3793, %v3777
    %v3796 = vmul.f32 %v3794, %v3778
    %v3797 = vadd.f32 %v3795, -0.0029546
    %v3798 = vadd.f32 %v3796, -0.0029546
    %v3799 = vmul.f32 %v3797, %v3777
    %v3800 = vmul.f32 %v3798, %v3778
    %v3801 = vadd.f32 %v3799, -0.016096033
    %v3802 = vadd.f32 %v3800, -0.016096033
    %v3803 = vmul.f32 %v3777, -1.45660715e-05
    %v3804 = vmul.f32 %v3778, -1.45660715e-05
    %v3805 = vadd.f32 %v3803, -0.00021337405
    %v3806 = vadd.f32 %v3804, -0.00021337405
    %v3807 = vmul.f32 %v3805, %v3777
    %v3808 = vmul.f32 %v3806, %v3778
    %v3809 = vadd.f32 %v3807, -0.001682827
    %v3810 = vadd.f32 %v3808, -0.001682827
    %v3811 = vmul.f32 %v3809, %v3777
    %v3812 = vmul.f32 %v3810, %v3778
    %v3813 = vadd.f32 %v3811, -0.0073733293
    %v3814 = vadd.f32 %v3812, -0.0073733293
    %v3815 = vmul.f32 %v3813, %v3777
    %v3816 = vmul.f32 %v3814, %v3778
    %v3817 = vadd.f32 %v3815, -0.014264739
    %v3818 = vadd.f32 %v3816, -0.014264739
    %v3819 = vmul.f32 %v3775, %v3801
    %v3820 = vmul.f32 %v3776, %v3802
    %v3821 = vrcp.pop %v3817
    %v3822 = vrcp.pop %v3818
    %v3823 = vmul.f32 %v3819, %v3821
    %v3824 = vmul.f32 %v3820, %v3822
    %v3825 = vadd.f32 %v3823, 1.0
    %v3826 = vadd.f32 %v3824, 1.0
    %v3827 = vmul.f32 %v3769, %v3825
    %v3828 = vmul.f32 %v3770, %v3826
    %v3829 = vpack.c.bf16 %v3827, %v3827
    %v3830 = vpack.c.bf16 %v3828, %v3828
    %v3832 = vperm.slane %v930, 0
    %v3833 = vperm.slane %v930, 1
    %v3868 = vunpack.c.l.b16 %v669
    %v3869 = vunpack.c.h.b16 %v669
    %v3870 = vunpack.c.l.b16 %v670
    %v3871 = vunpack.c.h.b16 %v670
    %v3872 = vunpack.c.l.b16 %v671
    %v3873 = vunpack.c.h.b16 %v671
    %v3874 = vunpack.c.l.b16 %v672
    %v3875 = vunpack.c.h.b16 %v672
    %v3876 = vunpack.c.l.b16 %v673
    %v3877 = vunpack.c.h.b16 %v673
    %v3878 = vunpack.c.l.b16 %v674
    %v3879 = vunpack.c.h.b16 %v674
    %v3880 = vunpack.c.l.b16 %v675
    %v3881 = vunpack.c.h.b16 %v675
    %v3882 = vunpack.c.l.b16 %v676
    %v3883 = vunpack.c.h.b16 %v676
    %v3884 = vunpack.c.l.b16 %v677
    %v3885 = vunpack.c.h.b16 %v677
    %v3886 = vunpack.c.l.b16 %v678
    %v3887 = vunpack.c.h.b16 %v678
    %v3888 = vunpack.c.l.b16 %v679
    %v3889 = vunpack.c.h.b16 %v679
    %v3890 = vunpack.c.l.b16 %v680
    %v3891 = vunpack.c.h.b16 %v680
    %v3892 = vunpack.c.l.b16 %v681
    %v3893 = vunpack.c.h.b16 %v681
    %v3894 = vunpack.c.l.b16 %v682
    %v3895 = vunpack.c.h.b16 %v682
    %v3896 = vunpack.c.l.b16 %v683
    %v3897 = vunpack.c.h.b16 %v683
    %v3898 = vunpack.c.l.b16 %v684
    %v3899 = vunpack.c.h.b16 %v684
    %v3900 = vunpack.c.l.b16 %v685
    %v3901 = vunpack.c.h.b16 %v685
    %v3902 = vunpack.c.l.b16 %v686
    %v3903 = vunpack.c.h.b16 %v686
    %v3904 = vunpack.c.l.b16 %v687
    %v3905 = vunpack.c.h.b16 %v687
    %v3906 = vunpack.c.l.b16 %v688
    %v3907 = vunpack.c.h.b16 %v688
    %v3908 = vunpack.c.l.b16 %v689
    %v3909 = vunpack.c.h.b16 %v689
    %v3910 = vunpack.c.l.b16 %v690
    %v3911 = vunpack.c.h.b16 %v690
    %v3912 = vunpack.c.l.b16 %v691
    %v3913 = vunpack.c.h.b16 %v691
    %v3914 = vunpack.c.l.b16 %v692
    %v3915 = vunpack.c.h.b16 %v692
    %v3916 = vunpack.c.l.b16 %v693
    %v3917 = vunpack.c.h.b16 %v693
    %v3918 = vunpack.c.l.b16 %v694
    %v3919 = vunpack.c.h.b16 %v694
    %v3920 = vunpack.c.l.b16 %v695
    %v3921 = vunpack.c.h.b16 %v695
    %v3922 = vunpack.c.l.b16 %v696
    %v3923 = vunpack.c.h.b16 %v696
    %v3924 = vunpack.c.l.b16 %v697
    %v3925 = vunpack.c.h.b16 %v697
    %v3926 = vunpack.c.l.b16 %v698
    %v3927 = vunpack.c.h.b16 %v698
    %v3928 = vunpack.c.l.b16 %v699
    %v3929 = vunpack.c.h.b16 %v699
    %v3930 = vunpack.c.l.b16 %v700
    %v3931 = vunpack.c.h.b16 %v700
    %v3932 = vpack.c.b16 %v3870, %v3868
    %v3933 = vpack.c.b16 %v3871, %v3869
    %v3934 = vpack.c.b16 %v3874, %v3872
    %v3935 = vpack.c.b16 %v3875, %v3873
    %v3936 = vpack.c.b16 %v3878, %v3876
    %v3937 = vpack.c.b16 %v3879, %v3877
    %v3938 = vpack.c.b16 %v3882, %v3880
    %v3939 = vpack.c.b16 %v3883, %v3881
    %v3940 = vpack.c.b16 %v3886, %v3884
    %v3941 = vpack.c.b16 %v3887, %v3885
    %v3942 = vpack.c.b16 %v3890, %v3888
    %v3943 = vpack.c.b16 %v3891, %v3889
    %v3944 = vpack.c.b16 %v3894, %v3892
    %v3945 = vpack.c.b16 %v3895, %v3893
    %v3946 = vpack.c.b16 %v3898, %v3896
    %v3947 = vpack.c.b16 %v3899, %v3897
    %v3948 = vpack.c.b16 %v3902, %v3900
    %v3949 = vpack.c.b16 %v3903, %v3901
    %v3950 = vpack.c.b16 %v3906, %v3904
    %v3951 = vpack.c.b16 %v3907, %v3905
    %v3952 = vpack.c.b16 %v3910, %v3908
    %v3953 = vpack.c.b16 %v3911, %v3909
    %v3954 = vpack.c.b16 %v3914, %v3912
    %v3955 = vpack.c.b16 %v3915, %v3913
    %v3956 = vpack.c.b16 %v3918, %v3916
    %v3957 = vpack.c.b16 %v3919, %v3917
    %v3958 = vpack.c.b16 %v3922, %v3920
    %v3959 = vpack.c.b16 %v3923, %v3921
    %v3960 = vpack.c.b16 %v3926, %v3924
    %v3961 = vpack.c.b16 %v3927, %v3925
    %v3962 = vpack.c.b16 %v3930, %v3928
    %v3963 = vpack.c.b16 %v3931, %v3929
    %3996 = vmatpush.bf16.msra.mxu0 %v3946
    %3997 = vmatpush.bf16.msra.mxu0 %v3944
    %3998 = vmatpush.bf16.msra.mxu0 %v3942
    %3999 = vmatpush.bf16.msra.mxu0 %v3940
    %4000 = vmatpush.bf16.msra.mxu0 %v3938
    %4001 = vmatpush.bf16.msra.mxu0 %v3936
    %4002 = vmatpush.bf16.msra.mxu0 %v3934
    %4003 = vmatpush.bf16.msra.mxu0 %v3932
    %4004 = vmatmul.bf16.gmra.mxu0 %v3829
    %v4005 = vpop.f32.mrf.mxu0
    %v4006 = vadd.f32 %v3832, %v4005
    %v4007 = vpop.f32.mrf.mxu0
    %4008 = vdwg.mxu0
    %4009 = vmatpush.bf16.msra.mxu0 %v3962
    %4010 = vmatpush.bf16.msra.mxu0 %v3960
    %4011 = vmatpush.bf16.msra.mxu0 %v3958
    %4012 = vmatpush.bf16.msra.mxu0 %v3956
    %4013 = vmatpush.bf16.msra.mxu0 %v3954
    %4014 = vmatpush.bf16.msra.mxu0 %v3952
    %4015 = vmatpush.bf16.msra.mxu0 %v3950
    %4016 = vmatpush.bf16.msra.mxu0 %v3948
    %4017 = vmatmul.bf16.gmra.mxu0 %v3830
    %v4018 = vpop.f32.mrf.mxu0
    %v4019 = vadd.f32 %v4006, %v4018
    %v4020 = vpop.f32.mrf.mxu0
    %4021 = vdwg.mxu0
    %4022 = vmatpush.bf16.msra.mxu0 %v3947
    %4023 = vmatpush.bf16.msra.mxu0 %v3945
    %4024 = vmatpush.bf16.msra.mxu0 %v3943
    %4025 = vmatpush.bf16.msra.mxu0 %v3941
    %4026 = vmatpush.bf16.msra.mxu0 %v3939
    %4027 = vmatpush.bf16.msra.mxu0 %v3937
    %4028 = vmatpush.bf16.msra.mxu0 %v3935
    %4029 = vmatpush.bf16.msra.mxu0 %v3933
    %4030 = vmatmul.bf16.gmra.mxu0 %v3829
    %v4031 = vpop.f32.mrf.mxu0
    %v4032 = vadd.f32 %v3833, %v4031
    %v4033 = vpop.f32.mrf.mxu0
    %4034 = vdwg.mxu0
    %4035 = vmatpush.bf16.msra.mxu0 %v3963
    %4036 = vmatpush.bf16.msra.mxu0 %v3961
    %4037 = vmatpush.bf16.msra.mxu0 %v3959
    %4038 = vmatpush.bf16.msra.mxu0 %v3957
    %4039 = vmatpush.bf16.msra.mxu0 %v3955
    %4040 = vmatpush.bf16.msra.mxu0 %v3953
    %4041 = vmatpush.bf16.msra.mxu0 %v3951
    %4042 = vmatpush.bf16.msra.mxu0 %v3949
    %4043 = vmatmul.bf16.gmra.mxu0 %v3830
    %v4044 = vpop.f32.mrf.mxu0
    %v4045 = vadd.f32 %v4032, %v4044
    %v4046 = vpop.f32.mrf.mxu0
    %4047 = vdwg.mxu0
    %v4049 = vperm.slane %v932, 0
    %v4050 = vperm.slane %v932, 1
    %v4053 = vmul.f32 %v4019, %v4049
    %v4054 = vmul.f32 %v4045, %v4050
    %v4056 = vperm.slane %v934, 0
    %v4057 = vperm.slane %v934, 1
    %v4060 = vadd.f32 %v4053, %v4056
    %v4061 = vadd.f32 %v4054, %v4057
    %v4062 = vmul.f32 %v4060, 0.5
    %v4063 = vmul.f32 %v4061, 0.5
    %v4064 = vmul.f32 %v4060, 0.70710677
    %v4065 = vmul.f32 %v4061, 0.70710677
    %v4066 = vmax.f32 %v4064, -4.0
    %v4067 = vmax.f32 %v4065, -4.0
    %v4068 = vmin.f32 %v4066, 4.0
    %v4069 = vmin.f32 %v4067, 4.0
    %v4070 = vmul.f32 %v4068, %v4068
    %v4071 = vmul.f32 %v4069, %v4069
    %v4072 = vmul.f32 %v4070, -2.7261424e-10
    %v4073 = vmul.f32 %v4071, -2.7261424e-10
    %v4074 = vadd.f32 %v4072, 2.7706815e-08
    %v4075 = vadd.f32 %v4073, 2.7706815e-08
    %v4076 = vmul.f32 %v4074, %v4070
    %v4077 = vmul.f32 %v4075, %v4071
    %v4078 = vadd.f32 %v4076, -2.101024e-06
    %v4079 = vadd.f32 %v4077, -2.101024e-06
    %v4080 = vmul.f32 %v4078, %v4070
    %v4081 = vmul.f32 %v4079, %v4071
    %v4082 = vadd.f32 %v4080, -5.6925062e-05
    %v4083 = vadd.f32 %v4081, -5.6925062e-05
    %v4084 = vmul.f32 %v4082, %v4070
    %v4085 = vmul.f32 %v4083, %v4071
    %v4086 = vadd.f32 %v4084, -0.00073499064
    %v4087 = vadd.f32 %v4085, -0.00073499064
    %v4088 = vmul.f32 %v4086, %v4070
    %v4089 = vmul.f32 %v4087, %v4071
    %v4090 = vadd.f32 %v4088, -0.0029546
    %v4091 = vadd.f32 %v4089, -0.0029546
    %v4092 = vmul.f32 %v4090, %v4070
    %v4093 = vmul.f32 %v4091, %v4071
    %v4094 = vadd.f32 %v4092, -0.016096033
    %v4095 = vadd.f32 %v4093, -0.016096033
    %v4096 = vmul.f32 %v4070, -1.45660715e-05
    %v4097 = vmul.f32 %v4071, -1.45660715e-05
    %v4098 = vadd.f32 %v4096, -0.00021337405
    %v4099 = vadd.f32 %v4097, -0.00021337405
    %v4100 = vmul.f32 %v4098, %v4070
    %v4101 = vmul.f32 %v4099, %v4071
    %v4102 = vadd.f32 %v4100, -0.001682827
    %v4103 = vadd.f32 %v4101, -0.001682827
    %v4104 = vmul.f32 %v4102, %v4070
    %v4105 = vmul.f32 %v4103, %v4071
    %v4106 = vadd.f32 %v4104, -0.0073733293
    %v4107 = vadd.f32 %v4105, -0.0073733293
    %v4108 = vmul.f32 %v4106, %v4070
    %v4109 = vmul.f32 %v4107, %v4071
    %v4110 = vadd.f32 %v4108, -0.014264739
    %v4111 = vadd.f32 %v4109, -0.014264739
    %v4112 = vmul.f32 %v4068, %v4094
    %v4113 = vmul.f32 %v4069, %v4095
    %v4114 = vrcp.pop %v4110
    %v4115 = vrcp.pop %v4111
    %v4116 = vmul.f32 %v4112, %v4114
    %v4117 = vmul.f32 %v4113, %v4115
    %v4118 = vadd.f32 %v4116, 1.0
    %v4119 = vadd.f32 %v4117, 1.0
    %v4120 = vmul.f32 %v4062, %v4118
    %v4121 = vmul.f32 %v4063, %v4119
    %v4122 = vpack.c.bf16 %v4120, %v4120
    %v4123 = vpack.c.bf16 %v4121, %v4121
    %v4125 = vperm.slane %v936, 0
    %v4126 = vperm.slane %v936, 1
    %v4161 = vunpack.c.l.b16 %v701
    %v4162 = vunpack.c.h.b16 %v701
    %v4163 = vunpack.c.l.b16 %v702
    %v4164 = vunpack.c.h.b16 %v702
    %v4165 = vunpack.c.l.b16 %v703
    %v4166 = vunpack.c.h.b16 %v703
    %v4167 = vunpack.c.l.b16 %v704
    %v4168 = vunpack.c.h.b16 %v704
    %v4169 = vunpack.c.l.b16 %v705
    %v4170 = vunpack.c.h.b16 %v705
    %v4171 = vunpack.c.l.b16 %v706
    %v4172 = vunpack.c.h.b16 %v706
    %v4173 = vunpack.c.l.b16 %v707
    %v4174 = vunpack.c.h.b16 %v707
    %v4175 = vunpack.c.l.b16 %v708
    %v4176 = vunpack.c.h.b16 %v708
    %v4177 = vunpack.c.l.b16 %v709
    %v4178 = vunpack.c.h.b16 %v709
    %v4179 = vunpack.c.l.b16 %v710
    %v4180 = vunpack.c.h.b16 %v710
    %v4181 = vunpack.c.l.b16 %v711
    %v4182 = vunpack.c.h.b16 %v711
    %v4183 = vunpack.c.l.b16 %v712
    %v4184 = vunpack.c.h.b16 %v712
    %v4185 = vunpack.c.l.b16 %v713
    %v4186 = vunpack.c.h.b16 %v713
    %v4187 = vunpack.c.l.b16 %v714
    %v4188 = vunpack.c.h.b16 %v714
    %v4189 = vunpack.c.l.b16 %v715
    %v4190 = vunpack.c.h.b16 %v715
    %v4191 = vunpack.c.l.b16 %v716
    %v4192 = vunpack.c.h.b16 %v716
    %v4193 = vunpack.c.l.b16 %v717
    %v4194 = vunpack.c.h.b16 %v717
    %v4195 = vunpack.c.l.b16 %v718
    %v4196 = vunpack.c.h.b16 %v718
    %v4197 = vunpack.c.l.b16 %v719
    %v4198 = vunpack.c.h.b16 %v719
    %v4199 = vunpack.c.l.b16 %v720
    %v4200 = vunpack.c.h.b16 %v720
    %v4201 = vunpack.c.l.b16 %v721
    %v4202 = vunpack.c.h.b16 %v721
    %v4203 = vunpack.c.l.b16 %v722
    %v4204 = vunpack.c.h.b16 %v722
    %v4205 = vunpack.c.l.b16 %v723
    %v4206 = vunpack.c.h.b16 %v723
    %v4207 = vunpack.c.l.b16 %v724
    %v4208 = vunpack.c.h.b16 %v724
    %v4209 = vunpack.c.l.b16 %v725
    %v4210 = vunpack.c.h.b16 %v725
    %v4211 = vunpack.c.l.b16 %v726
    %v4212 = vunpack.c.h.b16 %v726
    %v4213 = vunpack.c.l.b16 %v727
    %v4214 = vunpack.c.h.b16 %v727
    %v4215 = vunpack.c.l.b16 %v728
    %v4216 = vunpack.c.h.b16 %v728
    %v4217 = vunpack.c.l.b16 %v729
    %v4218 = vunpack.c.h.b16 %v729
    %v4219 = vunpack.c.l.b16 %v730
    %v4220 = vunpack.c.h.b16 %v730
    %v4221 = vunpack.c.l.b16 %v731
    %v4222 = vunpack.c.h.b16 %v731
    %v4223 = vunpack.c.l.b16 %v732
    %v4224 = vunpack.c.h.b16 %v732
    %v4225 = vpack.c.b16 %v4163, %v4161
    %v4226 = vpack.c.b16 %v4164, %v4162
    %v4227 = vpack.c.b16 %v4167, %v4165
    %v4228 = vpack.c.b16 %v4168, %v4166
    %v4229 = vpack.c.b16 %v4171, %v4169
    %v4230 = vpack.c.b16 %v4172, %v4170
    %v4231 = vpack.c.b16 %v4175, %v4173
    %v4232 = vpack.c.b16 %v4176, %v4174
    %v4233 = vpack.c.b16 %v4179, %v4177
    %v4234 = vpack.c.b16 %v4180, %v4178
    %v4235 = vpack.c.b16 %v4183, %v4181
    %v4236 = vpack.c.b16 %v4184, %v4182
    %v4237 = vpack.c.b16 %v4187, %v4185
    %v4238 = vpack.c.b16 %v4188, %v4186
    %v4239 = vpack.c.b16 %v4191, %v4189
    %v4240 = vpack.c.b16 %v4192, %v4190
    %v4241 = vpack.c.b16 %v4195, %v4193
    %v4242 = vpack.c.b16 %v4196, %v4194
    %v4243 = vpack.c.b16 %v4199, %v4197
    %v4244 = vpack.c.b16 %v4200, %v4198
    %v4245 = vpack.c.b16 %v4203, %v4201
    %v4246 = vpack.c.b16 %v4204, %v4202
    %v4247 = vpack.c.b16 %v4207, %v4205
    %v4248 = vpack.c.b16 %v4208, %v4206
    %v4249 = vpack.c.b16 %v4211, %v4209
    %v4250 = vpack.c.b16 %v4212, %v4210
    %v4251 = vpack.c.b16 %v4215, %v4213
    %v4252 = vpack.c.b16 %v4216, %v4214
    %v4253 = vpack.c.b16 %v4219, %v4217
    %v4254 = vpack.c.b16 %v4220, %v4218
    %v4255 = vpack.c.b16 %v4223, %v4221
    %v4256 = vpack.c.b16 %v4224, %v4222
    %4289 = vmatpush.bf16.msra.mxu0 %v4239
    %4290 = vmatpush.bf16.msra.mxu0 %v4237
    %4291 = vmatpush.bf16.msra.mxu0 %v4235
    %4292 = vmatpush.bf16.msra.mxu0 %v4233
    %4293 = vmatpush.bf16.msra.mxu0 %v4231
    %4294 = vmatpush.bf16.msra.mxu0 %v4229
    %4295 = vmatpush.bf16.msra.mxu0 %v4227
    %4296 = vmatpush.bf16.msra.mxu0 %v4225
    %4297 = vmatmul.bf16.gmra.mxu0 %v4122
    %v4298 = vpop.f32.mrf.mxu0
    %v4299 = vadd.f32 %v4125, %v4298
    %v4300 = vpop.f32.mrf.mxu0
    %4301 = vdwg.mxu0
    %4302 = vmatpush.bf16.msra.mxu0 %v4255
    %4303 = vmatpush.bf16.msra.mxu0 %v4253
    %4304 = vmatpush.bf16.msra.mxu0 %v4251
    %4305 = vmatpush.bf16.msra.mxu0 %v4249
    %4306 = vmatpush.bf16.msra.mxu0 %v4247
    %4307 = vmatpush.bf16.msra.mxu0 %v4245
    %4308 = vmatpush.bf16.msra.mxu0 %v4243
    %4309 = vmatpush.bf16.msra.mxu0 %v4241
    %4310 = vmatmul.bf16.gmra.mxu0 %v4123
    %v4311 = vpop.f32.mrf.mxu0
    %v4312 = vadd.f32 %v4299, %v4311
    %v4313 = vpop.f32.mrf.mxu0
    %4314 = vdwg.mxu0
    %4315 = vmatpush.bf16.msra.mxu0 %v4240
    %4316 = vmatpush.bf16.msra.mxu0 %v4238
    %4317 = vmatpush.bf16.msra.mxu0 %v4236
    %4318 = vmatpush.bf16.msra.mxu0 %v4234
    %4319 = vmatpush.bf16.msra.mxu0 %v4232
    %4320 = vmatpush.bf16.msra.mxu0 %v4230
    %4321 = vmatpush.bf16.msra.mxu0 %v4228
    %4322 = vmatpush.bf16.msra.mxu0 %v4226
    %4323 = vmatmul.bf16.gmra.mxu0 %v4122
    %v4324 = vpop.f32.mrf.mxu0
    %v4325 = vadd.f32 %v4126, %v4324
    %v4326 = vpop.f32.mrf.mxu0
    %4327 = vdwg.mxu0
    %4328 = vmatpush.bf16.msra.mxu0 %v4256
    %4329 = vmatpush.bf16.msra.mxu0 %v4254
    %4330 = vmatpush.bf16.msra.mxu0 %v4252
    %4331 = vmatpush.bf16.msra.mxu0 %v4250
    %4332 = vmatpush.bf16.msra.mxu0 %v4248
    %4333 = vmatpush.bf16.msra.mxu0 %v4246
    %4334 = vmatpush.bf16.msra.mxu0 %v4244
    %4335 = vmatpush.bf16.msra.mxu0 %v4242
    %4336 = vmatmul.bf16.gmra.mxu0 %v4123
    %v4337 = vpop.f32.mrf.mxu0
    %v4338 = vadd.f32 %v4325, %v4337
    %v4339 = vpop.f32.mrf.mxu0
    %4340 = vdwg.mxu0
    %v4341 = vadd.f32 %v4312, %v3753
    %v4342 = vadd.f32 %v4338, %v3754
    %v4343 = vmul.f32 %v4341, 0.5
    %v4344 = vmul.f32 %v4342, 0.5
    %v4345 = vmul.f32 %v4341, 0.70710677
    %v4346 = vmul.f32 %v4342, 0.70710677
    %v4347 = vmax.f32 %v4345, -4.0
    %v4348 = vmax.f32 %v4346, -4.0
    %v4349 = vmin.f32 %v4347, 4.0
    %v4350 = vmin.f32 %v4348, 4.0
    %v4351 = vmul.f32 %v4349, %v4349
    %v4352 = vmul.f32 %v4350, %v4350
    %v4353 = vmul.f32 %v4351, -2.7261424e-10
    %v4354 = vmul.f32 %v4352, -2.7261424e-10
    %v4355 = vadd.f32 %v4353, 2.7706815e-08
    %v4356 = vadd.f32 %v4354, 2.7706815e-08
    %v4357 = vmul.f32 %v4355, %v4351
    %v4358 = vmul.f32 %v4356, %v4352
    %v4359 = vadd.f32 %v4357, -2.101024e-06
    %v4360 = vadd.f32 %v4358, -2.101024e-06
    %v4361 = vmul.f32 %v4359, %v4351
    %v4362 = vmul.f32 %v4360, %v4352
    %v4363 = vadd.f32 %v4361, -5.6925062e-05
    %v4364 = vadd.f32 %v4362, -5.6925062e-05
    %v4365 = vmul.f32 %v4363, %v4351
    %v4366 = vmul.f32 %v4364, %v4352
    %v4367 = vadd.f32 %v4365, -0.00073499064
    %v4368 = vadd.f32 %v4366, -0.00073499064
    %v4369 = vmul.f32 %v4367, %v4351
    %v4370 = vmul.f32 %v4368, %v4352
    %v4371 = vadd.f32 %v4369, -0.0029546
    %v4372 = vadd.f32 %v4370, -0.0029546
    %v4373 = vmul.f32 %v4371, %v4351
    %v4374 = vmul.f32 %v4372, %v4352
    %v4375 = vadd.f32 %v4373, -0.016096033
    %v4376 = vadd.f32 %v4374, -0.016096033
    %v4377 = vmul.f32 %v4351, -1.45660715e-05
    %v4378 = vmul.f32 %v4352, -1.45660715e-05
    %v4379 = vadd.f32 %v4377, -0.00021337405
    %v4380 = vadd.f32 %v4378, -0.00021337405
    %v4381 = vmul.f32 %v4379, %v4351
    %v4382 = vmul.f32 %v4380, %v4352
    %v4383 = vadd.f32 %v4381, -0.001682827
    %v4384 = vadd.f32 %v4382, -0.001682827
    %v4385 = vmul.f32 %v4383, %v4351
    %v4386 = vmul.f32 %v4384, %v4352
    %v4387 = vadd.f32 %v4385, -0.0073733293
    %v4388 = vadd.f32 %v4386, -0.0073733293
    %v4389 = vmul.f32 %v4387, %v4351
    %v4390 = vmul.f32 %v4388, %v4352
    %v4391 = vadd.f32 %v4389, -0.014264739
    %v4392 = vadd.f32 %v4390, -0.014264739
    %v4393 = vmul.f32 %v4349, %v4375
    %v4394 = vmul.f32 %v4350, %v4376
    %v4395 = vrcp.pop %v4391
    %v4396 = vrcp.pop %v4392
    %v4397 = vmul.f32 %v4393, %v4395
    %v4398 = vmul.f32 %v4394, %v4396
    %v4399 = vadd.f32 %v4397, 1.0
    %v4400 = vadd.f32 %v4398, 1.0
    %v4401 = vmul.f32 %v4343, %v4399
    %v4402 = vmul.f32 %v4344, %v4400
    %v4404 = vperm.slane %v938, 0
    %v4405 = vperm.slane %v938, 1
    %v4408 = vmul.f32 %v4401, %v4404
    %v4409 = vmul.f32 %v4402, %v4405
    %v4411 = vperm.slane %v940, 0
    %v4412 = vperm.slane %v940, 1
    %v4415 = vadd.f32 %v4408, %v4411
    %v4416 = vadd.f32 %v4409, %v4412
    %v4417 = vmul.f32 %v4415, 0.5
    %v4418 = vmul.f32 %v4416, 0.5
    %v4419 = vmul.f32 %v4415, 0.70710677
    %v4420 = vmul.f32 %v4416, 0.70710677
    %v4421 = vmax.f32 %v4419, -4.0
    %v4422 = vmax.f32 %v4420, -4.0
    %v4423 = vmin.f32 %v4421, 4.0
    %v4424 = vmin.f32 %v4422, 4.0
    %v4425 = vmul.f32 %v4423, %v4423
    %v4426 = vmul.f32 %v4424, %v4424
    %v4427 = vmul.f32 %v4425, -2.7261424e-10
    %v4428 = vmul.f32 %v4426, -2.7261424e-10
    %v4429 = vadd.f32 %v4427, 2.7706815e-08
    %v4430 = vadd.f32 %v4428, 2.7706815e-08
    %v4431 = vmul.f32 %v4429, %v4425
    %v4432 = vmul.f32 %v4430, %v4426
    %v4433 = vadd.f32 %v4431, -2.101024e-06
    %v4434 = vadd.f32 %v4432, -2.101024e-06
    %v4435 = vmul.f32 %v4433, %v4425
    %v4436 = vmul.f32 %v4434, %v4426
    %v4437 = vadd.f32 %v4435, -5.6925062e-05
    %v4438 = vadd.f32 %v4436, -5.6925062e-05
    %v4439 = vmul.f32 %v4437, %v4425
    %v4440 = vmul.f32 %v4438, %v4426
    %v4441 = vadd.f32 %v4439, -0.00073499064
    %v4442 = vadd.f32 %v4440, -0.00073499064
    %v4443 = vmul.f32 %v4441, %v4425
    %v4444 = vmul.f32 %v4442, %v4426
    %v4445 = vadd.f32 %v4443, -0.0029546
    %v4446 = vadd.f32 %v4444, -0.0029546
    %v4447 = vmul.f32 %v4445, %v4425
    %v4448 = vmul.f32 %v4446, %v4426
    %v4449 = vadd.f32 %v4447, -0.016096033
    %v4450 = vadd.f32 %v4448, -0.016096033
    %v4451 = vmul.f32 %v4425, -1.45660715e-05
    %v4452 = vmul.f32 %v4426, -1.45660715e-05
    %v4453 = vadd.f32 %v4451, -0.00021337405
    %v4454 = vadd.f32 %v4452, -0.00021337405
    %v4455 = vmul.f32 %v4453, %v4425
    %v4456 = vmul.f32 %v4454, %v4426
    %v4457 = vadd.f32 %v4455, -0.001682827
    %v4458 = vadd.f32 %v4456, -0.001682827
    %v4459 = vmul.f32 %v4457, %v4425
    %v4460 = vmul.f32 %v4458, %v4426
    %v4461 = vadd.f32 %v4459, -0.0073733293
    %v4462 = vadd.f32 %v4460, -0.0073733293
    %v4463 = vmul.f32 %v4461, %v4425
    %v4464 = vmul.f32 %v4462, %v4426
    %v4465 = vadd.f32 %v4463, -0.014264739
    %v4466 = vadd.f32 %v4464, -0.014264739
    %v4467 = vmul.f32 %v4423, %v4449
    %v4468 = vmul.f32 %v4424, %v4450
    %v4469 = vrcp.pop %v4465
    %v4470 = vrcp.pop %v4466
    %v4471 = vmul.f32 %v4467, %v4469
    %v4472 = vmul.f32 %v4468, %v4470
    %v4473 = vadd.f32 %v4471, 1.0
    %v4474 = vadd.f32 %v4472, 1.0
    %v4475 = vmul.f32 %v4417, %v4473
    %v4476 = vmul.f32 %v4418, %v4474
    %v4477 = vpack.c.bf16 %v4475, %v4475
    %v4478 = vpack.c.bf16 %v4476, %v4476
    %v4480 = vperm.slane %v942, 0
    %v4481 = vperm.slane %v942, 1
    %v4516 = vunpack.c.l.b16 %v733
    %v4517 = vunpack.c.h.b16 %v733
    %v4518 = vunpack.c.l.b16 %v734
    %v4519 = vunpack.c.h.b16 %v734
    %v4520 = vunpack.c.l.b16 %v735
    %v4521 = vunpack.c.h.b16 %v735
    %v4522 = vunpack.c.l.b16 %v736
    %v4523 = vunpack.c.h.b16 %v736
    %v4524 = vunpack.c.l.b16 %v737
    %v4525 = vunpack.c.h.b16 %v737
    %v4526 = vunpack.c.l.b16 %v738
    %v4527 = vunpack.c.h.b16 %v738
    %v4528 = vunpack.c.l.b16 %v739
    %v4529 = vunpack.c.h.b16 %v739
    %v4530 = vunpack.c.l.b16 %v740
    %v4531 = vunpack.c.h.b16 %v740
    %v4532 = vunpack.c.l.b16 %v741
    %v4533 = vunpack.c.h.b16 %v741
    %v4534 = vunpack.c.l.b16 %v742
    %v4535 = vunpack.c.h.b16 %v742
    %v4536 = vunpack.c.l.b16 %v743
    %v4537 = vunpack.c.h.b16 %v743
    %v4538 = vunpack.c.l.b16 %v744
    %v4539 = vunpack.c.h.b16 %v744
    %v4540 = vunpack.c.l.b16 %v745
    %v4541 = vunpack.c.h.b16 %v745
    %v4542 = vunpack.c.l.b16 %v746
    %v4543 = vunpack.c.h.b16 %v746
    %v4544 = vunpack.c.l.b16 %v747
    %v4545 = vunpack.c.h.b16 %v747
    %v4546 = vunpack.c.l.b16 %v748
    %v4547 = vunpack.c.h.b16 %v748
    %v4548 = vunpack.c.l.b16 %v749
    %v4549 = vunpack.c.h.b16 %v749
    %v4550 = vunpack.c.l.b16 %v750
    %v4551 = vunpack.c.h.b16 %v750
    %v4552 = vunpack.c.l.b16 %v751
    %v4553 = vunpack.c.h.b16 %v751
    %v4554 = vunpack.c.l.b16 %v752
    %v4555 = vunpack.c.h.b16 %v752
    %v4556 = vunpack.c.l.b16 %v753
    %v4557 = vunpack.c.h.b16 %v753
    %v4558 = vunpack.c.l.b16 %v754
    %v4559 = vunpack.c.h.b16 %v754
    %v4560 = vunpack.c.l.b16 %v755
    %v4561 = vunpack.c.h.b16 %v755
    %v4562 = vunpack.c.l.b16 %v756
    %v4563 = vunpack.c.h.b16 %v756
    %v4564 = vunpack.c.l.b16 %v757
    %v4565 = vunpack.c.h.b16 %v757
    %v4566 = vunpack.c.l.b16 %v758
    %v4567 = vunpack.c.h.b16 %v758
    %v4568 = vunpack.c.l.b16 %v759
    %v4569 = vunpack.c.h.b16 %v759
    %v4570 = vunpack.c.l.b16 %v760
    %v4571 = vunpack.c.h.b16 %v760
    %v4572 = vunpack.c.l.b16 %v761
    %v4573 = vunpack.c.h.b16 %v761
    %v4574 = vunpack.c.l.b16 %v762
    %v4575 = vunpack.c.h.b16 %v762
    %v4576 = vunpack.c.l.b16 %v763
    %v4577 = vunpack.c.h.b16 %v763
    %v4578 = vunpack.c.l.b16 %v764
    %v4579 = vunpack.c.h.b16 %v764
    %v4580 = vpack.c.b16 %v4518, %v4516
    %v4581 = vpack.c.b16 %v4519, %v4517
    %v4582 = vpack.c.b16 %v4522, %v4520
    %v4583 = vpack.c.b16 %v4523, %v4521
    %v4584 = vpack.c.b16 %v4526, %v4524
    %v4585 = vpack.c.b16 %v4527, %v4525
    %v4586 = vpack.c.b16 %v4530, %v4528
    %v4587 = vpack.c.b16 %v4531, %v4529
    %v4588 = vpack.c.b16 %v4534, %v4532
    %v4589 = vpack.c.b16 %v4535, %v4533
    %v4590 = vpack.c.b16 %v4538, %v4536
    %v4591 = vpack.c.b16 %v4539, %v4537
    %v4592 = vpack.c.b16 %v4542, %v4540
    %v4593 = vpack.c.b16 %v4543, %v4541
    %v4594 = vpack.c.b16 %v4546, %v4544
    %v4595 = vpack.c.b16 %v4547, %v4545
    %v4596 = vpack.c.b16 %v4550, %v4548
    %v4597 = vpack.c.b16 %v4551, %v4549
    %v4598 = vpack.c.b16 %v4554, %v4552
    %v4599 = vpack.c.b16 %v4555, %v4553
    %v4600 = vpack.c.b16 %v4558, %v4556
    %v4601 = vpack.c.b16 %v4559, %v4557
    %v4602 = vpack.c.b16 %v4562, %v4560
    %v4603 = vpack.c.b16 %v4563, %v4561
    %v4604 = vpack.c.b16 %v4566, %v4564
    %v4605 = vpack.c.b16 %v4567, %v4565
    %v4606 = vpack.c.b16 %v4570, %v4568
    %v4607 = vpack.c.b16 %v4571, %v4569
    %v4608 = vpack.c.b16 %v4574, %v4572
    %v4609 = vpack.c.b16 %v4575, %v4573
    %v4610 = vpack.c.b16 %v4578, %v4576
    %v4611 = vpack.c.b16 %v4579, %v4577
    %4644 = vmatpush.bf16.msra.mxu0 %v4594
    %4645 = vmatpush.bf16.msra.mxu0 %v4592
    %4646 = vmatpush.bf16.msra.mxu0 %v4590
    %4647 = vmatpush.bf16.msra.mxu0 %v4588
    %4648 = vmatpush.bf16.msra.mxu0 %v4586
    %4649 = vmatpush.bf16.msra.mxu0 %v4584
    %4650 = vmatpush.bf16.msra.mxu0 %v4582
    %4651 = vmatpush.bf16.msra.mxu0 %v4580
    %4652 = vmatmul.bf16.gmra.mxu0 %v4477
    %v4653 = vpop.f32.mrf.mxu0
    %v4654 = vadd.f32 %v4480, %v4653
    %v4655 = vpop.f32.mrf.mxu0
    %4656 = vdwg.mxu0
    %4657 = vmatpush.bf16.msra.mxu0 %v4610
    %4658 = vmatpush.bf16.msra.mxu0 %v4608
    %4659 = vmatpush.bf16.msra.mxu0 %v4606
    %4660 = vmatpush.bf16.msra.mxu0 %v4604
    %4661 = vmatpush.bf16.msra.mxu0 %v4602
    %4662 = vmatpush.bf16.msra.mxu0 %v4600
    %4663 = vmatpush.bf16.msra.mxu0 %v4598
    %4664 = vmatpush.bf16.msra.mxu0 %v4596
    %4665 = vmatmul.bf16.gmra.mxu0 %v4478
    %v4666 = vpop.f32.mrf.mxu0
    %v4667 = vadd.f32 %v4654, %v4666
    %v4668 = vpop.f32.mrf.mxu0
    %4669 = vdwg.mxu0
    %4670 = vmatpush.bf16.msra.mxu0 %v4595
    %4671 = vmatpush.bf16.msra.mxu0 %v4593
    %4672 = vmatpush.bf16.msra.mxu0 %v4591
    %4673 = vmatpush.bf16.msra.mxu0 %v4589
    %4674 = vmatpush.bf16.msra.mxu0 %v4587
    %4675 = vmatpush.bf16.msra.mxu0 %v4585
    %4676 = vmatpush.bf16.msra.mxu0 %v4583
    %4677 = vmatpush.bf16.msra.mxu0 %v4581
    %4678 = vmatmul.bf16.gmra.mxu0 %v4477
    %v4679 = vpop.f32.mrf.mxu0
    %v4680 = vadd.f32 %v4481, %v4679
    %v4681 = vpop.f32.mrf.mxu0
    %4682 = vdwg.mxu0
    %4683 = vmatpush.bf16.msra.mxu0 %v4611
    %4684 = vmatpush.bf16.msra.mxu0 %v4609
    %4685 = vmatpush.bf16.msra.mxu0 %v4607
    %4686 = vmatpush.bf16.msra.mxu0 %v4605
    %4687 = vmatpush.bf16.msra.mxu0 %v4603
    %4688 = vmatpush.bf16.msra.mxu0 %v4601
    %4689 = vmatpush.bf16.msra.mxu0 %v4599
    %4690 = vmatpush.bf16.msra.mxu0 %v4597
    %4691 = vmatmul.bf16.gmra.mxu0 %v4478
    %v4692 = vpop.f32.mrf.mxu0
    %v4693 = vadd.f32 %v4680, %v4692
    %v4694 = vpop.f32.mrf.mxu0
    %4695 = vdwg.mxu0
    %v4697 = vperm.slane %v944, 0
    %v4698 = vperm.slane %v944, 1
    %v4701 = vmul.f32 %v4667, %v4697
    %v4702 = vmul.f32 %v4693, %v4698
    %v4704 = vperm.slane %v946, 0
    %v4705 = vperm.slane %v946, 1
    %v4708 = vadd.f32 %v4701, %v4704
    %v4709 = vadd.f32 %v4702, %v4705
    %v4710 = vmul.f32 %v4708, 0.5
    %v4711 = vmul.f32 %v4709, 0.5
    %v4712 = vmul.f32 %v4708, 0.70710677
    %v4713 = vmul.f32 %v4709, 0.70710677
    %v4714 = vmax.f32 %v4712, -4.0
    %v4715 = vmax.f32 %v4713, -4.0
    %v4716 = vmin.f32 %v4714, 4.0
    %v4717 = vmin.f32 %v4715, 4.0
    %v4718 = vmul.f32 %v4716, %v4716
    %v4719 = vmul.f32 %v4717, %v4717
    %v4720 = vmul.f32 %v4718, -2.7261424e-10
    %v4721 = vmul.f32 %v4719, -2.7261424e-10
    %v4722 = vadd.f32 %v4720, 2.7706815e-08
    %v4723 = vadd.f32 %v4721, 2.7706815e-08
    %v4724 = vmul.f32 %v4722, %v4718
    %v4725 = vmul.f32 %v4723, %v4719
    %v4726 = vadd.f32 %v4724, -2.101024e-06
    %v4727 = vadd.f32 %v4725, -2.101024e-06
    %v4728 = vmul.f32 %v4726, %v4718
    %v4729 = vmul.f32 %v4727, %v4719
    %v4730 = vadd.f32 %v4728, -5.6925062e-05
    %v4731 = vadd.f32 %v4729, -5.6925062e-05
    %v4732 = vmul.f32 %v4730, %v4718
    %v4733 = vmul.f32 %v4731, %v4719
    %v4734 = vadd.f32 %v4732, -0.00073499064
    %v4735 = vadd.f32 %v4733, -0.00073499064
    %v4736 = vmul.f32 %v4734, %v4718
    %v4737 = vmul.f32 %v4735, %v4719
    %v4738 = vadd.f32 %v4736, -0.0029546
    %v4739 = vadd.f32 %v4737, -0.0029546
    %v4740 = vmul.f32 %v4738, %v4718
    %v4741 = vmul.f32 %v4739, %v4719
    %v4742 = vadd.f32 %v4740, -0.016096033
    %v4743 = vadd.f32 %v4741, -0.016096033
    %v4744 = vmul.f32 %v4718, -1.45660715e-05
    %v4745 = vmul.f32 %v4719, -1.45660715e-05
    %v4746 = vadd.f32 %v4744, -0.00021337405
    %v4747 = vadd.f32 %v4745, -0.00021337405
    %v4748 = vmul.f32 %v4746, %v4718
    %v4749 = vmul.f32 %v4747, %v4719
    %v4750 = vadd.f32 %v4748, -0.001682827
    %v4751 = vadd.f32 %v4749, -0.001682827
    %v4752 = vmul.f32 %v4750, %v4718
    %v4753 = vmul.f32 %v4751, %v4719
    %v4754 = vadd.f32 %v4752, -0.0073733293
    %v4755 = vadd.f32 %v4753, -0.0073733293
    %v4756 = vmul.f32 %v4754, %v4718
    %v4757 = vmul.f32 %v4755, %v4719
    %v4758 = vadd.f32 %v4756, -0.014264739
    %v4759 = vadd.f32 %v4757, -0.014264739
    %v4760 = vmul.f32 %v4716, %v4742
    %v4761 = vmul.f32 %v4717, %v4743
    %v4762 = vrcp.pop %v4758
    %v4763 = vrcp.pop %v4759
    %v4764 = vmul.f32 %v4760, %v4762
    %v4765 = vmul.f32 %v4761, %v4763
    %v4766 = vadd.f32 %v4764, 1.0
    %v4767 = vadd.f32 %v4765, 1.0
    %v4768 = vmul.f32 %v4710, %v4766
    %v4769 = vmul.f32 %v4711, %v4767
    %v4770 = vpack.c.bf16 %v4768, %v4768
    %v4771 = vpack.c.bf16 %v4769, %v4769
    %v4773 = vperm.slane %v948, 0
    %v4774 = vperm.slane %v948, 1
    %v4809 = vunpack.c.l.b16 %v765
    %v4810 = vunpack.c.h.b16 %v765
    %v4811 = vunpack.c.l.b16 %v766
    %v4812 = vunpack.c.h.b16 %v766
    %v4813 = vunpack.c.l.b16 %v767
    %v4814 = vunpack.c.h.b16 %v767
    %v4815 = vunpack.c.l.b16 %v768
    %v4816 = vunpack.c.h.b16 %v768
    %v4817 = vunpack.c.l.b16 %v769
    %v4818 = vunpack.c.h.b16 %v769
    %v4819 = vunpack.c.l.b16 %v770
    %v4820 = vunpack.c.h.b16 %v770
    %v4821 = vunpack.c.l.b16 %v771
    %v4822 = vunpack.c.h.b16 %v771
    %v4823 = vunpack.c.l.b16 %v772
    %v4824 = vunpack.c.h.b16 %v772
    %v4825 = vunpack.c.l.b16 %v773
    %v4826 = vunpack.c.h.b16 %v773
    %v4827 = vunpack.c.l.b16 %v774
    %v4828 = vunpack.c.h.b16 %v774
    %v4829 = vunpack.c.l.b16 %v775
    %v4830 = vunpack.c.h.b16 %v775
    %v4831 = vunpack.c.l.b16 %v776
    %v4832 = vunpack.c.h.b16 %v776
    %v4833 = vunpack.c.l.b16 %v777
    %v4834 = vunpack.c.h.b16 %v777
    %v4835 = vunpack.c.l.b16 %v778
    %v4836 = vunpack.c.h.b16 %v778
    %v4837 = vunpack.c.l.b16 %v779
    %v4838 = vunpack.c.h.b16 %v779
    %v4839 = vunpack.c.l.b16 %v780
    %v4840 = vunpack.c.h.b16 %v780
    %v4841 = vunpack.c.l.b16 %v781
    %v4842 = vunpack.c.h.b16 %v781
    %v4843 = vunpack.c.l.b16 %v782
    %v4844 = vunpack.c.h.b16 %v782
    %v4845 = vunpack.c.l.b16 %v783
    %v4846 = vunpack.c.h.b16 %v783
    %v4847 = vunpack.c.l.b16 %v784
    %v4848 = vunpack.c.h.b16 %v784
    %v4849 = vunpack.c.l.b16 %v785
    %v4850 = vunpack.c.h.b16 %v785
    %v4851 = vunpack.c.l.b16 %v786
    %v4852 = vunpack.c.h.b16 %v786
    %v4853 = vunpack.c.l.b16 %v787
    %v4854 = vunpack.c.h.b16 %v787
    %v4855 = vunpack.c.l.b16 %v788
    %v4856 = vunpack.c.h.b16 %v788
    %v4857 = vunpack.c.l.b16 %v789
    %v4858 = vunpack.c.h.b16 %v789
    %v4859 = vunpack.c.l.b16 %v790
    %v4860 = vunpack.c.h.b16 %v790
    %v4861 = vunpack.c.l.b16 %v791
    %v4862 = vunpack.c.h.b16 %v791
    %v4863 = vunpack.c.l.b16 %v792
    %v4864 = vunpack.c.h.b16 %v792
    %v4865 = vunpack.c.l.b16 %v793
    %v4866 = vunpack.c.h.b16 %v793
    %v4867 = vunpack.c.l.b16 %v794
    %v4868 = vunpack.c.h.b16 %v794
    %v4869 = vunpack.c.l.b16 %v795
    %v4870 = vunpack.c.h.b16 %v795
    %v4871 = vunpack.c.l.b16 %v796
    %v4872 = vunpack.c.h.b16 %v796
    %v4873 = vpack.c.b16 %v4811, %v4809
    %v4874 = vpack.c.b16 %v4812, %v4810
    %v4875 = vpack.c.b16 %v4815, %v4813
    %v4876 = vpack.c.b16 %v4816, %v4814
    %v4877 = vpack.c.b16 %v4819, %v4817
    %v4878 = vpack.c.b16 %v4820, %v4818
    %v4879 = vpack.c.b16 %v4823, %v4821
    %v4880 = vpack.c.b16 %v4824, %v4822
    %v4881 = vpack.c.b16 %v4827, %v4825
    %v4882 = vpack.c.b16 %v4828, %v4826
    %v4883 = vpack.c.b16 %v4831, %v4829
    %v4884 = vpack.c.b16 %v4832, %v4830
    %v4885 = vpack.c.b16 %v4835, %v4833
    %v4886 = vpack.c.b16 %v4836, %v4834
    %v4887 = vpack.c.b16 %v4839, %v4837
    %v4888 = vpack.c.b16 %v4840, %v4838
    %v4889 = vpack.c.b16 %v4843, %v4841
    %v4890 = vpack.c.b16 %v4844, %v4842
    %v4891 = vpack.c.b16 %v4847, %v4845
    %v4892 = vpack.c.b16 %v4848, %v4846
    %v4893 = vpack.c.b16 %v4851, %v4849
    %v4894 = vpack.c.b16 %v4852, %v4850
    %v4895 = vpack.c.b16 %v4855, %v4853
    %v4896 = vpack.c.b16 %v4856, %v4854
    %v4897 = vpack.c.b16 %v4859, %v4857
    %v4898 = vpack.c.b16 %v4860, %v4858
    %v4899 = vpack.c.b16 %v4863, %v4861
    %v4900 = vpack.c.b16 %v4864, %v4862
    %v4901 = vpack.c.b16 %v4867, %v4865
    %v4902 = vpack.c.b16 %v4868, %v4866
    %v4903 = vpack.c.b16 %v4871, %v4869
    %v4904 = vpack.c.b16 %v4872, %v4870
    %4937 = vmatpush.bf16.msra.mxu0 %v4887
    %4938 = vmatpush.bf16.msra.mxu0 %v4885
    %4939 = vmatpush.bf16.msra.mxu0 %v4883
    %4940 = vmatpush.bf16.msra.mxu0 %v4881
    %4941 = vmatpush.bf16.msra.mxu0 %v4879
    %4942 = vmatpush.bf16.msra.mxu0 %v4877
    %4943 = vmatpush.bf16.msra.mxu0 %v4875
    %4944 = vmatpush.bf16.msra.mxu0 %v4873
    %4945 = vmatmul.bf16.gmra.mxu0 %v4770
    %v4946 = vpop.f32.mrf.mxu0
    %v4947 = vadd.f32 %v4773, %v4946
    %v4948 = vpop.f32.mrf.mxu0
    %4949 = vdwg.mxu0
    %4950 = vmatpush.bf16.msra.mxu0 %v4903
    %4951 = vmatpush.bf16.msra.mxu0 %v4901
    %4952 = vmatpush.bf16.msra.mxu0 %v4899
    %4953 = vmatpush.bf16.msra.mxu0 %v4897
    %4954 = vmatpush.bf16.msra.mxu0 %v4895
    %4955 = vmatpush.bf16.msra.mxu0 %v4893
    %4956 = vmatpush.bf16.msra.mxu0 %v4891
    %4957 = vmatpush.bf16.msra.mxu0 %v4889
    %4958 = vmatmul.bf16.gmra.mxu0 %v4771
    %v4959 = vpop.f32.mrf.mxu0
    %v4960 = vadd.f32 %v4947, %v4959
    %v4961 = vpop.f32.mrf.mxu0
    %4962 = vdwg.mxu0
    %4963 = vmatpush.bf16.msra.mxu0 %v4888
    %4964 = vmatpush.bf16.msra.mxu0 %v4886
    %4965 = vmatpush.bf16.msra.mxu0 %v4884
    %4966 = vmatpush.bf16.msra.mxu0 %v4882
    %4967 = vmatpush.bf16.msra.mxu0 %v4880
    %4968 = vmatpush.bf16.msra.mxu0 %v4878
    %4969 = vmatpush.bf16.msra.mxu0 %v4876
    %4970 = vmatpush.bf16.msra.mxu0 %v4874
    %4971 = vmatmul.bf16.gmra.mxu0 %v4770
    %v4972 = vpop.f32.mrf.mxu0
    %v4973 = vadd.f32 %v4774, %v4972
    %v4974 = vpop.f32.mrf.mxu0
    %4975 = vdwg.mxu0
    %4976 = vmatpush.bf16.msra.mxu0 %v4904
    %4977 = vmatpush.bf16.msra.mxu0 %v4902
    %4978 = vmatpush.bf16.msra.mxu0 %v4900
    %4979 = vmatpush.bf16.msra.mxu0 %v4898
    %4980 = vmatpush.bf16.msra.mxu0 %v4896
    %4981 = vmatpush.bf16.msra.mxu0 %v4894
    %4982 = vmatpush.bf16.msra.mxu0 %v4892
    %4983 = vmatpush.bf16.msra.mxu0 %v4890
    %4984 = vmatmul.bf16.gmra.mxu0 %v4771
    %v4985 = vpop.f32.mrf.mxu0
    %v4986 = vadd.f32 %v4973, %v4985
    %v4987 = vpop.f32.mrf.mxu0
    %4988 = vdwg.mxu0
    %v4989 = vadd.f32 %v4960, %v4401
    %v4990 = vadd.f32 %v4986, %v4402
    %v4991 = vmul.f32 %v4989, 0.5
    %v4992 = vmul.f32 %v4990, 0.5
    %v4993 = vmul.f32 %v4989, 0.70710677
    %v4994 = vmul.f32 %v4990, 0.70710677
    %v4995 = vmax.f32 %v4993, -4.0
    %v4996 = vmax.f32 %v4994, -4.0
    %v4997 = vmin.f32 %v4995, 4.0
    %v4998 = vmin.f32 %v4996, 4.0
    %v4999 = vmul.f32 %v4997, %v4997
    %v5000 = vmul.f32 %v4998, %v4998
    %v5001 = vmul.f32 %v4999, -2.7261424e-10
    %v5002 = vmul.f32 %v5000, -2.7261424e-10
    %v5003 = vadd.f32 %v5001, 2.7706815e-08
    %v5004 = vadd.f32 %v5002, 2.7706815e-08
    %v5005 = vmul.f32 %v5003, %v4999
    %v5006 = vmul.f32 %v5004, %v5000
    %v5007 = vadd.f32 %v5005, -2.101024e-06
    %v5008 = vadd.f32 %v5006, -2.101024e-06
    %v5009 = vmul.f32 %v5007, %v4999
    %v5010 = vmul.f32 %v5008, %v5000
    %v5011 = vadd.f32 %v5009, -5.6925062e-05
    %v5012 = vadd.f32 %v5010, -5.6925062e-05
    %v5013 = vmul.f32 %v5011, %v4999
    %v5014 = vmul.f32 %v5012, %v5000
    %v5015 = vadd.f32 %v5013, -0.00073499064
    %v5016 = vadd.f32 %v5014, -0.00073499064
    %v5017 = vmul.f32 %v5015, %v4999
    %v5018 = vmul.f32 %v5016, %v5000
    %v5019 = vadd.f32 %v5017, -0.0029546
    %v5020 = vadd.f32 %v5018, -0.0029546
    %v5021 = vmul.f32 %v5019, %v4999
    %v5022 = vmul.f32 %v5020, %v5000
    %v5023 = vadd.f32 %v5021, -0.016096033
    %v5024 = vadd.f32 %v5022, -0.016096033
    %v5025 = vmul.f32 %v4999, -1.45660715e-05
    %v5026 = vmul.f32 %v5000, -1.45660715e-05
    %v5027 = vadd.f32 %v5025, -0.00021337405
    %v5028 = vadd.f32 %v5026, -0.00021337405
    %v5029 = vmul.f32 %v5027, %v4999
    %v5030 = vmul.f32 %v5028, %v5000
    %v5031 = vadd.f32 %v5029, -0.001682827
    %v5032 = vadd.f32 %v5030, -0.001682827
    %v5033 = vmul.f32 %v5031, %v4999
    %v5034 = vmul.f32 %v5032, %v5000
    %v5035 = vadd.f32 %v5033, -0.0073733293
    %v5036 = vadd.f32 %v5034, -0.0073733293
    %v5037 = vmul.f32 %v5035, %v4999
    %v5038 = vmul.f32 %v5036, %v5000
    %v5039 = vadd.f32 %v5037, -0.014264739
    %v5040 = vadd.f32 %v5038, -0.014264739
    %v5041 = vmul.f32 %v4997, %v5023
    %v5042 = vmul.f32 %v4998, %v5024
    %v5043 = vrcp.pop %v5039
    %v5044 = vrcp.pop %v5040
    %v5045 = vmul.f32 %v5041, %v5043
    %v5046 = vmul.f32 %v5042, %v5044
    %v5047 = vadd.f32 %v5045, 1.0
    %v5048 = vadd.f32 %v5046, 1.0
    %v5049 = vmul.f32 %v4991, %v5047
    %v5050 = vmul.f32 %v4992, %v5048
    %v5051 = vpack.c.bf16 %v5049, %v5049
    %v5052 = vpack.c.bf16 %v5050, %v5050
    %v5054 = vperm.slane %v950, 0
    %v5055 = vperm.slane %v950, 1
    %v5090 = vunpack.c.l.b16 %v797
    %v5091 = vunpack.c.h.b16 %v797
    %v5092 = vunpack.c.l.b16 %v798
    %v5093 = vunpack.c.h.b16 %v798
    %v5094 = vunpack.c.l.b16 %v799
    %v5095 = vunpack.c.h.b16 %v799
    %v5096 = vunpack.c.l.b16 %v800
    %v5097 = vunpack.c.h.b16 %v800
    %v5098 = vunpack.c.l.b16 %v801
    %v5099 = vunpack.c.h.b16 %v801
    %v5100 = vunpack.c.l.b16 %v802
    %v5101 = vunpack.c.h.b16 %v802
    %v5102 = vunpack.c.l.b16 %v803
    %v5103 = vunpack.c.h.b16 %v803
    %v5104 = vunpack.c.l.b16 %v804
    %v5105 = vunpack.c.h.b16 %v804
    %v5106 = vunpack.c.l.b16 %v805
    %v5107 = vunpack.c.h.b16 %v805
    %v5108 = vunpack.c.l.b16 %v806
    %v5109 = vunpack.c.h.b16 %v806
    %v5110 = vunpack.c.l.b16 %v807
    %v5111 = vunpack.c.h.b16 %v807
    %v5112 = vunpack.c.l.b16 %v808
    %v5113 = vunpack.c.h.b16 %v808
    %v5114 = vunpack.c.l.b16 %v809
    %v5115 = vunpack.c.h.b16 %v809
    %v5116 = vunpack.c.l.b16 %v810
    %v5117 = vunpack.c.h.b16 %v810
    %v5118 = vunpack.c.l.b16 %v811
    %v5119 = vunpack.c.h.b16 %v811
    %v5120 = vunpack.c.l.b16 %v812
    %v5121 = vunpack.c.h.b16 %v812
    %v5122 = vunpack.c.l.b16 %v813
    %v5123 = vunpack.c.h.b16 %v813
    %v5124 = vunpack.c.l.b16 %v814
    %v5125 = vunpack.c.h.b16 %v814
    %v5126 = vunpack.c.l.b16 %v815
    %v5127 = vunpack.c.h.b16 %v815
    %v5128 = vunpack.c.l.b16 %v816
    %v5129 = vunpack.c.h.b16 %v816
    %v5130 = vunpack.c.l.b16 %v817
    %v5131 = vunpack.c.h.b16 %v817
    %v5132 = vunpack.c.l.b16 %v818
    %v5133 = vunpack.c.h.b16 %v818
    %v5134 = vunpack.c.l.b16 %v819
    %v5135 = vunpack.c.h.b16 %v819
    %v5136 = vunpack.c.l.b16 %v820
    %v5137 = vunpack.c.h.b16 %v820
    %v5138 = vunpack.c.l.b16 %v821
    %v5139 = vunpack.c.h.b16 %v821
    %v5140 = vunpack.c.l.b16 %v822
    %v5141 = vunpack.c.h.b16 %v822
    %v5142 = vunpack.c.l.b16 %v823
    %v5143 = vunpack.c.h.b16 %v823
    %v5144 = vunpack.c.l.b16 %v824
    %v5145 = vunpack.c.h.b16 %v824
    %v5146 = vunpack.c.l.b16 %v825
    %v5147 = vunpack.c.h.b16 %v825
    %v5148 = vunpack.c.l.b16 %v826
    %v5149 = vunpack.c.h.b16 %v826
    %v5150 = vunpack.c.l.b16 %v827
    %v5151 = vunpack.c.h.b16 %v827
    %v5152 = vunpack.c.l.b16 %v828
    %v5153 = vunpack.c.h.b16 %v828
    %v5154 = vpack.c.b16 %v5092, %v5090
    %v5155 = vpack.c.b16 %v5093, %v5091
    %v5156 = vpack.c.b16 %v5096, %v5094
    %v5157 = vpack.c.b16 %v5097, %v5095
    %v5158 = vpack.c.b16 %v5100, %v5098
    %v5159 = vpack.c.b16 %v5101, %v5099
    %v5160 = vpack.c.b16 %v5104, %v5102
    %v5161 = vpack.c.b16 %v5105, %v5103
    %v5162 = vpack.c.b16 %v5108, %v5106
    %v5163 = vpack.c.b16 %v5109, %v5107
    %v5164 = vpack.c.b16 %v5112, %v5110
    %v5165 = vpack.c.b16 %v5113, %v5111
    %v5166 = vpack.c.b16 %v5116, %v5114
    %v5167 = vpack.c.b16 %v5117, %v5115
    %v5168 = vpack.c.b16 %v5120, %v5118
    %v5169 = vpack.c.b16 %v5121, %v5119
    %v5170 = vpack.c.b16 %v5124, %v5122
    %v5171 = vpack.c.b16 %v5125, %v5123
    %v5172 = vpack.c.b16 %v5128, %v5126
    %v5173 = vpack.c.b16 %v5129, %v5127
    %v5174 = vpack.c.b16 %v5132, %v5130
    %v5175 = vpack.c.b16 %v5133, %v5131
    %v5176 = vpack.c.b16 %v5136, %v5134
    %v5177 = vpack.c.b16 %v5137, %v5135
    %v5178 = vpack.c.b16 %v5140, %v5138
    %v5179 = vpack.c.b16 %v5141, %v5139
    %v5180 = vpack.c.b16 %v5144, %v5142
    %v5181 = vpack.c.b16 %v5145, %v5143
    %v5182 = vpack.c.b16 %v5148, %v5146
    %v5183 = vpack.c.b16 %v5149, %v5147
    %v5184 = vpack.c.b16 %v5152, %v5150
    %v5185 = vpack.c.b16 %v5153, %v5151
    %5218 = vmatpush.bf16.msra.mxu0 %v5168
    %5219 = vmatpush.bf16.msra.mxu0 %v5166
    %5220 = vmatpush.bf16.msra.mxu0 %v5164
    %5221 = vmatpush.bf16.msra.mxu0 %v5162
    %5222 = vmatpush.bf16.msra.mxu0 %v5160
    %5223 = vmatpush.bf16.msra.mxu0 %v5158
    %5224 = vmatpush.bf16.msra.mxu0 %v5156
    %5225 = vmatpush.bf16.msra.mxu0 %v5154
    %5226 = vmatmul.bf16.gmra.mxu0 %v5051
    %v5227 = vpop.f32.mrf.mxu0
    %v5228 = vadd.f32 %v5054, %v5227
    %v5229 = vpop.f32.mrf.mxu0
    %5230 = vdwg.mxu0
    %5231 = vmatpush.bf16.msra.mxu0 %v5184
    %5232 = vmatpush.bf16.msra.mxu0 %v5182
    %5233 = vmatpush.bf16.msra.mxu0 %v5180
    %5234 = vmatpush.bf16.msra.mxu0 %v5178
    %5235 = vmatpush.bf16.msra.mxu0 %v5176
    %5236 = vmatpush.bf16.msra.mxu0 %v5174
    %5237 = vmatpush.bf16.msra.mxu0 %v5172
    %5238 = vmatpush.bf16.msra.mxu0 %v5170
    %5239 = vmatmul.bf16.gmra.mxu0 %v5052
    %v5240 = vpop.f32.mrf.mxu0
    %v5241 = vadd.f32 %v5228, %v5240
    %v5242 = vpop.f32.mrf.mxu0
    %5243 = vdwg.mxu0
    %5244 = vmatpush.bf16.msra.mxu0 %v5169
    %5245 = vmatpush.bf16.msra.mxu0 %v5167
    %5246 = vmatpush.bf16.msra.mxu0 %v5165
    %5247 = vmatpush.bf16.msra.mxu0 %v5163
    %5248 = vmatpush.bf16.msra.mxu0 %v5161
    %5249 = vmatpush.bf16.msra.mxu0 %v5159
    %5250 = vmatpush.bf16.msra.mxu0 %v5157
    %5251 = vmatpush.bf16.msra.mxu0 %v5155
    %5252 = vmatmul.bf16.gmra.mxu0 %v5051
    %v5253 = vpop.f32.mrf.mxu0
    %v5254 = vadd.f32 %v5055, %v5253
    %v5255 = vpop.f32.mrf.mxu0
    %5256 = vdwg.mxu0
    %5257 = vmatpush.bf16.msra.mxu0 %v5185
    %5258 = vmatpush.bf16.msra.mxu0 %v5183
    %5259 = vmatpush.bf16.msra.mxu0 %v5181
    %5260 = vmatpush.bf16.msra.mxu0 %v5179
    %5261 = vmatpush.bf16.msra.mxu0 %v5177
    %5262 = vmatpush.bf16.msra.mxu0 %v5175
    %5263 = vmatpush.bf16.msra.mxu0 %v5173
    %5264 = vmatpush.bf16.msra.mxu0 %v5171
    %5265 = vmatmul.bf16.gmra.mxu0 %v5052
    %v5266 = vpop.f32.mrf.mxu0
    %v5267 = vadd.f32 %v5254, %v5266
    %v5268 = vpop.f32.mrf.mxu0
    %5269 = vdwg.mxu0
    %v5270 = vmul.f32 %v5241, 0.5
    %v5271 = vmul.f32 %v5267, 0.5
    %v5272 = vmul.f32 %v5241, 0.70710677
    %v5273 = vmul.f32 %v5267, 0.70710677
    %v5274 = vmax.f32 %v5272, -4.0
    %v5275 = vmax.f32 %v5273, -4.0
    %v5276 = vmin.f32 %v5274, 4.0
    %v5277 = vmin.f32 %v5275, 4.0
    %v5278 = vmul.f32 %v5276, %v5276
    %v5279 = vmul.f32 %v5277, %v5277
    %v5280 = vmul.f32 %v5278, -2.7261424e-10
    %v5281 = vmul.f32 %v5279, -2.7261424e-10
    %v5282 = vadd.f32 %v5280, 2.7706815e-08
    %v5283 = vadd.f32 %v5281, 2.7706815e-08
    %v5284 = vmul.f32 %v5282, %v5278
    %v5285 = vmul.f32 %v5283, %v5279
    %v5286 = vadd.f32 %v5284, -2.101024e-06
    %v5287 = vadd.f32 %v5285, -2.101024e-06
    %v5288 = vmul.f32 %v5286, %v5278
    %v5289 = vmul.f32 %v5287, %v5279
    %v5290 = vadd.f32 %v5288, -5.6925062e-05
    %v5291 = vadd.f32 %v5289, -5.6925062e-05
    %v5292 = vmul.f32 %v5290, %v5278
    %v5293 = vmul.f32 %v5291, %v5279
    %v5294 = vadd.f32 %v5292, -0.00073499064
    %v5295 = vadd.f32 %v5293, -0.00073499064
    %v5296 = vmul.f32 %v5294, %v5278
    %v5297 = vmul.f32 %v5295, %v5279
    %v5298 = vadd.f32 %v5296, -0.0029546
    %v5299 = vadd.f32 %v5297, -0.0029546
    %v5300 = vmul.f32 %v5298, %v5278
    %v5301 = vmul.f32 %v5299, %v5279
    %v5302 = vadd.f32 %v5300, -0.016096033
    %v5303 = vadd.f32 %v5301, -0.016096033
    %v5304 = vmul.f32 %v5278, -1.45660715e-05
    %v5305 = vmul.f32 %v5279, -1.45660715e-05
    %v5306 = vadd.f32 %v5304, -0.00021337405
    %v5307 = vadd.f32 %v5305, -0.00021337405
    %v5308 = vmul.f32 %v5306, %v5278
    %v5309 = vmul.f32 %v5307, %v5279
    %v5310 = vadd.f32 %v5308, -0.001682827
    %v5311 = vadd.f32 %v5309, -0.001682827
    %v5312 = vmul.f32 %v5310, %v5278
    %v5313 = vmul.f32 %v5311, %v5279
    %v5314 = vadd.f32 %v5312, -0.0073733293
    %v5315 = vadd.f32 %v5313, -0.0073733293
    %v5316 = vmul.f32 %v5314, %v5278
    %v5317 = vmul.f32 %v5315, %v5279
    %v5318 = vadd.f32 %v5316, -0.014264739
    %v5319 = vadd.f32 %v5317, -0.014264739
    %v5320 = vmul.f32 %v5276, %v5302
    %v5321 = vmul.f32 %v5277, %v5303
    %v5322 = vrcp.pop %v5318
    %v5323 = vrcp.pop %v5319
    %v5324 = vmul.f32 %v5320, %v5322
    %v5325 = vmul.f32 %v5321, %v5323
    %v5326 = vadd.f32 %v5324, 1.0
    %v5327 = vadd.f32 %v5325, 1.0
    %v5328 = vmul.f32 %v5270, %v5326
    %v5329 = vmul.f32 %v5271, %v5327
    %v5330 = vpack.c.bf16 %v5328, %v5328
    %v5331 = vpack.c.bf16 %v5329, %v5329
    %v5364 = vunpack.c.l.b16 %v829
    %v5365 = vunpack.c.l.b16 %v830
    %v5366 = vunpack.c.l.b16 %v831
    %v5367 = vunpack.c.l.b16 %v832
    %v5368 = vunpack.c.l.b16 %v833
    %v5369 = vunpack.c.l.b16 %v834
    %v5370 = vunpack.c.l.b16 %v835
    %v5371 = vunpack.c.l.b16 %v836
    %v5372 = vunpack.c.l.b16 %v837
    %v5373 = vunpack.c.l.b16 %v838
    %v5374 = vunpack.c.l.b16 %v839
    %v5375 = vunpack.c.l.b16 %v840
    %v5376 = vunpack.c.l.b16 %v841
    %v5377 = vunpack.c.l.b16 %v842
    %v5378 = vunpack.c.l.b16 %v843
    %v5379 = vunpack.c.l.b16 %v844
    %v5380 = vunpack.c.l.b16 %v845
    %v5381 = vunpack.c.l.b16 %v846
    %v5382 = vunpack.c.l.b16 %v847
    %v5383 = vunpack.c.l.b16 %v848
    %v5384 = vunpack.c.l.b16 %v849
    %v5385 = vunpack.c.l.b16 %v850
    %v5386 = vunpack.c.l.b16 %v851
    %v5387 = vunpack.c.l.b16 %v852
    %v5388 = vunpack.c.l.b16 %v853
    %v5389 = vunpack.c.l.b16 %v854
    %v5390 = vunpack.c.l.b16 %v855
    %v5391 = vunpack.c.l.b16 %v856
    %v5392 = vunpack.c.l.b16 %v857
    %v5393 = vunpack.c.l.b16 %v858
    %v5394 = vunpack.c.l.b16 %v859
    %v5395 = vunpack.c.l.b16 %v860
    %v5396 = vpack.c.b16 %v5365, %v5364
    %v5397 = vpack.c.b16 %v5367, %v5366
    %v5398 = vpack.c.b16 %v5369, %v5368
    %v5399 = vpack.c.b16 %v5371, %v5370
    %v5400 = vpack.c.b16 %v5373, %v5372
    %v5401 = vpack.c.b16 %v5375, %v5374
    %v5402 = vpack.c.b16 %v5377, %v5376
    %v5403 = vpack.c.b16 %v5379, %v5378
    %v5404 = vpack.c.b16 %v5381, %v5380
    %v5405 = vpack.c.b16 %v5383, %v5382
    %v5406 = vpack.c.b16 %v5385, %v5384
    %v5407 = vpack.c.b16 %v5387, %v5386
    %v5408 = vpack.c.b16 %v5389, %v5388
    %v5409 = vpack.c.b16 %v5391, %v5390
    %v5410 = vpack.c.b16 %v5393, %v5392
    %v5411 = vpack.c.b16 %v5395, %v5394
    %5428 = vmatpush.bf16.msra.mxu0 %v5403
    %5429 = vmatpush.bf16.msra.mxu0 %v5402
    %5430 = vmatpush.bf16.msra.mxu0 %v5401
    %5431 = vmatpush.bf16.msra.mxu0 %v5400
    %5432 = vmatpush.bf16.msra.mxu0 %v5399
    %5433 = vmatpush.bf16.msra.mxu0 %v5398
    %5434 = vmatpush.bf16.msra.mxu0 %v5397
    %5435 = vmatpush.bf16.msra.mxu0 %v5396
    %5436 = vmatmul.bf16.gmra.mxu0 %v5330
    %v5437 = vpop.f32.mrf.mxu0
    %v5438 = vadd.f32 %v951, %v5437
    %v5439 = vpop.f32.mrf.mxu0
    %5440 = vdwg.mxu0
    %5441 = vmatpush.bf16.msra.mxu0 %v5411
    %5442 = vmatpush.bf16.msra.mxu0 %v5410
    %5443 = vmatpush.bf16.msra.mxu0 %v5409
    %5444 = vmatpush.bf16.msra.mxu0 %v5408
    %5445 = vmatpush.bf16.msra.mxu0 %v5407
    %5446 = vmatpush.bf16.msra.mxu0 %v5406
    %5447 = vmatpush.bf16.msra.mxu0 %v5405
    %5448 = vmatpush.bf16.msra.mxu0 %v5404
    %5449 = vmatmul.bf16.gmra.mxu0 %v5331
    %v5450 = vpop.f32.mrf.mxu0
    %v5451 = vadd.f32 %v5438, %v5450
    %v5452 = vpop.f32.mrf.mxu0
    %5453 = vdwg.mxu0
    %v5454 = vmul.f32 %v5451, 0.5
    %v5455 = vmul.f32 %v5451, 0.70710677
    %v5456 = vmax.f32 %v5455, -4.0
    %v5457 = vmin.f32 %v5456, 4.0
    %v5458 = vmul.f32 %v5457, %v5457
    %v5459 = vmul.f32 %v5458, -2.7261424e-10
    %v5460 = vadd.f32 %v5459, 2.7706815e-08
    %v5461 = vmul.f32 %v5460, %v5458
    %v5462 = vadd.f32 %v5461, -2.101024e-06
    %v5463 = vmul.f32 %v5462, %v5458
    %v5464 = vadd.f32 %v5463, -5.6925062e-05
    %v5465 = vmul.f32 %v5464, %v5458
    %v5466 = vadd.f32 %v5465, -0.00073499064
    %v5467 = vmul.f32 %v5466, %v5458
    %v5468 = vadd.f32 %v5467, -0.0029546
    %v5469 = vmul.f32 %v5468, %v5458
    %v5470 = vadd.f32 %v5469, -0.016096033
    %v5471 = vmul.f32 %v5458, -1.45660715e-05
    %v5472 = vadd.f32 %v5471, -0.00021337405
    %v5473 = vmul.f32 %v5472, %v5458
    %v5474 = vadd.f32 %v5473, -0.001682827
    %v5475 = vmul.f32 %v5474, %v5458
    %v5476 = vadd.f32 %v5475, -0.0073733293
    %v5477 = vmul.f32 %v5476, %v5458
    %v5478 = vadd.f32 %v5477, -0.014264739
    %v5479 = vmul.f32 %v5457, %v5470
    %v5480 = vrcp.pop %v5478
    %v5481 = vmul.f32 %v5479, %v5480
    %v5482 = vadd.f32 %v5481, 1.0
    %v5483 = vmul.f32 %v5454, %v5482
    %v5484 = vpack.c.bf16 %v5483, %v5483
    %v5501 = vunpack.c.l.b16 %v861
    %v5502 = vunpack.c.l.b16 %v862
    %v5503 = vunpack.c.l.b16 %v863
    %v5504 = vunpack.c.l.b16 %v864
    %v5505 = vunpack.c.l.b16 %v865
    %v5506 = vunpack.c.l.b16 %v866
    %v5507 = vunpack.c.l.b16 %v867
    %v5508 = vunpack.c.l.b16 %v868
    %v5509 = vunpack.c.l.b16 %v869
    %v5510 = vunpack.c.l.b16 %v870
    %v5511 = vunpack.c.l.b16 %v871
    %v5512 = vunpack.c.l.b16 %v872
    %v5513 = vunpack.c.l.b16 %v873
    %v5514 = vunpack.c.l.b16 %v874
    %v5515 = vunpack.c.l.b16 %v875
    %v5516 = vunpack.c.l.b16 %v876
    %v5517 = vpack.c.b16 %v5502, %v5501
    %v5518 = vpack.c.b16 %v5504, %v5503
    %v5519 = vpack.c.b16 %v5506, %v5505
    %v5520 = vpack.c.b16 %v5508, %v5507
    %v5521 = vpack.c.b16 %v5510, %v5509
    %v5522 = vpack.c.b16 %v5512, %v5511
    %v5523 = vpack.c.b16 %v5514, %v5513
    %v5524 = vpack.c.b16 %v5516, %v5515
    %5533 = vmatpush.bf16.msra.mxu0 %v5524
    %5534 = vmatpush.bf16.msra.mxu0 %v5523
    %5535 = vmatpush.bf16.msra.mxu0 %v5522
    %5536 = vmatpush.bf16.msra.mxu0 %v5521
    %5537 = vmatpush.bf16.msra.mxu0 %v5520
    %5538 = vmatpush.bf16.msra.mxu0 %v5519
    %5539 = vmatpush.bf16.msra.mxu0 %v5518
    %5540 = vmatpush.bf16.msra.mxu0 %v5517
    %5541 = vmatmul.bf16.gmra.mxu0 %v5484
    %v5542 = vpop.f32.mrf.mxu0
    %v5543 = vadd.f32 %v952, %v5542
    %v5544 = vpop.f32.mrf.mxu0
    %5545 = vdwg.mxu0
    %v5546 = vmul.f32 %v5543, 0.5
    %v5547 = vmul.f32 %v5543, 0.70710677
    %v5548 = vmax.f32 %v5547, -4.0
    %v5549 = vmin.f32 %v5548, 4.0
    %v5550 = vmul.f32 %v5549, %v5549
    %v5551 = vmul.f32 %v5550, -2.7261424e-10
    %v5552 = vadd.f32 %v5551, 2.7706815e-08
    %v5553 = vmul.f32 %v5552, %v5550
    %v5554 = vadd.f32 %v5553, -2.101024e-06
    %v5555 = vmul.f32 %v5554, %v5550
    %v5556 = vadd.f32 %v5555, -5.6925062e-05
    %v5557 = vmul.f32 %v5556, %v5550
    %v5558 = vadd.f32 %v5557, -0.00073499064
    %v5559 = vmul.f32 %v5558, %v5550
    %v5560 = vadd.f32 %v5559, -0.0029546
    %v5561 = vmul.f32 %v5560, %v5550
    %v5562 = vadd.f32 %v5561, -0.016096033
    %v5563 = vmul.f32 %v5550, -1.45660715e-05
    %v5564 = vadd.f32 %v5563, -0.00021337405
    %v5565 = vmul.f32 %v5564, %v5550
    %v5566 = vadd.f32 %v5565, -0.001682827
    %v5567 = vmul.f32 %v5566, %v5550
    %v5568 = vadd.f32 %v5567, -0.0073733293
    %v5569 = vmul.f32 %v5568, %v5550
    %v5570 = vadd.f32 %v5569, -0.014264739
    %v5571 = vmul.f32 %v5549, %v5562
    %v5572 = vrcp.pop %v5570
    %v5573 = vmul.f32 %v5571, %v5572
    %v5574 = vadd.f32 %v5573, 1.0
    %v5575 = vmul.f32 %v5546, %v5574
    %v5576 = vpack.c.bf16 %v5575, %v5575
    %v5593 = vunpack.c.l.b16 %v877
    %v5594 = vunpack.c.l.b16 %v878
    %v5595 = vunpack.c.l.b16 %v879
    %v5596 = vunpack.c.l.b16 %v880
    %v5597 = vunpack.c.l.b16 %v881
    %v5598 = vunpack.c.l.b16 %v882
    %v5599 = vunpack.c.l.b16 %v883
    %v5600 = vunpack.c.l.b16 %v884
    %v5601 = vunpack.c.l.b16 %v885
    %v5602 = vunpack.c.l.b16 %v886
    %v5603 = vunpack.c.l.b16 %v887
    %v5604 = vunpack.c.l.b16 %v888
    %v5605 = vunpack.c.l.b16 %v889
    %v5606 = vunpack.c.l.b16 %v890
    %v5607 = vunpack.c.l.b16 %v891
    %v5608 = vunpack.c.l.b16 %v892
    %v5609 = vpack.c.b16 %v5594, %v5593
    %v5610 = vpack.c.b16 %v5596, %v5595
    %v5611 = vpack.c.b16 %v5598, %v5597
    %v5612 = vpack.c.b16 %v5600, %v5599
    %v5613 = vpack.c.b16 %v5602, %v5601
    %v5614 = vpack.c.b16 %v5604, %v5603
    %v5615 = vpack.c.b16 %v5606, %v5605
    %v5616 = vpack.c.b16 %v5608, %v5607
    %5625 = vmatpush.bf16.msra.mxu0 %v5616
    %5626 = vmatpush.bf16.msra.mxu0 %v5615
    %5627 = vmatpush.bf16.msra.mxu0 %v5614
    %5628 = vmatpush.bf16.msra.mxu0 %v5613
    %5629 = vmatpush.bf16.msra.mxu0 %v5612
    %5630 = vmatpush.bf16.msra.mxu0 %v5611
    %5631 = vmatpush.bf16.msra.mxu0 %v5610
    %5632 = vmatpush.bf16.msra.mxu0 %v5609
    %5633 = vmatmul.bf16.gmra.mxu0 %v5576
    %v5634 = vpop.f32.mrf.mxu0
    %v5635 = vadd.f32 %v953, %v5634
    %v5636 = vpop.f32.mrf.mxu0
    %5637 = vdwg.mxu0
    %v5638 = vmul.f32 %v5635, 0.5
    %v5639 = vmul.f32 %v5635, 0.70710677
    %v5640 = vmax.f32 %v5639, -4.0
    %v5641 = vmin.f32 %v5640, 4.0
    %v5642 = vmul.f32 %v5641, %v5641
    %v5643 = vmul.f32 %v5642, -2.7261424e-10
    %v5644 = vadd.f32 %v5643, 2.7706815e-08
    %v5645 = vmul.f32 %v5644, %v5642
    %v5646 = vadd.f32 %v5645, -2.101024e-06
    %v5647 = vmul.f32 %v5646, %v5642
    %v5648 = vadd.f32 %v5647, -5.6925062e-05
    %v5649 = vmul.f32 %v5648, %v5642
    %v5650 = vadd.f32 %v5649, -0.00073499064
    %v5651 = vmul.f32 %v5650, %v5642
    %v5652 = vadd.f32 %v5651, -0.0029546
    %v5653 = vmul.f32 %v5652, %v5642
    %v5654 = vadd.f32 %v5653, -0.016096033
    %v5655 = vmul.f32 %v5642, -1.45660715e-05
    %v5656 = vadd.f32 %v5655, -0.00021337405
    %v5657 = vmul.f32 %v5656, %v5642
    %v5658 = vadd.f32 %v5657, -0.001682827
    %v5659 = vmul.f32 %v5658, %v5642
    %v5660 = vadd.f32 %v5659, -0.0073733293
    %v5661 = vmul.f32 %v5660, %v5642
    %v5662 = vadd.f32 %v5661, -0.014264739
    %v5663 = vmul.f32 %v5641, %v5654
    %v5664 = vrcp.pop %v5662
    %v5665 = vmul.f32 %v5663, %v5664
    %v5666 = vadd.f32 %v5665, 1.0
    %v5667 = vmul.f32 %v5638, %v5666
    %v5668 = vpack.c.bf16 %v5667, %v5667
    %v5685 = vunpack.c.l.b16 %v893
    %v5686 = vunpack.c.l.b16 %v894
    %v5687 = vunpack.c.l.b16 %v895
    %v5688 = vunpack.c.l.b16 %v896
    %v5689 = vunpack.c.l.b16 %v897
    %v5690 = vunpack.c.l.b16 %v898
    %v5691 = vunpack.c.l.b16 %v899
    %v5692 = vunpack.c.l.b16 %v900
    %v5693 = vunpack.c.l.b16 %v901
    %v5694 = vunpack.c.l.b16 %v902
    %v5695 = vunpack.c.l.b16 %v903
    %v5696 = vunpack.c.l.b16 %v904
    %v5697 = vunpack.c.l.b16 %v905
    %v5698 = vunpack.c.l.b16 %v906
    %v5699 = vunpack.c.l.b16 %v907
    %v5700 = vunpack.c.l.b16 %v908
    %v5701 = vpack.c.b16 %v5686, %v5685
    %v5702 = vpack.c.b16 %v5688, %v5687
    %v5703 = vpack.c.b16 %v5690, %v5689
    %v5704 = vpack.c.b16 %v5692, %v5691
    %v5705 = vpack.c.b16 %v5694, %v5693
    %v5706 = vpack.c.b16 %v5696, %v5695
    %v5707 = vpack.c.b16 %v5698, %v5697
    %v5708 = vpack.c.b16 %v5700, %v5699
    %5717 = vmatpush.bf16.msra.mxu0 %v5708
    %5718 = vmatpush.bf16.msra.mxu0 %v5707
    %5719 = vmatpush.bf16.msra.mxu0 %v5706
    %5720 = vmatpush.bf16.msra.mxu0 %v5705
    %5721 = vmatpush.bf16.msra.mxu0 %v5704
    %5722 = vmatpush.bf16.msra.mxu0 %v5703
    %5723 = vmatpush.bf16.msra.mxu0 %v5702
    %5724 = vmatpush.bf16.msra.mxu0 %v5701
    %5725 = vmatmul.bf16.gmra.mxu0 %v5668
    %v5726 = vpop.f32.mrf.mxu0
    %v5727 = vadd.f32 %v954, %v5726
    %v5728 = vpop.f32.mrf.mxu0
    %5729 = vdwg.mxu0
    %v5730 = vmul.f32 %v5727, 0.5
    %v5731 = vmul.f32 %v5727, 0.70710677
    %v5732 = vmax.f32 %v5731, -4.0
    %v5733 = vmin.f32 %v5732, 4.0
    %v5734 = vmul.f32 %v5733, %v5733
    %v5735 = vmul.f32 %v5734, -2.7261424e-10
    %v5736 = vadd.f32 %v5735, 2.7706815e-08
    %v5737 = vmul.f32 %v5736, %v5734
    %v5738 = vadd.f32 %v5737, -2.101024e-06
    %v5739 = vmul.f32 %v5738, %v5734
    %v5740 = vadd.f32 %v5739, -5.6925062e-05
    %v5741 = vmul.f32 %v5740, %v5734
    %v5742 = vadd.f32 %v5741, -0.00073499064
    %v5743 = vmul.f32 %v5742, %v5734
    %v5744 = vadd.f32 %v5743, -0.0029546
    %v5745 = vmul.f32 %v5744, %v5734
    %v5746 = vadd.f32 %v5745, -0.016096033
    %v5747 = vmul.f32 %v5734, -1.45660715e-05
    %v5748 = vadd.f32 %v5747, -0.00021337405
    %v5749 = vmul.f32 %v5748, %v5734
    %v5750 = vadd.f32 %v5749, -0.001682827
    %v5751 = vmul.f32 %v5750, %v5734
    %v5752 = vadd.f32 %v5751, -0.0073733293
    %v5753 = vmul.f32 %v5752, %v5734
    %v5754 = vadd.f32 %v5753, -0.014264739
    %v5755 = vmul.f32 %v5733, %v5746
    %v5756 = vrcp.pop %v5754
    %v5757 = vmul.f32 %v5755, %v5756
    %v5758 = vadd.f32 %v5757, 1.0
    %v5759 = vmul.f32 %v5730, %v5758
    %v5760 = vpack.c.bf16 %v5759, %v5759
    %v5769 = vunpack.c.l.b16 %v909
    %v5770 = vunpack.c.l.b16 %v910
    %v5771 = vunpack.c.l.b16 %v911
    %v5772 = vunpack.c.l.b16 %v912
    %v5773 = vunpack.c.l.b16 %v913
    %v5774 = vunpack.c.l.b16 %v914
    %v5775 = vunpack.c.l.b16 %v915
    %v5776 = vunpack.c.l.b16 %v916
    %v5777 = vpack.c.b16 %v5770, %v5769
    %v5778 = vpack.c.b16 %v5772, %v5771
    %v5779 = vpack.c.b16 %v5774, %v5773
    %v5780 = vpack.c.b16 %v5776, %v5775
    %vm5785 = vcmask 523264
    %v5787 = vsel %vm5785, %v5760, 0
    %5789 = vmatpush.bf16.msra.mxu0 0
    %5790 = vmatpush.bf16.msra.mxu0 0
    %5791 = vmatpush.bf16.msra.mxu0 0
    %5792 = vmatpush.bf16.msra.mxu0 0
    %5793 = vmatpush.bf16.msra.mxu0 %v5780
    %5794 = vmatpush.bf16.msra.mxu0 %v5779
    %5795 = vmatpush.bf16.msra.mxu0 %v5778
    %5796 = vmatpush.bf16.msra.mxu0 %v5777
    %5797 = vmatmul.bf16.gmra.mxu0 %v5787
    %v5798 = vpop.f32.mrf.mxu0
    %v5799 = vadd.f32 %v955, %v5798
    %v5800 = vpop.f32.mrf.mxu0
    %5801 = vdwg.mxu0
    %v5802 = vmax.f32 %v5799, 0.0
    %5803 = vadd.xlane.f32.xlu0 %v5802
    %v5804 = vpop.xlane.xlu0 %5803
    %v5805 = vrcp.pop %v5804
    %v5806 = vmul.f32 %v5802, %v5805
    %5807 = vst [vmem:[#allocation26] sm:$0xff] %v5806
    // Predicated region
    $region138: #{tpu_custom_call.1} parent=1 // pred_check
      _
    $region139: #{tpu_custom_call.1} parent=1 // pred_check_branch
      %5809 = sbr.rel (0) target = $region141
    $region140: #{tpu_custom_call.1} parent=1 // pred_region
      %5811 = vsyncadd [#allocation4], 0
      %s5813 = sshll.u32 [#allocation26], 4
      %s5814 = int_to_ptr.vmem [resolvable:$true] %s5813
      %s5815 = sshll.u32 %s19, 4
      %s5816 = int_to_ptr.hbm [resolvable:$true] %s5815
      %5818 = dma.vmem_to_hbm [thread:$0]  %s5814, 128, %s5816, [#allocation4]
    $region141: #{tpu_custom_call.1} parent=1 // pred_fallthru
      _
    // Predicated region
    $region142: #{tpu_custom_call.1} parent=1 // pred_check
      _
    $region143: #{tpu_custom_call.1} parent=1 // pred_check_branch
      %5820 = sbr.rel (0) target = $region145
    $region144: #{tpu_custom_call.1} parent=1 // pred_region
      %5822 = dma.done [#allocation4], 128
    $region145: #{tpu_custom_call.1} parent=1 // pred_fallthru
      _
    %5823 = vsyncpa [#allocation3], 1
    %5824 = vsyncpa [#allocation6], 1
    %5825 = vsyncpa [#allocation9], 1
    %5826 = vsyncpa [#allocation12], 1
    %5827 = vsyncpa [#allocation15], 1
    %5828 = vsyncpa [#allocation18], 1
    %5829 = vsyncpa [#allocation21], 1
    %5830 = vsyncpa [#allocation24], 1
    %5831 = vsyncpa [#allocation4], 1

</llo_original>
